<compile_context>
chip_gen: v6e
topology: v6e:2x2x1
jax: 0.10.0
libtpu: 0.0.40
codegen_flags: <defaults>
</compile_context>

<pallas_src>
import functools
import numpy as np
import jax
import jax.numpy as jnp
from jax.experimental import pallas as pl
from jax.experimental.pallas import tpu as pltpu


_VMEM_LIMIT = 48 * 1024 * 1024  # safe on v5e/v6e (128 MiB) and v7x (64 MiB phys)


def _round_up(x, m):
    return (x + m - 1) // m * m


# ----------------------------------------------------------------------------
# Kernel A: tiled matmul + folded-bias + optional ReLU  (used for 1x1 convs)
# ----------------------------------------------------------------------------
def _mm_bias_act_kernel(x_ref, w_ref, b_ref, o_ref, acc_ref, *, relu):
    k = pl.program_id(2)

    @pl.when(k == 0)
    def _init():
        acc_ref[...] = jnp.zeros_like(acc_ref)

    acc_ref[...] += jnp.dot(x_ref[...], w_ref[...],
                            preferred_element_type=jnp.float32)

    @pl.when(k == pl.num_programs(2) - 1)
    def _finalize():
        y = acc_ref[...] + b_ref[...]
        if relu:
            y = jnp.maximum(y, 0.0)
        o_ref[...] = y.astype(o_ref.dtype)


def matmul_bias_act(x, w, bias, *, relu, out_dtype=jnp.bfloat16):
    """act((x @ w) + bias).  x:(M,K), w:(K,N) (BN scale pre-folded), bias:(N,)."""
    M, K = x.shape
    K2, N = w.shape
    assert K == K2

    # --- tile selection (conservative across v5e / v6e / v7x VMEM budgets) ---
    TM, TN, TK = 256, 256, 512
    Mp = _round_up(M, 8)
    if Mp > TM:
        tm = TM
        Mp = _round_up(M, tm)
    elif Mp >= 64:
        # guarantee >=2 M tiles so both v7x TensorCores get work
        tm = _round_up((Mp + 1) // 2, 8)
        Mp = 2 * tm
    else:
        tm = Mp
    Np = _round_up(N, 128)                # lane-dense output (e.g. num_classes)
    tn = TN if Np % TN == 0 else 128
    if K > TK:
        tk = TK
        Kp = _round_up(K, tk)
    else:
        tk, Kp = K, K

    xb = x.astype(jnp.bfloat16)
    wb = w.astype(jnp.bfloat16)
    if (Mp, Kp) != (M, K):
        xb = jnp.pad(xb, ((0, Mp - M), (0, Kp - K)))
    if (Kp, Np) != (K, N):
        wb = jnp.pad(wb, ((0, Kp - K), (0, Np - N)))
    b2 = bias.reshape(1, N).astype(jnp.float32)
    if Np != N:
        b2 = jnp.pad(b2, ((0, 0), (0, Np - N)))

    grid = (Mp // tm, Np // tn, Kp // tk)
    out_bytes = jnp.dtype(out_dtype).itemsize
    out = pl.pallas_call(
        functools.partial(_mm_bias_act_kernel, relu=relu),
        out_shape=jax.ShapeDtypeStruct((Mp, Np), out_dtype),
        grid_spec=pltpu.PrefetchScalarGridSpec(
            num_scalar_prefetch=0,
            grid=grid,
            in_specs=[
                pl.BlockSpec((tm, tk), lambda i, j, k: (i, k)),
                pl.BlockSpec((tk, tn), lambda i, j, k: (k, j)),
                pl.BlockSpec((1, tn), lambda i, j, k: (0, j)),
            ],
            out_specs=pl.BlockSpec((tm, tn), lambda i, j, k: (i, j)),
            scratch_shapes=[pltpu.VMEM((tm, tn), jnp.float32)]),
        compiler_params=pltpu.CompilerParams(
            dimension_semantics=("parallel", "parallel", "arbitrary"),
            vmem_limit_bytes=_VMEM_LIMIT),
        cost_estimate=pl.CostEstimate(
            flops=2 * Mp * Kp * Np,
            transcendentals=0,
            bytes_accessed=Mp * Kp * 2 + Kp * Np * 2 + Mp * Np * out_bytes),
    )(xb, wb, b2)
    if (Mp, Np) != (M, N):
        out = out[:M, :N]
    return out


def conv1x1_nhwc(x, w, bias, *, relu, out_dtype=jnp.bfloat16):
    """1x1 conv on NHWC via the tiled matmul (no im2col, no transposes)."""
    N, H, W, Cin = x.shape
    Cout = w.shape[1]
    y = matmul_bias_act(x.reshape(N * H * W, Cin), w, bias,
                        relu=relu, out_dtype=out_dtype)
    return y.reshape(N, H, W, Cout)


# ----------------------------------------------------------------------------
# Kernel B: fused (multi-input) dilated k x k conv, NHWC, no HBM im2col.
#   grid = (image, output row, kernel row dy); kw taps accumulated in-kernel.
# ----------------------------------------------------------------------------
def _conv_tap_kernel(*refs, n_in, kh, kw, dil, W, relu):
    x_refs = refs[:n_in]
    w_refs = refs[n_in:2 * n_in]
    b_ref = refs[2 * n_in]
    o_ref = refs[2 * n_in + 1]
    acc_ref = refs[2 * n_in + 2]
    dy = pl.program_id(2)

    @pl.when(dy == 0)
    def _init():
        acc_ref[...] = jnp.zeros_like(acc_ref)

    acc = acc_ref[...]
    for i in range(n_in):                       # fused "concat" over inputs
        for dx in range(kw):                    # static column taps
            patch = x_refs[i][0, 0, dx * dil:dx * dil + W, :]      # (W, Cin_i)
            acc = acc + jnp.dot(patch, w_refs[i][0, dx],
                                preferred_element_type=jnp.float32)
    acc_ref[...] = acc

    @pl.when(dy == kh - 1)
    def _finalize():
        y = acc_ref[...] + b_ref[...]
        if relu:
            y = jnp.maximum(y, 0.0)
        o_ref[0, 0] = y.astype(o_ref.dtype)


def conv2d_nhwc(xs, ws, bias, *, dilation=1, relu=True, out_dtype=jnp.bfloat16):
    """Fused k x k dilated conv over the (virtual) channel-concat of `xs`.

    xs  : list of NHWC activations (same N, H, W).
    ws  : list of (kh, kw, Cin_i, Cout) BN-folded weights (one per input).
    bias: (Cout,) folded bias.  SAME padding = dilation * (kh // 2).
    """
    n_in = len(xs)
    N, H, W, _ = xs[0].shape
    kh, kw, _, Cout = ws[0].shape
    pad = dilation * (kh // 2)

    xps = []
    for x in xs:
        x = x.astype(jnp.bfloat16)
        if pad > 0:
            x = jnp.pad(x, ((0, 0), (pad, pad), (pad, pad), (0, 0)))
        xps.append(x)
    ws = [w.astype(jnp.bfloat16) for w in ws]
    b2 = bias.reshape(1, Cout).astype(jnp.float32)

    in_specs = []
    for x in xps:
        Wp, Ci = x.shape[2], x.shape[3]
        in_specs.append(pl.BlockSpec(
            (1, 1, Wp, Ci),
            lambda n, r, dy, _d=dilation: (n, r + dy * _d, 0, 0)))
    for w in ws:
        _, kw_, ci, co = w.shape
        in_specs.append(pl.BlockSpec(
            (1, kw_, ci, co), lambda n, r, dy: (dy, 0, 0, 0)))
    in_specs.append(pl.BlockSpec((1, Cout), lambda n, r, dy: (0, 0)))

    kernel = functools.partial(_conv_tap_kernel, n_in=n_in, kh=kh, kw=kw,
                               dil=dilation, W=W, relu=relu)
    return pl.pallas_call(
        kernel,
        out_shape=jax.ShapeDtypeStruct((N, H, W, Cout), out_dtype),
        grid_spec=pltpu.PrefetchScalarGridSpec(
            num_scalar_prefetch=0,
            grid=(N, H, kh),
            in_specs=in_specs,
            out_specs=pl.BlockSpec((1, 1, W, Cout),
                                   lambda n, r, dy: (n, r, 0, 0)),
            scratch_shapes=[pltpu.VMEM((W, Cout), jnp.float32)]),
        compiler_params=pltpu.CompilerParams(
            dimension_semantics=("parallel", "parallel", "arbitrary"),
            vmem_limit_bytes=_VMEM_LIMIT),
    )(*xps, *ws, b2)


# ----------------------------------------------------------------------------
# Bilinear resize (align_corners=True), NHWC — left to XLA (tiny K starves MXU)
# ----------------------------------------------------------------------------
def bilinear_resize_nhwc(x, out_h, out_w):
    N, H, W, C = x.shape
    if (H, W) == (out_h, out_w):
        return x
    dtype = x.dtype

    def idx(in_size, out_size):
        if in_size == 1 or out_size == 1:
            z = np.zeros((out_size,), np.int32)
            return z, z, np.zeros((out_size,), np.float32)
        src = np.arange(out_size) * (in_size - 1) / (out_size - 1)
        lo = np.floor(src).astype(np.int32)
        hi = np.minimum(lo + 1, in_size - 1)
        return lo, hi, (src - lo).astype(np.float32)

    lo_h, hi_h, fh = idx(H, out_h)
    lo_w, hi_w, fw = idx(W, out_w)
    xf = x.astype(jnp.float32)
    xh = (xf[:, lo_h] * (1.0 - fh)[None, :, None, None]
          + xf[:, hi_h] * fh[None, :, None, None])
    xw = (xh[:, :, lo_w] * (1.0 - fw)[None, None, :, None]
          + xh[:, :, hi_w] * fw[None, None, :, None])
    return xw.astype(dtype)


# ----------------------------------------------------------------------------
# Parameter construction: random eval-mode weights with BN folded into weights
# ----------------------------------------------------------------------------
def init_deeplab_params(key, inplanes, low_inplanes, C, low_reduce, num_classes):
    ks = iter(jax.random.split(key, 64))

    def conv_w(cout, cin, k):
        fan = cin * k * k
        return (jax.random.normal(next(ks), (cout, cin, k, k), jnp.float32)
                * (2.0 / fan) ** 0.5)

    def bn(c, eps=1e-5):
        gamma = 1.0 + 0.1 * jax.random.normal(next(ks), (c,), jnp.float32)
        beta = 0.1 * jax.random.normal(next(ks), (c,), jnp.float32)
        mean = 0.1 * jax.random.normal(next(ks), (c,), jnp.float32)
        var = 1.0 + 0.1 * jnp.abs(jax.random.normal(next(ks), (c,), jnp.float32))
        scale = gamma / jnp.sqrt(var + eps)
        bias = beta - mean * scale
        return scale, bias

    def fold_kk(w_torch, scale, bias):
        # (Cout, Cin, kh, kw) -> (kh, kw, Cin, Cout) bf16 with BN scale folded.
        w = jnp.transpose(w_torch, (2, 3, 1, 0)) * scale
        return w.astype(jnp.bfloat16), bias.astype(jnp.float32)

    def fold_1x1(w_torch, scale, bias):
        # (Cout, Cin, 1, 1) -> (Cin, Cout) bf16 with BN scale folded.
        w = w_torch[:, :, 0, 0].T * scale
        return w.astype(jnp.bfloat16), bias.astype(jnp.float32)

    p = {}
    # ASPP: 1x1, three dilated 3x3 (6/12/18), global-avg-pool 1x1 (all conv+BN+ReLU)
    p['aspp1_w'], p['aspp1_b'] = fold_1x1(conv_w(C, inplanes, 1), *bn(C))
    p['aspp2_w'], p['aspp2_b'] = fold_kk(conv_w(C, inplanes, 3), *bn(C))
    p['aspp3_w'], p['aspp3_b'] = fold_kk(conv_w(C, inplanes, 3), *bn(C))
    p['aspp4_w'], p['aspp4_b'] = fold_kk(conv_w(C, inplanes, 3), *bn(C))
    p['gap_w'], p['gap_b'] = fold_1x1(conv_w(C, inplanes, 1), *bn(C))
    # ASPP projection (1x1 over concat of 5 branches) stored as 5 K-slices so
    # the concat never materializes in HBM.
    proj = conv_w(C, 5 * C, 1)
    ps, pb = bn(C)
    p['proj_w'] = [(proj[:, i * C:(i + 1) * C, 0, 0].T * ps)[None, None]
                   .astype(jnp.bfloat16) for i in range(5)]
    p['proj_b'] = pb.astype(jnp.float32)
    # Decoder
    p['low_w'], p['low_b'] = fold_1x1(conv_w(low_reduce, low_inplanes, 1),
                                      *bn(low_reduce))
    dec1 = conv_w(C, C + low_reduce, 3)
    ds, db = bn(C)
    dec1_f = jnp.transpose(dec1, (2, 3, 1, 0)) * ds        # (3,3,C+low_reduce,C)
    p['dec1_wx'] = dec1_f[:, :, :C, :].astype(jnp.bfloat16)
    p['dec1_wl'] = dec1_f[:, :, C:, :].astype(jnp.bfloat16)
    p['dec1_b'] = db.astype(jnp.float32)
    p['dec2_w'], p['dec2_b'] = fold_kk(conv_w(C, C, 3), *bn(C))
    # Classifier: plain 1x1 conv with bias (no BN)
    cls = conv_w(num_classes, C, 1)
    p['cls_w'] = cls[:, :, 0, 0].T.astype(jnp.bfloat16)
    p['cls_b'] = 0.1 * jax.random.normal(next(ks), (num_classes,), jnp.float32)
    return p


# ----------------------------------------------------------------------------
# Forward passes (internally NHWC)
# ----------------------------------------------------------------------------
def aspp_forward(p, x):
    """x: (N, H, W, Cin) NHWC."""
    N, H, W, _ = x.shape
    C = p['aspp1_w'].shape[1]
    x1 = conv1x1_nhwc(x, p['aspp1_w'], p['aspp1_b'], relu=True)
    x2 = conv2d_nhwc([x], [p['aspp2_w']], p['aspp2_b'], dilation=6, relu=True)
    x3 = conv2d_nhwc([x], [p['aspp3_w']], p['aspp3_b'], dilation=12, relu=True)
    x4 = conv2d_nhwc([x], [p['aspp4_w']], p['aspp4_b'], dilation=18, relu=True)
    # AdaptiveAvgPool2d(1) -> 1x1 conv+BN+ReLU -> bilinear(align_corners) == broadcast
    gp = jnp.mean(x.astype(jnp.float32), axis=(1, 2))              # (N, Cin)
    x5 = matmul_bias_act(gp, p['gap_w'], p['gap_b'], relu=True)     # (N, C)
    x5 = jnp.broadcast_to(x5[:, None, None, :], (N, H, W, C))
    # 1x1 projection + BN + ReLU over the (virtually concatenated) 5 branches.
    y = conv2d_nhwc([x1, x2, x3, x4, x5], p['proj_w'], p['proj_b'],
                    dilation=1, relu=True)
    # Dropout(0.5): eval-mode identity
    return y


def decoder_forward(p, x, low_level_feat, shape):
    """x: ASPP output NHWC; low_level_feat: NHWC; shape: (out_h, out_w)."""
    low = conv1x1_nhwc(low_level_feat, p['low_w'], p['low_b'], relu=True)
    Nb, lh, lw, _ = low.shape
    xu = bilinear_resize_nhwc(x, lh, lw)
    # 3x3 conv + BN + ReLU on concat([x_up, low]) — concat fused into the kernel.
    y = conv2d_nhwc([xu, low], [p['dec1_wx'], p['dec1_wl']], p['dec1_b'],
                    dilation=1, relu=True)
    # Dropout(0.5): identity
    y = conv2d_nhwc([y], [p['dec2_w']], p['dec2_b'], dilation=1, relu=True)
    # Dropout(0.1): identity
    C = y.shape[-1]
    nclass = p['cls_w'].shape[1]
    logits = matmul_bias_act(y.reshape(Nb * lh * lw, C), p['cls_w'], p['cls_b'],
                             relu=False, out_dtype=jnp.float32)
    logits = logits.reshape(Nb, lh, lw, nclass)
    return bilinear_resize_nhwc(logits, shape[0], shape[1])


@functools.partial(jax.jit, static_argnames=('shape',))
def deeplab_forward(p, x_nchw, low_nchw, *, shape):
    """Equivalent of DeepLab.forward(x, low_level_feat, shape) (with decoder)."""
    x = jnp.transpose(x_nchw, (0, 2, 3, 1))        # single NCHW -> NHWC transpose
    low = jnp.transpose(low_nchw, (0, 2, 3, 1))
    y = aspp_forward(p, x)
    y = decoder_forward(p, y, low, shape)
    return jnp.transpose(y, (0, 3, 1, 2))          # back to NCHW once


# ----------------------------------------------------------------------------
if __name__ == "__main__":
    key = jax.random.PRNGKey(0)
    k_param, k_x, k_low = jax.random.split(key, 3)

    N = 2
    inplanes = 16        # backbone output channels feeding ASPP
    low_inplanes = 8     # low-level feature channels feeding the decoder
    aspp_channels = 32   # ASPP output channels
    low_reduce = 16      # decoder low-level reduction channels
    num_classes = 6
    shape = (32, 32)

    x = jax.random.normal(k_x, (N, inplanes, 8, 8), jnp.float32)
    low_level_feat = jax.random.normal(k_low, (N, low_inplanes, 16, 16), jnp.float32)

    params = init_deeplab_params(k_param, inplanes, low_inplanes,
                                 aspp_channels, low_reduce, num_classes)

    out = deeplab_forward(params, x, low_level_feat, shape=shape)
    out = jax.block_until_ready(out)

    assert out.shape == (N, num_classes, shape[0], shape[1]), out.shape
    assert out.dtype == jnp.float32
    assert bool(jnp.all(jnp.isfinite(out)))
    print("KERNEL_OK")
</pallas_src>

<mosaic_0001>
module attributes {stable_mosaic.version = 11 : i64} {
  func.func @_conv_tap_kernel(%arg0: i32, %arg1: i32, %arg2: i32, %arg3: memref<1x1x44x16xbf16, #tpu.memory_space<vmem>>, %arg4: memref<1x3x16x32xbf16, #tpu.memory_space<vmem>>, %arg5: memref<1x32xf32, #tpu.memory_space<vmem>>, %arg6: memref<1x1x8x32xbf16, #tpu.memory_space<vmem>>, %arg7: memref<8x32xf32, #tpu.memory_space<vmem>>) attributes {dimension_semantics = [#tpu.dimension_semantics<parallel>, #tpu.dimension_semantics<parallel>, #tpu.dimension_semantics<arbitrary>], iteration_bounds = array<i64: 2, 8, 3>, scalar_prefetch = 0 : i64, scratch_operands = 1 : i64, tpu.core_type = #tpu.core_type<tc>, window_params = [{transform_indices = @transform_0, window_bounds = array<i64: 1, 1, 44, 16>}, {transform_indices = @transform_1, window_bounds = array<i64: 1, 3, 16, 32>}, {pipeline_mode = #tpu.pipeline_mode<synchronous>, transform_indices = @transform_2, window_bounds = array<i64: 1, 32>}, {transform_indices = @transform_3, window_bounds = array<i64: 1, 1, 8, 32>}]} {
    %c0_i32 = arith.constant 0 : i32
    %0 = arith.cmpi eq, %arg2, %c0_i32 : i32
    %1 = arith.extui %0 : i1 to i32
    %c0_i32_0 = arith.constant 0 : i32
    %2 = arith.cmpi ne, %1, %c0_i32_0 : i32
    scf.if %2 {
      %cst_27 = arith.constant 0.000000e+00 : f32
      %26 = vector.broadcast %cst_27 : f32 to vector<8x32xf32>
      %c0_28 = arith.constant 0 : index
      %c0_29 = arith.constant 0 : index
      %27 = vector.load %arg7[%c0_28, %c0_29] : memref<8x32xf32, #tpu.memory_space<vmem>>, vector<8x32xf32>
      tpu.vector_store %arg7[%c0_28, %c0_29], %26 {strides = array<i32>} : memref<8x32xf32, #tpu.memory_space<vmem>>, vector<8x32xf32>,
    } else {
    }
    %c0 = arith.constant 0 : index
    %c0_1 = arith.constant 0 : index
    %3 = vector.load %arg7[%c0, %c0_1] : memref<8x32xf32, #tpu.memory_space<vmem>>, vector<8x32xf32>
    %c0_2 = arith.constant 0 : index
    %c0_3 = arith.constant 0 : index
    %c0_4 = arith.constant 0 : index
    %c0_5 = arith.constant 0 : index
    %4 = vector.load %arg3[%c0_2, %c0_3, %c0_4, %c0_5] : memref<1x1x44x16xbf16, #tpu.memory_space<vmem>>, vector<1x1x8x16xbf16>
    %5 = vector.shape_cast %4 : vector<1x1x8x16xbf16> to vector<8x16xbf16>
    %c0_6 = arith.constant 0 : index
    %c0_7 = arith.constant 0 : index
    %c0_8 = arith.constant 0 : index
    %c0_9 = arith.constant 0 : index
    %6 = vector.load %arg4[%c0_6, %c0_7, %c0_8, %c0_9] : memref<1x3x16x32xbf16, #tpu.memory_space<vmem>>, vector<1x1x16x32xbf16>
    %7 = vector.shape_cast %6 : vector<1x1x16x32xbf16> to vector<16x32xbf16>
    %cst = arith.constant dense<0.000000e+00> : vector<8x32xf32>
    %8 = tpu.matmul %5, %7, %cst {dimension_numbers = #tpu.dot_dimension_numbers<[1], [0], [0], [1], [0, 0, 1, 1], [], []>} : vector<8x16xbf16>, vector<16x32xbf16>, vector<8x32xf32> -> vector<8x32xf32>
    %9 = arith.addf %3, %8 : vector<8x32xf32>
    %c0_10 = arith.constant 0 : index
    %c0_11 = arith.constant 0 : index
    %c18 = arith.constant 18 : index
    %c0_12 = arith.constant 0 : index
    %10 = vector.load %arg3[%c0_10, %c0_11, %c18, %c0_12] : memref<1x1x44x16xbf16, #tpu.memory_space<vmem>>, vector<1x1x8x16xbf16>
    %11 = vector.shape_cast %10 : vector<1x1x8x16xbf16> to vector<8x16xbf16>
    %c0_13 = arith.constant 0 : index
    %c1 = arith.constant 1 : index
    %c0_14 = arith.constant 0 : index
    %c0_15 = arith.constant 0 : index
    %12 = vector.load %arg4[%c0_13, %c1, %c0_14, %c0_15] : memref<1x3x16x32xbf16, #tpu.memory_space<vmem>>, vector<1x1x16x32xbf16>
    %13 = vector.shape_cast %12 : vector<1x1x16x32xbf16> to vector<16x32xbf16>
    %cst_16 = arith.constant dense<0.000000e+00> : vector<8x32xf32>
    %14 = tpu.matmul %11, %13, %cst_16 {dimension_numbers = #tpu.dot_dimension_numbers<[1], [0], [0], [1], [0, 0, 1, 1], [], []>} : vector<8x16xbf16>, vector<16x32xbf16>, vector<8x32xf32> -> vector<8x32xf32>
    %15 = arith.addf %9, %14 : vector<8x32xf32>
    %c0_17 = arith.constant 0 : index
    %c0_18 = arith.constant 0 : index
    %c36 = arith.constant 36 : index
    %c0_19 = arith.constant 0 : index
    %16 = vector.load %arg3[%c0_17, %c0_18, %c36, %c0_19] : memref<1x1x44x16xbf16, #tpu.memory_space<vmem>>, vector<1x1x8x16xbf16>
    %17 = vector.shape_cast %16 : vector<1x1x8x16xbf16> to vector<8x16xbf16>
    %c0_20 = arith.constant 0 : index
    %c2 = arith.constant 2 : index
    %c0_21 = arith.constant 0 : index
    %c0_22 = arith.constant 0 : index
    %18 = vector.load %arg4[%c0_20, %c2, %c0_21, %c0_22] : memref<1x3x16x32xbf16, #tpu.memory_space<vmem>>, vector<1x1x16x32xbf16>
    %19 = vector.shape_cast %18 : vector<1x1x16x32xbf16> to vector<16x32xbf16>
    %cst_23 = arith.constant dense<0.000000e+00> : vector<8x32xf32>
    %20 = tpu.matmul %17, %19, %cst_23 {dimension_numbers = #tpu.dot_dimension_numbers<[1], [0], [0], [1], [0, 0, 1, 1], [], []>} : vector<8x16xbf16>, vector<16x32xbf16>, vector<8x32xf32> -> vector<8x32xf32>
    %21 = arith.addf %15, %20 : vector<8x32xf32>
    %c0_24 = arith.constant 0 : index
    %c0_25 = arith.constant 0 : index
    %22 = vector.load %arg7[%c0_24, %c0_25] : memref<8x32xf32, #tpu.memory_space<vmem>>, vector<8x32xf32>
    tpu.vector_store %arg7[%c0_24, %c0_25], %21 {strides = array<i32>} : memref<8x32xf32, #tpu.memory_space<vmem>>, vector<8x32xf32>,
    %c2_i32 = arith.constant 2 : i32
    %23 = arith.cmpi eq, %arg2, %c2_i32 : i32
    %24 = arith.extui %23 : i1 to i32
    %c0_i32_26 = arith.constant 0 : i32
    %25 = arith.cmpi ne, %24, %c0_i32_26 : i32
    scf.if %25 {
      %c0_27 = arith.constant 0 : index
      %c0_28 = arith.constant 0 : index
      %26 = vector.load %arg7[%c0_27, %c0_28] : memref<8x32xf32, #tpu.memory_space<vmem>>, vector<8x32xf32>
      %c0_29 = arith.constant 0 : index
      %c0_30 = arith.constant 0 : index
      %27 = vector.load %arg5[%c0_29, %c0_30] : memref<1x32xf32, #tpu.memory_space<vmem>>, vector<1x32xf32>
      %28 = vector.broadcast %27 : vector<1x32xf32> to vector<8x32xf32>
      %29 = arith.addf %26, %28 : vector<8x32xf32>
      %cst_31 = arith.constant 0.000000e+00 : f32
      %30 = vector.broadcast %cst_31 : f32 to vector<8x32xf32>
      %31 = arith.maximumf %29, %30 : vector<8x32xf32>
      %32 = arith.truncf %31 : vector<8x32xf32> to vector<8x32xbf16>
      %c0_32 = arith.constant 0 : index
      %c0_33 = arith.constant 0 : index
      %c0_34 = arith.constant 0 : index
      %c0_35 = arith.constant 0 : index
      %33 = vector.load %arg6[%c0_32, %c0_33, %c0_34, %c0_35] : memref<1x1x8x32xbf16, #tpu.memory_space<vmem>>, vector<1x1x8x32xbf16>
      %34 = vector.shape_cast %33 : vector<1x1x8x32xbf16> to vector<8x32xbf16>
      %35 = vector.shape_cast %32 : vector<8x32xbf16> to vector<1x1x8x32xbf16>
      tpu.vector_store %arg6[%c0_32, %c0_33, %c0_34, %c0_35], %35 {strides = array<i32>} : memref<1x1x8x32xbf16, #tpu.memory_space<vmem>>, vector<1x1x8x32xbf16>,
    } else {
    }
    return
  }
  func.func @transform_0(%arg0: i32, %arg1: i32, %arg2: i32) -> (i32, i32, i32, i32) {
    %c18_i32 = arith.constant 18 : i32
    %0 = arith.muli %arg2, %c18_i32 : i32
    %1 = arith.addi %arg1, %0 : i32
    %c0_i32 = arith.constant 0 : i32
    %c0_i32_0 = arith.constant 0 : i32
    %c0_i32_1 = arith.constant 0 : i32
    return %arg0, %1, %c0_i32, %c0_i32_0 : i32, i32, i32, i32
  }
  func.func @transform_1(%arg0: i32, %arg1: i32, %arg2: i32) -> (i32, i32, i32, i32) {
    %c0_i32 = arith.constant 0 : i32
    %c0_i32_0 = arith.constant 0 : i32
    %c0_i32_1 = arith.constant 0 : i32
    %c0_i32_2 = arith.constant 0 : i32
    return %arg2, %c0_i32, %c0_i32_0, %c0_i32_1 : i32, i32, i32, i32
  }
  func.func @transform_2(%arg0: i32, %arg1: i32, %arg2: i32) -> (i32, i32) {
    %c0_i32 = arith.constant 0 : i32
    %c0_i32_0 = arith.constant 0 : i32
    %c0_i32_1 = arith.constant 0 : i32
    return %c0_i32, %c0_i32_0 : i32, i32
  }
  func.func @transform_3(%arg0: i32, %arg1: i32, %arg2: i32) -> (i32, i32, i32, i32) {
    %c0_i32 = arith.constant 0 : i32
    %c0_i32_0 = arith.constant 0 : i32
    %c0_i32_1 = arith.constant 0 : i32
    return %arg0, %arg1, %c0_i32, %c0_i32_0 : i32, i32, i32, i32
  }
}

module attributes {stable_mosaic.version = 11 : i64} {
  func.func @_conv_tap_kernel(%arg0: i32, %arg1: i32, %arg2: i32, %arg3: memref<1x1x32x16xbf16, #tpu.memory_space<vmem>>, %arg4: memref<1x3x16x32xbf16, #tpu.memory_space<vmem>>, %arg5: memref<1x32xf32, #tpu.memory_space<vmem>>, %arg6: memref<1x1x8x32xbf16, #tpu.memory_space<vmem>>, %arg7: memref<8x32xf32, #tpu.memory_space<vmem>>) attributes {dimension_semantics = [#tpu.dimension_semantics<parallel>, #tpu.dimension_semantics<parallel>, #tpu.dimension_semantics<arbitrary>], iteration_bounds = array<i64: 2, 8, 3>, scalar_prefetch = 0 : i64, scratch_operands = 1 : i64, tpu.core_type = #tpu.core_type<tc>, window_params = [{transform_indices = @transform_0, window_bounds = array<i64: 1, 1, 32, 16>}, {transform_indices = @transform_1, window_bounds = array<i64: 1, 3, 16, 32>}, {pipeline_mode = #tpu.pipeline_mode<synchronous>, transform_indices = @transform_2, window_bounds = array<i64: 1, 32>}, {transform_indices = @transform_3, window_bounds = array<i64: 1, 1, 8, 32>}]} {
    %c0_i32 = arith.constant 0 : i32
    %0 = arith.cmpi eq, %arg2, %c0_i32 : i32
    %1 = arith.extui %0 : i1 to i32
    %c0_i32_0 = arith.constant 0 : i32
    %2 = arith.cmpi ne, %1, %c0_i32_0 : i32
    scf.if %2 {
      %cst_27 = arith.constant 0.000000e+00 : f32
      %26 = vector.broadcast %cst_27 : f32 to vector<8x32xf32>
      %c0_28 = arith.constant 0 : index
      %c0_29 = arith.constant 0 : index
      %27 = vector.load %arg7[%c0_28, %c0_29] : memref<8x32xf32, #tpu.memory_space<vmem>>, vector<8x32xf32>
      tpu.vector_store %arg7[%c0_28, %c0_29], %26 {strides = array<i32>} : memref<8x32xf32, #tpu.memory_space<vmem>>, vector<8x32xf32>,
    } else {
    }
    %c0 = arith.constant 0 : index
    %c0_1 = arith.constant 0 : index
    %3 = vector.load %arg7[%c0, %c0_1] : memref<8x32xf32, #tpu.memory_space<vmem>>, vector<8x32xf32>
    %c0_2 = arith.constant 0 : index
    %c0_3 = arith.constant 0 : index
    %c0_4 = arith.constant 0 : index
    %c0_5 = arith.constant 0 : index
    %4 = vector.load %arg3[%c0_2, %c0_3, %c0_4, %c0_5] : memref<1x1x32x16xbf16, #tpu.memory_space<vmem>>, vector<1x1x8x16xbf16>
    %5 = vector.shape_cast %4 : vector<1x1x8x16xbf16> to vector<8x16xbf16>
    %c0_6 = arith.constant 0 : index
    %c0_7 = arith.constant 0 : index
    %c0_8 = arith.constant 0 : index
    %c0_9 = arith.constant 0 : index
    %6 = vector.load %arg4[%c0_6, %c0_7, %c0_8, %c0_9] : memref<1x3x16x32xbf16, #tpu.memory_space<vmem>>, vector<1x1x16x32xbf16>
    %7 = vector.shape_cast %6 : vector<1x1x16x32xbf16> to vector<16x32xbf16>
    %cst = arith.constant dense<0.000000e+00> : vector<8x32xf32>
    %8 = tpu.matmul %5, %7, %cst {dimension_numbers = #tpu.dot_dimension_numbers<[1], [0], [0], [1], [0, 0, 1, 1], [], []>} : vector<8x16xbf16>, vector<16x32xbf16>, vector<8x32xf32> -> vector<8x32xf32>
    %9 = arith.addf %3, %8 : vector<8x32xf32>
    %c0_10 = arith.constant 0 : index
    %c0_11 = arith.constant 0 : index
    %c12 = arith.constant 12 : index
    %c0_12 = arith.constant 0 : index
    %10 = vector.load %arg3[%c0_10, %c0_11, %c12, %c0_12] : memref<1x1x32x16xbf16, #tpu.memory_space<vmem>>, vector<1x1x8x16xbf16>
    %11 = vector.shape_cast %10 : vector<1x1x8x16xbf16> to vector<8x16xbf16>
    %c0_13 = arith.constant 0 : index
    %c1 = arith.constant 1 : index
    %c0_14 = arith.constant 0 : index
    %c0_15 = arith.constant 0 : index
    %12 = vector.load %arg4[%c0_13, %c1, %c0_14, %c0_15] : memref<1x3x16x32xbf16, #tpu.memory_space<vmem>>, vector<1x1x16x32xbf16>
    %13 = vector.shape_cast %12 : vector<1x1x16x32xbf16> to vector<16x32xbf16>
    %cst_16 = arith.constant dense<0.000000e+00> : vector<8x32xf32>
    %14 = tpu.matmul %11, %13, %cst_16 {dimension_numbers = #tpu.dot_dimension_numbers<[1], [0], [0], [1], [0, 0, 1, 1], [], []>} : vector<8x16xbf16>, vector<16x32xbf16>, vector<8x32xf32> -> vector<8x32xf32>
    %15 = arith.addf %9, %14 : vector<8x32xf32>
    %c0_17 = arith.constant 0 : index
    %c0_18 = arith.constant 0 : index
    %c24 = arith.constant 24 : index
    %c0_19 = arith.constant 0 : index
    %16 = vector.load %arg3[%c0_17, %c0_18, %c24, %c0_19] : memref<1x1x32x16xbf16, #tpu.memory_space<vmem>>, vector<1x1x8x16xbf16>
    %17 = vector.shape_cast %16 : vector<1x1x8x16xbf16> to vector<8x16xbf16>
    %c0_20 = arith.constant 0 : index
    %c2 = arith.constant 2 : index
    %c0_21 = arith.constant 0 : index
    %c0_22 = arith.constant 0 : index
    %18 = vector.load %arg4[%c0_20, %c2, %c0_21, %c0_22] : memref<1x3x16x32xbf16, #tpu.memory_space<vmem>>, vector<1x1x16x32xbf16>
    %19 = vector.shape_cast %18 : vector<1x1x16x32xbf16> to vector<16x32xbf16>
    %cst_23 = arith.constant dense<0.000000e+00> : vector<8x32xf32>
    %20 = tpu.matmul %17, %19, %cst_23 {dimension_numbers = #tpu.dot_dimension_numbers<[1], [0], [0], [1], [0, 0, 1, 1], [], []>} : vector<8x16xbf16>, vector<16x32xbf16>, vector<8x32xf32> -> vector<8x32xf32>
    %21 = arith.addf %15, %20 : vector<8x32xf32>
    %c0_24 = arith.constant 0 : index
    %c0_25 = arith.constant 0 : index
    %22 = vector.load %arg7[%c0_24, %c0_25] : memref<8x32xf32, #tpu.memory_space<vmem>>, vector<8x32xf32>
    tpu.vector_store %arg7[%c0_24, %c0_25], %21 {strides = array<i32>} : memref<8x32xf32, #tpu.memory_space<vmem>>, vector<8x32xf32>,
    %c2_i32 = arith.constant 2 : i32
    %23 = arith.cmpi eq, %arg2, %c2_i32 : i32
    %24 = arith.extui %23 : i1 to i32
    %c0_i32_26 = arith.constant 0 : i32
    %25 = arith.cmpi ne, %24, %c0_i32_26 : i32
    scf.if %25 {
      %c0_27 = arith.constant 0 : index
      %c0_28 = arith.constant 0 : index
      %26 = vector.load %arg7[%c0_27, %c0_28] : memref<8x32xf32, #tpu.memory_space<vmem>>, vector<8x32xf32>
      %c0_29 = arith.constant 0 : index
      %c0_30 = arith.constant 0 : index
      %27 = vector.load %arg5[%c0_29, %c0_30] : memref<1x32xf32, #tpu.memory_space<vmem>>, vector<1x32xf32>
      %28 = vector.broadcast %27 : vector<1x32xf32> to vector<8x32xf32>
      %29 = arith.addf %26, %28 : vector<8x32xf32>
      %cst_31 = arith.constant 0.000000e+00 : f32
      %30 = vector.broadcast %cst_31 : f32 to vector<8x32xf32>
      %31 = arith.maximumf %29, %30 : vector<8x32xf32>
      %32 = arith.truncf %31 : vector<8x32xf32> to vector<8x32xbf16>
      %c0_32 = arith.constant 0 : index
      %c0_33 = arith.constant 0 : index
      %c0_34 = arith.constant 0 : index
      %c0_35 = arith.constant 0 : index
      %33 = vector.load %arg6[%c0_32, %c0_33, %c0_34, %c0_35] : memref<1x1x8x32xbf16, #tpu.memory_space<vmem>>, vector<1x1x8x32xbf16>
      %34 = vector.shape_cast %33 : vector<1x1x8x32xbf16> to vector<8x32xbf16>
      %35 = vector.shape_cast %32 : vector<8x32xbf16> to vector<1x1x8x32xbf16>
      tpu.vector_store %arg6[%c0_32, %c0_33, %c0_34, %c0_35], %35 {strides = array<i32>} : memref<1x1x8x32xbf16, #tpu.memory_space<vmem>>, vector<1x1x8x32xbf16>,
    } else {
    }
    return
  }
  func.func @transform_0(%arg0: i32, %arg1: i32, %arg2: i32) -> (i32, i32, i32, i32) {
    %c12_i32 = arith.constant 12 : i32
    %0 = arith.muli %arg2, %c12_i32 : i32
    %1 = arith.addi %arg1, %0 : i32
    %c0_i32 = arith.constant 0 : i32
    %c0_i32_0 = arith.constant 0 : i32
    %c0_i32_1 = arith.constant 0 : i32
    return %arg0, %1, %c0_i32, %c0_i32_0 : i32, i32, i32, i32
  }
  func.func @transform_1(%arg0: i32, %arg1: i32, %arg2: i32) -> (i32, i32, i32, i32) {
    %c0_i32 = arith.constant 0 : i32
    %c0_i32_0 = arith.constant 0 : i32
    %c0_i32_1 = arith.constant 0 : i32
    %c0_i32_2 = arith.constant 0 : i32
    return %arg2, %c0_i32, %c0_i32_0, %c0_i32_1 : i32, i32, i32, i32
  }
  func.func @transform_2(%arg0: i32, %arg1: i32, %arg2: i32) -> (i32, i32) {
    %c0_i32 = arith.constant 0 : i32
    %c0_i32_0 = arith.constant 0 : i32
    %c0_i32_1 = arith.constant 0 : i32
    return %c0_i32, %c0_i32_0 : i32, i32
  }
  func.func @transform_3(%arg0: i32, %arg1: i32, %arg2: i32) -> (i32, i32, i32, i32) {
    %c0_i32 = arith.constant 0 : i32
    %c0_i32_0 = arith.constant 0 : i32
    %c0_i32_1 = arith.constant 0 : i32
    return %arg0, %arg1, %c0_i32, %c0_i32_0 : i32, i32, i32, i32
  }
}

module attributes {stable_mosaic.version = 11 : i64} {
  func.func @_conv_tap_kernel(%arg0: i32, %arg1: i32, %arg2: i32, %arg3: memref<1x1x20x16xbf16, #tpu.memory_space<vmem>>, %arg4: memref<1x3x16x32xbf16, #tpu.memory_space<vmem>>, %arg5: memref<1x32xf32, #tpu.memory_space<vmem>>, %arg6: memref<1x1x8x32xbf16, #tpu.memory_space<vmem>>, %arg7: memref<8x32xf32, #tpu.memory_space<vmem>>) attributes {dimension_semantics = [#tpu.dimension_semantics<parallel>, #tpu.dimension_semantics<parallel>, #tpu.dimension_semantics<arbitrary>], iteration_bounds = array<i64: 2, 8, 3>, scalar_prefetch = 0 : i64, scratch_operands = 1 : i64, tpu.core_type = #tpu.core_type<tc>, window_params = [{transform_indices = @transform_0, window_bounds = array<i64: 1, 1, 20, 16>}, {transform_indices = @transform_1, window_bounds = array<i64: 1, 3, 16, 32>}, {pipeline_mode = #tpu.pipeline_mode<synchronous>, transform_indices = @transform_2, window_bounds = array<i64: 1, 32>}, {transform_indices = @transform_3, window_bounds = array<i64: 1, 1, 8, 32>}]} {
    %c0_i32 = arith.constant 0 : i32
    %0 = arith.cmpi eq, %arg2, %c0_i32 : i32
    %1 = arith.extui %0 : i1 to i32
    %c0_i32_0 = arith.constant 0 : i32
    %2 = arith.cmpi ne, %1, %c0_i32_0 : i32
    scf.if %2 {
      %cst_27 = arith.constant 0.000000e+00 : f32
      %26 = vector.broadcast %cst_27 : f32 to vector<8x32xf32>
      %c0_28 = arith.constant 0 : index
      %c0_29 = arith.constant 0 : index
      %27 = vector.load %arg7[%c0_28, %c0_29] : memref<8x32xf32, #tpu.memory_space<vmem>>, vector<8x32xf32>
      tpu.vector_store %arg7[%c0_28, %c0_29], %26 {strides = array<i32>} : memref<8x32xf32, #tpu.memory_space<vmem>>, vector<8x32xf32>,
    } else {
    }
    %c0 = arith.constant 0 : index
    %c0_1 = arith.constant 0 : index
    %3 = vector.load %arg7[%c0, %c0_1] : memref<8x32xf32, #tpu.memory_space<vmem>>, vector<8x32xf32>
    %c0_2 = arith.constant 0 : index
    %c0_3 = arith.constant 0 : index
    %c0_4 = arith.constant 0 : index
    %c0_5 = arith.constant 0 : index
    %4 = vector.load %arg3[%c0_2, %c0_3, %c0_4, %c0_5] : memref<1x1x20x16xbf16, #tpu.memory_space<vmem>>, vector<1x1x8x16xbf16>
    %5 = vector.shape_cast %4 : vector<1x1x8x16xbf16> to vector<8x16xbf16>
    %c0_6 = arith.constant 0 : index
    %c0_7 = arith.constant 0 : index
    %c0_8 = arith.constant 0 : index
    %c0_9 = arith.constant 0 : index
    %6 = vector.load %arg4[%c0_6, %c0_7, %c0_8, %c0_9] : memref<1x3x16x32xbf16, #tpu.memory_space<vmem>>, vector<1x1x16x32xbf16>
    %7 = vector.shape_cast %6 : vector<1x1x16x32xbf16> to vector<16x32xbf16>
    %cst = arith.constant dense<0.000000e+00> : vector<8x32xf32>
    %8 = tpu.matmul %5, %7, %cst {dimension_numbers = #tpu.dot_dimension_numbers<[1], [0], [0], [1], [0, 0, 1, 1], [], []>} : vector<8x16xbf16>, vector<16x32xbf16>, vector<8x32xf32> -> vector<8x32xf32>
    %9 = arith.addf %3, %8 : vector<8x32xf32>
    %c0_10 = arith.constant 0 : index
    %c0_11 = arith.constant 0 : index
    %c6 = arith.constant 6 : index
    %c0_12 = arith.constant 0 : index
    %10 = vector.load %arg3[%c0_10, %c0_11, %c6, %c0_12] : memref<1x1x20x16xbf16, #tpu.memory_space<vmem>>, vector<1x1x8x16xbf16>
    %11 = vector.shape_cast %10 : vector<1x1x8x16xbf16> to vector<8x16xbf16>
    %c0_13 = arith.constant 0 : index
    %c1 = arith.constant 1 : index
    %c0_14 = arith.constant 0 : index
    %c0_15 = arith.constant 0 : index
    %12 = vector.load %arg4[%c0_13, %c1, %c0_14, %c0_15] : memref<1x3x16x32xbf16, #tpu.memory_space<vmem>>, vector<1x1x16x32xbf16>
    %13 = vector.shape_cast %12 : vector<1x1x16x32xbf16> to vector<16x32xbf16>
    %cst_16 = arith.constant dense<0.000000e+00> : vector<8x32xf32>
    %14 = tpu.matmul %11, %13, %cst_16 {dimension_numbers = #tpu.dot_dimension_numbers<[1], [0], [0], [1], [0, 0, 1, 1], [], []>} : vector<8x16xbf16>, vector<16x32xbf16>, vector<8x32xf32> -> vector<8x32xf32>
    %15 = arith.addf %9, %14 : vector<8x32xf32>
    %c0_17 = arith.constant 0 : index
    %c0_18 = arith.constant 0 : index
    %c12 = arith.constant 12 : index
    %c0_19 = arith.constant 0 : index
    %16 = vector.load %arg3[%c0_17, %c0_18, %c12, %c0_19] : memref<1x1x20x16xbf16, #tpu.memory_space<vmem>>, vector<1x1x8x16xbf16>
    %17 = vector.shape_cast %16 : vector<1x1x8x16xbf16> to vector<8x16xbf16>
    %c0_20 = arith.constant 0 : index
    %c2 = arith.constant 2 : index
    %c0_21 = arith.constant 0 : index
    %c0_22 = arith.constant 0 : index
    %18 = vector.load %arg4[%c0_20, %c2, %c0_21, %c0_22] : memref<1x3x16x32xbf16, #tpu.memory_space<vmem>>, vector<1x1x16x32xbf16>
    %19 = vector.shape_cast %18 : vector<1x1x16x32xbf16> to vector<16x32xbf16>
    %cst_23 = arith.constant dense<0.000000e+00> : vector<8x32xf32>
    %20 = tpu.matmul %17, %19, %cst_23 {dimension_numbers = #tpu.dot_dimension_numbers<[1], [0], [0], [1], [0, 0, 1, 1], [], []>} : vector<8x16xbf16>, vector<16x32xbf16>, vector<8x32xf32> -> vector<8x32xf32>
    %21 = arith.addf %15, %20 : vector<8x32xf32>
    %c0_24 = arith.constant 0 : index
    %c0_25 = arith.constant 0 : index
    %22 = vector.load %arg7[%c0_24, %c0_25] : memref<8x32xf32, #tpu.memory_space<vmem>>, vector<8x32xf32>
    tpu.vector_store %arg7[%c0_24, %c0_25], %21 {strides = array<i32>} : memref<8x32xf32, #tpu.memory_space<vmem>>, vector<8x32xf32>,
    %c2_i32 = arith.constant 2 : i32
    %23 = arith.cmpi eq, %arg2, %c2_i32 : i32
    %24 = arith.extui %23 : i1 to i32
    %c0_i32_26 = arith.constant 0 : i32
    %25 = arith.cmpi ne, %24, %c0_i32_26 : i32
    scf.if %25 {
      %c0_27 = arith.constant 0 : index
      %c0_28 = arith.constant 0 : index
      %26 = vector.load %arg7[%c0_27, %c0_28] : memref<8x32xf32, #tpu.memory_space<vmem>>, vector<8x32xf32>
      %c0_29 = arith.constant 0 : index
      %c0_30 = arith.constant 0 : index
      %27 = vector.load %arg5[%c0_29, %c0_30] : memref<1x32xf32, #tpu.memory_space<vmem>>, vector<1x32xf32>
      %28 = vector.broadcast %27 : vector<1x32xf32> to vector<8x32xf32>
      %29 = arith.addf %26, %28 : vector<8x32xf32>
      %cst_31 = arith.constant 0.000000e+00 : f32
      %30 = vector.broadcast %cst_31 : f32 to vector<8x32xf32>
      %31 = arith.maximumf %29, %30 : vector<8x32xf32>
      %32 = arith.truncf %31 : vector<8x32xf32> to vector<8x32xbf16>
      %c0_32 = arith.constant 0 : index
      %c0_33 = arith.constant 0 : index
      %c0_34 = arith.constant 0 : index
      %c0_35 = arith.constant 0 : index
      %33 = vector.load %arg6[%c0_32, %c0_33, %c0_34, %c0_35] : memref<1x1x8x32xbf16, #tpu.memory_space<vmem>>, vector<1x1x8x32xbf16>
      %34 = vector.shape_cast %33 : vector<1x1x8x32xbf16> to vector<8x32xbf16>
      %35 = vector.shape_cast %32 : vector<8x32xbf16> to vector<1x1x8x32xbf16>
      tpu.vector_store %arg6[%c0_32, %c0_33, %c0_34, %c0_35], %35 {strides = array<i32>} : memref<1x1x8x32xbf16, #tpu.memory_space<vmem>>, vector<1x1x8x32xbf16>,
    } else {
    }
    return
  }
  func.func @transform_0(%arg0: i32, %arg1: i32, %arg2: i32) -> (i32, i32, i32, i32) {
    %c6_i32 = arith.constant 6 : i32
    %0 = arith.muli %arg2, %c6_i32 : i32
    %1 = arith.addi %arg1, %0 : i32
    %c0_i32 = arith.constant 0 : i32
    %c0_i32_0 = arith.constant 0 : i32
    %c0_i32_1 = arith.constant 0 : i32
    return %arg0, %1, %c0_i32, %c0_i32_0 : i32, i32, i32, i32
  }
  func.func @transform_1(%arg0: i32, %arg1: i32, %arg2: i32) -> (i32, i32, i32, i32) {
    %c0_i32 = arith.constant 0 : i32
    %c0_i32_0 = arith.constant 0 : i32
    %c0_i32_1 = arith.constant 0 : i32
    %c0_i32_2 = arith.constant 0 : i32
    return %arg2, %c0_i32, %c0_i32_0, %c0_i32_1 : i32, i32, i32, i32
  }
  func.func @transform_2(%arg0: i32, %arg1: i32, %arg2: i32) -> (i32, i32) {
    %c0_i32 = arith.constant 0 : i32
    %c0_i32_0 = arith.constant 0 : i32
    %c0_i32_1 = arith.constant 0 : i32
    return %c0_i32, %c0_i32_0 : i32, i32
  }
  func.func @transform_3(%arg0: i32, %arg1: i32, %arg2: i32) -> (i32, i32, i32, i32) {
    %c0_i32 = arith.constant 0 : i32
    %c0_i32_0 = arith.constant 0 : i32
    %c0_i32_1 = arith.constant 0 : i32
    return %arg0, %arg1, %c0_i32, %c0_i32_0 : i32, i32, i32, i32
  }
}

module attributes {stable_mosaic.version = 11 : i64} {
  func.func @_mm_bias_act_kernel(%arg0: i32, %arg1: i32, %arg2: i32, %arg3: memref<64x16xbf16, #tpu.memory_space<vmem>>, %arg4: memref<16x128xbf16, #tpu.memory_space<vmem>>, %arg5: memref<1x128xf32, #tpu.memory_space<vmem>>, %arg6: memref<64x128xbf16, #tpu.memory_space<vmem>>, %arg7: memref<64x128xf32, #tpu.memory_space<vmem>>) attributes {dimension_semantics = [#tpu.dimension_semantics<parallel>, #tpu.dimension_semantics<parallel>, #tpu.dimension_semantics<arbitrary>], iteration_bounds = array<i64: 2, 1, 1>, scalar_prefetch = 0 : i64, scratch_operands = 1 : i64, tpu.core_type = #tpu.core_type<tc>, window_params = [{transform_indices = @transform_0, window_bounds = array<i64: 64, 16>}, {transform_indices = @transform_1, window_bounds = array<i64: 16, 128>}, {transform_indices = @transform_2, window_bounds = array<i64: 1, 128>}, {transform_indices = @transform_3, window_bounds = array<i64: 64, 128>}]} {
    %c0_i32 = arith.constant 0 : i32
    %0 = arith.cmpi eq, %arg2, %c0_i32 : i32
    %1 = arith.extui %0 : i1 to i32
    %c0_i32_0 = arith.constant 0 : i32
    %2 = arith.cmpi ne, %1, %c0_i32_0 : i32
    scf.if %2 {
      %cst_10 = arith.constant 0.000000e+00 : f32
      %12 = vector.broadcast %cst_10 : f32 to vector<64x128xf32>
      %c0_11 = arith.constant 0 : index
      %c0_12 = arith.constant 0 : index
      %13 = vector.load %arg7[%c0_11, %c0_12] : memref<64x128xf32, #tpu.memory_space<vmem>>, vector<64x128xf32>
      tpu.vector_store %arg7[%c0_11, %c0_12], %12 {strides = array<i32>} : memref<64x128xf32, #tpu.memory_space<vmem>>, vector<64x128xf32>,
    } else {
    }
    %c0 = arith.constant 0 : index
    %c0_1 = arith.constant 0 : index
    %3 = vector.load %arg7[%c0, %c0_1] : memref<64x128xf32, #tpu.memory_space<vmem>>, vector<64x128xf32>
    %c0_2 = arith.constant 0 : index
    %c0_3 = arith.constant 0 : index
    %4 = vector.load %arg3[%c0_2, %c0_3] : memref<64x16xbf16, #tpu.memory_space<vmem>>, vector<64x16xbf16>
    %c0_4 = arith.constant 0 : index
    %c0_5 = arith.constant 0 : index
    %5 = vector.load %arg4[%c0_4, %c0_5] : memref<16x128xbf16, #tpu.memory_space<vmem>>, vector<16x128xbf16>
    %cst = arith.constant dense<0.000000e+00> : vector<64x128xf32>
    %6 = tpu.matmul %4, %5, %cst {dimension_numbers = #tpu.dot_dimension_numbers<[1], [0], [0], [1], [0, 0, 1, 1], [], []>} : vector<64x16xbf16>, vector<16x128xbf16>, vector<64x128xf32> -> vector<64x128xf32>
    %7 = arith.addf %3, %6 : vector<64x128xf32>
    %c0_6 = arith.constant 0 : index
    %c0_7 = arith.constant 0 : index
    %8 = vector.load %arg7[%c0_6, %c0_7] : memref<64x128xf32, #tpu.memory_space<vmem>>, vector<64x128xf32>
    tpu.vector_store %arg7[%c0_6, %c0_7], %7 {strides = array<i32>} : memref<64x128xf32, #tpu.memory_space<vmem>>, vector<64x128xf32>,
    %c0_i32_8 = arith.constant 0 : i32
    %9 = arith.cmpi eq, %arg2, %c0_i32_8 : i32
    %10 = arith.extui %9 : i1 to i32
    %c0_i32_9 = arith.constant 0 : i32
    %11 = arith.cmpi ne, %10, %c0_i32_9 : i32
    scf.if %11 {
      %c0_10 = arith.constant 0 : index
      %c0_11 = arith.constant 0 : index
      %12 = vector.load %arg7[%c0_10, %c0_11] : memref<64x128xf32, #tpu.memory_space<vmem>>, vector<64x128xf32>
      %c0_12 = arith.constant 0 : index
      %c0_13 = arith.constant 0 : index
      %13 = vector.load %arg5[%c0_12, %c0_13] : memref<1x128xf32, #tpu.memory_space<vmem>>, vector<1x128xf32>
      %14 = vector.broadcast %13 : vector<1x128xf32> to vector<64x128xf32>
      %15 = arith.addf %12, %14 : vector<64x128xf32>
      %cst_14 = arith.constant 0.000000e+00 : f32
      %16 = vector.broadcast %cst_14 : f32 to vector<64x128xf32>
      %17 = arith.maximumf %15, %16 : vector<64x128xf32>
      %18 = arith.truncf %17 : vector<64x128xf32> to vector<64x128xbf16>
      %c0_15 = arith.constant 0 : index
      %c0_16 = arith.constant 0 : index
      %19 = vector.load %arg6[%c0_15, %c0_16] : memref<64x128xbf16, #tpu.memory_space<vmem>>, vector<64x128xbf16>
      tpu.vector_store %arg6[%c0_15, %c0_16], %18 {strides = array<i32>} : memref<64x128xbf16, #tpu.memory_space<vmem>>, vector<64x128xbf16>,
    } else {
    }
    return
  }
  func.func @transform_0(%arg0: i32, %arg1: i32, %arg2: i32) -> (i32, i32) {
    %c0_i32 = arith.constant 0 : i32
    return %arg0, %arg2 : i32, i32
  }
  func.func @transform_1(%arg0: i32, %arg1: i32, %arg2: i32) -> (i32, i32) {
    %c0_i32 = arith.constant 0 : i32
    return %arg2, %arg1 : i32, i32
  }
  func.func @transform_2(%arg0: i32, %arg1: i32, %arg2: i32) -> (i32, i32) {
    %c0_i32 = arith.constant 0 : i32
    %c0_i32_0 = arith.constant 0 : i32
    return %c0_i32, %arg1 : i32, i32
  }
  func.func @transform_3(%arg0: i32, %arg1: i32, %arg2: i32) -> (i32, i32) {
    %c0_i32 = arith.constant 0 : i32
    return %arg0, %arg1 : i32, i32
  }
}

module attributes {stable_mosaic.version = 11 : i64} {
  func.func @_mm_bias_act_kernel(%arg0: i32, %arg1: i32, %arg2: i32, %arg3: memref<8x16xbf16, #tpu.memory_space<vmem>>, %arg4: memref<16x128xbf16, #tpu.memory_space<vmem>>, %arg5: memref<1x128xf32, #tpu.memory_space<vmem>>, %arg6: memref<8x128xbf16, #tpu.memory_space<vmem>>, %arg7: memref<8x128xf32, #tpu.memory_space<vmem>>) attributes {dimension_semantics = [#tpu.dimension_semantics<parallel>, #tpu.dimension_semantics<parallel>, #tpu.dimension_semantics<arbitrary>], iteration_bounds = array<i64: 1, 1, 1>, scalar_prefetch = 0 : i64, scratch_operands = 1 : i64, tpu.core_type = #tpu.core_type<tc>, window_params = [{transform_indices = @transform_0, window_bounds = array<i64: 8, 16>}, {transform_indices = @transform_1, window_bounds = array<i64: 16, 128>}, {transform_indices = @transform_2, window_bounds = array<i64: 1, 128>}, {transform_indices = @transform_3, window_bounds = array<i64: 8, 128>}]} {
    %c0_i32 = arith.constant 0 : i32
    %0 = arith.cmpi eq, %arg2, %c0_i32 : i32
    %1 = arith.extui %0 : i1 to i32
    %c0_i32_0 = arith.constant 0 : i32
    %2 = arith.cmpi ne, %1, %c0_i32_0 : i32
    scf.if %2 {
      %cst_10 = arith.constant 0.000000e+00 : f32
      %12 = vector.broadcast %cst_10 : f32 to vector<8x128xf32>
      %c0_11 = arith.constant 0 : index
      %c0_12 = arith.constant 0 : index
      %13 = vector.load %arg7[%c0_11, %c0_12] : memref<8x128xf32, #tpu.memory_space<vmem>>, vector<8x128xf32>
      tpu.vector_store %arg7[%c0_11, %c0_12], %12 {strides = array<i32>} : memref<8x128xf32, #tpu.memory_space<vmem>>, vector<8x128xf32>,
    } else {
    }
    %c0 = arith.constant 0 : index
    %c0_1 = arith.constant 0 : index
    %3 = vector.load %arg7[%c0, %c0_1] : memref<8x128xf32, #tpu.memory_space<vmem>>, vector<8x128xf32>
    %c0_2 = arith.constant 0 : index
    %c0_3 = arith.constant 0 : index
    %4 = vector.load %arg3[%c0_2, %c0_3] : memref<8x16xbf16, #tpu.memory_space<vmem>>, vector<8x16xbf16>
    %c0_4 = arith.constant 0 : index
    %c0_5 = arith.constant 0 : index
    %5 = vector.load %arg4[%c0_4, %c0_5] : memref<16x128xbf16, #tpu.memory_space<vmem>>, vector<16x128xbf16>
    %cst = arith.constant dense<0.000000e+00> : vector<8x128xf32>
    %6 = tpu.matmul %4, %5, %cst {dimension_numbers = #tpu.dot_dimension_numbers<[1], [0], [0], [1], [0, 0, 1, 1], [], []>} : vector<8x16xbf16>, vector<16x128xbf16>, vector<8x128xf32> -> vector<8x128xf32>
    %7 = arith.addf %3, %6 : vector<8x128xf32>
    %c0_6 = arith.constant 0 : index
    %c0_7 = arith.constant 0 : index
    %8 = vector.load %arg7[%c0_6, %c0_7] : memref<8x128xf32, #tpu.memory_space<vmem>>, vector<8x128xf32>
    tpu.vector_store %arg7[%c0_6, %c0_7], %7 {strides = array<i32>} : memref<8x128xf32, #tpu.memory_space<vmem>>, vector<8x128xf32>,
    %c0_i32_8 = arith.constant 0 : i32
    %9 = arith.cmpi eq, %arg2, %c0_i32_8 : i32
    %10 = arith.extui %9 : i1 to i32
    %c0_i32_9 = arith.constant 0 : i32
    %11 = arith.cmpi ne, %10, %c0_i32_9 : i32
    scf.if %11 {
      %c0_10 = arith.constant 0 : index
      %c0_11 = arith.constant 0 : index
      %12 = vector.load %arg7[%c0_10, %c0_11] : memref<8x128xf32, #tpu.memory_space<vmem>>, vector<8x128xf32>
      %c0_12 = arith.constant 0 : index
      %c0_13 = arith.constant 0 : index
      %13 = vector.load %arg5[%c0_12, %c0_13] : memref<1x128xf32, #tpu.memory_space<vmem>>, vector<1x128xf32>
      %14 = vector.broadcast %13 : vector<1x128xf32> to vector<8x128xf32>
      %15 = arith.addf %12, %14 : vector<8x128xf32>
      %cst_14 = arith.constant 0.000000e+00 : f32
      %16 = vector.broadcast %cst_14 : f32 to vector<8x128xf32>
      %17 = arith.maximumf %15, %16 : vector<8x128xf32>
      %18 = arith.truncf %17 : vector<8x128xf32> to vector<8x128xbf16>
      %c0_15 = arith.constant 0 : index
      %c0_16 = arith.constant 0 : index
      %19 = vector.load %arg6[%c0_15, %c0_16] : memref<8x128xbf16, #tpu.memory_space<vmem>>, vector<8x128xbf16>
      tpu.vector_store %arg6[%c0_15, %c0_16], %18 {strides = array<i32>} : memref<8x128xbf16, #tpu.memory_space<vmem>>, vector<8x128xbf16>,
    } else {
    }
    return
  }
  func.func @transform_0(%arg0: i32, %arg1: i32, %arg2: i32) -> (i32, i32) {
    %c0_i32 = arith.constant 0 : i32
    return %arg0, %arg2 : i32, i32
  }
  func.func @transform_1(%arg0: i32, %arg1: i32, %arg2: i32) -> (i32, i32) {
    %c0_i32 = arith.constant 0 : i32
    return %arg2, %arg1 : i32, i32
  }
  func.func @transform_2(%arg0: i32, %arg1: i32, %arg2: i32) -> (i32, i32) {
    %c0_i32 = arith.constant 0 : i32
    %c0_i32_0 = arith.constant 0 : i32
    return %c0_i32, %arg1 : i32, i32
  }
  func.func @transform_3(%arg0: i32, %arg1: i32, %arg2: i32) -> (i32, i32) {
    %c0_i32 = arith.constant 0 : i32
    return %arg0, %arg1 : i32, i32
  }
}

module attributes {stable_mosaic.version = 11 : i64} {
  func.func @_conv_tap_kernel(%arg0: i32, %arg1: i32, %arg2: i32, %arg3: memref<1x1x8x32xbf16, #tpu.memory_space<vmem>>, %arg4: memref<1x1x8x32xbf16, #tpu.memory_space<vmem>>, %arg5: memref<1x1x8x32xbf16, #tpu.memory_space<vmem>>, %arg6: memref<1x1x8x32xbf16, #tpu.memory_space<vmem>>, %arg7: memref<1x1x8x32xbf16, #tpu.memory_space<vmem>>, %arg8: memref<1x1x32x32xbf16, #tpu.memory_space<vmem>>, %arg9: memref<1x1x32x32xbf16, #tpu.memory_space<vmem>>, %arg10: memref<1x1x32x32xbf16, #tpu.memory_space<vmem>>, %arg11: memref<1x1x32x32xbf16, #tpu.memory_space<vmem>>, %arg12: memref<1x1x32x32xbf16, #tpu.memory_space<vmem>>, %arg13: memref<1x32xf32, #tpu.memory_space<vmem>>, %arg14: memref<1x1x8x32xbf16, #tpu.memory_space<vmem>>, %arg15: memref<8x32xf32, #tpu.memory_space<vmem>>) attributes {dimension_semantics = [#tpu.dimension_semantics<parallel>, #tpu.dimension_semantics<parallel>, #tpu.dimension_semantics<arbitrary>], iteration_bounds = array<i64: 2, 8, 1>, scalar_prefetch = 0 : i64, scratch_operands = 1 : i64, tpu.core_type = #tpu.core_type<tc>, window_params = [{transform_indices = @transform_0, window_bounds = array<i64: 1, 1, 8, 32>}, {transform_indices = @transform_1, window_bounds = array<i64: 1, 1, 8, 32>}, {transform_indices = @transform_2, window_bounds = array<i64: 1, 1, 8, 32>}, {transform_indices = @transform_3, window_bounds = array<i64: 1, 1, 8, 32>}, {transform_indices = @transform_4, window_bounds = array<i64: 1, 1, 8, 32>}, {transform_indices = @transform_5, window_bounds = array<i64: 1, 1, 32, 32>}, {transform_indices = @transform_6, window_bounds = array<i64: 1, 1, 32, 32>}, {transform_indices = @transform_7, window_bounds = array<i64: 1, 1, 32, 32>}, {transform_indices = @transform_8, window_bounds = array<i64: 1, 1, 32, 32>}, {transform_indices = @transform_9, window_bounds = array<i64: 1, 1, 32, 32>}, {pipeline_mode = #tpu.pipeline_mode<synchronous>, transform_indices = @transform_10, window_bounds = array<i64: 1, 32>}, {transform_indices = @transform_11, window_bounds = array<i64: 1, 1, 8, 32>}]} {
    %c0_i32 = arith.constant 0 : i32
    %0 = arith.cmpi eq, %arg2, %c0_i32 : i32
    %1 = arith.extui %0 : i1 to i32
    %c0_i32_0 = arith.constant 0 : i32
    %2 = arith.cmpi ne, %1, %c0_i32_0 : i32
    scf.if %2 {
      %cst_50 = arith.constant 0.000000e+00 : f32
      %38 = vector.broadcast %cst_50 : f32 to vector<8x32xf32>
      %c0_51 = arith.constant 0 : index
      %c0_52 = arith.constant 0 : index
      %39 = vector.load %arg15[%c0_51, %c0_52] : memref<8x32xf32, #tpu.memory_space<vmem>>, vector<8x32xf32>
      tpu.vector_store %arg15[%c0_51, %c0_52], %38 {strides = array<i32>} : memref<8x32xf32, #tpu.memory_space<vmem>>, vector<8x32xf32>,
    } else {
    }
    %c0 = arith.constant 0 : index
    %c0_1 = arith.constant 0 : index
    %3 = vector.load %arg15[%c0, %c0_1] : memref<8x32xf32, #tpu.memory_space<vmem>>, vector<8x32xf32>
    %c0_2 = arith.constant 0 : index
    %c0_3 = arith.constant 0 : index
    %c0_4 = arith.constant 0 : index
    %c0_5 = arith.constant 0 : index
    %4 = vector.load %arg3[%c0_2, %c0_3, %c0_4, %c0_5] : memref<1x1x8x32xbf16, #tpu.memory_space<vmem>>, vector<1x1x8x32xbf16>
    %5 = vector.shape_cast %4 : vector<1x1x8x32xbf16> to vector<8x32xbf16>
    %c0_6 = arith.constant 0 : index
    %c0_7 = arith.constant 0 : index
    %c0_8 = arith.constant 0 : index
    %c0_9 = arith.constant 0 : index
    %6 = vector.load %arg8[%c0_6, %c0_7, %c0_8, %c0_9] : memref<1x1x32x32xbf16, #tpu.memory_space<vmem>>, vector<1x1x32x32xbf16>
    %7 = vector.shape_cast %6 : vector<1x1x32x32xbf16> to vector<32x32xbf16>
    %cst = arith.constant dense<0.000000e+00> : vector<8x32xf32>
    %8 = tpu.matmul %5, %7, %cst {dimension_numbers = #tpu.dot_dimension_numbers<[1], [0], [0], [1], [0, 0, 1, 1], [], []>} : vector<8x32xbf16>, vector<32x32xbf16>, vector<8x32xf32> -> vector<8x32xf32>
    %9 = arith.addf %3, %8 : vector<8x32xf32>
    %c0_10 = arith.constant 0 : index
    %c0_11 = arith.constant 0 : index
    %c0_12 = arith.constant 0 : index
    %c0_13 = arith.constant 0 : index
    %10 = vector.load %arg4[%c0_10, %c0_11, %c0_12, %c0_13] : memref<1x1x8x32xbf16, #tpu.memory_space<vmem>>, vector<1x1x8x32xbf16>
    %11 = vector.shape_cast %10 : vector<1x1x8x32xbf16> to vector<8x32xbf16>
    %c0_14 = arith.constant 0 : index
    %c0_15 = arith.constant 0 : index
    %c0_16 = arith.constant 0 : index
    %c0_17 = arith.constant 0 : index
    %12 = vector.load %arg9[%c0_14, %c0_15, %c0_16, %c0_17] : memref<1x1x32x32xbf16, #tpu.memory_space<vmem>>, vector<1x1x32x32xbf16>
    %13 = vector.shape_cast %12 : vector<1x1x32x32xbf16> to vector<32x32xbf16>
    %cst_18 = arith.constant dense<0.000000e+00> : vector<8x32xf32>
    %14 = tpu.matmul %11, %13, %cst_18 {dimension_numbers = #tpu.dot_dimension_numbers<[1], [0], [0], [1], [0, 0, 1, 1], [], []>} : vector<8x32xbf16>, vector<32x32xbf16>, vector<8x32xf32> -> vector<8x32xf32>
    %15 = arith.addf %9, %14 : vector<8x32xf32>
    %c0_19 = arith.constant 0 : index
    %c0_20 = arith.constant 0 : index
    %c0_21 = arith.constant 0 : index
    %c0_22 = arith.constant 0 : index
    %16 = vector.load %arg5[%c0_19, %c0_20, %c0_21, %c0_22] : memref<1x1x8x32xbf16, #tpu.memory_space<vmem>>, vector<1x1x8x32xbf16>
    %17 = vector.shape_cast %16 : vector<1x1x8x32xbf16> to vector<8x32xbf16>
    %c0_23 = arith.constant 0 : index
    %c0_24 = arith.constant 0 : index
    %c0_25 = arith.constant 0 : index
    %c0_26 = arith.constant 0 : index
    %18 = vector.load %arg10[%c0_23, %c0_24, %c0_25, %c0_26] : memref<1x1x32x32xbf16, #tpu.memory_space<vmem>>, vector<1x1x32x32xbf16>
    %19 = vector.shape_cast %18 : vector<1x1x32x32xbf16> to vector<32x32xbf16>
    %cst_27 = arith.constant dense<0.000000e+00> : vector<8x32xf32>
    %20 = tpu.matmul %17, %19, %cst_27 {dimension_numbers = #tpu.dot_dimension_numbers<[1], [0], [0], [1], [0, 0, 1, 1], [], []>} : vector<8x32xbf16>, vector<32x32xbf16>, vector<8x32xf32> -> vector<8x32xf32>
    %21 = arith.addf %15, %20 : vector<8x32xf32>
    %c0_28 = arith.constant 0 : index
    %c0_29 = arith.constant 0 : index
    %c0_30 = arith.constant 0 : index
    %c0_31 = arith.constant 0 : index
    %22 = vector.load %arg6[%c0_28, %c0_29, %c0_30, %c0_31] : memref<1x1x8x32xbf16, #tpu.memory_space<vmem>>, vector<1x1x8x32xbf16>
    %23 = vector.shape_cast %22 : vector<1x1x8x32xbf16> to vector<8x32xbf16>
    %c0_32 = arith.constant 0 : index
    %c0_33 = arith.constant 0 : index
    %c0_34 = arith.constant 0 : index
    %c0_35 = arith.constant 0 : index
    %24 = vector.load %arg11[%c0_32, %c0_33, %c0_34, %c0_35] : memref<1x1x32x32xbf16, #tpu.memory_space<vmem>>, vector<1x1x32x32xbf16>
    %25 = vector.shape_cast %24 : vector<1x1x32x32xbf16> to vector<32x32xbf16>
    %cst_36 = arith.constant dense<0.000000e+00> : vector<8x32xf32>
    %26 = tpu.matmul %23, %25, %cst_36 {dimension_numbers = #tpu.dot_dimension_numbers<[1], [0], [0], [1], [0, 0, 1, 1], [], []>} : vector<8x32xbf16>, vector<32x32xbf16>, vector<8x32xf32> -> vector<8x32xf32>
    %27 = arith.addf %21, %26 : vector<8x32xf32>
    %c0_37 = arith.constant 0 : index
    %c0_38 = arith.constant 0 : index
    %c0_39 = arith.constant 0 : index
    %c0_40 = arith.constant 0 : index
    %28 = vector.load %arg7[%c0_37, %c0_38, %c0_39, %c0_40] : memref<1x1x8x32xbf16, #tpu.memory_space<vmem>>, vector<1x1x8x32xbf16>
    %29 = vector.shape_cast %28 : vector<1x1x8x32xbf16> to vector<8x32xbf16>
    %c0_41 = arith.constant 0 : index
    %c0_42 = arith.constant 0 : index
    %c0_43 = arith.constant 0 : index
    %c0_44 = arith.constant 0 : index
    %30 = vector.load %arg12[%c0_41, %c0_42, %c0_43, %c0_44] : memref<1x1x32x32xbf16, #tpu.memory_space<vmem>>, vector<1x1x32x32xbf16>
    %31 = vector.shape_cast %30 : vector<1x1x32x32xbf16> to vector<32x32xbf16>
    %cst_45 = arith.constant dense<0.000000e+00> : vector<8x32xf32>
    %32 = tpu.matmul %29, %31, %cst_45 {dimension_numbers = #tpu.dot_dimension_numbers<[1], [0], [0], [1], [0, 0, 1, 1], [], []>} : vector<8x32xbf16>, vector<32x32xbf16>, vector<8x32xf32> -> vector<8x32xf32>
    %33 = arith.addf %27, %32 : vector<8x32xf32>
    %c0_46 = arith.constant 0 : index
    %c0_47 = arith.constant 0 : index
    %34 = vector.load %arg15[%c0_46, %c0_47] : memref<8x32xf32, #tpu.memory_space<vmem>>, vector<8x32xf32>
    tpu.vector_store %arg15[%c0_46, %c0_47], %33 {strides = array<i32>} : memref<8x32xf32, #tpu.memory_space<vmem>>, vector<8x32xf32>,
    %c0_i32_48 = arith.constant 0 : i32
    %35 = arith.cmpi eq, %arg2, %c0_i32_48 : i32
    %36 = arith.extui %35 : i1 to i32
    %c0_i32_49 = arith.constant 0 : i32
    %37 = arith.cmpi ne, %36, %c0_i32_49 : i32
    scf.if %37 {
      %c0_50 = arith.constant 0 : index
      %c0_51 = arith.constant 0 : index
      %38 = vector.load %arg15[%c0_50, %c0_51] : memref<8x32xf32, #tpu.memory_space<vmem>>, vector<8x32xf32>
      %c0_52 = arith.constant 0 : index
      %c0_53 = arith.constant 0 : index
      %39 = vector.load %arg13[%c0_52, %c0_53] : memref<1x32xf32, #tpu.memory_space<vmem>>, vector<1x32xf32>
      %40 = vector.broadcast %39 : vector<1x32xf32> to vector<8x32xf32>
      %41 = arith.addf %38, %40 : vector<8x32xf32>
      %cst_54 = arith.constant 0.000000e+00 : f32
      %42 = vector.broadcast %cst_54 : f32 to vector<8x32xf32>
      %43 = arith.maximumf %41, %42 : vector<8x32xf32>
      %44 = arith.truncf %43 : vector<8x32xf32> to vector<8x32xbf16>
      %c0_55 = arith.constant 0 : index
      %c0_56 = arith.constant 0 : index
      %c0_57 = arith.constant 0 : index
      %c0_58 = arith.constant 0 : index
      %45 = vector.load %arg14[%c0_55, %c0_56, %c0_57, %c0_58] : memref<1x1x8x32xbf16, #tpu.memory_space<vmem>>, vector<1x1x8x32xbf16>
      %46 = vector.shape_cast %45 : vector<1x1x8x32xbf16> to vector<8x32xbf16>
      %47 = vector.shape_cast %44 : vector<8x32xbf16> to vector<1x1x8x32xbf16>
      tpu.vector_store %arg14[%c0_55, %c0_56, %c0_57, %c0_58], %47 {strides = array<i32>} : memref<1x1x8x32xbf16, #tpu.memory_space<vmem>>, vector<1x1x8x32xbf16>,
    } else {
    }
    return
  }
  func.func @transform_0(%arg0: i32, %arg1: i32, %arg2: i32) -> (i32, i32, i32, i32) {
    %c1_i32 = arith.constant 1 : i32
    %0 = arith.muli %arg2, %c1_i32 : i32
    %1 = arith.addi %arg1, %0 : i32
    %c0_i32 = arith.constant 0 : i32
    %c0_i32_0 = arith.constant 0 : i32
    %c0_i32_1 = arith.constant 0 : i32
    return %arg0, %1, %c0_i32, %c0_i32_0 : i32, i32, i32, i32
  }
  func.func @transform_1(%arg0: i32, %arg1: i32, %arg2: i32) -> (i32, i32, i32, i32) {
    %c1_i32 = arith.constant 1 : i32
    %0 = arith.muli %arg2, %c1_i32 : i32
    %1 = arith.addi %arg1, %0 : i32
    %c0_i32 = arith.constant 0 : i32
    %c0_i32_0 = arith.constant 0 : i32
    %c0_i32_1 = arith.constant 0 : i32
    return %arg0, %1, %c0_i32, %c0_i32_0 : i32, i32, i32, i32
  }
  func.func @transform_2(%arg0: i32, %arg1: i32, %arg2: i32) -> (i32, i32, i32, i32) {
    %c1_i32 = arith.constant 1 : i32
    %0 = arith.muli %arg2, %c1_i32 : i32
    %1 = arith.addi %arg1, %0 : i32
    %c0_i32 = arith.constant 0 : i32
    %c0_i32_0 = arith.constant 0 : i32
    %c0_i32_1 = arith.constant 0 : i32
    return %arg0, %1, %c0_i32, %c0_i32_0 : i32, i32, i32, i32
  }
  func.func @transform_3(%arg0: i32, %arg1: i32, %arg2: i32) -> (i32, i32, i32, i32) {
    %c1_i32 = arith.constant 1 : i32
    %0 = arith.muli %arg2, %c1_i32 : i32
    %1 = arith.addi %arg1, %0 : i32
    %c0_i32 = arith.constant 0 : i32
    %c0_i32_0 = arith.constant 0 : i32
    %c0_i32_1 = arith.constant 0 : i32
    return %arg0, %1, %c0_i32, %c0_i32_0 : i32, i32, i32, i32
  }
  func.func @transform_4(%arg0: i32, %arg1: i32, %arg2: i32) -> (i32, i32, i32, i32) {
    %c1_i32 = arith.constant 1 : i32
    %0 = arith.muli %arg2, %c1_i32 : i32
    %1 = arith.addi %arg1, %0 : i32
    %c0_i32 = arith.constant 0 : i32
    %c0_i32_0 = arith.constant 0 : i32
    %c0_i32_1 = arith.constant 0 : i32
    return %arg0, %1, %c0_i32, %c0_i32_0 : i32, i32, i32, i32
  }
  func.func @transform_5(%arg0: i32, %arg1: i32, %arg2: i32) -> (i32, i32, i32, i32) {
    %c0_i32 = arith.constant 0 : i32
    %c0_i32_0 = arith.constant 0 : i32
    %c0_i32_1 = arith.constant 0 : i32
    %c0_i32_2 = arith.constant 0 : i32
    return %arg2, %c0_i32, %c0_i32_0, %c0_i32_1 : i32, i32, i32, i32
  }
  func.func @transform_6(%arg0: i32, %arg1: i32, %arg2: i32) -> (i32, i32, i32, i32) {
    %c0_i32 = arith.constant 0 : i32
    %c0_i32_0 = arith.constant 0 : i32
    %c0_i32_1 = arith.constant 0 : i32
    %c0_i32_2 = arith.constant 0 : i32
    return %arg2, %c0_i32, %c0_i32_0, %c0_i32_1 : i32, i32, i32, i32
  }
  func.func @transform_7(%arg0: i32, %arg1: i32, %arg2: i32) -> (i32, i32, i32, i32) {
    %c0_i32 = arith.constant 0 : i32
    %c0_i32_0 = arith.constant 0 : i32
    %c0_i32_1 = arith.constant 0 : i32
    %c0_i32_2 = arith.constant 0 : i32
    return %arg2, %c0_i32, %c0_i32_0, %c0_i32_1 : i32, i32, i32, i32
  }
  func.func @transform_8(%arg0: i32, %arg1: i32, %arg2: i32) -> (i32, i32, i32, i32) {
    %c0_i32 = arith.constant 0 : i32
    %c0_i32_0 = arith.constant 0 : i32
    %c0_i32_1 = arith.constant 0 : i32
    %c0_i32_2 = arith.constant 0 : i32
    return %arg2, %c0_i32, %c0_i32_0, %c0_i32_1 : i32, i32, i32, i32
  }
  func.func @transform_9(%arg0: i32, %arg1: i32, %arg2: i32) -> (i32, i32, i32, i32) {
    %c0_i32 = arith.constant 0 : i32
    %c0_i32_0 = arith.constant 0 : i32
    %c0_i32_1 = arith.constant 0 : i32
    %c0_i32_2 = arith.constant 0 : i32
    return %arg2, %c0_i32, %c0_i32_0, %c0_i32_1 : i32, i32, i32, i32
  }
  func.func @transform_10(%arg0: i32, %arg1: i32, %arg2: i32) -> (i32, i32) {
    %c0_i32 = arith.constant 0 : i32
    %c0_i32_0 = arith.constant 0 : i32
    %c0_i32_1 = arith.constant 0 : i32
    return %c0_i32, %c0_i32_0 : i32, i32
  }
  func.func @transform_11(%arg0: i32, %arg1: i32, %arg2: i32) -> (i32, i32, i32, i32) {
    %c0_i32 = arith.constant 0 : i32
    %c0_i32_0 = arith.constant 0 : i32
    %c0_i32_1 = arith.constant 0 : i32
    return %arg0, %arg1, %c0_i32, %c0_i32_0 : i32, i32, i32, i32
  }
}

module attributes {stable_mosaic.version = 11 : i64} {
  func.func @_mm_bias_act_kernel(%arg0: i32, %arg1: i32, %arg2: i32, %arg3: memref<256x8xbf16, #tpu.memory_space<vmem>>, %arg4: memref<8x128xbf16, #tpu.memory_space<vmem>>, %arg5: memref<1x128xf32, #tpu.memory_space<vmem>>, %arg6: memref<256x128xbf16, #tpu.memory_space<vmem>>, %arg7: memref<256x128xf32, #tpu.memory_space<vmem>>) attributes {dimension_semantics = [#tpu.dimension_semantics<parallel>, #tpu.dimension_semantics<parallel>, #tpu.dimension_semantics<arbitrary>], iteration_bounds = array<i64: 2, 1, 1>, scalar_prefetch = 0 : i64, scratch_operands = 1 : i64, tpu.core_type = #tpu.core_type<tc>, window_params = [{transform_indices = @transform_0, window_bounds = array<i64: 256, 8>}, {transform_indices = @transform_1, window_bounds = array<i64: 8, 128>}, {transform_indices = @transform_2, window_bounds = array<i64: 1, 128>}, {transform_indices = @transform_3, window_bounds = array<i64: 256, 128>}]} {
    %c0_i32 = arith.constant 0 : i32
    %0 = arith.cmpi eq, %arg2, %c0_i32 : i32
    %1 = arith.extui %0 : i1 to i32
    %c0_i32_0 = arith.constant 0 : i32
    %2 = arith.cmpi ne, %1, %c0_i32_0 : i32
    scf.if %2 {
      %cst_10 = arith.constant 0.000000e+00 : f32
      %12 = vector.broadcast %cst_10 : f32 to vector<256x128xf32>
      %c0_11 = arith.constant 0 : index
      %c0_12 = arith.constant 0 : index
      %13 = vector.load %arg7[%c0_11, %c0_12] : memref<256x128xf32, #tpu.memory_space<vmem>>, vector<256x128xf32>
      tpu.vector_store %arg7[%c0_11, %c0_12], %12 {strides = array<i32>} : memref<256x128xf32, #tpu.memory_space<vmem>>, vector<256x128xf32>,
    } else {
    }
    %c0 = arith.constant 0 : index
    %c0_1 = arith.constant 0 : index
    %3 = vector.load %arg7[%c0, %c0_1] : memref<256x128xf32, #tpu.memory_space<vmem>>, vector<256x128xf32>
    %c0_2 = arith.constant 0 : index
    %c0_3 = arith.constant 0 : index
    %4 = vector.load %arg3[%c0_2, %c0_3] : memref<256x8xbf16, #tpu.memory_space<vmem>>, vector<256x8xbf16>
    %c0_4 = arith.constant 0 : index
    %c0_5 = arith.constant 0 : index
    %5 = vector.load %arg4[%c0_4, %c0_5] : memref<8x128xbf16, #tpu.memory_space<vmem>>, vector<8x128xbf16>
    %cst = arith.constant dense<0.000000e+00> : vector<256x128xf32>
    %6 = tpu.matmul %4, %5, %cst {dimension_numbers = #tpu.dot_dimension_numbers<[1], [0], [0], [1], [0, 0, 1, 1], [], []>} : vector<256x8xbf16>, vector<8x128xbf16>, vector<256x128xf32> -> vector<256x128xf32>
    %7 = arith.addf %3, %6 : vector<256x128xf32>
    %c0_6 = arith.constant 0 : index
    %c0_7 = arith.constant 0 : index
    %8 = vector.load %arg7[%c0_6, %c0_7] : memref<256x128xf32, #tpu.memory_space<vmem>>, vector<256x128xf32>
    tpu.vector_store %arg7[%c0_6, %c0_7], %7 {strides = array<i32>} : memref<256x128xf32, #tpu.memory_space<vmem>>, vector<256x128xf32>,
    %c0_i32_8 = arith.constant 0 : i32
    %9 = arith.cmpi eq, %arg2, %c0_i32_8 : i32
    %10 = arith.extui %9 : i1 to i32
    %c0_i32_9 = arith.constant 0 : i32
    %11 = arith.cmpi ne, %10, %c0_i32_9 : i32
    scf.if %11 {
      %c0_10 = arith.constant 0 : index
      %c0_11 = arith.constant 0 : index
      %12 = vector.load %arg7[%c0_10, %c0_11] : memref<256x128xf32, #tpu.memory_space<vmem>>, vector<256x128xf32>
      %c0_12 = arith.constant 0 : index
      %c0_13 = arith.constant 0 : index
      %13 = vector.load %arg5[%c0_12, %c0_13] : memref<1x128xf32, #tpu.memory_space<vmem>>, vector<1x128xf32>
      %14 = vector.broadcast %13 : vector<1x128xf32> to vector<256x128xf32>
      %15 = arith.addf %12, %14 : vector<256x128xf32>
      %cst_14 = arith.constant 0.000000e+00 : f32
      %16 = vector.broadcast %cst_14 : f32 to vector<256x128xf32>
      %17 = arith.maximumf %15, %16 : vector<256x128xf32>
      %18 = arith.truncf %17 : vector<256x128xf32> to vector<256x128xbf16>
      %c0_15 = arith.constant 0 : index
      %c0_16 = arith.constant 0 : index
      %19 = vector.load %arg6[%c0_15, %c0_16] : memref<256x128xbf16, #tpu.memory_space<vmem>>, vector<256x128xbf16>
      tpu.vector_store %arg6[%c0_15, %c0_16], %18 {strides = array<i32>} : memref<256x128xbf16, #tpu.memory_space<vmem>>, vector<256x128xbf16>,
    } else {
    }
    return
  }
  func.func @transform_0(%arg0: i32, %arg1: i32, %arg2: i32) -> (i32, i32) {
    %c0_i32 = arith.constant 0 : i32
    return %arg0, %arg2 : i32, i32
  }
  func.func @transform_1(%arg0: i32, %arg1: i32, %arg2: i32) -> (i32, i32) {
    %c0_i32 = arith.constant 0 : i32
    return %arg2, %arg1 : i32, i32
  }
  func.func @transform_2(%arg0: i32, %arg1: i32, %arg2: i32) -> (i32, i32) {
    %c0_i32 = arith.constant 0 : i32
    %c0_i32_0 = arith.constant 0 : i32
    return %c0_i32, %arg1 : i32, i32
  }
  func.func @transform_3(%arg0: i32, %arg1: i32, %arg2: i32) -> (i32, i32) {
    %c0_i32 = arith.constant 0 : i32
    return %arg0, %arg1 : i32, i32
  }
}

module attributes {stable_mosaic.version = 11 : i64} {
  func.func @_conv_tap_kernel(%arg0: i32, %arg1: i32, %arg2: i32, %arg3: memref<1x1x18x32xbf16, #tpu.memory_space<vmem>>, %arg4: memref<1x3x32x32xbf16, #tpu.memory_space<vmem>>, %arg5: memref<1x32xf32, #tpu.memory_space<vmem>>, %arg6: memref<1x1x16x32xbf16, #tpu.memory_space<vmem>>, %arg7: memref<16x32xf32, #tpu.memory_space<vmem>>) attributes {dimension_semantics = [#tpu.dimension_semantics<parallel>, #tpu.dimension_semantics<parallel>, #tpu.dimension_semantics<arbitrary>], iteration_bounds = array<i64: 2, 16, 3>, scalar_prefetch = 0 : i64, scratch_operands = 1 : i64, tpu.core_type = #tpu.core_type<tc>, window_params = [{transform_indices = @transform_0, window_bounds = array<i64: 1, 1, 18, 32>}, {transform_indices = @transform_1, window_bounds = array<i64: 1, 3, 32, 32>}, {pipeline_mode = #tpu.pipeline_mode<synchronous>, transform_indices = @transform_2, window_bounds = array<i64: 1, 32>}, {transform_indices = @transform_3, window_bounds = array<i64: 1, 1, 16, 32>}]} {
    %c0_i32 = arith.constant 0 : i32
    %0 = arith.cmpi eq, %arg2, %c0_i32 : i32
    %1 = arith.extui %0 : i1 to i32
    %c0_i32_0 = arith.constant 0 : i32
    %2 = arith.cmpi ne, %1, %c0_i32_0 : i32
    scf.if %2 {
      %cst_29 = arith.constant 0.000000e+00 : f32
      %26 = vector.broadcast %cst_29 : f32 to vector<16x32xf32>
      %c0_30 = arith.constant 0 : index
      %c0_31 = arith.constant 0 : index
      %27 = vector.load %arg7[%c0_30, %c0_31] : memref<16x32xf32, #tpu.memory_space<vmem>>, vector<16x32xf32>
      tpu.vector_store %arg7[%c0_30, %c0_31], %26 {strides = array<i32>} : memref<16x32xf32, #tpu.memory_space<vmem>>, vector<16x32xf32>,
    } else {
    }
    %c0 = arith.constant 0 : index
    %c0_1 = arith.constant 0 : index
    %3 = vector.load %arg7[%c0, %c0_1] : memref<16x32xf32, #tpu.memory_space<vmem>>, vector<16x32xf32>
    %c0_2 = arith.constant 0 : index
    %c0_3 = arith.constant 0 : index
    %c0_4 = arith.constant 0 : index
    %c0_5 = arith.constant 0 : index
    %4 = vector.load %arg3[%c0_2, %c0_3, %c0_4, %c0_5] : memref<1x1x18x32xbf16, #tpu.memory_space<vmem>>, vector<1x1x16x32xbf16>
    %5 = vector.shape_cast %4 : vector<1x1x16x32xbf16> to vector<16x32xbf16>
    %c0_6 = arith.constant 0 : index
    %c0_7 = arith.constant 0 : index
    %c0_8 = arith.constant 0 : index
    %c0_9 = arith.constant 0 : index
    %6 = vector.load %arg4[%c0_6, %c0_7, %c0_8, %c0_9] : memref<1x3x32x32xbf16, #tpu.memory_space<vmem>>, vector<1x1x32x32xbf16>
    %7 = vector.shape_cast %6 : vector<1x1x32x32xbf16> to vector<32x32xbf16>
    %cst = arith.constant dense<0.000000e+00> : vector<16x32xf32>
    %8 = tpu.matmul %5, %7, %cst {dimension_numbers = #tpu.dot_dimension_numbers<[1], [0], [0], [1], [0, 0, 1, 1], [], []>} : vector<16x32xbf16>, vector<32x32xbf16>, vector<16x32xf32> -> vector<16x32xf32>
    %9 = arith.addf %3, %8 : vector<16x32xf32>
    %c0_10 = arith.constant 0 : index
    %c0_11 = arith.constant 0 : index
    %c1 = arith.constant 1 : index
    %c0_12 = arith.constant 0 : index
    %10 = vector.load %arg3[%c0_10, %c0_11, %c1, %c0_12] : memref<1x1x18x32xbf16, #tpu.memory_space<vmem>>, vector<1x1x16x32xbf16>
    %11 = vector.shape_cast %10 : vector<1x1x16x32xbf16> to vector<16x32xbf16>
    %c0_13 = arith.constant 0 : index
    %c1_14 = arith.constant 1 : index
    %c0_15 = arith.constant 0 : index
    %c0_16 = arith.constant 0 : index
    %12 = vector.load %arg4[%c0_13, %c1_14, %c0_15, %c0_16] : memref<1x3x32x32xbf16, #tpu.memory_space<vmem>>, vector<1x1x32x32xbf16>
    %13 = vector.shape_cast %12 : vector<1x1x32x32xbf16> to vector<32x32xbf16>
    %cst_17 = arith.constant dense<0.000000e+00> : vector<16x32xf32>
    %14 = tpu.matmul %11, %13, %cst_17 {dimension_numbers = #tpu.dot_dimension_numbers<[1], [0], [0], [1], [0, 0, 1, 1], [], []>} : vector<16x32xbf16>, vector<32x32xbf16>, vector<16x32xf32> -> vector<16x32xf32>
    %15 = arith.addf %9, %14 : vector<16x32xf32>
    %c0_18 = arith.constant 0 : index
    %c0_19 = arith.constant 0 : index
    %c2 = arith.constant 2 : index
    %c0_20 = arith.constant 0 : index
    %16 = vector.load %arg3[%c0_18, %c0_19, %c2, %c0_20] : memref<1x1x18x32xbf16, #tpu.memory_space<vmem>>, vector<1x1x16x32xbf16>
    %17 = vector.shape_cast %16 : vector<1x1x16x32xbf16> to vector<16x32xbf16>
    %c0_21 = arith.constant 0 : index
    %c2_22 = arith.constant 2 : index
    %c0_23 = arith.constant 0 : index
    %c0_24 = arith.constant 0 : index
    %18 = vector.load %arg4[%c0_21, %c2_22, %c0_23, %c0_24] : memref<1x3x32x32xbf16, #tpu.memory_space<vmem>>, vector<1x1x32x32xbf16>
    %19 = vector.shape_cast %18 : vector<1x1x32x32xbf16> to vector<32x32xbf16>
    %cst_25 = arith.constant dense<0.000000e+00> : vector<16x32xf32>
    %20 = tpu.matmul %17, %19, %cst_25 {dimension_numbers = #tpu.dot_dimension_numbers<[1], [0], [0], [1], [0, 0, 1, 1], [], []>} : vector<16x32xbf16>, vector<32x32xbf16>, vector<16x32xf32> -> vector<16x32xf32>
    %21 = arith.addf %15, %20 : vector<16x32xf32>
    %c0_26 = arith.constant 0 : index
    %c0_27 = arith.constant 0 : index
    %22 = vector.load %arg7[%c0_26, %c0_27] : memref<16x32xf32, #tpu.memory_space<vmem>>, vector<16x32xf32>
    tpu.vector_store %arg7[%c0_26, %c0_27], %21 {strides = array<i32>} : memref<16x32xf32, #tpu.memory_space<vmem>>, vector<16x32xf32>,
    %c2_i32 = arith.constant 2 : i32
    %23 = arith.cmpi eq, %arg2, %c2_i32 : i32
    %24 = arith.extui %23 : i1 to i32
    %c0_i32_28 = arith.constant 0 : i32
    %25 = arith.cmpi ne, %24, %c0_i32_28 : i32
    scf.if %25 {
      %c0_29 = arith.constant 0 : index
      %c0_30 = arith.constant 0 : index
      %26 = vector.load %arg7[%c0_29, %c0_30] : memref<16x32xf32, #tpu.memory_space<vmem>>, vector<16x32xf32>
      %c0_31 = arith.constant 0 : index
      %c0_32 = arith.constant 0 : index
      %27 = vector.load %arg5[%c0_31, %c0_32] : memref<1x32xf32, #tpu.memory_space<vmem>>, vector<1x32xf32>
      %28 = vector.broadcast %27 : vector<1x32xf32> to vector<16x32xf32>
      %29 = arith.addf %26, %28 : vector<16x32xf32>
      %cst_33 = arith.constant 0.000000e+00 : f32
      %30 = vector.broadcast %cst_33 : f32 to vector<16x32xf32>
      %31 = arith.maximumf %29, %30 : vector<16x32xf32>
      %32 = arith.truncf %31 : vector<16x32xf32> to vector<16x32xbf16>
      %c0_34 = arith.constant 0 : index
      %c0_35 = arith.constant 0 : index
      %c0_36 = arith.constant 0 : index
      %c0_37 = arith.constant 0 : index
      %33 = vector.load %arg6[%c0_34, %c0_35, %c0_36, %c0_37] : memref<1x1x16x32xbf16, #tpu.memory_space<vmem>>, vector<1x1x16x32xbf16>
      %34 = vector.shape_cast %33 : vector<1x1x16x32xbf16> to vector<16x32xbf16>
      %35 = vector.shape_cast %32 : vector<16x32xbf16> to vector<1x1x16x32xbf16>
      tpu.vector_store %arg6[%c0_34, %c0_35, %c0_36, %c0_37], %35 {strides = array<i32>} : memref<1x1x16x32xbf16, #tpu.memory_space<vmem>>, vector<1x1x16x32xbf16>,
    } else {
    }
    return
  }
  func.func @transform_0(%arg0: i32, %arg1: i32, %arg2: i32) -> (i32, i32, i32, i32) {
    %c1_i32 = arith.constant 1 : i32
    %0 = arith.muli %arg2, %c1_i32 : i32
    %1 = arith.addi %arg1, %0 : i32
    %c0_i32 = arith.constant 0 : i32
    %c0_i32_0 = arith.constant 0 : i32
    %c0_i32_1 = arith.constant 0 : i32
    return %arg0, %1, %c0_i32, %c0_i32_0 : i32, i32, i32, i32
  }
  func.func @transform_1(%arg0: i32, %arg1: i32, %arg2: i32) -> (i32, i32, i32, i32) {
    %c0_i32 = arith.constant 0 : i32
    %c0_i32_0 = arith.constant 0 : i32
    %c0_i32_1 = arith.constant 0 : i32
    %c0_i32_2 = arith.constant 0 : i32
    return %arg2, %c0_i32, %c0_i32_0, %c0_i32_1 : i32, i32, i32, i32
  }
  func.func @transform_2(%arg0: i32, %arg1: i32, %arg2: i32) -> (i32, i32) {
    %c0_i32 = arith.constant 0 : i32
    %c0_i32_0 = arith.constant 0 : i32
    %c0_i32_1 = arith.constant 0 : i32
    return %c0_i32, %c0_i32_0 : i32, i32
  }
  func.func @transform_3(%arg0: i32, %arg1: i32, %arg2: i32) -> (i32, i32, i32, i32) {
    %c0_i32 = arith.constant 0 : i32
    %c0_i32_0 = arith.constant 0 : i32
    %c0_i32_1 = arith.constant 0 : i32
    return %arg0, %arg1, %c0_i32, %c0_i32_0 : i32, i32, i32, i32
  }
}

module attributes {stable_mosaic.version = 11 : i64} {
  func.func @_conv_tap_kernel(%arg0: i32, %arg1: i32, %arg2: i32, %arg3: memref<1x1x18x32xbf16, #tpu.memory_space<vmem>>, %arg4: memref<1x1x18x16xbf16, #tpu.memory_space<vmem>>, %arg5: memref<1x3x32x32xbf16, #tpu.memory_space<vmem>>, %arg6: memref<1x3x16x32xbf16, #tpu.memory_space<vmem>>, %arg7: memref<1x32xf32, #tpu.memory_space<vmem>>, %arg8: memref<1x1x16x32xbf16, #tpu.memory_space<vmem>>, %arg9: memref<16x32xf32, #tpu.memory_space<vmem>>) attributes {dimension_semantics = [#tpu.dimension_semantics<parallel>, #tpu.dimension_semantics<parallel>, #tpu.dimension_semantics<arbitrary>], iteration_bounds = array<i64: 2, 16, 3>, scalar_prefetch = 0 : i64, scratch_operands = 1 : i64, tpu.core_type = #tpu.core_type<tc>, window_params = [{transform_indices = @transform_0, window_bounds = array<i64: 1, 1, 18, 32>}, {transform_indices = @transform_1, window_bounds = array<i64: 1, 1, 18, 16>}, {transform_indices = @transform_2, window_bounds = array<i64: 1, 3, 32, 32>}, {transform_indices = @transform_3, window_bounds = array<i64: 1, 3, 16, 32>}, {pipeline_mode = #tpu.pipeline_mode<synchronous>, transform_indices = @transform_4, window_bounds = array<i64: 1, 32>}, {transform_indices = @transform_5, window_bounds = array<i64: 1, 1, 16, 32>}]} {
    %c0_i32 = arith.constant 0 : i32
    %0 = arith.cmpi eq, %arg2, %c0_i32 : i32
    %1 = arith.extui %0 : i1 to i32
    %c0_i32_0 = arith.constant 0 : i32
    %2 = arith.cmpi ne, %1, %c0_i32_0 : i32
    scf.if %2 {
      %cst_56 = arith.constant 0.000000e+00 : f32
      %44 = vector.broadcast %cst_56 : f32 to vector<16x32xf32>
      %c0_57 = arith.constant 0 : index
      %c0_58 = arith.constant 0 : index
      %45 = vector.load %arg9[%c0_57, %c0_58] : memref<16x32xf32, #tpu.memory_space<vmem>>, vector<16x32xf32>
      tpu.vector_store %arg9[%c0_57, %c0_58], %44 {strides = array<i32>} : memref<16x32xf32, #tpu.memory_space<vmem>>, vector<16x32xf32>,
    } else {
    }
    %c0 = arith.constant 0 : index
    %c0_1 = arith.constant 0 : index
    %3 = vector.load %arg9[%c0, %c0_1] : memref<16x32xf32, #tpu.memory_space<vmem>>, vector<16x32xf32>
    %c0_2 = arith.constant 0 : index
    %c0_3 = arith.constant 0 : index
    %c0_4 = arith.constant 0 : index
    %c0_5 = arith.constant 0 : index
    %4 = vector.load %arg3[%c0_2, %c0_3, %c0_4, %c0_5] : memref<1x1x18x32xbf16, #tpu.memory_space<vmem>>, vector<1x1x16x32xbf16>
    %5 = vector.shape_cast %4 : vector<1x1x16x32xbf16> to vector<16x32xbf16>
    %c0_6 = arith.constant 0 : index
    %c0_7 = arith.constant 0 : index
    %c0_8 = arith.constant 0 : index
    %c0_9 = arith.constant 0 : index
    %6 = vector.load %arg5[%c0_6, %c0_7, %c0_8, %c0_9] : memref<1x3x32x32xbf16, #tpu.memory_space<vmem>>, vector<1x1x32x32xbf16>
    %7 = vector.shape_cast %6 : vector<1x1x32x32xbf16> to vector<32x32xbf16>
    %cst = arith.constant dense<0.000000e+00> : vector<16x32xf32>
    %8 = tpu.matmul %5, %7, %cst {dimension_numbers = #tpu.dot_dimension_numbers<[1], [0], [0], [1], [0, 0, 1, 1], [], []>} : vector<16x32xbf16>, vector<32x32xbf16>, vector<16x32xf32> -> vector<16x32xf32>
    %9 = arith.addf %3, %8 : vector<16x32xf32>
    %c0_10 = arith.constant 0 : index
    %c0_11 = arith.constant 0 : index
    %c1 = arith.constant 1 : index
    %c0_12 = arith.constant 0 : index
    %10 = vector.load %arg3[%c0_10, %c0_11, %c1, %c0_12] : memref<1x1x18x32xbf16, #tpu.memory_space<vmem>>, vector<1x1x16x32xbf16>
    %11 = vector.shape_cast %10 : vector<1x1x16x32xbf16> to vector<16x32xbf16>
    %c0_13 = arith.constant 0 : index
    %c1_14 = arith.constant 1 : index
    %c0_15 = arith.constant 0 : index
    %c0_16 = arith.constant 0 : index
    %12 = vector.load %arg5[%c0_13, %c1_14, %c0_15, %c0_16] : memref<1x3x32x32xbf16, #tpu.memory_space<vmem>>, vector<1x1x32x32xbf16>
    %13 = vector.shape_cast %12 : vector<1x1x32x32xbf16> to vector<32x32xbf16>
    %cst_17 = arith.constant dense<0.000000e+00> : vector<16x32xf32>
    %14 = tpu.matmul %11, %13, %cst_17 {dimension_numbers = #tpu.dot_dimension_numbers<[1], [0], [0], [1], [0, 0, 1, 1], [], []>} : vector<16x32xbf16>, vector<32x32xbf16>, vector<16x32xf32> -> vector<16x32xf32>
    %15 = arith.addf %9, %14 : vector<16x32xf32>
    %c0_18 = arith.constant 0 : index
    %c0_19 = arith.constant 0 : index
    %c2 = arith.constant 2 : index
    %c0_20 = arith.constant 0 : index
    %16 = vector.load %arg3[%c0_18, %c0_19, %c2, %c0_20] : memref<1x1x18x32xbf16, #tpu.memory_space<vmem>>, vector<1x1x16x32xbf16>
    %17 = vector.shape_cast %16 : vector<1x1x16x32xbf16> to vector<16x32xbf16>
    %c0_21 = arith.constant 0 : index
    %c2_22 = arith.constant 2 : index
    %c0_23 = arith.constant 0 : index
    %c0_24 = arith.constant 0 : index
    %18 = vector.load %arg5[%c0_21, %c2_22, %c0_23, %c0_24] : memref<1x3x32x32xbf16, #tpu.memory_space<vmem>>, vector<1x1x32x32xbf16>
    %19 = vector.shape_cast %18 : vector<1x1x32x32xbf16> to vector<32x32xbf16>
    %cst_25 = arith.constant dense<0.000000e+00> : vector<16x32xf32>
    %20 = tpu.matmul %17, %19, %cst_25 {dimension_numbers = #tpu.dot_dimension_numbers<[1], [0], [0], [1], [0, 0, 1, 1], [], []>} : vector<16x32xbf16>, vector<32x32xbf16>, vector<16x32xf32> -> vector<16x32xf32>
    %21 = arith.addf %15, %20 : vector<16x32xf32>
    %c0_26 = arith.constant 0 : index
    %c0_27 = arith.constant 0 : index
    %c0_28 = arith.constant 0 : index
    %c0_29 = arith.constant 0 : index
    %22 = vector.load %arg4[%c0_26, %c0_27, %c0_28, %c0_29] : memref<1x1x18x16xbf16, #tpu.memory_space<vmem>>, vector<1x1x16x16xbf16>
    %23 = vector.shape_cast %22 : vector<1x1x16x16xbf16> to vector<16x16xbf16>
    %c0_30 = arith.constant 0 : index
    %c0_31 = arith.constant 0 : index
    %c0_32 = arith.constant 0 : index
    %c0_33 = arith.constant 0 : index
    %24 = vector.load %arg6[%c0_30, %c0_31, %c0_32, %c0_33] : memref<1x3x16x32xbf16, #tpu.memory_space<vmem>>, vector<1x1x16x32xbf16>
    %25 = vector.shape_cast %24 : vector<1x1x16x32xbf16> to vector<16x32xbf16>
    %cst_34 = arith.constant dense<0.000000e+00> : vector<16x32xf32>
    %26 = tpu.matmul %23, %25, %cst_34 {dimension_numbers = #tpu.dot_dimension_numbers<[1], [0], [0], [1], [0, 0, 1, 1], [], []>} : vector<16x16xbf16>, vector<16x32xbf16>, vector<16x32xf32> -> vector<16x32xf32>
    %27 = arith.addf %21, %26 : vector<16x32xf32>
    %c0_35 = arith.constant 0 : index
    %c0_36 = arith.constant 0 : index
    %c1_37 = arith.constant 1 : index
    %c0_38 = arith.constant 0 : index
    %28 = vector.load %arg4[%c0_35, %c0_36, %c1_37, %c0_38] : memref<1x1x18x16xbf16, #tpu.memory_space<vmem>>, vector<1x1x16x16xbf16>
    %29 = vector.shape_cast %28 : vector<1x1x16x16xbf16> to vector<16x16xbf16>
    %c0_39 = arith.constant 0 : index
    %c1_40 = arith.constant 1 : index
    %c0_41 = arith.constant 0 : index
    %c0_42 = arith.constant 0 : index
    %30 = vector.load %arg6[%c0_39, %c1_40, %c0_41, %c0_42] : memref<1x3x16x32xbf16, #tpu.memory_space<vmem>>, vector<1x1x16x32xbf16>
    %31 = vector.shape_cast %30 : vector<1x1x16x32xbf16> to vector<16x32xbf16>
    %cst_43 = arith.constant dense<0.000000e+00> : vector<16x32xf32>
    %32 = tpu.matmul %29, %31, %cst_43 {dimension_numbers = #tpu.dot_dimension_numbers<[1], [0], [0], [1], [0, 0, 1, 1], [], []>} : vector<16x16xbf16>, vector<16x32xbf16>, vector<16x32xf32> -> vector<16x32xf32>
    %33 = arith.addf %27, %32 : vector<16x32xf32>
    %c0_44 = arith.constant 0 : index
    %c0_45 = arith.constant 0 : index
    %c2_46 = arith.constant 2 : index
    %c0_47 = arith.constant 0 : index
    %34 = vector.load %arg4[%c0_44, %c0_45, %c2_46, %c0_47] : memref<1x1x18x16xbf16, #tpu.memory_space<vmem>>, vector<1x1x16x16xbf16>
    %35 = vector.shape_cast %34 : vector<1x1x16x16xbf16> to vector<16x16xbf16>
    %c0_48 = arith.constant 0 : index
    %c2_49 = arith.constant 2 : index
    %c0_50 = arith.constant 0 : index
    %c0_51 = arith.constant 0 : index
    %36 = vector.load %arg6[%c0_48, %c2_49, %c0_50, %c0_51] : memref<1x3x16x32xbf16, #tpu.memory_space<vmem>>, vector<1x1x16x32xbf16>
    %37 = vector.shape_cast %36 : vector<1x1x16x32xbf16> to vector<16x32xbf16>
    %cst_52 = arith.constant dense<0.000000e+00> : vector<16x32xf32>
    %38 = tpu.matmul %35, %37, %cst_52 {dimension_numbers = #tpu.dot_dimension_numbers<[1], [0], [0], [1], [0, 0, 1, 1], [], []>} : vector<16x16xbf16>, vector<16x32xbf16>, vector<16x32xf32> -> vector<16x32xf32>
    %39 = arith.addf %33, %38 : vector<16x32xf32>
    %c0_53 = arith.constant 0 : index
    %c0_54 = arith.constant 0 : index
    %40 = vector.load %arg9[%c0_53, %c0_54] : memref<16x32xf32, #tpu.memory_space<vmem>>, vector<16x32xf32>
    tpu.vector_store %arg9[%c0_53, %c0_54], %39 {strides = array<i32>} : memref<16x32xf32, #tpu.memory_space<vmem>>, vector<16x32xf32>,
    %c2_i32 = arith.constant 2 : i32
    %41 = arith.cmpi eq, %arg2, %c2_i32 : i32
    %42 = arith.extui %41 : i1 to i32
    %c0_i32_55 = arith.constant 0 : i32
    %43 = arith.cmpi ne, %42, %c0_i32_55 : i32
    scf.if %43 {
      %c0_56 = arith.constant 0 : index
      %c0_57 = arith.constant 0 : index
      %44 = vector.load %arg9[%c0_56, %c0_57] : memref<16x32xf32, #tpu.memory_space<vmem>>, vector<16x32xf32>
      %c0_58 = arith.constant 0 : index
      %c0_59 = arith.constant 0 : index
      %45 = vector.load %arg7[%c0_58, %c0_59] : memref<1x32xf32, #tpu.memory_space<vmem>>, vector<1x32xf32>
      %46 = vector.broadcast %45 : vector<1x32xf32> to vector<16x32xf32>
      %47 = arith.addf %44, %46 : vector<16x32xf32>
      %cst_60 = arith.constant 0.000000e+00 : f32
      %48 = vector.broadcast %cst_60 : f32 to vector<16x32xf32>
      %49 = arith.maximumf %47, %48 : vector<16x32xf32>
      %50 = arith.truncf %49 : vector<16x32xf32> to vector<16x32xbf16>
      %c0_61 = arith.constant 0 : index
      %c0_62 = arith.constant 0 : index
      %c0_63 = arith.constant 0 : index
      %c0_64 = arith.constant 0 : index
      %51 = vector.load %arg8[%c0_61, %c0_62, %c0_63, %c0_64] : memref<1x1x16x32xbf16, #tpu.memory_space<vmem>>, vector<1x1x16x32xbf16>
      %52 = vector.shape_cast %51 : vector<1x1x16x32xbf16> to vector<16x32xbf16>
      %53 = vector.shape_cast %50 : vector<16x32xbf16> to vector<1x1x16x32xbf16>
      tpu.vector_store %arg8[%c0_61, %c0_62, %c0_63, %c0_64], %53 {strides = array<i32>} : memref<1x1x16x32xbf16, #tpu.memory_space<vmem>>, vector<1x1x16x32xbf16>,
    } else {
    }
    return
  }
  func.func @transform_0(%arg0: i32, %arg1: i32, %arg2: i32) -> (i32, i32, i32, i32) {
    %c1_i32 = arith.constant 1 : i32
    %0 = arith.muli %arg2, %c1_i32 : i32
    %1 = arith.addi %arg1, %0 : i32
    %c0_i32 = arith.constant 0 : i32
    %c0_i32_0 = arith.constant 0 : i32
    %c0_i32_1 = arith.constant 0 : i32
    return %arg0, %1, %c0_i32, %c0_i32_0 : i32, i32, i32, i32
  }
  func.func @transform_1(%arg0: i32, %arg1: i32, %arg2: i32) -> (i32, i32, i32, i32) {
    %c1_i32 = arith.constant 1 : i32
    %0 = arith.muli %arg2, %c1_i32 : i32
    %1 = arith.addi %arg1, %0 : i32
    %c0_i32 = arith.constant 0 : i32
    %c0_i32_0 = arith.constant 0 : i32
    %c0_i32_1 = arith.constant 0 : i32
    return %arg0, %1, %c0_i32, %c0_i32_0 : i32, i32, i32, i32
  }
  func.func @transform_2(%arg0: i32, %arg1: i32, %arg2: i32) -> (i32, i32, i32, i32) {
    %c0_i32 = arith.constant 0 : i32
    %c0_i32_0 = arith.constant 0 : i32
    %c0_i32_1 = arith.constant 0 : i32
    %c0_i32_2 = arith.constant 0 : i32
    return %arg2, %c0_i32, %c0_i32_0, %c0_i32_1 : i32, i32, i32, i32
  }
  func.func @transform_3(%arg0: i32, %arg1: i32, %arg2: i32) -> (i32, i32, i32, i32) {
    %c0_i32 = arith.constant 0 : i32
    %c0_i32_0 = arith.constant 0 : i32
    %c0_i32_1 = arith.constant 0 : i32
    %c0_i32_2 = arith.constant 0 : i32
    return %arg2, %c0_i32, %c0_i32_0, %c0_i32_1 : i32, i32, i32, i32
  }
  func.func @transform_4(%arg0: i32, %arg1: i32, %arg2: i32) -> (i32, i32) {
    %c0_i32 = arith.constant 0 : i32
    %c0_i32_0 = arith.constant 0 : i32
    %c0_i32_1 = arith.constant 0 : i32
    return %c0_i32, %c0_i32_0 : i32, i32
  }
  func.func @transform_5(%arg0: i32, %arg1: i32, %arg2: i32) -> (i32, i32, i32, i32) {
    %c0_i32 = arith.constant 0 : i32
    %c0_i32_0 = arith.constant 0 : i32
    %c0_i32_1 = arith.constant 0 : i32
    return %arg0, %arg1, %c0_i32, %c0_i32_0 : i32, i32, i32, i32
  }
}

module attributes {stable_mosaic.version = 11 : i64} {
  func.func @_mm_bias_act_kernel(%arg0: i32, %arg1: i32, %arg2: i32, %arg3: memref<256x32xbf16, #tpu.memory_space<vmem>>, %arg4: memref<32x128xbf16, #tpu.memory_space<vmem>>, %arg5: memref<1x128xf32, #tpu.memory_space<vmem>>, %arg6: memref<256x128xf32, #tpu.memory_space<vmem>>, %arg7: memref<256x128xf32, #tpu.memory_space<vmem>>) attributes {dimension_semantics = [#tpu.dimension_semantics<parallel>, #tpu.dimension_semantics<parallel>, #tpu.dimension_semantics<arbitrary>], iteration_bounds = array<i64: 2, 1, 1>, scalar_prefetch = 0 : i64, scratch_operands = 1 : i64, tpu.core_type = #tpu.core_type<tc>, window_params = [{transform_indices = @transform_0, window_bounds = array<i64: 256, 32>}, {transform_indices = @transform_1, window_bounds = array<i64: 32, 128>}, {transform_indices = @transform_2, window_bounds = array<i64: 1, 128>}, {transform_indices = @transform_3, window_bounds = array<i64: 256, 128>}]} {
    %c0_i32 = arith.constant 0 : i32
    %0 = arith.cmpi eq, %arg2, %c0_i32 : i32
    %1 = arith.extui %0 : i1 to i32
    %c0_i32_0 = arith.constant 0 : i32
    %2 = arith.cmpi ne, %1, %c0_i32_0 : i32
    scf.if %2 {
      %cst_10 = arith.constant 0.000000e+00 : f32
      %12 = vector.broadcast %cst_10 : f32 to vector<256x128xf32>
      %c0_11 = arith.constant 0 : index
      %c0_12 = arith.constant 0 : index
      %13 = vector.load %arg7[%c0_11, %c0_12] : memref<256x128xf32, #tpu.memory_space<vmem>>, vector<256x128xf32>
      tpu.vector_store %arg7[%c0_11, %c0_12], %12 {strides = array<i32>} : memref<256x128xf32, #tpu.memory_space<vmem>>, vector<256x128xf32>,
    } else {
    }
    %c0 = arith.constant 0 : index
    %c0_1 = arith.constant 0 : index
    %3 = vector.load %arg7[%c0, %c0_1] : memref<256x128xf32, #tpu.memory_space<vmem>>, vector<256x128xf32>
    %c0_2 = arith.constant 0 : index
    %c0_3 = arith.constant 0 : index
    %4 = vector.load %arg3[%c0_2, %c0_3] : memref<256x32xbf16, #tpu.memory_space<vmem>>, vector<256x32xbf16>
    %c0_4 = arith.constant 0 : index
    %c0_5 = arith.constant 0 : index
    %5 = vector.load %arg4[%c0_4, %c0_5] : memref<32x128xbf16, #tpu.memory_space<vmem>>, vector<32x128xbf16>
    %cst = arith.constant dense<0.000000e+00> : vector<256x128xf32>
    %6 = tpu.matmul %4, %5, %cst {dimension_numbers = #tpu.dot_dimension_numbers<[1], [0], [0], [1], [0, 0, 1, 1], [], []>} : vector<256x32xbf16>, vector<32x128xbf16>, vector<256x128xf32> -> vector<256x128xf32>
    %7 = arith.addf %3, %6 : vector<256x128xf32>
    %c0_6 = arith.constant 0 : index
    %c0_7 = arith.constant 0 : index
    %8 = vector.load %arg7[%c0_6, %c0_7] : memref<256x128xf32, #tpu.memory_space<vmem>>, vector<256x128xf32>
    tpu.vector_store %arg7[%c0_6, %c0_7], %7 {strides = array<i32>} : memref<256x128xf32, #tpu.memory_space<vmem>>, vector<256x128xf32>,
    %c0_i32_8 = arith.constant 0 : i32
    %9 = arith.cmpi eq, %arg2, %c0_i32_8 : i32
    %10 = arith.extui %9 : i1 to i32
    %c0_i32_9 = arith.constant 0 : i32
    %11 = arith.cmpi ne, %10, %c0_i32_9 : i32
    scf.if %11 {
      %c0_10 = arith.constant 0 : index
      %c0_11 = arith.constant 0 : index
      %12 = vector.load %arg7[%c0_10, %c0_11] : memref<256x128xf32, #tpu.memory_space<vmem>>, vector<256x128xf32>
      %c0_12 = arith.constant 0 : index
      %c0_13 = arith.constant 0 : index
      %13 = vector.load %arg5[%c0_12, %c0_13] : memref<1x128xf32, #tpu.memory_space<vmem>>, vector<1x128xf32>
      %14 = vector.broadcast %13 : vector<1x128xf32> to vector<256x128xf32>
      %15 = arith.addf %12, %14 : vector<256x128xf32>
      %c0_14 = arith.constant 0 : index
      %c0_15 = arith.constant 0 : index
      %16 = vector.load %arg6[%c0_14, %c0_15] : memref<256x128xf32, #tpu.memory_space<vmem>>, vector<256x128xf32>
      tpu.vector_store %arg6[%c0_14, %c0_15], %15 {strides = array<i32>} : memref<256x128xf32, #tpu.memory_space<vmem>>, vector<256x128xf32>,
    } else {
    }
    return
  }
  func.func @transform_0(%arg0: i32, %arg1: i32, %arg2: i32) -> (i32, i32) {
    %c0_i32 = arith.constant 0 : i32
    return %arg0, %arg2 : i32, i32
  }
  func.func @transform_1(%arg0: i32, %arg1: i32, %arg2: i32) -> (i32, i32) {
    %c0_i32 = arith.constant 0 : i32
    return %arg2, %arg1 : i32, i32
  }
  func.func @transform_2(%arg0: i32, %arg1: i32, %arg2: i32) -> (i32, i32) {
    %c0_i32 = arith.constant 0 : i32
    %c0_i32_0 = arith.constant 0 : i32
    return %c0_i32, %arg1 : i32, i32
  }
  func.func @transform_3(%arg0: i32, %arg1: i32, %arg2: i32) -> (i32, i32) {
    %c0_i32 = arith.constant 0 : i32
    return %arg0, %arg1 : i32, i32
  }
}

</mosaic_0001>

<llo_original>
// kernel: deeplab_forward.13
$region0: #{deeplab_forward.13}
  #allocation0 [shape = 'u32[]', space=smem, size = 0x4, offset = 0x4, fixed_abs, tag = 'smem constant byte address 0x4 - core index']
  #allocation1 [shape = 'u32[144,128]{1,0:T(1,128)}', space=vmem, size = 0x12000, scoped, tag = 'internal scratch']
  #allocation2 [shape = 'f32[8,32]{1,0:T(8,128)}', space=vmem, size = 0x1000, scoped, tag = 'scratch operand']
  %s0 = inlined_call_operand.vmem [shape: bf16[2,44,44,16], index: 0, kind: input, shape index: {}]
  %s1 = inlined_call_operand.vmem [shape: bf16[3,3,16,32], index: 1, kind: input, shape index: {}]
  %s2 = inlined_call_operand.vmem [shape: f32[1,32], index: 2, kind: input, shape index: {}]
  %s3 = inlined_call_operand.vmem [shape: bf16[2,8,8,32], index: 3, kind: output, shape index: {}]
  %s4 = sld [smem:[#allocation0]]
  $region53: #{deeplab_forward.13} parent=0
    _
  %s6 = ssub.s32 1, %s4
  %s7 = scalar_select 0, %s6, %s4
  loop: start=0, step=1, limit=50
  $region2: #{deeplab_forward.13} parent=0 // loop_pre_header
    _
  $region3: #{deeplab_forward.13} parent=0 // loop_header
    %s9 = sphi 0, %s13
    %p10 = scmp.ge.s32.totalorder %s9, 50
    %s16 = sphi 0, %s35
    %s17 = sphi 0, %s31
    %s18 = sphi 0, %s27
    %s19 = sphi 0, %s16
    %s20 = sphi 0, %s17
    %s21 = sphi 0, %s18
    %s22 = sphi 0, %s19
    %s23 = sphi 0, %s20
    %s24 = sphi 0, %s21
    %s44 = sphi 0, %s46
    %s47 = sphi 0, %s44
    %s48 = sphi 0, %s47
    %s64 = sphi 0, %s48
    %s70 = sphi 0, %s72
    %s73 = sphi 0, %s70
    %s74 = sphi 0, %s73
    %s90 = sphi 0, %s74
    %s94 = sphi 0, %s94
    %s96 = sphi 0, %s94
    %s97 = sphi 0, %s96
    %s111 = sphi 0, %s97
    %s119 = sphi 0, %s121
    %s122 = sphi 0, %s119
    %s123 = sphi 0, %s122
    %s139 = sphi 0, %s123
  $region4: #{deeplab_forward.13} parent=0 // loop_header_branch
    %12 = sbr.rel (%p10) target = $region8
  $region5: #{deeplab_forward.13} parent=0 // loop_body
    %s14 = ssub.s32 %s9, 1
    %s15 = ssub.s32 %s9, 2
    %s25 = sadd.s32 1, %s18
    %p26 = scmp.ge.s32.totalorder %s25, 3
    %s27 = scalar_select %p26, 0, %s25
    %s28 = sadd.s32 1, %s17
    %s29 = scalar_select %p26, %s28, %s17
    %p30 = scmp.ge.s32.totalorder %s29, 8
    %s31 = scalar_select %p30, 0, %s29
    %s32 = sadd.s32 1, %s16
    %s33 = scalar_select %p30, %s32, %s16
    %p34 = scmp.ge.s32.totalorder %s33, 2
    %s35 = scalar_select %p34, 0, %s33
    %s36 = smul.u32 %s18, 18
    %s37 = sadd.s32 %s17, %s36
    %s38 = smul.u32 %s27, 18
    %s39 = sadd.s32 %s31, %s38
    %s40 = ssub.s32 %s16, %s35
    %s41 = ssub.s32 %s37, %s39
    %s42 = sor.u32 %s40, %s41
    %p43 = scmp.eq.s32.totalorder %s42, 0
    %s45 = sadd.s32 %s44, 1
    %s46 = scalar_select %p43, %s44, %s45
    %p49 = pneg %p43
    %p50 = scmp.eq.s32.totalorder %s9, 47
    %p51 = por %p49, %p50
    %p52 = scmp.ne.s32.totalorder %s44, %s47
    %p53 = scmp.eq.s32.totalorder %s9, 0
    %p54 = por %p52, %p53
    %p55 = scmp.ne.s32.totalorder %s44, %s47
    %p56 = scmp.eq.s32.totalorder %s14, 47
    %p57 = por %p55, %p56
    %p58 = scmp.ne.s32.totalorder %s47, %s48
    %p59 = scmp.eq.s32.totalorder %s14, 0
    %p60 = por %p58, %p59
    %p61 = scmp.ne.s32.totalorder %s47, %s48
    %p62 = scmp.eq.s32.totalorder %s15, 47
    %p63 = por %p61, %p62
    %p65 = scmp.ne.s32.totalorder %s48, %s64
    %p66 = scmp.eq.s32.totalorder %s15, 0
    %p67 = por %p65, %p66
    %s68 = ssub.s32 %s18, %s27
    %p69 = scmp.eq.s32.totalorder %s68, 0
    %s71 = sadd.s32 %s70, 1
    %s72 = scalar_select %p69, %s70, %s71
    %p75 = pneg %p69
    %p76 = scmp.eq.s32.totalorder %s9, 47
    %p77 = por %p75, %p76
    %p78 = scmp.ne.s32.totalorder %s70, %s73
    %p79 = scmp.eq.s32.totalorder %s9, 0
    %p80 = por %p78, %p79
    %p81 = scmp.ne.s32.totalorder %s70, %s73
    %p82 = scmp.eq.s32.totalorder %s14, 47
    %p83 = por %p81, %p82
    %p84 = scmp.ne.s32.totalorder %s73, %s74
    %p85 = scmp.eq.s32.totalorder %s14, 0
    %p86 = por %p84, %p85
    %p87 = scmp.ne.s32.totalorder %s73, %s74
    %p88 = scmp.eq.s32.totalorder %s15, 47
    %p89 = por %p87, %p88
    %p91 = scmp.ne.s32.totalorder %s74, %s90
    %p92 = scmp.eq.s32.totalorder %s15, 0
    %p93 = por %p91, %p92
    %s95 = sadd.s32 %s94, 1
    %p98 = scmp.eq.s32.totalorder %s9, 47
    %p99 = scmp.ne.s32.totalorder %s94, %s96
    %p100 = scmp.eq.s32.totalorder %s9, 0
    %p101 = por %p99, %p100
    %p102 = scmp.ne.s32.totalorder %s94, %s96
    %p103 = scmp.eq.s32.totalorder %s14, 47
    %p104 = por %p102, %p103
    %p105 = scmp.ne.s32.totalorder %s96, %s97
    %p106 = scmp.eq.s32.totalorder %s14, 0
    %p107 = por %p105, %p106
    %p108 = scmp.ne.s32.totalorder %s96, %s97
    %p109 = scmp.eq.s32.totalorder %s15, 47
    %p110 = por %p108, %p109
    %p112 = scmp.ne.s32.totalorder %s97, %s111
    %p113 = scmp.eq.s32.totalorder %s15, 0
    %p114 = por %p112, %p113
    %s115 = ssub.s32 %s16, %s35
    %s116 = ssub.s32 %s17, %s31
    %s117 = sor.u32 %s115, %s116
    %p118 = scmp.eq.s32.totalorder %s117, 0
    %s120 = sadd.s32 %s119, 1
    %s121 = scalar_select %p118, %s119, %s120
    %p124 = pneg %p118
    %p125 = scmp.eq.s32.totalorder %s9, 47
    %p126 = por %p124, %p125
    %p127 = scmp.ne.s32.totalorder %s119, %s122
    %p128 = scmp.eq.s32.totalorder %s9, 0
    %p129 = por %p127, %p128
    %p130 = scmp.ne.s32.totalorder %s119, %s122
    %p131 = scmp.eq.s32.totalorder %s14, 47
    %p132 = por %p130, %p131
    %p133 = scmp.ne.s32.totalorder %s122, %s123
    %p134 = scmp.eq.s32.totalorder %s14, 0
    %p135 = por %p133, %p134
    %p136 = scmp.ne.s32.totalorder %s122, %s123
    %p137 = scmp.eq.s32.totalorder %s15, 47
    %p138 = por %p136, %p137
    %p140 = scmp.ne.s32.totalorder %s123, %s139
    %p141 = scmp.eq.s32.totalorder %s15, 0
    %p142 = por %p140, %p141
    %p143 = scmp.le.s32.totalorder 1, %s9
    %p144 = scmp.lt.s32.totalorder %s9, 49
    %p145 = pnand %p143, %p144
    %p146 = pneg %p145
    // Predicated region
    $region9: #{deeplab_forward.13} parent=5 // pred_check
      _
    $region10: #{deeplab_forward.13} parent=5 // pred_check_branch
      %148 = sbr.rel (%p145) target = $region12
    $region11: #{deeplab_forward.13} parent=5 // pred_region
      %s149 = ssub.s32 %s9, 1
      // Predicated region
      $region13: #{deeplab_forward.13} parent=11 // pred_check
        %p150 = pneg %p107
      $region14: #{deeplab_forward.13} parent=11 // pred_check_branch
        %152 = sbr.rel (%p150) target = $region16
      $region15: #{deeplab_forward.13} parent=11 // pred_region
        _
      $region16: #{deeplab_forward.13} parent=11 // pred_fallthru
        _
    $region12: #{deeplab_forward.13} parent=5 // pred_fallthru
      _
    %p153 = scmp.lt.s32.totalorder %s9, 48
    // Predicated region
    $region17: #{deeplab_forward.13} parent=5 // pred_check
      %p154 = pneg %p153
    $region18: #{deeplab_forward.13} parent=5 // pred_check_branch
      %156 = sbr.rel (%p154) target = $region20
    $region19: #{deeplab_forward.13} parent=5 // pred_region
      // Predicated region
      $region21: #{deeplab_forward.13} parent=19 // pred_check
        %p157 = pneg %p54
      $region22: #{deeplab_forward.13} parent=19 // pred_check_branch
        %159 = sbr.rel (%p157) target = $region24
      $region23: #{deeplab_forward.13} parent=19 // pred_region
        %s160 = smul.u32 %s18, 18
        %s161 = sadd.s32 %s17, %s160
        %p162 = scmp.lt.s32.totalorder %s16, 1
        %s163 = scalar_select %p162, %s16, 1
        %p164 = scmp.lt.s32.totalorder %s161, 43
        %s165 = scalar_select %p164, %s161, 43
        %s166 = smul.addr %s165, 6
        %s167 = smul.addr %s163, 264
        %s168 = sadd.s32 %s166, %s167
        %s169 = smul.addr %s168, 4
        %s170 = scalar_lea.vmem %s0, %s169
        %s171 = smul.u32 %s18, 18
        %s172 = sadd.s32 %s17, %s171
      $region24: #{deeplab_forward.13} parent=19 // pred_fallthru
        _
      // Predicated region
      $region25: #{deeplab_forward.13} parent=19 // pred_check
        %p173 = pneg %p80
      $region26: #{deeplab_forward.13} parent=19 // pred_check_branch
        %175 = sbr.rel (%p173) target = $region28
      $region27: #{deeplab_forward.13} parent=19 // pred_region
        %p176 = scmp.lt.s32.totalorder %s18, 2
        %s177 = scalar_select %p176, %s18, 2
        %s178 = smul.addr %s177, 6
        %s179 = smul.addr %s178, 4
        %s180 = scalar_lea.vmem %s1, %s179
      $region28: #{deeplab_forward.13} parent=19 // pred_fallthru
        _
    $region20: #{deeplab_forward.13} parent=5 // pred_fallthru
      _
    %p181 = scmp.le.s32.totalorder 1, %s9
    %p182 = scmp.lt.s32.totalorder %s9, 49
    %p183 = pnand %p181, %p182
    %p184 = pneg %p183
    // Predicated region
    $region29: #{deeplab_forward.13} parent=5 // pred_check
      _
    $region30: #{deeplab_forward.13} parent=5 // pred_check_branch
      %186 = sbr.rel (%p183) target = $region32
    $region31: #{deeplab_forward.13} parent=5 // pred_region
      %s187 = ssub.s32 %s9, 1
      %s188 = smul.u32 %s21, 18
      %s189 = sadd.s32 %s20, %s188
      %p190 = scmp.lt.s32.totalorder %s19, 1
      %s191 = scalar_select %p190, %s19, 1
      %p192 = scmp.lt.s32.totalorder %s189, 43
      %s193 = scalar_select %p192, %s189, 43
      %s194 = smul.addr %s193, 6
      %s195 = smul.addr %s191, 264
      %s196 = sadd.s32 %s194, %s195
      %s197 = smul.addr %s196, 4
      %s198 = scalar_lea.vmem %s0, %s197
      %p199 = pneg %p60
      %p200 = pneg %p57
      %p201 = scmp.lt.s32.totalorder %s21, 2
      %s202 = scalar_select %p201, %s21, 2
      %s203 = smul.addr %s202, 6
      %s204 = smul.addr %s203, 4
      %s205 = scalar_lea.vmem %s1, %s204
      %p206 = pneg %p86
      %p207 = pneg %p83
      %p208 = pneg %p107
      %p209 = pneg %p104
      %p210 = pneg %p135
      %p211 = pneg %p132
      %p212 = scmp.lt.s32.totalorder %s19, 1
      %s213 = scalar_select %p212, %s19, 1
      %p214 = scmp.lt.s32.totalorder %s20, 7
      %s215 = scalar_select %p214, %s20, 7
      %s216 = smul.addr %s213, 8
      %s217 = sadd.s32 %s215, %s216
      %s218 = smul.addr %s217, 4
      %s219 = scalar_lea.vmem %s3, %s218
      %s220 = smul.u32 %s21, 18
      %s221 = sadd.s32 %s20, %s220
      %p222 = scmp.lt.s32.totalorder %s19, 1
      %s223 = scalar_select %p222, %s19, 1
      %p224 = scmp.lt.s32.totalorder %s221, 43
      %s225 = scalar_select %p224, %s221, 43
      %s226 = smul.addr %s225, 6
      %s227 = smul.addr %s223, 264
      %s228 = sadd.s32 %s226, %s227
      %s229 = smul.addr %s228, 4
      %s230 = scalar_lea.vmem %s0, %s229
      %s231 = smul.u32 %s21, 18
      %s232 = sadd.s32 %s20, %s231
      %p233 = scmp.lt.s32.totalorder %s21, 2
      %s234 = scalar_select %p233, %s21, 2
      %s235 = smul.addr %s234, 6
      %s236 = smul.addr %s235, 4
      %s237 = scalar_lea.vmem %s1, %s236
      %p238 = scmp.lt.s32.totalorder %s19, 1
      %s239 = scalar_select %p238, %s19, 1
      %p240 = scmp.lt.s32.totalorder %s20, 7
      %s241 = scalar_select %p240, %s20, 7
      %s242 = smul.addr %s239, 8
      %s243 = sadd.s32 %s241, %s242
      %s244 = smul.addr %s243, 4
      %s245 = scalar_lea.vmem %s3, %s244
      %p247 = scmp.eq.s32.totalorder %s21, 0
      // Predicated region
      $region33: #{deeplab_forward.13} parent=31 // pred_check
        %p248 = pneg %p247
      $region34: #{deeplab_forward.13} parent=31 // pred_check_branch
        %250 = sbr.rel (%p248) target = $region36
      $region35: #{deeplab_forward.13} parent=31 // pred_region
        %vm251 = vcmask 261120
        %252 = vst.msk [vmem:[#allocation2] sm:$0xff] %vm251, 0.0
      $region36: #{deeplab_forward.13} parent=31 // pred_fallthru
        _
      %v253 = vld [vmem:[#allocation2] sm:$0xff]
      %v254 = vld [vmem:[%s230] sm:$0xf]
      %v255 = vld [vmem:[%s237] sm:$0xf]
      %v256 = vld [vmem:[%s237 + $0x4] sm:$0xf]
      %v259 = vunpack.c.l.b16 %v255
      %v260 = vunpack.c.l.b16 %v256
      %v261 = vpack.c.b16 %v260, %v259
      %vm263 = vcmask 130048
      %v265 = vsel %vm263, %v254, 0
      %267 = vmatprep.subr.bf16.mxu0 0
      %268 = vmatpush1.bf16.msra.mxu0 0
      %269 = vmatprep.subr.bf16.mxu0 0
      %270 = vmatpush1.bf16.msra.mxu0 0
      %271 = vmatprep.subr.bf16.mxu0 0
      %272 = vmatpush1.bf16.msra.mxu0 0
      %273 = vmatprep.subr.bf16.mxu0 0
      %274 = vmatpush1.bf16.msra.mxu0 0
      %275 = vmatprep.subr.bf16.mxu0 0
      %276 = vmatpush1.bf16.msra.mxu0 0
      %277 = vmatprep.subr.bf16.mxu0 0
      %278 = vmatpush1.bf16.msra.mxu0 0
      %279 = vmatprep.subr.bf16.mxu0 0
      %280 = vmatpush1.bf16.msra.mxu0 0
      %281 = vmatprep.subr.bf16.mxu0 0
      %282 = vmatpush1.bf16.msra.mxu0 %v261
      %283 = vmatprep.subr.bf16.mxu0 0
      %284 = vmatpush2.bf16.msra.mxu0 0
      %285 = vmatprep.subr.bf16.mxu0 0
      %286 = vmatpush2.bf16.msra.mxu0 0
      %287 = vmatprep.subr.bf16.mxu0 0
      %288 = vmatpush2.bf16.msra.mxu0 0
      %289 = vmatprep.subr.bf16.mxu0 0
      %290 = vmatpush2.bf16.msra.mxu0 0
      %291 = vmatprep.subr.bf16.mxu0 0
      %292 = vmatpush2.bf16.msra.mxu0 0
      %293 = vmatprep.subr.bf16.mxu0 0
      %294 = vmatpush2.bf16.msra.mxu0 0
      %295 = vmatprep.subr.bf16.mxu0 0
      %296 = vmatpush2.bf16.msra.mxu0 0
      %297 = vmatprep.subr.bf16.mxu0 0
      %298 = vmatpush2.bf16.msra.mxu0 0
      %299 = vmatprep.mubr.bf16.mxu0 0
      %300 = vmatmul.mubr.bf16.gmra.mxu0 %v265
      %v301 = vpop.f32.mrf.mxu0
      %v302 = vadd.f32 0.0, %v301
      %v303 = vpop.f32.mrf.mxu0
      %v304 = vpop.f32.mrf.mxu0
      %v305 = vpop.f32.mrf.mxu0
      %306 = vdwg.mxu0
      %v307 = vadd.f32 %v253, %v302
      %v308 = vld [vmem:[%s230 + $0x8] sm:$0xe]
      %v309 = vld [vmem:[%s230 + $0xc] sm:$0x1]
      %s310 = scalar_lea.vmem %s237, 8
      %v311 = vld [vmem:[%s310] sm:$0xf]
      %v312 = vld [vmem:[%s310 + $0x4] sm:$0xf]
      %v315 = vunpack.c.l.b16 %v308
      %v316 = vunpack.c.l.b16 %v309
      %v317 = vpack.c.b16 %v316, %v315
      %v318 = vrot.slane %v317, 1
      %v321 = vunpack.c.l.b16 %v311
      %v322 = vunpack.c.l.b16 %v312
      %v323 = vpack.c.b16 %v322, %v321
      %v326 = vsel %vm263, %v318, 0
      %328 = vmatprep.subr.bf16.mxu0 0
      %329 = vmatpush1.bf16.msra.mxu0 0
      %330 = vmatprep.subr.bf16.mxu0 0
      %331 = vmatpush1.bf16.msra.mxu0 0
      %332 = vmatprep.subr.bf16.mxu0 0
      %333 = vmatpush1.bf16.msra.mxu0 0
      %334 = vmatprep.subr.bf16.mxu0 0
      %335 = vmatpush1.bf16.msra.mxu0 0
      %336 = vmatprep.subr.bf16.mxu0 0
      %337 = vmatpush1.bf16.msra.mxu0 0
      %338 = vmatprep.subr.bf16.mxu0 0
      %339 = vmatpush1.bf16.msra.mxu0 0
      %340 = vmatprep.subr.bf16.mxu0 0
      %341 = vmatpush1.bf16.msra.mxu0 0
      %342 = vmatprep.subr.bf16.mxu0 0
      %343 = vmatpush1.bf16.msra.mxu0 %v323
      %344 = vmatprep.subr.bf16.mxu0 0
      %345 = vmatpush2.bf16.msra.mxu0 0
      %346 = vmatprep.subr.bf16.mxu0 0
      %347 = vmatpush2.bf16.msra.mxu0 0
      %348 = vmatprep.subr.bf16.mxu0 0
      %349 = vmatpush2.bf16.msra.mxu0 0
      %350 = vmatprep.subr.bf16.mxu0 0
      %351 = vmatpush2.bf16.msra.mxu0 0
      %352 = vmatprep.subr.bf16.mxu0 0
      %353 = vmatpush2.bf16.msra.mxu0 0
      %354 = vmatprep.subr.bf16.mxu0 0
      %355 = vmatpush2.bf16.msra.mxu0 0
      %356 = vmatprep.subr.bf16.mxu0 0
      %357 = vmatpush2.bf16.msra.mxu0 0
      %358 = vmatprep.subr.bf16.mxu0 0
      %359 = vmatpush2.bf16.msra.mxu0 0
      %360 = vmatprep.mubr.bf16.mxu0 0
      %361 = vmatmul.mubr.bf16.gmra.mxu0 %v326
      %v362 = vpop.f32.mrf.mxu0
      %v363 = vadd.f32 0.0, %v362
      %v364 = vpop.f32.mrf.mxu0
      %v365 = vpop.f32.mrf.mxu0
      %v366 = vpop.f32.mrf.mxu0
      %367 = vdwg.mxu0
      %v368 = vadd.f32 %v307, %v363
      %v369 = vld [vmem:[%s230 + $0x10] sm:$0xc]
      %v370 = vld [vmem:[%s230 + $0x14] sm:$0x3]
      %s371 = scalar_lea.vmem %s237, 16
      %v372 = vld [vmem:[%s371] sm:$0xf]
      %v373 = vld [vmem:[%s371 + $0x4] sm:$0xf]
      %v376 = vunpack.c.l.b16 %v369
      %v377 = vunpack.c.l.b16 %v370
      %v378 = vpack.c.b16 %v377, %v376
      %v379 = vrot.slane %v378, 2
      %v382 = vunpack.c.l.b16 %v372
      %v383 = vunpack.c.l.b16 %v373
      %v384 = vpack.c.b16 %v383, %v382
      %v387 = vsel %vm263, %v379, 0
      %389 = vmatprep.subr.bf16.mxu0 0
      %390 = vmatpush1.bf16.msra.mxu0 0
      %391 = vmatprep.subr.bf16.mxu0 0
      %392 = vmatpush1.bf16.msra.mxu0 0
      %393 = vmatprep.subr.bf16.mxu0 0
      %394 = vmatpush1.bf16.msra.mxu0 0
      %395 = vmatprep.subr.bf16.mxu0 0
      %396 = vmatpush1.bf16.msra.mxu0 0
      %397 = vmatprep.subr.bf16.mxu0 0
      %398 = vmatpush1.bf16.msra.mxu0 0
      %399 = vmatprep.subr.bf16.mxu0 0
      %400 = vmatpush1.bf16.msra.mxu0 0
      %401 = vmatprep.subr.bf16.mxu0 0
      %402 = vmatpush1.bf16.msra.mxu0 0
      %403 = vmatprep.subr.bf16.mxu0 0
      %404 = vmatpush1.bf16.msra.mxu0 %v384
      %405 = vmatprep.subr.bf16.mxu0 0
      %406 = vmatpush2.bf16.msra.mxu0 0
      %407 = vmatprep.subr.bf16.mxu0 0
      %408 = vmatpush2.bf16.msra.mxu0 0
      %409 = vmatprep.subr.bf16.mxu0 0
      %410 = vmatpush2.bf16.msra.mxu0 0
      %411 = vmatprep.subr.bf16.mxu0 0
      %412 = vmatpush2.bf16.msra.mxu0 0
      %413 = vmatprep.subr.bf16.mxu0 0
      %414 = vmatpush2.bf16.msra.mxu0 0
      %415 = vmatprep.subr.bf16.mxu0 0
      %416 = vmatpush2.bf16.msra.mxu0 0
      %417 = vmatprep.subr.bf16.mxu0 0
      %418 = vmatpush2.bf16.msra.mxu0 0
      %419 = vmatprep.subr.bf16.mxu0 0
      %420 = vmatpush2.bf16.msra.mxu0 0
      %421 = vmatprep.mubr.bf16.mxu0 0
      %422 = vmatmul.mubr.bf16.gmra.mxu0 %v387
      %v423 = vpop.f32.mrf.mxu0
      %v424 = vadd.f32 0.0, %v423
      %v425 = vpop.f32.mrf.mxu0
      %v426 = vpop.f32.mrf.mxu0
      %v427 = vpop.f32.mrf.mxu0
      %428 = vdwg.mxu0
      %v429 = vadd.f32 %v368, %v424
      %vm430 = vcmask 261120
      %431 = vst.msk [vmem:[#allocation2] sm:$0xff] %vm430, %v429
      %p432 = scmp.eq.s32.totalorder %s21, 2
      // Predicated region
      $region37: #{deeplab_forward.13} parent=31 // pred_check
        %p433 = pneg %p432
      $region38: #{deeplab_forward.13} parent=31 // pred_check_branch
        %435 = sbr.rel (%p433) target = $region40
      $region39: #{deeplab_forward.13} parent=31 // pred_region
        %v436 = vld [vmem:[#allocation2] sm:$0xff]
        %v437 = vld [vmem:[%s2] sm:$0x1]
        %v439 = vlaneseq
        %v440 = vshrl.u32 %v439, 7
        %v441 = vsub.s32 0, %v440
        %v442 = vrot.slane %v437, %v441
        %v444 = vadd.f32 %v436, %v442
        %v445 = vmax.f32 %v444, 0.0
        %v446 = vpack.c.bf16 %v445, %v445
        %vm447 = vcmask 257024
        %448 = vst.msk [vmem:[%s245] sm:$0xf] %vm447, %v446
      $region40: #{deeplab_forward.13} parent=31 // pred_fallthru
        _
      %p449 = scmp.lt.s32.totalorder %s19, 1
      %s450 = scalar_select %p449, %s19, 1
      %p451 = scmp.lt.s32.totalorder %s20, 7
      %s452 = scalar_select %p451, %s20, 7
      %s453 = smul.addr %s450, 8
      %s454 = sadd.s32 %s452, %s453
      %s455 = smul.addr %s454, 4
      %s456 = scalar_lea.vmem %s3, %s455
      // Predicated region
      $region41: #{deeplab_forward.13} parent=31 // pred_check
        %p457 = pneg %p132
      $region42: #{deeplab_forward.13} parent=31 // pred_check_branch
        %459 = sbr.rel (%p457) target = $region44
      $region43: #{deeplab_forward.13} parent=31 // pred_region
        _
      $region44: #{deeplab_forward.13} parent=31 // pred_fallthru
        _
    $region32: #{deeplab_forward.13} parent=5 // pred_fallthru
      _
    %p460 = scmp.le.s32.totalorder 2, %s9
    // Predicated region
    $region45: #{deeplab_forward.13} parent=5 // pred_check
      %p461 = pneg %p460
    $region46: #{deeplab_forward.13} parent=5 // pred_check_branch
      %463 = sbr.rel (%p461) target = $region48
    $region47: #{deeplab_forward.13} parent=5 // pred_region
      %s464 = ssub.s32 %s9, 2
      // Predicated region
      $region49: #{deeplab_forward.13} parent=47 // pred_check
        %p465 = pneg %p138
      $region50: #{deeplab_forward.13} parent=47 // pred_check_branch
        %467 = sbr.rel (%p465) target = $region52
      $region51: #{deeplab_forward.13} parent=47 // pred_region
        %p468 = scmp.lt.s32.totalorder %s22, 1
        %s469 = scalar_select %p468, %s22, 1
        %p470 = scmp.lt.s32.totalorder %s23, 7
        %s471 = scalar_select %p470, %s23, 7
        %s472 = smul.addr %s469, 8
        %s473 = sadd.s32 %s471, %s472
        %s474 = smul.addr %s473, 4
        %s475 = scalar_lea.vmem %s3, %s474
      $region52: #{deeplab_forward.13} parent=47 // pred_fallthru
        _
    $region48: #{deeplab_forward.13} parent=5 // pred_fallthru
      _
  $region6: #{deeplab_forward.13} parent=0 // loop_footer
    %s13 = sadd.s32 1, %s9
  $region7: #{deeplab_forward.13} parent=0 // loop_footer_branch
    %8 = sbr.rel target = $region3
  $region8: #{deeplab_forward.13} parent=0 // loop_exit
    _

// kernel: deeplab_forward.12
$region0: #{deeplab_forward.12}
  #allocation0 [shape = 'u32[]', space=smem, size = 0x4, offset = 0x4, fixed_abs, tag = 'smem constant byte address 0x4 - core index']
  #allocation1 [shape = 'u32[144,128]{1,0:T(1,128)}', space=vmem, size = 0x12000, scoped, tag = 'internal scratch']
  #allocation2 [shape = 'f32[8,32]{1,0:T(8,128)}', space=vmem, size = 0x1000, scoped, tag = 'scratch operand']
  %s0 = inlined_call_operand.vmem [shape: bf16[2,32,32,16], index: 0, kind: input, shape index: {}]
  %s1 = inlined_call_operand.vmem [shape: bf16[3,3,16,32], index: 1, kind: input, shape index: {}]
  %s2 = inlined_call_operand.vmem [shape: f32[1,32], index: 2, kind: input, shape index: {}]
  %s3 = inlined_call_operand.vmem [shape: bf16[2,8,8,32], index: 3, kind: output, shape index: {}]
  %s4 = sld [smem:[#allocation0]]
  $region53: #{deeplab_forward.12} parent=0
    _
  %s6 = ssub.s32 1, %s4
  %s7 = scalar_select 0, %s6, %s4
  loop: start=0, step=1, limit=50
  $region2: #{deeplab_forward.12} parent=0 // loop_pre_header
    _
  $region3: #{deeplab_forward.12} parent=0 // loop_header
    %s9 = sphi 0, %s13
    %p10 = scmp.ge.s32.totalorder %s9, 50
    %s16 = sphi 0, %s35
    %s17 = sphi 0, %s31
    %s18 = sphi 0, %s27
    %s19 = sphi 0, %s16
    %s20 = sphi 0, %s17
    %s21 = sphi 0, %s18
    %s22 = sphi 0, %s19
    %s23 = sphi 0, %s20
    %s24 = sphi 0, %s21
    %s44 = sphi 0, %s46
    %s47 = sphi 0, %s44
    %s48 = sphi 0, %s47
    %s64 = sphi 0, %s48
    %s70 = sphi 0, %s72
    %s73 = sphi 0, %s70
    %s74 = sphi 0, %s73
    %s90 = sphi 0, %s74
    %s94 = sphi 0, %s94
    %s96 = sphi 0, %s94
    %s97 = sphi 0, %s96
    %s111 = sphi 0, %s97
    %s119 = sphi 0, %s121
    %s122 = sphi 0, %s119
    %s123 = sphi 0, %s122
    %s139 = sphi 0, %s123
  $region4: #{deeplab_forward.12} parent=0 // loop_header_branch
    %12 = sbr.rel (%p10) target = $region8
  $region5: #{deeplab_forward.12} parent=0 // loop_body
    %s14 = ssub.s32 %s9, 1
    %s15 = ssub.s32 %s9, 2
    %s25 = sadd.s32 1, %s18
    %p26 = scmp.ge.s32.totalorder %s25, 3
    %s27 = scalar_select %p26, 0, %s25
    %s28 = sadd.s32 1, %s17
    %s29 = scalar_select %p26, %s28, %s17
    %p30 = scmp.ge.s32.totalorder %s29, 8
    %s31 = scalar_select %p30, 0, %s29
    %s32 = sadd.s32 1, %s16
    %s33 = scalar_select %p30, %s32, %s16
    %p34 = scmp.ge.s32.totalorder %s33, 2
    %s35 = scalar_select %p34, 0, %s33
    %s36 = smul.u32 %s18, 12
    %s37 = sadd.s32 %s17, %s36
    %s38 = smul.u32 %s27, 12
    %s39 = sadd.s32 %s31, %s38
    %s40 = ssub.s32 %s16, %s35
    %s41 = ssub.s32 %s37, %s39
    %s42 = sor.u32 %s40, %s41
    %p43 = scmp.eq.s32.totalorder %s42, 0
    %s45 = sadd.s32 %s44, 1
    %s46 = scalar_select %p43, %s44, %s45
    %p49 = pneg %p43
    %p50 = scmp.eq.s32.totalorder %s9, 47
    %p51 = por %p49, %p50
    %p52 = scmp.ne.s32.totalorder %s44, %s47
    %p53 = scmp.eq.s32.totalorder %s9, 0
    %p54 = por %p52, %p53
    %p55 = scmp.ne.s32.totalorder %s44, %s47
    %p56 = scmp.eq.s32.totalorder %s14, 47
    %p57 = por %p55, %p56
    %p58 = scmp.ne.s32.totalorder %s47, %s48
    %p59 = scmp.eq.s32.totalorder %s14, 0
    %p60 = por %p58, %p59
    %p61 = scmp.ne.s32.totalorder %s47, %s48
    %p62 = scmp.eq.s32.totalorder %s15, 47
    %p63 = por %p61, %p62
    %p65 = scmp.ne.s32.totalorder %s48, %s64
    %p66 = scmp.eq.s32.totalorder %s15, 0
    %p67 = por %p65, %p66
    %s68 = ssub.s32 %s18, %s27
    %p69 = scmp.eq.s32.totalorder %s68, 0
    %s71 = sadd.s32 %s70, 1
    %s72 = scalar_select %p69, %s70, %s71
    %p75 = pneg %p69
    %p76 = scmp.eq.s32.totalorder %s9, 47
    %p77 = por %p75, %p76
    %p78 = scmp.ne.s32.totalorder %s70, %s73
    %p79 = scmp.eq.s32.totalorder %s9, 0
    %p80 = por %p78, %p79
    %p81 = scmp.ne.s32.totalorder %s70, %s73
    %p82 = scmp.eq.s32.totalorder %s14, 47
    %p83 = por %p81, %p82
    %p84 = scmp.ne.s32.totalorder %s73, %s74
    %p85 = scmp.eq.s32.totalorder %s14, 0
    %p86 = por %p84, %p85
    %p87 = scmp.ne.s32.totalorder %s73, %s74
    %p88 = scmp.eq.s32.totalorder %s15, 47
    %p89 = por %p87, %p88
    %p91 = scmp.ne.s32.totalorder %s74, %s90
    %p92 = scmp.eq.s32.totalorder %s15, 0
    %p93 = por %p91, %p92
    %s95 = sadd.s32 %s94, 1
    %p98 = scmp.eq.s32.totalorder %s9, 47
    %p99 = scmp.ne.s32.totalorder %s94, %s96
    %p100 = scmp.eq.s32.totalorder %s9, 0
    %p101 = por %p99, %p100
    %p102 = scmp.ne.s32.totalorder %s94, %s96
    %p103 = scmp.eq.s32.totalorder %s14, 47
    %p104 = por %p102, %p103
    %p105 = scmp.ne.s32.totalorder %s96, %s97
    %p106 = scmp.eq.s32.totalorder %s14, 0
    %p107 = por %p105, %p106
    %p108 = scmp.ne.s32.totalorder %s96, %s97
    %p109 = scmp.eq.s32.totalorder %s15, 47
    %p110 = por %p108, %p109
    %p112 = scmp.ne.s32.totalorder %s97, %s111
    %p113 = scmp.eq.s32.totalorder %s15, 0
    %p114 = por %p112, %p113
    %s115 = ssub.s32 %s16, %s35
    %s116 = ssub.s32 %s17, %s31
    %s117 = sor.u32 %s115, %s116
    %p118 = scmp.eq.s32.totalorder %s117, 0
    %s120 = sadd.s32 %s119, 1
    %s121 = scalar_select %p118, %s119, %s120
    %p124 = pneg %p118
    %p125 = scmp.eq.s32.totalorder %s9, 47
    %p126 = por %p124, %p125
    %p127 = scmp.ne.s32.totalorder %s119, %s122
    %p128 = scmp.eq.s32.totalorder %s9, 0
    %p129 = por %p127, %p128
    %p130 = scmp.ne.s32.totalorder %s119, %s122
    %p131 = scmp.eq.s32.totalorder %s14, 47
    %p132 = por %p130, %p131
    %p133 = scmp.ne.s32.totalorder %s122, %s123
    %p134 = scmp.eq.s32.totalorder %s14, 0
    %p135 = por %p133, %p134
    %p136 = scmp.ne.s32.totalorder %s122, %s123
    %p137 = scmp.eq.s32.totalorder %s15, 47
    %p138 = por %p136, %p137
    %p140 = scmp.ne.s32.totalorder %s123, %s139
    %p141 = scmp.eq.s32.totalorder %s15, 0
    %p142 = por %p140, %p141
    %p143 = scmp.le.s32.totalorder 1, %s9
    %p144 = scmp.lt.s32.totalorder %s9, 49
    %p145 = pnand %p143, %p144
    %p146 = pneg %p145
    // Predicated region
    $region9: #{deeplab_forward.12} parent=5 // pred_check
      _
    $region10: #{deeplab_forward.12} parent=5 // pred_check_branch
      %148 = sbr.rel (%p145) target = $region12
    $region11: #{deeplab_forward.12} parent=5 // pred_region
      %s149 = ssub.s32 %s9, 1
      // Predicated region
      $region13: #{deeplab_forward.12} parent=11 // pred_check
        %p150 = pneg %p107
      $region14: #{deeplab_forward.12} parent=11 // pred_check_branch
        %152 = sbr.rel (%p150) target = $region16
      $region15: #{deeplab_forward.12} parent=11 // pred_region
        _
      $region16: #{deeplab_forward.12} parent=11 // pred_fallthru
        _
    $region12: #{deeplab_forward.12} parent=5 // pred_fallthru
      _
    %p153 = scmp.lt.s32.totalorder %s9, 48
    // Predicated region
    $region17: #{deeplab_forward.12} parent=5 // pred_check
      %p154 = pneg %p153
    $region18: #{deeplab_forward.12} parent=5 // pred_check_branch
      %156 = sbr.rel (%p154) target = $region20
    $region19: #{deeplab_forward.12} parent=5 // pred_region
      // Predicated region
      $region21: #{deeplab_forward.12} parent=19 // pred_check
        %p157 = pneg %p54
      $region22: #{deeplab_forward.12} parent=19 // pred_check_branch
        %159 = sbr.rel (%p157) target = $region24
      $region23: #{deeplab_forward.12} parent=19 // pred_region
        %s160 = smul.u32 %s18, 12
        %s161 = sadd.s32 %s17, %s160
        %p162 = scmp.lt.s32.totalorder %s16, 1
        %s163 = scalar_select %p162, %s16, 1
        %p164 = scmp.lt.s32.totalorder %s161, 31
        %s165 = scalar_select %p164, %s161, 31
        %s166 = smul.addr %s165, 4
        %s167 = smul.addr %s163, 128
        %s168 = sadd.s32 %s166, %s167
        %s169 = smul.addr %s168, 4
        %s170 = scalar_lea.vmem %s0, %s169
        %s171 = smul.u32 %s18, 12
        %s172 = sadd.s32 %s17, %s171
      $region24: #{deeplab_forward.12} parent=19 // pred_fallthru
        _
      // Predicated region
      $region25: #{deeplab_forward.12} parent=19 // pred_check
        %p173 = pneg %p80
      $region26: #{deeplab_forward.12} parent=19 // pred_check_branch
        %175 = sbr.rel (%p173) target = $region28
      $region27: #{deeplab_forward.12} parent=19 // pred_region
        %p176 = scmp.lt.s32.totalorder %s18, 2
        %s177 = scalar_select %p176, %s18, 2
        %s178 = smul.addr %s177, 6
        %s179 = smul.addr %s178, 4
        %s180 = scalar_lea.vmem %s1, %s179
      $region28: #{deeplab_forward.12} parent=19 // pred_fallthru
        _
    $region20: #{deeplab_forward.12} parent=5 // pred_fallthru
      _
    %p181 = scmp.le.s32.totalorder 1, %s9
    %p182 = scmp.lt.s32.totalorder %s9, 49
    %p183 = pnand %p181, %p182
    %p184 = pneg %p183
    // Predicated region
    $region29: #{deeplab_forward.12} parent=5 // pred_check
      _
    $region30: #{deeplab_forward.12} parent=5 // pred_check_branch
      %186 = sbr.rel (%p183) target = $region32
    $region31: #{deeplab_forward.12} parent=5 // pred_region
      %s187 = ssub.s32 %s9, 1
      %s188 = smul.u32 %s21, 12
      %s189 = sadd.s32 %s20, %s188
      %p190 = scmp.lt.s32.totalorder %s19, 1
      %s191 = scalar_select %p190, %s19, 1
      %p192 = scmp.lt.s32.totalorder %s189, 31
      %s193 = scalar_select %p192, %s189, 31
      %s194 = smul.addr %s193, 4
      %s195 = smul.addr %s191, 128
      %s196 = sadd.s32 %s194, %s195
      %s197 = smul.addr %s196, 4
      %s198 = scalar_lea.vmem %s0, %s197
      %p199 = pneg %p60
      %p200 = pneg %p57
      %p201 = scmp.lt.s32.totalorder %s21, 2
      %s202 = scalar_select %p201, %s21, 2
      %s203 = smul.addr %s202, 6
      %s204 = smul.addr %s203, 4
      %s205 = scalar_lea.vmem %s1, %s204
      %p206 = pneg %p86
      %p207 = pneg %p83
      %p208 = pneg %p107
      %p209 = pneg %p104
      %p210 = pneg %p135
      %p211 = pneg %p132
      %p212 = scmp.lt.s32.totalorder %s19, 1
      %s213 = scalar_select %p212, %s19, 1
      %p214 = scmp.lt.s32.totalorder %s20, 7
      %s215 = scalar_select %p214, %s20, 7
      %s216 = smul.addr %s213, 8
      %s217 = sadd.s32 %s215, %s216
      %s218 = smul.addr %s217, 4
      %s219 = scalar_lea.vmem %s3, %s218
      %s220 = smul.u32 %s21, 12
      %s221 = sadd.s32 %s20, %s220
      %p222 = scmp.lt.s32.totalorder %s19, 1
      %s223 = scalar_select %p222, %s19, 1
      %p224 = scmp.lt.s32.totalorder %s221, 31
      %s225 = scalar_select %p224, %s221, 31
      %s226 = smul.addr %s225, 4
      %s227 = smul.addr %s223, 128
      %s228 = sadd.s32 %s226, %s227
      %s229 = smul.addr %s228, 4
      %s230 = scalar_lea.vmem %s0, %s229
      %s231 = smul.u32 %s21, 12
      %s232 = sadd.s32 %s20, %s231
      %p233 = scmp.lt.s32.totalorder %s21, 2
      %s234 = scalar_select %p233, %s21, 2
      %s235 = smul.addr %s234, 6
      %s236 = smul.addr %s235, 4
      %s237 = scalar_lea.vmem %s1, %s236
      %p238 = scmp.lt.s32.totalorder %s19, 1
      %s239 = scalar_select %p238, %s19, 1
      %p240 = scmp.lt.s32.totalorder %s20, 7
      %s241 = scalar_select %p240, %s20, 7
      %s242 = smul.addr %s239, 8
      %s243 = sadd.s32 %s241, %s242
      %s244 = smul.addr %s243, 4
      %s245 = scalar_lea.vmem %s3, %s244
      %p247 = scmp.eq.s32.totalorder %s21, 0
      // Predicated region
      $region33: #{deeplab_forward.12} parent=31 // pred_check
        %p248 = pneg %p247
      $region34: #{deeplab_forward.12} parent=31 // pred_check_branch
        %250 = sbr.rel (%p248) target = $region36
      $region35: #{deeplab_forward.12} parent=31 // pred_region
        %vm251 = vcmask 261120
        %252 = vst.msk [vmem:[#allocation2] sm:$0xff] %vm251, 0.0
      $region36: #{deeplab_forward.12} parent=31 // pred_fallthru
        _
      %v253 = vld [vmem:[#allocation2] sm:$0xff]
      %v254 = vld [vmem:[%s230] sm:$0xf]
      %v255 = vld [vmem:[%s237] sm:$0xf]
      %v256 = vld [vmem:[%s237 + $0x4] sm:$0xf]
      %v259 = vunpack.c.l.b16 %v255
      %v260 = vunpack.c.l.b16 %v256
      %v261 = vpack.c.b16 %v260, %v259
      %vm263 = vcmask 130048
      %v265 = vsel %vm263, %v254, 0
      %267 = vmatprep.subr.bf16.mxu0 0
      %268 = vmatpush1.bf16.msra.mxu0 0
      %269 = vmatprep.subr.bf16.mxu0 0
      %270 = vmatpush1.bf16.msra.mxu0 0
      %271 = vmatprep.subr.bf16.mxu0 0
      %272 = vmatpush1.bf16.msra.mxu0 0
      %273 = vmatprep.subr.bf16.mxu0 0
      %274 = vmatpush1.bf16.msra.mxu0 0
      %275 = vmatprep.subr.bf16.mxu0 0
      %276 = vmatpush1.bf16.msra.mxu0 0
      %277 = vmatprep.subr.bf16.mxu0 0
      %278 = vmatpush1.bf16.msra.mxu0 0
      %279 = vmatprep.subr.bf16.mxu0 0
      %280 = vmatpush1.bf16.msra.mxu0 0
      %281 = vmatprep.subr.bf16.mxu0 0
      %282 = vmatpush1.bf16.msra.mxu0 %v261
      %283 = vmatprep.subr.bf16.mxu0 0
      %284 = vmatpush2.bf16.msra.mxu0 0
      %285 = vmatprep.subr.bf16.mxu0 0
      %286 = vmatpush2.bf16.msra.mxu0 0
      %287 = vmatprep.subr.bf16.mxu0 0
      %288 = vmatpush2.bf16.msra.mxu0 0
      %289 = vmatprep.subr.bf16.mxu0 0
      %290 = vmatpush2.bf16.msra.mxu0 0
      %291 = vmatprep.subr.bf16.mxu0 0
      %292 = vmatpush2.bf16.msra.mxu0 0
      %293 = vmatprep.subr.bf16.mxu0 0
      %294 = vmatpush2.bf16.msra.mxu0 0
      %295 = vmatprep.subr.bf16.mxu0 0
      %296 = vmatpush2.bf16.msra.mxu0 0
      %297 = vmatprep.subr.bf16.mxu0 0
      %298 = vmatpush2.bf16.msra.mxu0 0
      %299 = vmatprep.mubr.bf16.mxu0 0
      %300 = vmatmul.mubr.bf16.gmra.mxu0 %v265
      %v301 = vpop.f32.mrf.mxu0
      %v302 = vadd.f32 0.0, %v301
      %v303 = vpop.f32.mrf.mxu0
      %v304 = vpop.f32.mrf.mxu0
      %v305 = vpop.f32.mrf.mxu0
      %306 = vdwg.mxu0
      %v307 = vadd.f32 %v253, %v302
      %v308 = vld [vmem:[%s230 + $0x4] sm:$0xc]
      %v309 = vld [vmem:[%s230 + $0x8] sm:$0x3]
      %s310 = scalar_lea.vmem %s237, 8
      %v311 = vld [vmem:[%s310] sm:$0xf]
      %v312 = vld [vmem:[%s310 + $0x4] sm:$0xf]
      %v315 = vunpack.c.l.b16 %v308
      %v316 = vunpack.c.l.b16 %v309
      %v317 = vpack.c.b16 %v316, %v315
      %v318 = vrot.slane %v317, 2
      %v321 = vunpack.c.l.b16 %v311
      %v322 = vunpack.c.l.b16 %v312
      %v323 = vpack.c.b16 %v322, %v321
      %v326 = vsel %vm263, %v318, 0
      %328 = vmatprep.subr.bf16.mxu0 0
      %329 = vmatpush1.bf16.msra.mxu0 0
      %330 = vmatprep.subr.bf16.mxu0 0
      %331 = vmatpush1.bf16.msra.mxu0 0
      %332 = vmatprep.subr.bf16.mxu0 0
      %333 = vmatpush1.bf16.msra.mxu0 0
      %334 = vmatprep.subr.bf16.mxu0 0
      %335 = vmatpush1.bf16.msra.mxu0 0
      %336 = vmatprep.subr.bf16.mxu0 0
      %337 = vmatpush1.bf16.msra.mxu0 0
      %338 = vmatprep.subr.bf16.mxu0 0
      %339 = vmatpush1.bf16.msra.mxu0 0
      %340 = vmatprep.subr.bf16.mxu0 0
      %341 = vmatpush1.bf16.msra.mxu0 0
      %342 = vmatprep.subr.bf16.mxu0 0
      %343 = vmatpush1.bf16.msra.mxu0 %v323
      %344 = vmatprep.subr.bf16.mxu0 0
      %345 = vmatpush2.bf16.msra.mxu0 0
      %346 = vmatprep.subr.bf16.mxu0 0
      %347 = vmatpush2.bf16.msra.mxu0 0
      %348 = vmatprep.subr.bf16.mxu0 0
      %349 = vmatpush2.bf16.msra.mxu0 0
      %350 = vmatprep.subr.bf16.mxu0 0
      %351 = vmatpush2.bf16.msra.mxu0 0
      %352 = vmatprep.subr.bf16.mxu0 0
      %353 = vmatpush2.bf16.msra.mxu0 0
      %354 = vmatprep.subr.bf16.mxu0 0
      %355 = vmatpush2.bf16.msra.mxu0 0
      %356 = vmatprep.subr.bf16.mxu0 0
      %357 = vmatpush2.bf16.msra.mxu0 0
      %358 = vmatprep.subr.bf16.mxu0 0
      %359 = vmatpush2.bf16.msra.mxu0 0
      %360 = vmatprep.mubr.bf16.mxu0 0
      %361 = vmatmul.mubr.bf16.gmra.mxu0 %v326
      %v362 = vpop.f32.mrf.mxu0
      %v363 = vadd.f32 0.0, %v362
      %v364 = vpop.f32.mrf.mxu0
      %v365 = vpop.f32.mrf.mxu0
      %v366 = vpop.f32.mrf.mxu0
      %367 = vdwg.mxu0
      %v368 = vadd.f32 %v307, %v363
      %v369 = vld [vmem:[%s230 + $0xc] sm:$0xf]
      %s370 = scalar_lea.vmem %s237, 16
      %v371 = vld [vmem:[%s370] sm:$0xf]
      %v372 = vld [vmem:[%s370 + $0x4] sm:$0xf]
      %v375 = vunpack.c.l.b16 %v371
      %v376 = vunpack.c.l.b16 %v372
      %v377 = vpack.c.b16 %v376, %v375
      %v380 = vsel %vm263, %v369, 0
      %382 = vmatprep.subr.bf16.mxu0 0
      %383 = vmatpush1.bf16.msra.mxu0 0
      %384 = vmatprep.subr.bf16.mxu0 0
      %385 = vmatpush1.bf16.msra.mxu0 0
      %386 = vmatprep.subr.bf16.mxu0 0
      %387 = vmatpush1.bf16.msra.mxu0 0
      %388 = vmatprep.subr.bf16.mxu0 0
      %389 = vmatpush1.bf16.msra.mxu0 0
      %390 = vmatprep.subr.bf16.mxu0 0
      %391 = vmatpush1.bf16.msra.mxu0 0
      %392 = vmatprep.subr.bf16.mxu0 0
      %393 = vmatpush1.bf16.msra.mxu0 0
      %394 = vmatprep.subr.bf16.mxu0 0
      %395 = vmatpush1.bf16.msra.mxu0 0
      %396 = vmatprep.subr.bf16.mxu0 0
      %397 = vmatpush1.bf16.msra.mxu0 %v377
      %398 = vmatprep.subr.bf16.mxu0 0
      %399 = vmatpush2.bf16.msra.mxu0 0
      %400 = vmatprep.subr.bf16.mxu0 0
      %401 = vmatpush2.bf16.msra.mxu0 0
      %402 = vmatprep.subr.bf16.mxu0 0
      %403 = vmatpush2.bf16.msra.mxu0 0
      %404 = vmatprep.subr.bf16.mxu0 0
      %405 = vmatpush2.bf16.msra.mxu0 0
      %406 = vmatprep.subr.bf16.mxu0 0
      %407 = vmatpush2.bf16.msra.mxu0 0
      %408 = vmatprep.subr.bf16.mxu0 0
      %409 = vmatpush2.bf16.msra.mxu0 0
      %410 = vmatprep.subr.bf16.mxu0 0
      %411 = vmatpush2.bf16.msra.mxu0 0
      %412 = vmatprep.subr.bf16.mxu0 0
      %413 = vmatpush2.bf16.msra.mxu0 0
      %414 = vmatprep.mubr.bf16.mxu0 0
      %415 = vmatmul.mubr.bf16.gmra.mxu0 %v380
      %v416 = vpop.f32.mrf.mxu0
      %v417 = vadd.f32 0.0, %v416
      %v418 = vpop.f32.mrf.mxu0
      %v419 = vpop.f32.mrf.mxu0
      %v420 = vpop.f32.mrf.mxu0
      %421 = vdwg.mxu0
      %v422 = vadd.f32 %v368, %v417
      %vm423 = vcmask 261120
      %424 = vst.msk [vmem:[#allocation2] sm:$0xff] %vm423, %v422
      %p425 = scmp.eq.s32.totalorder %s21, 2
      // Predicated region
      $region37: #{deeplab_forward.12} parent=31 // pred_check
        %p426 = pneg %p425
      $region38: #{deeplab_forward.12} parent=31 // pred_check_branch
        %428 = sbr.rel (%p426) target = $region40
      $region39: #{deeplab_forward.12} parent=31 // pred_region
        %v429 = vld [vmem:[#allocation2] sm:$0xff]
        %v430 = vld [vmem:[%s2] sm:$0x1]
        %v432 = vlaneseq
        %v433 = vshrl.u32 %v432, 7
        %v434 = vsub.s32 0, %v433
        %v435 = vrot.slane %v430, %v434
        %v437 = vadd.f32 %v429, %v435
        %v438 = vmax.f32 %v437, 0.0
        %v439 = vpack.c.bf16 %v438, %v438
        %vm440 = vcmask 257024
        %441 = vst.msk [vmem:[%s245] sm:$0xf] %vm440, %v439
      $region40: #{deeplab_forward.12} parent=31 // pred_fallthru
        _
      %p442 = scmp.lt.s32.totalorder %s19, 1
      %s443 = scalar_select %p442, %s19, 1
      %p444 = scmp.lt.s32.totalorder %s20, 7
      %s445 = scalar_select %p444, %s20, 7
      %s446 = smul.addr %s443, 8
      %s447 = sadd.s32 %s445, %s446
      %s448 = smul.addr %s447, 4
      %s449 = scalar_lea.vmem %s3, %s448
      // Predicated region
      $region41: #{deeplab_forward.12} parent=31 // pred_check
        %p450 = pneg %p132
      $region42: #{deeplab_forward.12} parent=31 // pred_check_branch
        %452 = sbr.rel (%p450) target = $region44
      $region43: #{deeplab_forward.12} parent=31 // pred_region
        _
      $region44: #{deeplab_forward.12} parent=31 // pred_fallthru
        _
    $region32: #{deeplab_forward.12} parent=5 // pred_fallthru
      _
    %p453 = scmp.le.s32.totalorder 2, %s9
    // Predicated region
    $region45: #{deeplab_forward.12} parent=5 // pred_check
      %p454 = pneg %p453
    $region46: #{deeplab_forward.12} parent=5 // pred_check_branch
      %456 = sbr.rel (%p454) target = $region48
    $region47: #{deeplab_forward.12} parent=5 // pred_region
      %s457 = ssub.s32 %s9, 2
      // Predicated region
      $region49: #{deeplab_forward.12} parent=47 // pred_check
        %p458 = pneg %p138
      $region50: #{deeplab_forward.12} parent=47 // pred_check_branch
        %460 = sbr.rel (%p458) target = $region52
      $region51: #{deeplab_forward.12} parent=47 // pred_region
        %p461 = scmp.lt.s32.totalorder %s22, 1
        %s462 = scalar_select %p461, %s22, 1
        %p463 = scmp.lt.s32.totalorder %s23, 7
        %s464 = scalar_select %p463, %s23, 7
        %s465 = smul.addr %s462, 8
        %s466 = sadd.s32 %s464, %s465
        %s467 = smul.addr %s466, 4
        %s468 = scalar_lea.vmem %s3, %s467
      $region52: #{deeplab_forward.12} parent=47 // pred_fallthru
        _
    $region48: #{deeplab_forward.12} parent=5 // pred_fallthru
      _
  $region6: #{deeplab_forward.12} parent=0 // loop_footer
    %s13 = sadd.s32 1, %s9
  $region7: #{deeplab_forward.12} parent=0 // loop_footer_branch
    %8 = sbr.rel target = $region3
  $region8: #{deeplab_forward.12} parent=0 // loop_exit
    _

// kernel: deeplab_forward.11
$region0: #{deeplab_forward.11}
  #allocation0 [shape = 'u32[]', space=smem, size = 0x4, offset = 0x4, fixed_abs, tag = 'smem constant byte address 0x4 - core index']
  #allocation1 [shape = 'u32[144,128]{1,0:T(1,128)}', space=vmem, size = 0x12000, scoped, tag = 'internal scratch']
  #allocation2 [shape = 'f32[8,32]{1,0:T(8,128)}', space=vmem, size = 0x1000, scoped, tag = 'scratch operand']
  %s0 = inlined_call_operand.vmem [shape: bf16[2,20,20,16], index: 0, kind: input, shape index: {}]
  %s1 = inlined_call_operand.vmem [shape: bf16[3,3,16,32], index: 1, kind: input, shape index: {}]
  %s2 = inlined_call_operand.vmem [shape: f32[1,32], index: 2, kind: input, shape index: {}]
  %s3 = inlined_call_operand.vmem [shape: bf16[2,8,8,32], index: 3, kind: output, shape index: {}]
  %s4 = sld [smem:[#allocation0]]
  $region53: #{deeplab_forward.11} parent=0
    _
  %s6 = ssub.s32 1, %s4
  %s7 = scalar_select 0, %s6, %s4
  loop: start=0, step=1, limit=50
  $region2: #{deeplab_forward.11} parent=0 // loop_pre_header
    _
  $region3: #{deeplab_forward.11} parent=0 // loop_header
    %s9 = sphi 0, %s13
    %p10 = scmp.ge.s32.totalorder %s9, 50
    %s16 = sphi 0, %s35
    %s17 = sphi 0, %s31
    %s18 = sphi 0, %s27
    %s19 = sphi 0, %s16
    %s20 = sphi 0, %s17
    %s21 = sphi 0, %s18
    %s22 = sphi 0, %s19
    %s23 = sphi 0, %s20
    %s24 = sphi 0, %s21
    %s44 = sphi 0, %s46
    %s47 = sphi 0, %s44
    %s48 = sphi 0, %s47
    %s64 = sphi 0, %s48
    %s70 = sphi 0, %s72
    %s73 = sphi 0, %s70
    %s74 = sphi 0, %s73
    %s90 = sphi 0, %s74
    %s94 = sphi 0, %s94
    %s96 = sphi 0, %s94
    %s97 = sphi 0, %s96
    %s111 = sphi 0, %s97
    %s119 = sphi 0, %s121
    %s122 = sphi 0, %s119
    %s123 = sphi 0, %s122
    %s139 = sphi 0, %s123
  $region4: #{deeplab_forward.11} parent=0 // loop_header_branch
    %12 = sbr.rel (%p10) target = $region8
  $region5: #{deeplab_forward.11} parent=0 // loop_body
    %s14 = ssub.s32 %s9, 1
    %s15 = ssub.s32 %s9, 2
    %s25 = sadd.s32 1, %s18
    %p26 = scmp.ge.s32.totalorder %s25, 3
    %s27 = scalar_select %p26, 0, %s25
    %s28 = sadd.s32 1, %s17
    %s29 = scalar_select %p26, %s28, %s17
    %p30 = scmp.ge.s32.totalorder %s29, 8
    %s31 = scalar_select %p30, 0, %s29
    %s32 = sadd.s32 1, %s16
    %s33 = scalar_select %p30, %s32, %s16
    %p34 = scmp.ge.s32.totalorder %s33, 2
    %s35 = scalar_select %p34, 0, %s33
    %s36 = smul.u32 %s18, 6
    %s37 = sadd.s32 %s17, %s36
    %s38 = smul.u32 %s27, 6
    %s39 = sadd.s32 %s31, %s38
    %s40 = ssub.s32 %s16, %s35
    %s41 = ssub.s32 %s37, %s39
    %s42 = sor.u32 %s40, %s41
    %p43 = scmp.eq.s32.totalorder %s42, 0
    %s45 = sadd.s32 %s44, 1
    %s46 = scalar_select %p43, %s44, %s45
    %p49 = pneg %p43
    %p50 = scmp.eq.s32.totalorder %s9, 47
    %p51 = por %p49, %p50
    %p52 = scmp.ne.s32.totalorder %s44, %s47
    %p53 = scmp.eq.s32.totalorder %s9, 0
    %p54 = por %p52, %p53
    %p55 = scmp.ne.s32.totalorder %s44, %s47
    %p56 = scmp.eq.s32.totalorder %s14, 47
    %p57 = por %p55, %p56
    %p58 = scmp.ne.s32.totalorder %s47, %s48
    %p59 = scmp.eq.s32.totalorder %s14, 0
    %p60 = por %p58, %p59
    %p61 = scmp.ne.s32.totalorder %s47, %s48
    %p62 = scmp.eq.s32.totalorder %s15, 47
    %p63 = por %p61, %p62
    %p65 = scmp.ne.s32.totalorder %s48, %s64
    %p66 = scmp.eq.s32.totalorder %s15, 0
    %p67 = por %p65, %p66
    %s68 = ssub.s32 %s18, %s27
    %p69 = scmp.eq.s32.totalorder %s68, 0
    %s71 = sadd.s32 %s70, 1
    %s72 = scalar_select %p69, %s70, %s71
    %p75 = pneg %p69
    %p76 = scmp.eq.s32.totalorder %s9, 47
    %p77 = por %p75, %p76
    %p78 = scmp.ne.s32.totalorder %s70, %s73
    %p79 = scmp.eq.s32.totalorder %s9, 0
    %p80 = por %p78, %p79
    %p81 = scmp.ne.s32.totalorder %s70, %s73
    %p82 = scmp.eq.s32.totalorder %s14, 47
    %p83 = por %p81, %p82
    %p84 = scmp.ne.s32.totalorder %s73, %s74
    %p85 = scmp.eq.s32.totalorder %s14, 0
    %p86 = por %p84, %p85
    %p87 = scmp.ne.s32.totalorder %s73, %s74
    %p88 = scmp.eq.s32.totalorder %s15, 47
    %p89 = por %p87, %p88
    %p91 = scmp.ne.s32.totalorder %s74, %s90
    %p92 = scmp.eq.s32.totalorder %s15, 0
    %p93 = por %p91, %p92
    %s95 = sadd.s32 %s94, 1
    %p98 = scmp.eq.s32.totalorder %s9, 47
    %p99 = scmp.ne.s32.totalorder %s94, %s96
    %p100 = scmp.eq.s32.totalorder %s9, 0
    %p101 = por %p99, %p100
    %p102 = scmp.ne.s32.totalorder %s94, %s96
    %p103 = scmp.eq.s32.totalorder %s14, 47
    %p104 = por %p102, %p103
    %p105 = scmp.ne.s32.totalorder %s96, %s97
    %p106 = scmp.eq.s32.totalorder %s14, 0
    %p107 = por %p105, %p106
    %p108 = scmp.ne.s32.totalorder %s96, %s97
    %p109 = scmp.eq.s32.totalorder %s15, 47
    %p110 = por %p108, %p109
    %p112 = scmp.ne.s32.totalorder %s97, %s111
    %p113 = scmp.eq.s32.totalorder %s15, 0
    %p114 = por %p112, %p113
    %s115 = ssub.s32 %s16, %s35
    %s116 = ssub.s32 %s17, %s31
    %s117 = sor.u32 %s115, %s116
    %p118 = scmp.eq.s32.totalorder %s117, 0
    %s120 = sadd.s32 %s119, 1
    %s121 = scalar_select %p118, %s119, %s120
    %p124 = pneg %p118
    %p125 = scmp.eq.s32.totalorder %s9, 47
    %p126 = por %p124, %p125
    %p127 = scmp.ne.s32.totalorder %s119, %s122
    %p128 = scmp.eq.s32.totalorder %s9, 0
    %p129 = por %p127, %p128
    %p130 = scmp.ne.s32.totalorder %s119, %s122
    %p131 = scmp.eq.s32.totalorder %s14, 47
    %p132 = por %p130, %p131
    %p133 = scmp.ne.s32.totalorder %s122, %s123
    %p134 = scmp.eq.s32.totalorder %s14, 0
    %p135 = por %p133, %p134
    %p136 = scmp.ne.s32.totalorder %s122, %s123
    %p137 = scmp.eq.s32.totalorder %s15, 47
    %p138 = por %p136, %p137
    %p140 = scmp.ne.s32.totalorder %s123, %s139
    %p141 = scmp.eq.s32.totalorder %s15, 0
    %p142 = por %p140, %p141
    %p143 = scmp.le.s32.totalorder 1, %s9
    %p144 = scmp.lt.s32.totalorder %s9, 49
    %p145 = pnand %p143, %p144
    %p146 = pneg %p145
    // Predicated region
    $region9: #{deeplab_forward.11} parent=5 // pred_check
      _
    $region10: #{deeplab_forward.11} parent=5 // pred_check_branch
      %148 = sbr.rel (%p145) target = $region12
    $region11: #{deeplab_forward.11} parent=5 // pred_region
      %s149 = ssub.s32 %s9, 1
      // Predicated region
      $region13: #{deeplab_forward.11} parent=11 // pred_check
        %p150 = pneg %p107
      $region14: #{deeplab_forward.11} parent=11 // pred_check_branch
        %152 = sbr.rel (%p150) target = $region16
      $region15: #{deeplab_forward.11} parent=11 // pred_region
        _
      $region16: #{deeplab_forward.11} parent=11 // pred_fallthru
        _
    $region12: #{deeplab_forward.11} parent=5 // pred_fallthru
      _
    %p153 = scmp.lt.s32.totalorder %s9, 48
    // Predicated region
    $region17: #{deeplab_forward.11} parent=5 // pred_check
      %p154 = pneg %p153
    $region18: #{deeplab_forward.11} parent=5 // pred_check_branch
      %156 = sbr.rel (%p154) target = $region20
    $region19: #{deeplab_forward.11} parent=5 // pred_region
      // Predicated region
      $region21: #{deeplab_forward.11} parent=19 // pred_check
        %p157 = pneg %p54
      $region22: #{deeplab_forward.11} parent=19 // pred_check_branch
        %159 = sbr.rel (%p157) target = $region24
      $region23: #{deeplab_forward.11} parent=19 // pred_region
        %s160 = smul.u32 %s18, 6
        %s161 = sadd.s32 %s17, %s160
        %p162 = scmp.lt.s32.totalorder %s16, 1
        %s163 = scalar_select %p162, %s16, 1
        %p164 = scmp.lt.s32.totalorder %s161, 19
        %s165 = scalar_select %p164, %s161, 19
        %s166 = smul.addr %s165, 3
        %s167 = smul.addr %s163, 60
        %s168 = sadd.s32 %s166, %s167
        %s169 = smul.addr %s168, 4
        %s170 = scalar_lea.vmem %s0, %s169
        %s171 = smul.u32 %s18, 6
        %s172 = sadd.s32 %s17, %s171
      $region24: #{deeplab_forward.11} parent=19 // pred_fallthru
        _
      // Predicated region
      $region25: #{deeplab_forward.11} parent=19 // pred_check
        %p173 = pneg %p80
      $region26: #{deeplab_forward.11} parent=19 // pred_check_branch
        %175 = sbr.rel (%p173) target = $region28
      $region27: #{deeplab_forward.11} parent=19 // pred_region
        %p176 = scmp.lt.s32.totalorder %s18, 2
        %s177 = scalar_select %p176, %s18, 2
        %s178 = smul.addr %s177, 6
        %s179 = smul.addr %s178, 4
        %s180 = scalar_lea.vmem %s1, %s179
      $region28: #{deeplab_forward.11} parent=19 // pred_fallthru
        _
    $region20: #{deeplab_forward.11} parent=5 // pred_fallthru
      _
    %p181 = scmp.le.s32.totalorder 1, %s9
    %p182 = scmp.lt.s32.totalorder %s9, 49
    %p183 = pnand %p181, %p182
    %p184 = pneg %p183
    // Predicated region
    $region29: #{deeplab_forward.11} parent=5 // pred_check
      _
    $region30: #{deeplab_forward.11} parent=5 // pred_check_branch
      %186 = sbr.rel (%p183) target = $region32
    $region31: #{deeplab_forward.11} parent=5 // pred_region
      %s187 = ssub.s32 %s9, 1
      %s188 = smul.u32 %s21, 6
      %s189 = sadd.s32 %s20, %s188
      %p190 = scmp.lt.s32.totalorder %s19, 1
      %s191 = scalar_select %p190, %s19, 1
      %p192 = scmp.lt.s32.totalorder %s189, 19
      %s193 = scalar_select %p192, %s189, 19
      %s194 = smul.addr %s193, 3
      %s195 = smul.addr %s191, 60
      %s196 = sadd.s32 %s194, %s195
      %s197 = smul.addr %s196, 4
      %s198 = scalar_lea.vmem %s0, %s197
      %p199 = pneg %p60
      %p200 = pneg %p57
      %p201 = scmp.lt.s32.totalorder %s21, 2
      %s202 = scalar_select %p201, %s21, 2
      %s203 = smul.addr %s202, 6
      %s204 = smul.addr %s203, 4
      %s205 = scalar_lea.vmem %s1, %s204
      %p206 = pneg %p86
      %p207 = pneg %p83
      %p208 = pneg %p107
      %p209 = pneg %p104
      %p210 = pneg %p135
      %p211 = pneg %p132
      %p212 = scmp.lt.s32.totalorder %s19, 1
      %s213 = scalar_select %p212, %s19, 1
      %p214 = scmp.lt.s32.totalorder %s20, 7
      %s215 = scalar_select %p214, %s20, 7
      %s216 = smul.addr %s213, 8
      %s217 = sadd.s32 %s215, %s216
      %s218 = smul.addr %s217, 4
      %s219 = scalar_lea.vmem %s3, %s218
      %s220 = smul.u32 %s21, 6
      %s221 = sadd.s32 %s20, %s220
      %p222 = scmp.lt.s32.totalorder %s19, 1
      %s223 = scalar_select %p222, %s19, 1
      %p224 = scmp.lt.s32.totalorder %s221, 19
      %s225 = scalar_select %p224, %s221, 19
      %s226 = smul.addr %s225, 3
      %s227 = smul.addr %s223, 60
      %s228 = sadd.s32 %s226, %s227
      %s229 = smul.addr %s228, 4
      %s230 = scalar_lea.vmem %s0, %s229
      %s231 = smul.u32 %s21, 6
      %s232 = sadd.s32 %s20, %s231
      %p233 = scmp.lt.s32.totalorder %s21, 2
      %s234 = scalar_select %p233, %s21, 2
      %s235 = smul.addr %s234, 6
      %s236 = smul.addr %s235, 4
      %s237 = scalar_lea.vmem %s1, %s236
      %p238 = scmp.lt.s32.totalorder %s19, 1
      %s239 = scalar_select %p238, %s19, 1
      %p240 = scmp.lt.s32.totalorder %s20, 7
      %s241 = scalar_select %p240, %s20, 7
      %s242 = smul.addr %s239, 8
      %s243 = sadd.s32 %s241, %s242
      %s244 = smul.addr %s243, 4
      %s245 = scalar_lea.vmem %s3, %s244
      %p247 = scmp.eq.s32.totalorder %s21, 0
      // Predicated region
      $region33: #{deeplab_forward.11} parent=31 // pred_check
        %p248 = pneg %p247
      $region34: #{deeplab_forward.11} parent=31 // pred_check_branch
        %250 = sbr.rel (%p248) target = $region36
      $region35: #{deeplab_forward.11} parent=31 // pred_region
        %vm251 = vcmask 261120
        %252 = vst.msk [vmem:[#allocation2] sm:$0xff] %vm251, 0.0
      $region36: #{deeplab_forward.11} parent=31 // pred_fallthru
        _
      %v253 = vld [vmem:[#allocation2] sm:$0xff]
      %v254 = vld [vmem:[%s230] sm:$0xf]
      %v255 = vld [vmem:[%s237] sm:$0xf]
      %v256 = vld [vmem:[%s237 + $0x4] sm:$0xf]
      %v259 = vunpack.c.l.b16 %v255
      %v260 = vunpack.c.l.b16 %v256
      %v261 = vpack.c.b16 %v260, %v259
      %vm263 = vcmask 130048
      %v265 = vsel %vm263, %v254, 0
      %267 = vmatprep.subr.bf16.mxu0 0
      %268 = vmatpush1.bf16.msra.mxu0 0
      %269 = vmatprep.subr.bf16.mxu0 0
      %270 = vmatpush1.bf16.msra.mxu0 0
      %271 = vmatprep.subr.bf16.mxu0 0
      %272 = vmatpush1.bf16.msra.mxu0 0
      %273 = vmatprep.subr.bf16.mxu0 0
      %274 = vmatpush1.bf16.msra.mxu0 0
      %275 = vmatprep.subr.bf16.mxu0 0
      %276 = vmatpush1.bf16.msra.mxu0 0
      %277 = vmatprep.subr.bf16.mxu0 0
      %278 = vmatpush1.bf16.msra.mxu0 0
      %279 = vmatprep.subr.bf16.mxu0 0
      %280 = vmatpush1.bf16.msra.mxu0 0
      %281 = vmatprep.subr.bf16.mxu0 0
      %282 = vmatpush1.bf16.msra.mxu0 %v261
      %283 = vmatprep.subr.bf16.mxu0 0
      %284 = vmatpush2.bf16.msra.mxu0 0
      %285 = vmatprep.subr.bf16.mxu0 0
      %286 = vmatpush2.bf16.msra.mxu0 0
      %287 = vmatprep.subr.bf16.mxu0 0
      %288 = vmatpush2.bf16.msra.mxu0 0
      %289 = vmatprep.subr.bf16.mxu0 0
      %290 = vmatpush2.bf16.msra.mxu0 0
      %291 = vmatprep.subr.bf16.mxu0 0
      %292 = vmatpush2.bf16.msra.mxu0 0
      %293 = vmatprep.subr.bf16.mxu0 0
      %294 = vmatpush2.bf16.msra.mxu0 0
      %295 = vmatprep.subr.bf16.mxu0 0
      %296 = vmatpush2.bf16.msra.mxu0 0
      %297 = vmatprep.subr.bf16.mxu0 0
      %298 = vmatpush2.bf16.msra.mxu0 0
      %299 = vmatprep.mubr.bf16.mxu0 0
      %300 = vmatmul.mubr.bf16.gmra.mxu0 %v265
      %v301 = vpop.f32.mrf.mxu0
      %v302 = vadd.f32 0.0, %v301
      %v303 = vpop.f32.mrf.mxu0
      %v304 = vpop.f32.mrf.mxu0
      %v305 = vpop.f32.mrf.mxu0
      %306 = vdwg.mxu0
      %v307 = vadd.f32 %v253, %v302
      %v308 = vld [vmem:[%s230] sm:$0x8]
      %v309 = vld [vmem:[%s230 + $0x4] sm:$0x7]
      %s310 = scalar_lea.vmem %s237, 8
      %v311 = vld [vmem:[%s310] sm:$0xf]
      %v312 = vld [vmem:[%s310 + $0x4] sm:$0xf]
      %v315 = vunpack.c.l.b16 %v308
      %v316 = vunpack.c.l.b16 %v309
      %v317 = vpack.c.b16 %v316, %v315
      %v318 = vrot.slane %v317, 3
      %v321 = vunpack.c.l.b16 %v311
      %v322 = vunpack.c.l.b16 %v312
      %v323 = vpack.c.b16 %v322, %v321
      %v326 = vsel %vm263, %v318, 0
      %328 = vmatprep.subr.bf16.mxu0 0
      %329 = vmatpush1.bf16.msra.mxu0 0
      %330 = vmatprep.subr.bf16.mxu0 0
      %331 = vmatpush1.bf16.msra.mxu0 0
      %332 = vmatprep.subr.bf16.mxu0 0
      %333 = vmatpush1.bf16.msra.mxu0 0
      %334 = vmatprep.subr.bf16.mxu0 0
      %335 = vmatpush1.bf16.msra.mxu0 0
      %336 = vmatprep.subr.bf16.mxu0 0
      %337 = vmatpush1.bf16.msra.mxu0 0
      %338 = vmatprep.subr.bf16.mxu0 0
      %339 = vmatpush1.bf16.msra.mxu0 0
      %340 = vmatprep.subr.bf16.mxu0 0
      %341 = vmatpush1.bf16.msra.mxu0 0
      %342 = vmatprep.subr.bf16.mxu0 0
      %343 = vmatpush1.bf16.msra.mxu0 %v323
      %344 = vmatprep.subr.bf16.mxu0 0
      %345 = vmatpush2.bf16.msra.mxu0 0
      %346 = vmatprep.subr.bf16.mxu0 0
      %347 = vmatpush2.bf16.msra.mxu0 0
      %348 = vmatprep.subr.bf16.mxu0 0
      %349 = vmatpush2.bf16.msra.mxu0 0
      %350 = vmatprep.subr.bf16.mxu0 0
      %351 = vmatpush2.bf16.msra.mxu0 0
      %352 = vmatprep.subr.bf16.mxu0 0
      %353 = vmatpush2.bf16.msra.mxu0 0
      %354 = vmatprep.subr.bf16.mxu0 0
      %355 = vmatpush2.bf16.msra.mxu0 0
      %356 = vmatprep.subr.bf16.mxu0 0
      %357 = vmatpush2.bf16.msra.mxu0 0
      %358 = vmatprep.subr.bf16.mxu0 0
      %359 = vmatpush2.bf16.msra.mxu0 0
      %360 = vmatprep.mubr.bf16.mxu0 0
      %361 = vmatmul.mubr.bf16.gmra.mxu0 %v326
      %v362 = vpop.f32.mrf.mxu0
      %v363 = vadd.f32 0.0, %v362
      %v364 = vpop.f32.mrf.mxu0
      %v365 = vpop.f32.mrf.mxu0
      %v366 = vpop.f32.mrf.mxu0
      %367 = vdwg.mxu0
      %v368 = vadd.f32 %v307, %v363
      %v369 = vld [vmem:[%s230 + $0x4] sm:$0xc]
      %v370 = vld [vmem:[%s230 + $0x8] sm:$0x3]
      %s371 = scalar_lea.vmem %s237, 16
      %v372 = vld [vmem:[%s371] sm:$0xf]
      %v373 = vld [vmem:[%s371 + $0x4] sm:$0xf]
      %v376 = vunpack.c.l.b16 %v369
      %v377 = vunpack.c.l.b16 %v370
      %v378 = vpack.c.b16 %v377, %v376
      %v379 = vrot.slane %v378, 2
      %v382 = vunpack.c.l.b16 %v372
      %v383 = vunpack.c.l.b16 %v373
      %v384 = vpack.c.b16 %v383, %v382
      %v387 = vsel %vm263, %v379, 0
      %389 = vmatprep.subr.bf16.mxu0 0
      %390 = vmatpush1.bf16.msra.mxu0 0
      %391 = vmatprep.subr.bf16.mxu0 0
      %392 = vmatpush1.bf16.msra.mxu0 0
      %393 = vmatprep.subr.bf16.mxu0 0
      %394 = vmatpush1.bf16.msra.mxu0 0
      %395 = vmatprep.subr.bf16.mxu0 0
      %396 = vmatpush1.bf16.msra.mxu0 0
      %397 = vmatprep.subr.bf16.mxu0 0
      %398 = vmatpush1.bf16.msra.mxu0 0
      %399 = vmatprep.subr.bf16.mxu0 0
      %400 = vmatpush1.bf16.msra.mxu0 0
      %401 = vmatprep.subr.bf16.mxu0 0
      %402 = vmatpush1.bf16.msra.mxu0 0
      %403 = vmatprep.subr.bf16.mxu0 0
      %404 = vmatpush1.bf16.msra.mxu0 %v384
      %405 = vmatprep.subr.bf16.mxu0 0
      %406 = vmatpush2.bf16.msra.mxu0 0
      %407 = vmatprep.subr.bf16.mxu0 0
      %408 = vmatpush2.bf16.msra.mxu0 0
      %409 = vmatprep.subr.bf16.mxu0 0
      %410 = vmatpush2.bf16.msra.mxu0 0
      %411 = vmatprep.subr.bf16.mxu0 0
      %412 = vmatpush2.bf16.msra.mxu0 0
      %413 = vmatprep.subr.bf16.mxu0 0
      %414 = vmatpush2.bf16.msra.mxu0 0
      %415 = vmatprep.subr.bf16.mxu0 0
      %416 = vmatpush2.bf16.msra.mxu0 0
      %417 = vmatprep.subr.bf16.mxu0 0
      %418 = vmatpush2.bf16.msra.mxu0 0
      %419 = vmatprep.subr.bf16.mxu0 0
      %420 = vmatpush2.bf16.msra.mxu0 0
      %421 = vmatprep.mubr.bf16.mxu0 0
      %422 = vmatmul.mubr.bf16.gmra.mxu0 %v387
      %v423 = vpop.f32.mrf.mxu0
      %v424 = vadd.f32 0.0, %v423
      %v425 = vpop.f32.mrf.mxu0
      %v426 = vpop.f32.mrf.mxu0
      %v427 = vpop.f32.mrf.mxu0
      %428 = vdwg.mxu0
      %v429 = vadd.f32 %v368, %v424
      %vm430 = vcmask 261120
      %431 = vst.msk [vmem:[#allocation2] sm:$0xff] %vm430, %v429
      %p432 = scmp.eq.s32.totalorder %s21, 2
      // Predicated region
      $region37: #{deeplab_forward.11} parent=31 // pred_check
        %p433 = pneg %p432
      $region38: #{deeplab_forward.11} parent=31 // pred_check_branch
        %435 = sbr.rel (%p433) target = $region40
      $region39: #{deeplab_forward.11} parent=31 // pred_region
        %v436 = vld [vmem:[#allocation2] sm:$0xff]
        %v437 = vld [vmem:[%s2] sm:$0x1]
        %v439 = vlaneseq
        %v440 = vshrl.u32 %v439, 7
        %v441 = vsub.s32 0, %v440
        %v442 = vrot.slane %v437, %v441
        %v444 = vadd.f32 %v436, %v442
        %v445 = vmax.f32 %v444, 0.0
        %v446 = vpack.c.bf16 %v445, %v445
        %vm447 = vcmask 257024
        %448 = vst.msk [vmem:[%s245] sm:$0xf] %vm447, %v446
      $region40: #{deeplab_forward.11} parent=31 // pred_fallthru
        _
      %p449 = scmp.lt.s32.totalorder %s19, 1
      %s450 = scalar_select %p449, %s19, 1
      %p451 = scmp.lt.s32.totalorder %s20, 7
      %s452 = scalar_select %p451, %s20, 7
      %s453 = smul.addr %s450, 8
      %s454 = sadd.s32 %s452, %s453
      %s455 = smul.addr %s454, 4
      %s456 = scalar_lea.vmem %s3, %s455
      // Predicated region
      $region41: #{deeplab_forward.11} parent=31 // pred_check
        %p457 = pneg %p132
      $region42: #{deeplab_forward.11} parent=31 // pred_check_branch
        %459 = sbr.rel (%p457) target = $region44
      $region43: #{deeplab_forward.11} parent=31 // pred_region
        _
      $region44: #{deeplab_forward.11} parent=31 // pred_fallthru
        _
    $region32: #{deeplab_forward.11} parent=5 // pred_fallthru
      _
    %p460 = scmp.le.s32.totalorder 2, %s9
    // Predicated region
    $region45: #{deeplab_forward.11} parent=5 // pred_check
      %p461 = pneg %p460
    $region46: #{deeplab_forward.11} parent=5 // pred_check_branch
      %463 = sbr.rel (%p461) target = $region48
    $region47: #{deeplab_forward.11} parent=5 // pred_region
      %s464 = ssub.s32 %s9, 2
      // Predicated region
      $region49: #{deeplab_forward.11} parent=47 // pred_check
        %p465 = pneg %p138
      $region50: #{deeplab_forward.11} parent=47 // pred_check_branch
        %467 = sbr.rel (%p465) target = $region52
      $region51: #{deeplab_forward.11} parent=47 // pred_region
        %p468 = scmp.lt.s32.totalorder %s22, 1
        %s469 = scalar_select %p468, %s22, 1
        %p470 = scmp.lt.s32.totalorder %s23, 7
        %s471 = scalar_select %p470, %s23, 7
        %s472 = smul.addr %s469, 8
        %s473 = sadd.s32 %s471, %s472
        %s474 = smul.addr %s473, 4
        %s475 = scalar_lea.vmem %s3, %s474
      $region52: #{deeplab_forward.11} parent=47 // pred_fallthru
        _
    $region48: #{deeplab_forward.11} parent=5 // pred_fallthru
      _
  $region6: #{deeplab_forward.11} parent=0 // loop_footer
    %s13 = sadd.s32 1, %s9
  $region7: #{deeplab_forward.11} parent=0 // loop_footer_branch
    %8 = sbr.rel target = $region3
  $region8: #{deeplab_forward.11} parent=0 // loop_exit
    _

// kernel: deeplab_forward.10
$region0: #{deeplab_forward.10}
  #allocation0 [shape = 'u32[]', space=smem, size = 0x4, offset = 0x4, fixed_abs, tag = 'smem constant byte address 0x4 - core index']
  #allocation1 [shape = 'u32[144,128]{1,0:T(1,128)}', space=vmem, size = 0x12000, scoped, tag = 'internal scratch']
  #allocation2 [shape = 'f32[64,128]{1,0:T(8,128)}', space=vmem, size = 0x8000, scoped, tag = 'scratch operand']
  %s0 = inlined_call_operand.vmem [shape: bf16[128,16], index: 0, kind: input, shape index: {}]
  %s1 = inlined_call_operand.vmem [shape: bf16[16,128], index: 1, kind: input, shape index: {}]
  %s2 = inlined_call_operand.vmem [shape: f32[1,128], index: 2, kind: input, shape index: {}]
  %s3 = inlined_call_operand.vmem [shape: bf16[128,128], index: 3, kind: output, shape index: {}]
  %s4 = sld [smem:[#allocation0]]
  $region53: #{deeplab_forward.10} parent=0
    _
  %s6 = ssub.s32 1, %s4
  %s7 = scalar_select 0, %s6, %s4
  loop: start=0, step=1, limit=4
  $region2: #{deeplab_forward.10} parent=0 // loop_pre_header
    _
  $region3: #{deeplab_forward.10} parent=0 // loop_header
    %s9 = sphi 0, %s13
    %p10 = scmp.ge.s32.totalorder %s9, 4
    %s16 = sphi 0, %s35
    %s17 = sphi 0, %s31
    %s18 = sphi 0, %s27
    %s19 = sphi 0, %s16
    %s20 = sphi 0, %s17
    %s21 = sphi 0, %s18
    %s22 = sphi 0, %s19
    %s23 = sphi 0, %s20
    %s24 = sphi 0, %s21
    %s40 = sphi 0, %s42
    %s43 = sphi 0, %s40
    %s44 = sphi 0, %s43
    %s60 = sphi 0, %s44
    %s68 = sphi 0, %s70
    %s71 = sphi 0, %s68
    %s72 = sphi 0, %s71
    %s88 = sphi 0, %s72
    %s94 = sphi 0, %s96
    %s97 = sphi 0, %s94
    %s98 = sphi 0, %s97
    %s114 = sphi 0, %s98
    %s122 = sphi 0, %s124
    %s125 = sphi 0, %s122
    %s126 = sphi 0, %s125
    %s142 = sphi 0, %s126
  $region4: #{deeplab_forward.10} parent=0 // loop_header_branch
    %12 = sbr.rel (%p10) target = $region8
  $region5: #{deeplab_forward.10} parent=0 // loop_body
    %s14 = ssub.s32 %s9, 1
    %s15 = ssub.s32 %s9, 2
    %s25 = sadd.s32 1, %s18
    %p26 = scmp.ge.s32.totalorder %s25, 1
    %s27 = scalar_select %p26, 0, %s25
    %s28 = sadd.s32 1, %s17
    %s29 = scalar_select %p26, %s28, %s17
    %p30 = scmp.ge.s32.totalorder %s29, 1
    %s31 = scalar_select %p30, 0, %s29
    %s32 = sadd.s32 1, %s16
    %s33 = scalar_select %p30, %s32, %s16
    %p34 = scmp.ge.s32.totalorder %s33, 2
    %s35 = scalar_select %p34, 0, %s33
    %s36 = ssub.s32 %s16, %s35
    %s37 = ssub.s32 %s18, %s27
    %s38 = sor.u32 %s36, %s37
    %p39 = scmp.eq.s32.totalorder %s38, 0
    %s41 = sadd.s32 %s40, 1
    %s42 = scalar_select %p39, %s40, %s41
    %p45 = pneg %p39
    %p46 = scmp.eq.s32.totalorder %s9, 1
    %p47 = por %p45, %p46
    %p48 = scmp.ne.s32.totalorder %s40, %s43
    %p49 = scmp.eq.s32.totalorder %s9, 0
    %p50 = por %p48, %p49
    %p51 = scmp.ne.s32.totalorder %s40, %s43
    %p52 = scmp.eq.s32.totalorder %s14, 1
    %p53 = por %p51, %p52
    %p54 = scmp.ne.s32.totalorder %s43, %s44
    %p55 = scmp.eq.s32.totalorder %s14, 0
    %p56 = por %p54, %p55
    %p57 = scmp.ne.s32.totalorder %s43, %s44
    %p58 = scmp.eq.s32.totalorder %s15, 1
    %p59 = por %p57, %p58
    %p61 = scmp.ne.s32.totalorder %s44, %s60
    %p62 = scmp.eq.s32.totalorder %s15, 0
    %p63 = por %p61, %p62
    %s64 = ssub.s32 %s18, %s27
    %s65 = ssub.s32 %s17, %s31
    %s66 = sor.u32 %s64, %s65
    %p67 = scmp.eq.s32.totalorder %s66, 0
    %s69 = sadd.s32 %s68, 1
    %s70 = scalar_select %p67, %s68, %s69
    %p73 = pneg %p67
    %p74 = scmp.eq.s32.totalorder %s9, 1
    %p75 = por %p73, %p74
    %p76 = scmp.ne.s32.totalorder %s68, %s71
    %p77 = scmp.eq.s32.totalorder %s9, 0
    %p78 = por %p76, %p77
    %p79 = scmp.ne.s32.totalorder %s68, %s71
    %p80 = scmp.eq.s32.totalorder %s14, 1
    %p81 = por %p79, %p80
    %p82 = scmp.ne.s32.totalorder %s71, %s72
    %p83 = scmp.eq.s32.totalorder %s14, 0
    %p84 = por %p82, %p83
    %p85 = scmp.ne.s32.totalorder %s71, %s72
    %p86 = scmp.eq.s32.totalorder %s15, 1
    %p87 = por %p85, %p86
    %p89 = scmp.ne.s32.totalorder %s72, %s88
    %p90 = scmp.eq.s32.totalorder %s15, 0
    %p91 = por %p89, %p90
    %s92 = ssub.s32 %s17, %s31
    %p93 = scmp.eq.s32.totalorder %s92, 0
    %s95 = sadd.s32 %s94, 1
    %s96 = scalar_select %p93, %s94, %s95
    %p99 = pneg %p93
    %p100 = scmp.eq.s32.totalorder %s9, 1
    %p101 = por %p99, %p100
    %p102 = scmp.ne.s32.totalorder %s94, %s97
    %p103 = scmp.eq.s32.totalorder %s9, 0
    %p104 = por %p102, %p103
    %p105 = scmp.ne.s32.totalorder %s94, %s97
    %p106 = scmp.eq.s32.totalorder %s14, 1
    %p107 = por %p105, %p106
    %p108 = scmp.ne.s32.totalorder %s97, %s98
    %p109 = scmp.eq.s32.totalorder %s14, 0
    %p110 = por %p108, %p109
    %p111 = scmp.ne.s32.totalorder %s97, %s98
    %p112 = scmp.eq.s32.totalorder %s15, 1
    %p113 = por %p111, %p112
    %p115 = scmp.ne.s32.totalorder %s98, %s114
    %p116 = scmp.eq.s32.totalorder %s15, 0
    %p117 = por %p115, %p116
    %s118 = ssub.s32 %s16, %s35
    %s119 = ssub.s32 %s17, %s31
    %s120 = sor.u32 %s118, %s119
    %p121 = scmp.eq.s32.totalorder %s120, 0
    %s123 = sadd.s32 %s122, 1
    %s124 = scalar_select %p121, %s122, %s123
    %p127 = pneg %p121
    %p128 = scmp.eq.s32.totalorder %s9, 1
    %p129 = por %p127, %p128
    %p130 = scmp.ne.s32.totalorder %s122, %s125
    %p131 = scmp.eq.s32.totalorder %s9, 0
    %p132 = por %p130, %p131
    %p133 = scmp.ne.s32.totalorder %s122, %s125
    %p134 = scmp.eq.s32.totalorder %s14, 1
    %p135 = por %p133, %p134
    %p136 = scmp.ne.s32.totalorder %s125, %s126
    %p137 = scmp.eq.s32.totalorder %s14, 0
    %p138 = por %p136, %p137
    %p139 = scmp.ne.s32.totalorder %s125, %s126
    %p140 = scmp.eq.s32.totalorder %s15, 1
    %p141 = por %p139, %p140
    %p143 = scmp.ne.s32.totalorder %s126, %s142
    %p144 = scmp.eq.s32.totalorder %s15, 0
    %p145 = por %p143, %p144
    %p146 = scmp.le.s32.totalorder 1, %s9
    %p147 = scmp.lt.s32.totalorder %s9, 3
    %p148 = pnand %p146, %p147
    %p149 = pneg %p148
    // Predicated region
    $region9: #{deeplab_forward.10} parent=5 // pred_check
      _
    $region10: #{deeplab_forward.10} parent=5 // pred_check_branch
      %151 = sbr.rel (%p148) target = $region12
    $region11: #{deeplab_forward.10} parent=5 // pred_region
      %s152 = ssub.s32 %s9, 1
      // Predicated region
      $region13: #{deeplab_forward.10} parent=11 // pred_check
        %p153 = pneg %p84
      $region14: #{deeplab_forward.10} parent=11 // pred_check_branch
        %155 = sbr.rel (%p153) target = $region16
      $region15: #{deeplab_forward.10} parent=11 // pred_region
        %s156 = smul.u32 2, %s21
        %p157 = scmp.lt.s32.totalorder %s156, 1
        %s158 = scalar_select %p157, %s156, 1
        %p159 = scmp.lt.s32.totalorder %s20, 0
        %s160 = scalar_select %p159, %s20, 0
        %s161 = sadd.s32 %s160, %s158
        %s162 = smul.addr %s161, 4
        %s163 = scalar_lea.vmem %s1, %s162
        %s164 = smul.u32 2, %s21
      $region16: #{deeplab_forward.10} parent=11 // pred_fallthru
        _
      // Predicated region
      $region17: #{deeplab_forward.10} parent=11 // pred_check
        %p165 = pneg %p110
      $region18: #{deeplab_forward.10} parent=11 // pred_check_branch
        %167 = sbr.rel (%p165) target = $region20
      $region19: #{deeplab_forward.10} parent=11 // pred_region
        %p168 = scmp.lt.s32.totalorder %s20, 0
        %s169 = scalar_select %p168, %s20, 0
        %s170 = scalar_lea.vmem %s2, %s169
      $region20: #{deeplab_forward.10} parent=11 // pred_fallthru
        _
    $region12: #{deeplab_forward.10} parent=5 // pred_fallthru
      _
    %p171 = scmp.lt.s32.totalorder %s9, 2
    // Predicated region
    $region21: #{deeplab_forward.10} parent=5 // pred_check
      %p172 = pneg %p171
    $region22: #{deeplab_forward.10} parent=5 // pred_check_branch
      %174 = sbr.rel (%p172) target = $region24
    $region23: #{deeplab_forward.10} parent=5 // pred_region
      // Predicated region
      $region25: #{deeplab_forward.10} parent=23 // pred_check
        %p175 = pneg %p50
      $region26: #{deeplab_forward.10} parent=23 // pred_check_branch
        %177 = sbr.rel (%p175) target = $region28
      $region27: #{deeplab_forward.10} parent=23 // pred_region
        %s178 = smul.u32 8, %s16
        %p179 = scmp.lt.s32.totalorder %s178, 15
        %s180 = scalar_select %p179, %s178, 15
        %p181 = scmp.lt.s32.totalorder %s18, 0
        %s182 = scalar_select %p181, %s18, 0
        %s183 = sadd.s32 %s182, %s180
        %s184 = smul.addr %s183, 4
        %s185 = scalar_lea.vmem %s0, %s184
        %s186 = smul.u32 8, %s16
      $region28: #{deeplab_forward.10} parent=23 // pred_fallthru
        _
    $region24: #{deeplab_forward.10} parent=5 // pred_fallthru
      _
    %p187 = scmp.le.s32.totalorder 1, %s9
    %p188 = scmp.lt.s32.totalorder %s9, 3
    %p189 = pnand %p187, %p188
    %p190 = pneg %p189
    // Predicated region
    $region29: #{deeplab_forward.10} parent=5 // pred_check
      _
    $region30: #{deeplab_forward.10} parent=5 // pred_check_branch
      %192 = sbr.rel (%p189) target = $region32
    $region31: #{deeplab_forward.10} parent=5 // pred_region
      %s193 = ssub.s32 %s9, 1
      %s194 = smul.u32 8, %s19
      %p195 = scmp.lt.s32.totalorder %s194, 15
      %s196 = scalar_select %p195, %s194, 15
      %p197 = scmp.lt.s32.totalorder %s21, 0
      %s198 = scalar_select %p197, %s21, 0
      %s199 = sadd.s32 %s198, %s196
      %s200 = smul.addr %s199, 4
      %s201 = scalar_lea.vmem %s0, %s200
      %p202 = pneg %p56
      %p203 = pneg %p53
      %s204 = smul.u32 2, %s21
      %p205 = scmp.lt.s32.totalorder %s204, 1
      %s206 = scalar_select %p205, %s204, 1
      %p207 = scmp.lt.s32.totalorder %s20, 0
      %s208 = scalar_select %p207, %s20, 0
      %s209 = sadd.s32 %s208, %s206
      %s210 = smul.addr %s209, 4
      %s211 = scalar_lea.vmem %s1, %s210
      %p212 = pneg %p84
      %p213 = pneg %p81
      %p214 = scmp.lt.s32.totalorder %s20, 0
      %s215 = scalar_select %p214, %s20, 0
      %s216 = scalar_lea.vmem %s2, %s215
      %p217 = pneg %p110
      %p218 = pneg %p107
      %p219 = pneg %p138
      %p220 = pneg %p135
      %s221 = smul.u32 8, %s19
      %p222 = scmp.lt.s32.totalorder %s221, 15
      %s223 = scalar_select %p222, %s221, 15
      %p224 = scmp.lt.s32.totalorder %s20, 0
      %s225 = scalar_select %p224, %s20, 0
      %s226 = sadd.s32 %s225, %s223
      %s227 = smul.addr %s226, 4
      %s228 = scalar_lea.vmem %s3, %s227
      %s229 = smul.u32 8, %s19
      %p230 = scmp.lt.s32.totalorder %s229, 15
      %s231 = scalar_select %p230, %s229, 15
      %p232 = scmp.lt.s32.totalorder %s21, 0
      %s233 = scalar_select %p232, %s21, 0
      %s234 = sadd.s32 %s233, %s231
      %s235 = smul.addr %s234, 4
      %s236 = scalar_lea.vmem %s0, %s235
      %s237 = smul.u32 8, %s19
      %s238 = smul.u32 2, %s21
      %p239 = scmp.lt.s32.totalorder %s238, 1
      %s240 = scalar_select %p239, %s238, 1
      %p241 = scmp.lt.s32.totalorder %s20, 0
      %s242 = scalar_select %p241, %s20, 0
      %s243 = sadd.s32 %s242, %s240
      %s244 = smul.addr %s243, 4
      %s245 = scalar_lea.vmem %s1, %s244
      %s246 = smul.u32 2, %s21
      %p247 = scmp.lt.s32.totalorder %s20, 0
      %s248 = scalar_select %p247, %s20, 0
      %s249 = scalar_lea.vmem %s2, %s248
      %s250 = smul.u32 8, %s19
      %p251 = scmp.lt.s32.totalorder %s250, 15
      %s252 = scalar_select %p251, %s250, 15
      %p253 = scmp.lt.s32.totalorder %s20, 0
      %s254 = scalar_select %p253, %s20, 0
      %s255 = sadd.s32 %s254, %s252
      %s256 = smul.addr %s255, 4
      %s257 = scalar_lea.vmem %s3, %s256
      %s258 = smul.u32 8, %s19
      %p260 = scmp.eq.s32.totalorder %s21, 0
      // Predicated region
      $region33: #{deeplab_forward.10} parent=31 // pred_check
        %p261 = pneg %p260
      $region34: #{deeplab_forward.10} parent=31 // pred_check_branch
        %263 = sbr.rel (%p261) target = $region36
      $region35: #{deeplab_forward.10} parent=31 // pred_region
        %264 = vst [vmem:[#allocation2] sm:$0xff] 0.0
        %265 = vst [vmem:[#allocation2 + $0x8] sm:$0xff] 0.0
        %266 = vst [vmem:[#allocation2 + $0x10] sm:$0xff] 0.0
        %267 = vst [vmem:[#allocation2 + $0x18] sm:$0xff] 0.0
        %268 = vst [vmem:[#allocation2 + $0x20] sm:$0xff] 0.0
        %269 = vst [vmem:[#allocation2 + $0x28] sm:$0xff] 0.0
        %270 = vst [vmem:[#allocation2 + $0x30] sm:$0xff] 0.0
        %271 = vst [vmem:[#allocation2 + $0x38] sm:$0xff] 0.0
      $region36: #{deeplab_forward.10} parent=31 // pred_fallthru
        _
      %v272 = vld [vmem:[#allocation2] sm:$0xff]
      %v273 = vld [vmem:[#allocation2 + $0x8] sm:$0xff]
      %v274 = vld [vmem:[#allocation2 + $0x10] sm:$0xff]
      %v275 = vld [vmem:[#allocation2 + $0x18] sm:$0xff]
      %v276 = vld [vmem:[#allocation2 + $0x20] sm:$0xff]
      %v277 = vld [vmem:[#allocation2 + $0x28] sm:$0xff]
      %v278 = vld [vmem:[#allocation2 + $0x30] sm:$0xff]
      %v279 = vld [vmem:[#allocation2 + $0x38] sm:$0xff]
      %v280 = vld [vmem:[%s236] sm:$0xf]
      %v281 = vld [vmem:[%s236 + $0x4] sm:$0xf]
      %v282 = vld [vmem:[%s236 + $0x8] sm:$0xf]
      %v283 = vld [vmem:[%s236 + $0xc] sm:$0xf]
      %v284 = vld [vmem:[%s236 + $0x10] sm:$0xf]
      %v285 = vld [vmem:[%s236 + $0x14] sm:$0xf]
      %v286 = vld [vmem:[%s236 + $0x18] sm:$0xf]
      %v287 = vld [vmem:[%s236 + $0x1c] sm:$0xf]
      %v288 = vld [vmem:[%s245] sm:$0xf]
      %v289 = vld [vmem:[%s245 + $0x4] sm:$0xf]
      %v298 = vunpack.c.l.b16 %v280
      %v299 = vunpack.c.l.b16 %v281
      %v300 = vunpack.c.l.b16 %v282
      %v301 = vunpack.c.l.b16 %v283
      %v302 = vunpack.c.l.b16 %v284
      %v303 = vunpack.c.l.b16 %v285
      %v304 = vunpack.c.l.b16 %v286
      %v305 = vunpack.c.l.b16 %v287
      %v306 = vpack.c.b16 %v299, %v298
      %v307 = vpack.c.b16 %v301, %v300
      %v308 = vpack.c.b16 %v303, %v302
      %v309 = vpack.c.b16 %v305, %v304
      %v312 = vunpack.c.l.b16 %v288
      %v313 = vunpack.c.l.b16 %v289
      %v314 = vpack.c.b16 %v313, %v312
      %vm316 = vcmask 130048
      %v318 = vsel %vm316, %v306, 0
      %v321 = vsel %vm316, %v307, 0
      %v324 = vsel %vm316, %v308, 0
      %v327 = vsel %vm316, %v309, 0
      %329 = vmatprep.subr.bf16.mxu0 0
      %330 = vmatpush1.bf16.msra.mxu0 0
      %331 = vmatprep.subr.bf16.mxu0 0
      %332 = vmatpush1.bf16.msra.mxu0 0
      %333 = vmatprep.subr.bf16.mxu0 0
      %334 = vmatpush1.bf16.msra.mxu0 0
      %335 = vmatprep.subr.bf16.mxu0 0
      %336 = vmatpush1.bf16.msra.mxu0 0
      %337 = vmatprep.subr.bf16.mxu0 0
      %338 = vmatpush1.bf16.msra.mxu0 0
      %339 = vmatprep.subr.bf16.mxu0 0
      %340 = vmatpush1.bf16.msra.mxu0 0
      %341 = vmatprep.subr.bf16.mxu0 0
      %342 = vmatpush1.bf16.msra.mxu0 0
      %343 = vmatprep.subr.bf16.mxu0 0
      %344 = vmatpush1.bf16.msra.mxu0 %v314
      %345 = vmatprep.subr.bf16.mxu0 0
      %346 = vmatpush2.bf16.msra.mxu0 0
      %347 = vmatprep.subr.bf16.mxu0 0
      %348 = vmatpush2.bf16.msra.mxu0 0
      %349 = vmatprep.subr.bf16.mxu0 0
      %350 = vmatpush2.bf16.msra.mxu0 0
      %351 = vmatprep.subr.bf16.mxu0 0
      %352 = vmatpush2.bf16.msra.mxu0 0
      %353 = vmatprep.subr.bf16.mxu0 0
      %354 = vmatpush2.bf16.msra.mxu0 0
      %355 = vmatprep.subr.bf16.mxu0 0
      %356 = vmatpush2.bf16.msra.mxu0 0
      %357 = vmatprep.subr.bf16.mxu0 0
      %358 = vmatpush2.bf16.msra.mxu0 0
      %359 = vmatprep.subr.bf16.mxu0 0
      %360 = vmatpush2.bf16.msra.mxu0 0
      %361 = vmatprep.mubr.bf16.mxu0 0
      %362 = vmatmul.mubr.bf16.gmra.mxu0 %v318
      %v363 = vpop.f32.mrf.mxu0
      %v364 = vadd.f32 0.0, %v363
      %v365 = vpop.f32.mrf.mxu0
      %v366 = vpop.f32.mrf.mxu0
      %v367 = vadd.f32 0.0, %v366
      %v368 = vpop.f32.mrf.mxu0
      %369 = vmatprep.mubr.bf16.mxu0 0
      %370 = vmatmul.mubr.bf16.gmra.mxu0 %v321
      %v371 = vpop.f32.mrf.mxu0
      %v372 = vadd.f32 0.0, %v371
      %v373 = vpop.f32.mrf.mxu0
      %v374 = vpop.f32.mrf.mxu0
      %v375 = vadd.f32 0.0, %v374
      %v376 = vpop.f32.mrf.mxu0
      %377 = vmatprep.mubr.bf16.mxu0 0
      %378 = vmatmul.mubr.bf16.gmra.mxu0 %v324
      %v379 = vpop.f32.mrf.mxu0
      %v380 = vadd.f32 0.0, %v379
      %v381 = vpop.f32.mrf.mxu0
      %v382 = vpop.f32.mrf.mxu0
      %v383 = vadd.f32 0.0, %v382
      %v384 = vpop.f32.mrf.mxu0
      %385 = vmatprep.mubr.bf16.mxu0 0
      %386 = vmatmul.mubr.bf16.gmra.mxu0 %v327
      %v387 = vpop.f32.mrf.mxu0
      %v388 = vadd.f32 0.0, %v387
      %v389 = vpop.f32.mrf.mxu0
      %v390 = vpop.f32.mrf.mxu0
      %v391 = vadd.f32 0.0, %v390
      %v392 = vpop.f32.mrf.mxu0
      %393 = vdwg.mxu0
      %v394 = vadd.f32 %v272, %v364
      %v395 = vadd.f32 %v273, %v367
      %v396 = vadd.f32 %v274, %v372
      %v397 = vadd.f32 %v275, %v375
      %v398 = vadd.f32 %v276, %v380
      %v399 = vadd.f32 %v277, %v383
      %v400 = vadd.f32 %v278, %v388
      %v401 = vadd.f32 %v279, %v391
      %402 = vst [vmem:[#allocation2] sm:$0xff] %v394
      %403 = vst [vmem:[#allocation2 + $0x8] sm:$0xff] %v395
      %404 = vst [vmem:[#allocation2 + $0x10] sm:$0xff] %v396
      %405 = vst [vmem:[#allocation2 + $0x18] sm:$0xff] %v397
      %406 = vst [vmem:[#allocation2 + $0x20] sm:$0xff] %v398
      %407 = vst [vmem:[#allocation2 + $0x28] sm:$0xff] %v399
      %408 = vst [vmem:[#allocation2 + $0x30] sm:$0xff] %v400
      %409 = vst [vmem:[#allocation2 + $0x38] sm:$0xff] %v401
      // Predicated region
      $region37: #{deeplab_forward.10} parent=31 // pred_check
        %p410 = pneg %p260
      $region38: #{deeplab_forward.10} parent=31 // pred_check_branch
        %412 = sbr.rel (%p410) target = $region40
      $region39: #{deeplab_forward.10} parent=31 // pred_region
        %v413 = vld [vmem:[#allocation2] sm:$0xff]
        %v414 = vld [vmem:[#allocation2 + $0x8] sm:$0xff]
        %v415 = vld [vmem:[#allocation2 + $0x10] sm:$0xff]
        %v416 = vld [vmem:[#allocation2 + $0x18] sm:$0xff]
        %v417 = vld [vmem:[#allocation2 + $0x20] sm:$0xff]
        %v418 = vld [vmem:[#allocation2 + $0x28] sm:$0xff]
        %v419 = vld [vmem:[#allocation2 + $0x30] sm:$0xff]
        %v420 = vld [vmem:[#allocation2 + $0x38] sm:$0xff]
        %v421 = vld [vmem:[%s249] sm:$0x1]
        %v423 = vlaneseq
        %v424 = vshrl.u32 %v423, 7
        %v425 = vsub.s32 0, %v424
        %v426 = vrot.slane %v421, %v425
        %v428 = vadd.f32 %v413, %v426
        %v429 = vadd.f32 %v414, %v426
        %v430 = vadd.f32 %v415, %v426
        %v431 = vadd.f32 %v416, %v426
        %v432 = vadd.f32 %v417, %v426
        %v433 = vadd.f32 %v418, %v426
        %v434 = vadd.f32 %v419, %v426
        %v435 = vadd.f32 %v420, %v426
        %v436 = vmax.f32 %v428, 0.0
        %v437 = vmax.f32 %v429, 0.0
        %v438 = vmax.f32 %v430, 0.0
        %v439 = vmax.f32 %v431, 0.0
        %v440 = vmax.f32 %v432, 0.0
        %v441 = vmax.f32 %v433, 0.0
        %v442 = vmax.f32 %v434, 0.0
        %v443 = vmax.f32 %v435, 0.0
        %v444 = vpack.c.bf16 %v437, %v436
        %v445 = vpack.c.bf16 %v439, %v438
        %v446 = vpack.c.bf16 %v441, %v440
        %v447 = vpack.c.bf16 %v443, %v442
        %v452 = vunpack.c.l.b16 %v444
        %v453 = vunpack.c.h.b16 %v444
        %v454 = vunpack.c.l.b16 %v445
        %v455 = vunpack.c.h.b16 %v445
        %v456 = vunpack.c.l.b16 %v446
        %v457 = vunpack.c.h.b16 %v446
        %v458 = vunpack.c.l.b16 %v447
        %v459 = vunpack.c.h.b16 %v447
        %v460 = vpack.c.b16 %v452, %v452
        %v461 = vpack.c.b16 %v453, %v453
        %v462 = vpack.c.b16 %v454, %v454
        %v463 = vpack.c.b16 %v455, %v455
        %v464 = vpack.c.b16 %v456, %v456
        %v465 = vpack.c.b16 %v457, %v457
        %v466 = vpack.c.b16 %v458, %v458
        %v467 = vpack.c.b16 %v459, %v459
        %476 = vst [vmem:[%s257] sm:$0xf] %v460
        %477 = vst [vmem:[%s257 + $0x4] sm:$0xf] %v461
        %478 = vst [vmem:[%s257 + $0x8] sm:$0xf] %v462
        %479 = vst [vmem:[%s257 + $0xc] sm:$0xf] %v463
        %480 = vst [vmem:[%s257 + $0x10] sm:$0xf] %v464
        %481 = vst [vmem:[%s257 + $0x14] sm:$0xf] %v465
        %482 = vst [vmem:[%s257 + $0x18] sm:$0xf] %v466
        %483 = vst [vmem:[%s257 + $0x1c] sm:$0xf] %v467
      $region40: #{deeplab_forward.10} parent=31 // pred_fallthru
        _
      %s484 = smul.u32 8, %s19
      %p485 = scmp.lt.s32.totalorder %s484, 15
      %s486 = scalar_select %p485, %s484, 15
      %p487 = scmp.lt.s32.totalorder %s20, 0
      %s488 = scalar_select %p487, %s20, 0
      %s489 = sadd.s32 %s488, %s486
      %s490 = smul.addr %s489, 4
      %s491 = scalar_lea.vmem %s3, %s490
      // Predicated region
      $region41: #{deeplab_forward.10} parent=31 // pred_check
        %p492 = pneg %p135
      $region42: #{deeplab_forward.10} parent=31 // pred_check_branch
        %494 = sbr.rel (%p492) target = $region44
      $region43: #{deeplab_forward.10} parent=31 // pred_region
        %s495 = smul.u32 8, %s19
      $region44: #{deeplab_forward.10} parent=31 // pred_fallthru
        _
    $region32: #{deeplab_forward.10} parent=5 // pred_fallthru
      _
    %p496 = scmp.le.s32.totalorder 2, %s9
    // Predicated region
    $region45: #{deeplab_forward.10} parent=5 // pred_check
      %p497 = pneg %p496
    $region46: #{deeplab_forward.10} parent=5 // pred_check_branch
      %499 = sbr.rel (%p497) target = $region48
    $region47: #{deeplab_forward.10} parent=5 // pred_region
      %s500 = ssub.s32 %s9, 2
      // Predicated region
      $region49: #{deeplab_forward.10} parent=47 // pred_check
        %p501 = pneg %p141
      $region50: #{deeplab_forward.10} parent=47 // pred_check_branch
        %503 = sbr.rel (%p501) target = $region52
      $region51: #{deeplab_forward.10} parent=47 // pred_region
        %s504 = smul.u32 8, %s22
        %p505 = scmp.lt.s32.totalorder %s504, 15
        %s506 = scalar_select %p505, %s504, 15
        %p507 = scmp.lt.s32.totalorder %s23, 0
        %s508 = scalar_select %p507, %s23, 0
        %s509 = sadd.s32 %s508, %s506
        %s510 = smul.addr %s509, 4
        %s511 = scalar_lea.vmem %s3, %s510
      $region52: #{deeplab_forward.10} parent=47 // pred_fallthru
        _
    $region48: #{deeplab_forward.10} parent=5 // pred_fallthru
      _
  $region6: #{deeplab_forward.10} parent=0 // loop_footer
    %s13 = sadd.s32 1, %s9
  $region7: #{deeplab_forward.10} parent=0 // loop_footer_branch
    %8 = sbr.rel target = $region3
  $region8: #{deeplab_forward.10} parent=0 // loop_exit
    _

// kernel: deeplab_forward.14
$region0: #{deeplab_forward.14}
  #allocation0 [shape = 'u32[]', space=smem, size = 0x4, offset = 0x4, fixed_abs, tag = 'smem constant byte address 0x4 - core index']
  #allocation1 [shape = 'u32[144,128]{1,0:T(1,128)}', space=vmem, size = 0x12000, scoped, tag = 'internal scratch']
  #allocation2 [shape = 'f32[8,128]{1,0:T(8,128)}', space=vmem, size = 0x1000, scoped, tag = 'scratch operand']
  %s0 = inlined_call_operand.vmem [shape: bf16[8,16], index: 0, kind: input, shape index: {}]
  %s1 = inlined_call_operand.vmem [shape: bf16[16,128], index: 1, kind: input, shape index: {}]
  %s2 = inlined_call_operand.vmem [shape: f32[1,128], index: 2, kind: input, shape index: {}]
  %s3 = inlined_call_operand.vmem [shape: bf16[8,128], index: 3, kind: output, shape index: {}]
  %s4 = sld [smem:[#allocation0]]
  $region30: #{deeplab_forward.14} parent=0
    _
  %s6 = ssub.s32 1, %s4
  %s7 = scalar_select 0, %s6, %s4
  // Predicated region
  $region2: #{deeplab_forward.14} parent=0 // pred_check
    _
  $region3: #{deeplab_forward.14} parent=0 // pred_check_branch
    %9 = sbr.rel (0) target = $region5
  $region4: #{deeplab_forward.14} parent=0 // pred_region
    _
  $region5: #{deeplab_forward.14} parent=0 // pred_fallthru
    _
  // Predicated region
  $region6: #{deeplab_forward.14} parent=0 // pred_check
    _
  $region7: #{deeplab_forward.14} parent=0 // pred_check_branch
    %11 = sbr.rel (0) target = $region9
  $region8: #{deeplab_forward.14} parent=0 // pred_region
    _
  $region9: #{deeplab_forward.14} parent=0 // pred_fallthru
    _
  // Predicated region
  $region10: #{deeplab_forward.14} parent=0 // pred_check
    _
  $region11: #{deeplab_forward.14} parent=0 // pred_check_branch
    %13 = sbr.rel (0) target = $region13
  $region12: #{deeplab_forward.14} parent=0 // pred_region
    _
  $region13: #{deeplab_forward.14} parent=0 // pred_fallthru
    _
  %p15 = scmp.eq.s32.totalorder 0, 0
  // Predicated region
  $region14: #{deeplab_forward.14} parent=0 // pred_check
    %p16 = pneg %p15
  $region15: #{deeplab_forward.14} parent=0 // pred_check_branch
    %18 = sbr.rel (%p16) target = $region17
  $region16: #{deeplab_forward.14} parent=0 // pred_region
    %19 = vst [vmem:[#allocation2] sm:$0xff] 0.0
  $region17: #{deeplab_forward.14} parent=0 // pred_fallthru
    _
  %v20 = vld [vmem:[#allocation2] sm:$0xff]
  %v21 = vld [vmem:[%s0] sm:$0xf]
  %v22 = vld [vmem:[%s1] sm:$0xf]
  %v23 = vld [vmem:[%s1 + $0x4] sm:$0xf]
  %v26 = vunpack.c.l.b16 %v22
  %v27 = vunpack.c.l.b16 %v23
  %v28 = vpack.c.b16 %v27, %v26
  %vm30 = vcmask 130048
  %v32 = vsel %vm30, %v21, 0
  %34 = vmatprep.subr.bf16.mxu0 0
  %35 = vmatpush1.bf16.msra.mxu0 0
  %36 = vmatprep.subr.bf16.mxu0 0
  %37 = vmatpush1.bf16.msra.mxu0 0
  %38 = vmatprep.subr.bf16.mxu0 0
  %39 = vmatpush1.bf16.msra.mxu0 0
  %40 = vmatprep.subr.bf16.mxu0 0
  %41 = vmatpush1.bf16.msra.mxu0 0
  %42 = vmatprep.subr.bf16.mxu0 0
  %43 = vmatpush1.bf16.msra.mxu0 0
  %44 = vmatprep.subr.bf16.mxu0 0
  %45 = vmatpush1.bf16.msra.mxu0 0
  %46 = vmatprep.subr.bf16.mxu0 0
  %47 = vmatpush1.bf16.msra.mxu0 0
  %48 = vmatprep.subr.bf16.mxu0 0
  %49 = vmatpush1.bf16.msra.mxu0 %v28
  %50 = vmatprep.subr.bf16.mxu0 0
  %51 = vmatpush2.bf16.msra.mxu0 0
  %52 = vmatprep.subr.bf16.mxu0 0
  %53 = vmatpush2.bf16.msra.mxu0 0
  %54 = vmatprep.subr.bf16.mxu0 0
  %55 = vmatpush2.bf16.msra.mxu0 0
  %56 = vmatprep.subr.bf16.mxu0 0
  %57 = vmatpush2.bf16.msra.mxu0 0
  %58 = vmatprep.subr.bf16.mxu0 0
  %59 = vmatpush2.bf16.msra.mxu0 0
  %60 = vmatprep.subr.bf16.mxu0 0
  %61 = vmatpush2.bf16.msra.mxu0 0
  %62 = vmatprep.subr.bf16.mxu0 0
  %63 = vmatpush2.bf16.msra.mxu0 0
  %64 = vmatprep.subr.bf16.mxu0 0
  %65 = vmatpush2.bf16.msra.mxu0 0
  %66 = vmatprep.mubr.bf16.mxu0 0
  %67 = vmatmul.mubr.bf16.gmra.mxu0 %v32
  %v68 = vpop.f32.mrf.mxu0
  %v69 = vadd.f32 0.0, %v68
  %v70 = vpop.f32.mrf.mxu0
  %v71 = vpop.f32.mrf.mxu0
  %v72 = vpop.f32.mrf.mxu0
  %73 = vdwg.mxu0
  %v74 = vadd.f32 %v20, %v69
  %75 = vst [vmem:[#allocation2] sm:$0xff] %v74
  // Predicated region
  $region18: #{deeplab_forward.14} parent=0 // pred_check
    %p76 = pneg %p15
  $region19: #{deeplab_forward.14} parent=0 // pred_check_branch
    %78 = sbr.rel (%p76) target = $region21
  $region20: #{deeplab_forward.14} parent=0 // pred_region
    %v79 = vld [vmem:[#allocation2] sm:$0xff]
    %v80 = vld [vmem:[%s2] sm:$0x1]
    %v82 = vlaneseq
    %v83 = vshrl.u32 %v82, 7
    %v84 = vsub.s32 0, %v83
    %v85 = vrot.slane %v80, %v84
    %v87 = vadd.f32 %v79, %v85
    %v88 = vmax.f32 %v87, 0.0
    %v89 = vpack.c.bf16 %v88, %v88
    %90 = vst [vmem:[%s3] sm:$0xf] %v89
  $region21: #{deeplab_forward.14} parent=0 // pred_fallthru
    _
  // Predicated region
  $region22: #{deeplab_forward.14} parent=0 // pred_check
    _
  $region23: #{deeplab_forward.14} parent=0 // pred_check_branch
    %92 = sbr.rel (0) target = $region25
  $region24: #{deeplab_forward.14} parent=0 // pred_region
    _
  $region25: #{deeplab_forward.14} parent=0 // pred_fallthru
    _
  // Predicated region
  $region26: #{deeplab_forward.14} parent=0 // pred_check
    _
  $region27: #{deeplab_forward.14} parent=0 // pred_check_branch
    %94 = sbr.rel (0) target = $region29
  $region28: #{deeplab_forward.14} parent=0 // pred_region
    _
  $region29: #{deeplab_forward.14} parent=0 // pred_fallthru
    _

// kernel: deeplab_forward.15
$region0: #{deeplab_forward.15}
  #allocation0 [shape = 'u32[]', space=smem, size = 0x4, offset = 0x4, fixed_abs, tag = 'smem constant byte address 0x4 - core index']
  #allocation1 [shape = 'u32[144,128]{1,0:T(1,128)}', space=vmem, size = 0x12000, scoped, tag = 'internal scratch']
  #allocation2 [shape = 'f32[8,32]{1,0:T(8,128)}', space=vmem, size = 0x1000, scoped, tag = 'scratch operand']
  %s0 = inlined_call_operand.vmem [shape: bf16[2,8,8,32], index: 0, kind: input, shape index: {}]
  %s1 = inlined_call_operand.vmem [shape: bf16[2,8,8,32], index: 1, kind: input, shape index: {}]
  %s2 = inlined_call_operand.vmem [shape: bf16[2,8,8,32], index: 2, kind: input, shape index: {}]
  %s3 = inlined_call_operand.vmem [shape: bf16[2,8,8,32], index: 3, kind: input, shape index: {}]
  %s4 = inlined_call_operand.vmem [shape: bf16[2,8,8,32], index: 4, kind: input, shape index: {}]
  %s5 = inlined_call_operand.vmem [shape: bf16[1,1,32,32], index: 5, kind: input, shape index: {}]
  %s6 = inlined_call_operand.vmem [shape: bf16[1,1,32,32], index: 6, kind: input, shape index: {}]
  %s7 = inlined_call_operand.vmem [shape: bf16[1,1,32,32], index: 7, kind: input, shape index: {}]
  %s8 = inlined_call_operand.vmem [shape: bf16[1,1,32,32], index: 8, kind: input, shape index: {}]
  %s9 = inlined_call_operand.vmem [shape: bf16[1,1,32,32], index: 9, kind: input, shape index: {}]
  %s10 = inlined_call_operand.vmem [shape: f32[1,32], index: 10, kind: input, shape index: {}]
  %s11 = inlined_call_operand.vmem [shape: bf16[2,8,8,32], index: 11, kind: output, shape index: {}]
  %s12 = sld [smem:[#allocation0]]
  $region85: #{deeplab_forward.15} parent=0
    _
  %s14 = ssub.s32 1, %s12
  %s15 = scalar_select 0, %s14, %s12
  loop: start=0, step=1, limit=18
  $region2: #{deeplab_forward.15} parent=0 // loop_pre_header
    _
  $region3: #{deeplab_forward.15} parent=0 // loop_header
    %s17 = sphi 0, %s21
    %p18 = scmp.ge.s32.totalorder %s17, 18
    %s24 = sphi 0, %s43
    %s25 = sphi 0, %s39
    %s26 = sphi 0, %s35
    %s27 = sphi 0, %s24
    %s28 = sphi 0, %s25
    %s29 = sphi 0, %s26
    %s30 = sphi 0, %s27
    %s31 = sphi 0, %s28
    %s32 = sphi 0, %s29
    %s50 = sphi 0, %s52
    %s53 = sphi 0, %s50
    %s54 = sphi 0, %s53
    %s70 = sphi 0, %s54
    %s80 = sphi 0, %s82
    %s83 = sphi 0, %s80
    %s84 = sphi 0, %s83
    %s100 = sphi 0, %s84
    %s110 = sphi 0, %s112
    %s113 = sphi 0, %s110
    %s114 = sphi 0, %s113
    %s130 = sphi 0, %s114
    %s140 = sphi 0, %s142
    %s143 = sphi 0, %s140
    %s144 = sphi 0, %s143
    %s160 = sphi 0, %s144
    %s170 = sphi 0, %s172
    %s173 = sphi 0, %s170
    %s174 = sphi 0, %s173
    %s190 = sphi 0, %s174
    %s196 = sphi 0, %s198
    %s199 = sphi 0, %s196
    %s200 = sphi 0, %s199
    %s216 = sphi 0, %s200
    %s222 = sphi 0, %s224
    %s225 = sphi 0, %s222
    %s226 = sphi 0, %s225
    %s242 = sphi 0, %s226
    %s248 = sphi 0, %s250
    %s251 = sphi 0, %s248
    %s252 = sphi 0, %s251
    %s268 = sphi 0, %s252
    %s274 = sphi 0, %s276
    %s277 = sphi 0, %s274
    %s278 = sphi 0, %s277
    %s294 = sphi 0, %s278
    %s300 = sphi 0, %s302
    %s303 = sphi 0, %s300
    %s304 = sphi 0, %s303
    %s320 = sphi 0, %s304
    %s324 = sphi 0, %s324
    %s326 = sphi 0, %s324
    %s327 = sphi 0, %s326
    %s341 = sphi 0, %s327
    %s349 = sphi 0, %s351
    %s352 = sphi 0, %s349
    %s353 = sphi 0, %s352
    %s369 = sphi 0, %s353
  $region4: #{deeplab_forward.15} parent=0 // loop_header_branch
    %20 = sbr.rel (%p18) target = $region8
  $region5: #{deeplab_forward.15} parent=0 // loop_body
    %s22 = ssub.s32 %s17, 1
    %s23 = ssub.s32 %s17, 2
    %s33 = sadd.s32 1, %s26
    %p34 = scmp.ge.s32.totalorder %s33, 1
    %s35 = scalar_select %p34, 0, %s33
    %s36 = sadd.s32 1, %s25
    %s37 = scalar_select %p34, %s36, %s25
    %p38 = scmp.ge.s32.totalorder %s37, 8
    %s39 = scalar_select %p38, 0, %s37
    %s40 = sadd.s32 1, %s24
    %s41 = scalar_select %p38, %s40, %s24
    %p42 = scmp.ge.s32.totalorder %s41, 2
    %s43 = scalar_select %p42, 0, %s41
    %s44 = sadd.s32 %s25, %s26
    %s45 = sadd.s32 %s39, %s35
    %s46 = ssub.s32 %s24, %s43
    %s47 = ssub.s32 %s44, %s45
    %s48 = sor.u32 %s46, %s47
    %p49 = scmp.eq.s32.totalorder %s48, 0
    %s51 = sadd.s32 %s50, 1
    %s52 = scalar_select %p49, %s50, %s51
    %p55 = pneg %p49
    %p56 = scmp.eq.s32.totalorder %s17, 15
    %p57 = por %p55, %p56
    %p58 = scmp.ne.s32.totalorder %s50, %s53
    %p59 = scmp.eq.s32.totalorder %s17, 0
    %p60 = por %p58, %p59
    %p61 = scmp.ne.s32.totalorder %s50, %s53
    %p62 = scmp.eq.s32.totalorder %s22, 15
    %p63 = por %p61, %p62
    %p64 = scmp.ne.s32.totalorder %s53, %s54
    %p65 = scmp.eq.s32.totalorder %s22, 0
    %p66 = por %p64, %p65
    %p67 = scmp.ne.s32.totalorder %s53, %s54
    %p68 = scmp.eq.s32.totalorder %s23, 15
    %p69 = por %p67, %p68
    %p71 = scmp.ne.s32.totalorder %s54, %s70
    %p72 = scmp.eq.s32.totalorder %s23, 0
    %p73 = por %p71, %p72
    %s74 = sadd.s32 %s25, %s26
    %s75 = sadd.s32 %s39, %s35
    %s76 = ssub.s32 %s24, %s43
    %s77 = ssub.s32 %s74, %s75
    %s78 = sor.u32 %s76, %s77
    %p79 = scmp.eq.s32.totalorder %s78, 0
    %s81 = sadd.s32 %s80, 1
    %s82 = scalar_select %p79, %s80, %s81
    %p85 = pneg %p79
    %p86 = scmp.eq.s32.totalorder %s17, 15
    %p87 = por %p85, %p86
    %p88 = scmp.ne.s32.totalorder %s80, %s83
    %p89 = scmp.eq.s32.totalorder %s17, 0
    %p90 = por %p88, %p89
    %p91 = scmp.ne.s32.totalorder %s80, %s83
    %p92 = scmp.eq.s32.totalorder %s22, 15
    %p93 = por %p91, %p92
    %p94 = scmp.ne.s32.totalorder %s83, %s84
    %p95 = scmp.eq.s32.totalorder %s22, 0
    %p96 = por %p94, %p95
    %p97 = scmp.ne.s32.totalorder %s83, %s84
    %p98 = scmp.eq.s32.totalorder %s23, 15
    %p99 = por %p97, %p98
    %p101 = scmp.ne.s32.totalorder %s84, %s100
    %p102 = scmp.eq.s32.totalorder %s23, 0
    %p103 = por %p101, %p102
    %s104 = sadd.s32 %s25, %s26
    %s105 = sadd.s32 %s39, %s35
    %s106 = ssub.s32 %s24, %s43
    %s107 = ssub.s32 %s104, %s105
    %s108 = sor.u32 %s106, %s107
    %p109 = scmp.eq.s32.totalorder %s108, 0
    %s111 = sadd.s32 %s110, 1
    %s112 = scalar_select %p109, %s110, %s111
    %p115 = pneg %p109
    %p116 = scmp.eq.s32.totalorder %s17, 15
    %p117 = por %p115, %p116
    %p118 = scmp.ne.s32.totalorder %s110, %s113
    %p119 = scmp.eq.s32.totalorder %s17, 0
    %p120 = por %p118, %p119
    %p121 = scmp.ne.s32.totalorder %s110, %s113
    %p122 = scmp.eq.s32.totalorder %s22, 15
    %p123 = por %p121, %p122
    %p124 = scmp.ne.s32.totalorder %s113, %s114
    %p125 = scmp.eq.s32.totalorder %s22, 0
    %p126 = por %p124, %p125
    %p127 = scmp.ne.s32.totalorder %s113, %s114
    %p128 = scmp.eq.s32.totalorder %s23, 15
    %p129 = por %p127, %p128
    %p131 = scmp.ne.s32.totalorder %s114, %s130
    %p132 = scmp.eq.s32.totalorder %s23, 0
    %p133 = por %p131, %p132
    %s134 = sadd.s32 %s25, %s26
    %s135 = sadd.s32 %s39, %s35
    %s136 = ssub.s32 %s24, %s43
    %s137 = ssub.s32 %s134, %s135
    %s138 = sor.u32 %s136, %s137
    %p139 = scmp.eq.s32.totalorder %s138, 0
    %s141 = sadd.s32 %s140, 1
    %s142 = scalar_select %p139, %s140, %s141
    %p145 = pneg %p139
    %p146 = scmp.eq.s32.totalorder %s17, 15
    %p147 = por %p145, %p146
    %p148 = scmp.ne.s32.totalorder %s140, %s143
    %p149 = scmp.eq.s32.totalorder %s17, 0
    %p150 = por %p148, %p149
    %p151 = scmp.ne.s32.totalorder %s140, %s143
    %p152 = scmp.eq.s32.totalorder %s22, 15
    %p153 = por %p151, %p152
    %p154 = scmp.ne.s32.totalorder %s143, %s144
    %p155 = scmp.eq.s32.totalorder %s22, 0
    %p156 = por %p154, %p155
    %p157 = scmp.ne.s32.totalorder %s143, %s144
    %p158 = scmp.eq.s32.totalorder %s23, 15
    %p159 = por %p157, %p158
    %p161 = scmp.ne.s32.totalorder %s144, %s160
    %p162 = scmp.eq.s32.totalorder %s23, 0
    %p163 = por %p161, %p162
    %s164 = sadd.s32 %s25, %s26
    %s165 = sadd.s32 %s39, %s35
    %s166 = ssub.s32 %s24, %s43
    %s167 = ssub.s32 %s164, %s165
    %s168 = sor.u32 %s166, %s167
    %p169 = scmp.eq.s32.totalorder %s168, 0
    %s171 = sadd.s32 %s170, 1
    %s172 = scalar_select %p169, %s170, %s171
    %p175 = pneg %p169
    %p176 = scmp.eq.s32.totalorder %s17, 15
    %p177 = por %p175, %p176
    %p178 = scmp.ne.s32.totalorder %s170, %s173
    %p179 = scmp.eq.s32.totalorder %s17, 0
    %p180 = por %p178, %p179
    %p181 = scmp.ne.s32.totalorder %s170, %s173
    %p182 = scmp.eq.s32.totalorder %s22, 15
    %p183 = por %p181, %p182
    %p184 = scmp.ne.s32.totalorder %s173, %s174
    %p185 = scmp.eq.s32.totalorder %s22, 0
    %p186 = por %p184, %p185
    %p187 = scmp.ne.s32.totalorder %s173, %s174
    %p188 = scmp.eq.s32.totalorder %s23, 15
    %p189 = por %p187, %p188
    %p191 = scmp.ne.s32.totalorder %s174, %s190
    %p192 = scmp.eq.s32.totalorder %s23, 0
    %p193 = por %p191, %p192
    %s194 = ssub.s32 %s26, %s35
    %p195 = scmp.eq.s32.totalorder %s194, 0
    %s197 = sadd.s32 %s196, 1
    %s198 = scalar_select %p195, %s196, %s197
    %p201 = pneg %p195
    %p202 = scmp.eq.s32.totalorder %s17, 15
    %p203 = por %p201, %p202
    %p204 = scmp.ne.s32.totalorder %s196, %s199
    %p205 = scmp.eq.s32.totalorder %s17, 0
    %p206 = por %p204, %p205
    %p207 = scmp.ne.s32.totalorder %s196, %s199
    %p208 = scmp.eq.s32.totalorder %s22, 15
    %p209 = por %p207, %p208
    %p210 = scmp.ne.s32.totalorder %s199, %s200
    %p211 = scmp.eq.s32.totalorder %s22, 0
    %p212 = por %p210, %p211
    %p213 = scmp.ne.s32.totalorder %s199, %s200
    %p214 = scmp.eq.s32.totalorder %s23, 15
    %p215 = por %p213, %p214
    %p217 = scmp.ne.s32.totalorder %s200, %s216
    %p218 = scmp.eq.s32.totalorder %s23, 0
    %p219 = por %p217, %p218
    %s220 = ssub.s32 %s26, %s35
    %p221 = scmp.eq.s32.totalorder %s220, 0
    %s223 = sadd.s32 %s222, 1
    %s224 = scalar_select %p221, %s222, %s223
    %p227 = pneg %p221
    %p228 = scmp.eq.s32.totalorder %s17, 15
    %p229 = por %p227, %p228
    %p230 = scmp.ne.s32.totalorder %s222, %s225
    %p231 = scmp.eq.s32.totalorder %s17, 0
    %p232 = por %p230, %p231
    %p233 = scmp.ne.s32.totalorder %s222, %s225
    %p234 = scmp.eq.s32.totalorder %s22, 15
    %p235 = por %p233, %p234
    %p236 = scmp.ne.s32.totalorder %s225, %s226
    %p237 = scmp.eq.s32.totalorder %s22, 0
    %p238 = por %p236, %p237
    %p239 = scmp.ne.s32.totalorder %s225, %s226
    %p240 = scmp.eq.s32.totalorder %s23, 15
    %p241 = por %p239, %p240
    %p243 = scmp.ne.s32.totalorder %s226, %s242
    %p244 = scmp.eq.s32.totalorder %s23, 0
    %p245 = por %p243, %p244
    %s246 = ssub.s32 %s26, %s35
    %p247 = scmp.eq.s32.totalorder %s246, 0
    %s249 = sadd.s32 %s248, 1
    %s250 = scalar_select %p247, %s248, %s249
    %p253 = pneg %p247
    %p254 = scmp.eq.s32.totalorder %s17, 15
    %p255 = por %p253, %p254
    %p256 = scmp.ne.s32.totalorder %s248, %s251
    %p257 = scmp.eq.s32.totalorder %s17, 0
    %p258 = por %p256, %p257
    %p259 = scmp.ne.s32.totalorder %s248, %s251
    %p260 = scmp.eq.s32.totalorder %s22, 15
    %p261 = por %p259, %p260
    %p262 = scmp.ne.s32.totalorder %s251, %s252
    %p263 = scmp.eq.s32.totalorder %s22, 0
    %p264 = por %p262, %p263
    %p265 = scmp.ne.s32.totalorder %s251, %s252
    %p266 = scmp.eq.s32.totalorder %s23, 15
    %p267 = por %p265, %p266
    %p269 = scmp.ne.s32.totalorder %s252, %s268
    %p270 = scmp.eq.s32.totalorder %s23, 0
    %p271 = por %p269, %p270
    %s272 = ssub.s32 %s26, %s35
    %p273 = scmp.eq.s32.totalorder %s272, 0
    %s275 = sadd.s32 %s274, 1
    %s276 = scalar_select %p273, %s274, %s275
    %p279 = pneg %p273
    %p280 = scmp.eq.s32.totalorder %s17, 15
    %p281 = por %p279, %p280
    %p282 = scmp.ne.s32.totalorder %s274, %s277
    %p283 = scmp.eq.s32.totalorder %s17, 0
    %p284 = por %p282, %p283
    %p285 = scmp.ne.s32.totalorder %s274, %s277
    %p286 = scmp.eq.s32.totalorder %s22, 15
    %p287 = por %p285, %p286
    %p288 = scmp.ne.s32.totalorder %s277, %s278
    %p289 = scmp.eq.s32.totalorder %s22, 0
    %p290 = por %p288, %p289
    %p291 = scmp.ne.s32.totalorder %s277, %s278
    %p292 = scmp.eq.s32.totalorder %s23, 15
    %p293 = por %p291, %p292
    %p295 = scmp.ne.s32.totalorder %s278, %s294
    %p296 = scmp.eq.s32.totalorder %s23, 0
    %p297 = por %p295, %p296
    %s298 = ssub.s32 %s26, %s35
    %p299 = scmp.eq.s32.totalorder %s298, 0
    %s301 = sadd.s32 %s300, 1
    %s302 = scalar_select %p299, %s300, %s301
    %p305 = pneg %p299
    %p306 = scmp.eq.s32.totalorder %s17, 15
    %p307 = por %p305, %p306
    %p308 = scmp.ne.s32.totalorder %s300, %s303
    %p309 = scmp.eq.s32.totalorder %s17, 0
    %p310 = por %p308, %p309
    %p311 = scmp.ne.s32.totalorder %s300, %s303
    %p312 = scmp.eq.s32.totalorder %s22, 15
    %p313 = por %p311, %p312
    %p314 = scmp.ne.s32.totalorder %s303, %s304
    %p315 = scmp.eq.s32.totalorder %s22, 0
    %p316 = por %p314, %p315
    %p317 = scmp.ne.s32.totalorder %s303, %s304
    %p318 = scmp.eq.s32.totalorder %s23, 15
    %p319 = por %p317, %p318
    %p321 = scmp.ne.s32.totalorder %s304, %s320
    %p322 = scmp.eq.s32.totalorder %s23, 0
    %p323 = por %p321, %p322
    %s325 = sadd.s32 %s324, 1
    %p328 = scmp.eq.s32.totalorder %s17, 15
    %p329 = scmp.ne.s32.totalorder %s324, %s326
    %p330 = scmp.eq.s32.totalorder %s17, 0
    %p331 = por %p329, %p330
    %p332 = scmp.ne.s32.totalorder %s324, %s326
    %p333 = scmp.eq.s32.totalorder %s22, 15
    %p334 = por %p332, %p333
    %p335 = scmp.ne.s32.totalorder %s326, %s327
    %p336 = scmp.eq.s32.totalorder %s22, 0
    %p337 = por %p335, %p336
    %p338 = scmp.ne.s32.totalorder %s326, %s327
    %p339 = scmp.eq.s32.totalorder %s23, 15
    %p340 = por %p338, %p339
    %p342 = scmp.ne.s32.totalorder %s327, %s341
    %p343 = scmp.eq.s32.totalorder %s23, 0
    %p344 = por %p342, %p343
    %s345 = ssub.s32 %s24, %s43
    %s346 = ssub.s32 %s25, %s39
    %s347 = sor.u32 %s345, %s346
    %p348 = scmp.eq.s32.totalorder %s347, 0
    %s350 = sadd.s32 %s349, 1
    %s351 = scalar_select %p348, %s349, %s350
    %p354 = pneg %p348
    %p355 = scmp.eq.s32.totalorder %s17, 15
    %p356 = por %p354, %p355
    %p357 = scmp.ne.s32.totalorder %s349, %s352
    %p358 = scmp.eq.s32.totalorder %s17, 0
    %p359 = por %p357, %p358
    %p360 = scmp.ne.s32.totalorder %s349, %s352
    %p361 = scmp.eq.s32.totalorder %s22, 15
    %p362 = por %p360, %p361
    %p363 = scmp.ne.s32.totalorder %s352, %s353
    %p364 = scmp.eq.s32.totalorder %s22, 0
    %p365 = por %p363, %p364
    %p366 = scmp.ne.s32.totalorder %s352, %s353
    %p367 = scmp.eq.s32.totalorder %s23, 15
    %p368 = por %p366, %p367
    %p370 = scmp.ne.s32.totalorder %s353, %s369
    %p371 = scmp.eq.s32.totalorder %s23, 0
    %p372 = por %p370, %p371
    %p373 = scmp.le.s32.totalorder 1, %s17
    %p374 = scmp.lt.s32.totalorder %s17, 17
    %p375 = pnand %p373, %p374
    %p376 = pneg %p375
    // Predicated region
    $region9: #{deeplab_forward.15} parent=5 // pred_check
      _
    $region10: #{deeplab_forward.15} parent=5 // pred_check_branch
      %378 = sbr.rel (%p375) target = $region12
    $region11: #{deeplab_forward.15} parent=5 // pred_region
      %s379 = ssub.s32 %s17, 1
      // Predicated region
      $region13: #{deeplab_forward.15} parent=11 // pred_check
        %p380 = pneg %p212
      $region14: #{deeplab_forward.15} parent=11 // pred_check_branch
        %382 = sbr.rel (%p380) target = $region16
      $region15: #{deeplab_forward.15} parent=11 // pred_region
        %p383 = scmp.lt.s32.totalorder %s29, 0
        %s384 = scalar_select %p383, %s29, 0
        %s385 = smul.addr %s384, 4
        %s386 = smul.addr %s385, 4
        %s387 = scalar_lea.vmem %s5, %s386
      $region16: #{deeplab_forward.15} parent=11 // pred_fallthru
        _
      // Predicated region
      $region17: #{deeplab_forward.15} parent=11 // pred_check
        %p388 = pneg %p238
      $region18: #{deeplab_forward.15} parent=11 // pred_check_branch
        %390 = sbr.rel (%p388) target = $region20
      $region19: #{deeplab_forward.15} parent=11 // pred_region
        %p391 = scmp.lt.s32.totalorder %s29, 0
        %s392 = scalar_select %p391, %s29, 0
        %s393 = smul.addr %s392, 4
        %s394 = smul.addr %s393, 4
        %s395 = scalar_lea.vmem %s6, %s394
      $region20: #{deeplab_forward.15} parent=11 // pred_fallthru
        _
      // Predicated region
      $region21: #{deeplab_forward.15} parent=11 // pred_check
        %p396 = pneg %p264
      $region22: #{deeplab_forward.15} parent=11 // pred_check_branch
        %398 = sbr.rel (%p396) target = $region24
      $region23: #{deeplab_forward.15} parent=11 // pred_region
        %p399 = scmp.lt.s32.totalorder %s29, 0
        %s400 = scalar_select %p399, %s29, 0
        %s401 = smul.addr %s400, 4
        %s402 = smul.addr %s401, 4
        %s403 = scalar_lea.vmem %s7, %s402
      $region24: #{deeplab_forward.15} parent=11 // pred_fallthru
        _
      // Predicated region
      $region25: #{deeplab_forward.15} parent=11 // pred_check
        %p404 = pneg %p290
      $region26: #{deeplab_forward.15} parent=11 // pred_check_branch
        %406 = sbr.rel (%p404) target = $region28
      $region27: #{deeplab_forward.15} parent=11 // pred_region
        %p407 = scmp.lt.s32.totalorder %s29, 0
        %s408 = scalar_select %p407, %s29, 0
        %s409 = smul.addr %s408, 4
        %s410 = smul.addr %s409, 4
        %s411 = scalar_lea.vmem %s8, %s410
      $region28: #{deeplab_forward.15} parent=11 // pred_fallthru
        _
      // Predicated region
      $region29: #{deeplab_forward.15} parent=11 // pred_check
        %p412 = pneg %p316
      $region30: #{deeplab_forward.15} parent=11 // pred_check_branch
        %414 = sbr.rel (%p412) target = $region32
      $region31: #{deeplab_forward.15} parent=11 // pred_region
        %p415 = scmp.lt.s32.totalorder %s29, 0
        %s416 = scalar_select %p415, %s29, 0
        %s417 = smul.addr %s416, 4
        %s418 = smul.addr %s417, 4
        %s419 = scalar_lea.vmem %s9, %s418
      $region32: #{deeplab_forward.15} parent=11 // pred_fallthru
        _
      // Predicated region
      $region33: #{deeplab_forward.15} parent=11 // pred_check
        %p420 = pneg %p337
      $region34: #{deeplab_forward.15} parent=11 // pred_check_branch
        %422 = sbr.rel (%p420) target = $region36
      $region35: #{deeplab_forward.15} parent=11 // pred_region
        _
      $region36: #{deeplab_forward.15} parent=11 // pred_fallthru
        _
    $region12: #{deeplab_forward.15} parent=5 // pred_fallthru
      _
    %p423 = scmp.lt.s32.totalorder %s17, 16
    // Predicated region
    $region37: #{deeplab_forward.15} parent=5 // pred_check
      %p424 = pneg %p423
    $region38: #{deeplab_forward.15} parent=5 // pred_check_branch
      %426 = sbr.rel (%p424) target = $region40
    $region39: #{deeplab_forward.15} parent=5 // pred_region
      // Predicated region
      $region41: #{deeplab_forward.15} parent=39 // pred_check
        %p427 = pneg %p60
      $region42: #{deeplab_forward.15} parent=39 // pred_check_branch
        %429 = sbr.rel (%p427) target = $region44
      $region43: #{deeplab_forward.15} parent=39 // pred_region
        %s430 = sadd.s32 %s25, %s26
        %p431 = scmp.lt.s32.totalorder %s24, 1
        %s432 = scalar_select %p431, %s24, 1
        %p433 = scmp.lt.s32.totalorder %s430, 7
        %s434 = scalar_select %p433, %s430, 7
        %s435 = smul.addr %s432, 8
        %s436 = sadd.s32 %s434, %s435
        %s437 = smul.addr %s436, 4
        %s438 = scalar_lea.vmem %s0, %s437
        %s439 = sadd.s32 %s25, %s26
      $region44: #{deeplab_forward.15} parent=39 // pred_fallthru
        _
      // Predicated region
      $region45: #{deeplab_forward.15} parent=39 // pred_check
        %p440 = pneg %p90
      $region46: #{deeplab_forward.15} parent=39 // pred_check_branch
        %442 = sbr.rel (%p440) target = $region48
      $region47: #{deeplab_forward.15} parent=39 // pred_region
        %s443 = sadd.s32 %s25, %s26
        %p444 = scmp.lt.s32.totalorder %s24, 1
        %s445 = scalar_select %p444, %s24, 1
        %p446 = scmp.lt.s32.totalorder %s443, 7
        %s447 = scalar_select %p446, %s443, 7
        %s448 = smul.addr %s445, 8
        %s449 = sadd.s32 %s447, %s448
        %s450 = smul.addr %s449, 4
        %s451 = scalar_lea.vmem %s1, %s450
        %s452 = sadd.s32 %s25, %s26
      $region48: #{deeplab_forward.15} parent=39 // pred_fallthru
        _
      // Predicated region
      $region49: #{deeplab_forward.15} parent=39 // pred_check
        %p453 = pneg %p120
      $region50: #{deeplab_forward.15} parent=39 // pred_check_branch
        %455 = sbr.rel (%p453) target = $region52
      $region51: #{deeplab_forward.15} parent=39 // pred_region
        %s456 = sadd.s32 %s25, %s26
        %p457 = scmp.lt.s32.totalorder %s24, 1
        %s458 = scalar_select %p457, %s24, 1
        %p459 = scmp.lt.s32.totalorder %s456, 7
        %s460 = scalar_select %p459, %s456, 7
        %s461 = smul.addr %s458, 8
        %s462 = sadd.s32 %s460, %s461
        %s463 = smul.addr %s462, 4
        %s464 = scalar_lea.vmem %s2, %s463
        %s465 = sadd.s32 %s25, %s26
      $region52: #{deeplab_forward.15} parent=39 // pred_fallthru
        _
      // Predicated region
      $region53: #{deeplab_forward.15} parent=39 // pred_check
        %p466 = pneg %p150
      $region54: #{deeplab_forward.15} parent=39 // pred_check_branch
        %468 = sbr.rel (%p466) target = $region56
      $region55: #{deeplab_forward.15} parent=39 // pred_region
        %s469 = sadd.s32 %s25, %s26
        %p470 = scmp.lt.s32.totalorder %s24, 1
        %s471 = scalar_select %p470, %s24, 1
        %p472 = scmp.lt.s32.totalorder %s469, 7
        %s473 = scalar_select %p472, %s469, 7
        %s474 = smul.addr %s471, 8
        %s475 = sadd.s32 %s473, %s474
        %s476 = smul.addr %s475, 4
        %s477 = scalar_lea.vmem %s3, %s476
        %s478 = sadd.s32 %s25, %s26
      $region56: #{deeplab_forward.15} parent=39 // pred_fallthru
        _
      // Predicated region
      $region57: #{deeplab_forward.15} parent=39 // pred_check
        %p479 = pneg %p180
      $region58: #{deeplab_forward.15} parent=39 // pred_check_branch
        %481 = sbr.rel (%p479) target = $region60
      $region59: #{deeplab_forward.15} parent=39 // pred_region
        %s482 = sadd.s32 %s25, %s26
        %p483 = scmp.lt.s32.totalorder %s24, 1
        %s484 = scalar_select %p483, %s24, 1
        %p485 = scmp.lt.s32.totalorder %s482, 7
        %s486 = scalar_select %p485, %s482, 7
        %s487 = smul.addr %s484, 8
        %s488 = sadd.s32 %s486, %s487
        %s489 = smul.addr %s488, 4
        %s490 = scalar_lea.vmem %s4, %s489
        %s491 = sadd.s32 %s25, %s26
      $region60: #{deeplab_forward.15} parent=39 // pred_fallthru
        _
    $region40: #{deeplab_forward.15} parent=5 // pred_fallthru
      _
    %p492 = scmp.le.s32.totalorder 1, %s17
    %p493 = scmp.lt.s32.totalorder %s17, 17
    %p494 = pnand %p492, %p493
    %p495 = pneg %p494
    // Predicated region
    $region61: #{deeplab_forward.15} parent=5 // pred_check
      _
    $region62: #{deeplab_forward.15} parent=5 // pred_check_branch
      %497 = sbr.rel (%p494) target = $region64
    $region63: #{deeplab_forward.15} parent=5 // pred_region
      %s498 = ssub.s32 %s17, 1
      %s499 = sadd.s32 %s28, %s29
      %p500 = scmp.lt.s32.totalorder %s27, 1
      %s501 = scalar_select %p500, %s27, 1
      %p502 = scmp.lt.s32.totalorder %s499, 7
      %s503 = scalar_select %p502, %s499, 7
      %s504 = smul.addr %s501, 8
      %s505 = sadd.s32 %s503, %s504
      %s506 = smul.addr %s505, 4
      %s507 = scalar_lea.vmem %s0, %s506
      %p508 = pneg %p66
      %p509 = pneg %p63
      %s510 = sadd.s32 %s28, %s29
      %p511 = scmp.lt.s32.totalorder %s27, 1
      %s512 = scalar_select %p511, %s27, 1
      %p513 = scmp.lt.s32.totalorder %s510, 7
      %s514 = scalar_select %p513, %s510, 7
      %s515 = smul.addr %s512, 8
      %s516 = sadd.s32 %s514, %s515
      %s517 = smul.addr %s516, 4
      %s518 = scalar_lea.vmem %s1, %s517
      %p519 = pneg %p96
      %p520 = pneg %p93
      %s521 = sadd.s32 %s28, %s29
      %p522 = scmp.lt.s32.totalorder %s27, 1
      %s523 = scalar_select %p522, %s27, 1
      %p524 = scmp.lt.s32.totalorder %s521, 7
      %s525 = scalar_select %p524, %s521, 7
      %s526 = smul.addr %s523, 8
      %s527 = sadd.s32 %s525, %s526
      %s528 = smul.addr %s527, 4
      %s529 = scalar_lea.vmem %s2, %s528
      %p530 = pneg %p126
      %p531 = pneg %p123
      %s532 = sadd.s32 %s28, %s29
      %p533 = scmp.lt.s32.totalorder %s27, 1
      %s534 = scalar_select %p533, %s27, 1
      %p535 = scmp.lt.s32.totalorder %s532, 7
      %s536 = scalar_select %p535, %s532, 7
      %s537 = smul.addr %s534, 8
      %s538 = sadd.s32 %s536, %s537
      %s539 = smul.addr %s538, 4
      %s540 = scalar_lea.vmem %s3, %s539
      %p541 = pneg %p156
      %p542 = pneg %p153
      %s543 = sadd.s32 %s28, %s29
      %p544 = scmp.lt.s32.totalorder %s27, 1
      %s545 = scalar_select %p544, %s27, 1
      %p546 = scmp.lt.s32.totalorder %s543, 7
      %s547 = scalar_select %p546, %s543, 7
      %s548 = smul.addr %s545, 8
      %s549 = sadd.s32 %s547, %s548
      %s550 = smul.addr %s549, 4
      %s551 = scalar_lea.vmem %s4, %s550
      %p552 = pneg %p186
      %p553 = pneg %p183
      %p554 = scmp.lt.s32.totalorder %s29, 0
      %s555 = scalar_select %p554, %s29, 0
      %s556 = smul.addr %s555, 4
      %s557 = smul.addr %s556, 4
      %s558 = scalar_lea.vmem %s5, %s557
      %p559 = pneg %p212
      %p560 = pneg %p209
      %p561 = scmp.lt.s32.totalorder %s29, 0
      %s562 = scalar_select %p561, %s29, 0
      %s563 = smul.addr %s562, 4
      %s564 = smul.addr %s563, 4
      %s565 = scalar_lea.vmem %s6, %s564
      %p566 = pneg %p238
      %p567 = pneg %p235
      %p568 = scmp.lt.s32.totalorder %s29, 0
      %s569 = scalar_select %p568, %s29, 0
      %s570 = smul.addr %s569, 4
      %s571 = smul.addr %s570, 4
      %s572 = scalar_lea.vmem %s7, %s571
      %p573 = pneg %p264
      %p574 = pneg %p261
      %p575 = scmp.lt.s32.totalorder %s29, 0
      %s576 = scalar_select %p575, %s29, 0
      %s577 = smul.addr %s576, 4
      %s578 = smul.addr %s577, 4
      %s579 = scalar_lea.vmem %s8, %s578
      %p580 = pneg %p290
      %p581 = pneg %p287
      %p582 = scmp.lt.s32.totalorder %s29, 0
      %s583 = scalar_select %p582, %s29, 0
      %s584 = smul.addr %s583, 4
      %s585 = smul.addr %s584, 4
      %s586 = scalar_lea.vmem %s9, %s585
      %p587 = pneg %p316
      %p588 = pneg %p313
      %p589 = pneg %p337
      %p590 = pneg %p334
      %p591 = pneg %p365
      %p592 = pneg %p362
      %p593 = scmp.lt.s32.totalorder %s27, 1
      %s594 = scalar_select %p593, %s27, 1
      %p595 = scmp.lt.s32.totalorder %s28, 7
      %s596 = scalar_select %p595, %s28, 7
      %s597 = smul.addr %s594, 8
      %s598 = sadd.s32 %s596, %s597
      %s599 = smul.addr %s598, 4
      %s600 = scalar_lea.vmem %s11, %s599
      %s601 = sadd.s32 %s28, %s29
      %p602 = scmp.lt.s32.totalorder %s27, 1
      %s603 = scalar_select %p602, %s27, 1
      %p604 = scmp.lt.s32.totalorder %s601, 7
      %s605 = scalar_select %p604, %s601, 7
      %s606 = smul.addr %s603, 8
      %s607 = sadd.s32 %s605, %s606
      %s608 = smul.addr %s607, 4
      %s609 = scalar_lea.vmem %s0, %s608
      %s610 = sadd.s32 %s28, %s29
      %s611 = sadd.s32 %s28, %s29
      %p612 = scmp.lt.s32.totalorder %s27, 1
      %s613 = scalar_select %p612, %s27, 1
      %p614 = scmp.lt.s32.totalorder %s611, 7
      %s615 = scalar_select %p614, %s611, 7
      %s616 = smul.addr %s613, 8
      %s617 = sadd.s32 %s615, %s616
      %s618 = smul.addr %s617, 4
      %s619 = scalar_lea.vmem %s1, %s618
      %s620 = sadd.s32 %s28, %s29
      %s621 = sadd.s32 %s28, %s29
      %p622 = scmp.lt.s32.totalorder %s27, 1
      %s623 = scalar_select %p622, %s27, 1
      %p624 = scmp.lt.s32.totalorder %s621, 7
      %s625 = scalar_select %p624, %s621, 7
      %s626 = smul.addr %s623, 8
      %s627 = sadd.s32 %s625, %s626
      %s628 = smul.addr %s627, 4
      %s629 = scalar_lea.vmem %s2, %s628
      %s630 = sadd.s32 %s28, %s29
      %s631 = sadd.s32 %s28, %s29
      %p632 = scmp.lt.s32.totalorder %s27, 1
      %s633 = scalar_select %p632, %s27, 1
      %p634 = scmp.lt.s32.totalorder %s631, 7
      %s635 = scalar_select %p634, %s631, 7
      %s636 = smul.addr %s633, 8
      %s637 = sadd.s32 %s635, %s636
      %s638 = smul.addr %s637, 4
      %s639 = scalar_lea.vmem %s3, %s638
      %s640 = sadd.s32 %s28, %s29
      %s641 = sadd.s32 %s28, %s29
      %p642 = scmp.lt.s32.totalorder %s27, 1
      %s643 = scalar_select %p642, %s27, 1
      %p644 = scmp.lt.s32.totalorder %s641, 7
      %s645 = scalar_select %p644, %s641, 7
      %s646 = smul.addr %s643, 8
      %s647 = sadd.s32 %s645, %s646
      %s648 = smul.addr %s647, 4
      %s649 = scalar_lea.vmem %s4, %s648
      %s650 = sadd.s32 %s28, %s29
      %p651 = scmp.lt.s32.totalorder %s29, 0
      %s652 = scalar_select %p651, %s29, 0
      %s653 = smul.addr %s652, 4
      %s654 = smul.addr %s653, 4
      %s655 = scalar_lea.vmem %s5, %s654
      %p656 = scmp.lt.s32.totalorder %s29, 0
      %s657 = scalar_select %p656, %s29, 0
      %s658 = smul.addr %s657, 4
      %s659 = smul.addr %s658, 4
      %s660 = scalar_lea.vmem %s6, %s659
      %p661 = scmp.lt.s32.totalorder %s29, 0
      %s662 = scalar_select %p661, %s29, 0
      %s663 = smul.addr %s662, 4
      %s664 = smul.addr %s663, 4
      %s665 = scalar_lea.vmem %s7, %s664
      %p666 = scmp.lt.s32.totalorder %s29, 0
      %s667 = scalar_select %p666, %s29, 0
      %s668 = smul.addr %s667, 4
      %s669 = smul.addr %s668, 4
      %s670 = scalar_lea.vmem %s8, %s669
      %p671 = scmp.lt.s32.totalorder %s29, 0
      %s672 = scalar_select %p671, %s29, 0
      %s673 = smul.addr %s672, 4
      %s674 = smul.addr %s673, 4
      %s675 = scalar_lea.vmem %s9, %s674
      %p676 = scmp.lt.s32.totalorder %s27, 1
      %s677 = scalar_select %p676, %s27, 1
      %p678 = scmp.lt.s32.totalorder %s28, 7
      %s679 = scalar_select %p678, %s28, 7
      %s680 = smul.addr %s677, 8
      %s681 = sadd.s32 %s679, %s680
      %s682 = smul.addr %s681, 4
      %s683 = scalar_lea.vmem %s11, %s682
      %p685 = scmp.eq.s32.totalorder %s29, 0
      // Predicated region
      $region65: #{deeplab_forward.15} parent=63 // pred_check
        %p686 = pneg %p685
      $region66: #{deeplab_forward.15} parent=63 // pred_check_branch
        %688 = sbr.rel (%p686) target = $region68
      $region67: #{deeplab_forward.15} parent=63 // pred_region
        %vm689 = vcmask 261120
        %690 = vst.msk [vmem:[#allocation2] sm:$0xff] %vm689, 0.0
      $region68: #{deeplab_forward.15} parent=63 // pred_fallthru
        _
      %v691 = vld [vmem:[#allocation2] sm:$0xff]
      %v692 = vld [vmem:[%s609] sm:$0xf]
      %v693 = vld [vmem:[%s655] sm:$0xf]
      %v694 = vld [vmem:[%s655 + $0x4] sm:$0xf]
      %v695 = vld [vmem:[%s655 + $0x8] sm:$0xf]
      %v696 = vld [vmem:[%s655 + $0xc] sm:$0xf]
      %v701 = vunpack.c.l.b16 %v693
      %v702 = vunpack.c.l.b16 %v694
      %v703 = vunpack.c.l.b16 %v695
      %v704 = vunpack.c.l.b16 %v696
      %v705 = vpack.c.b16 %v702, %v701
      %v706 = vpack.c.b16 %v704, %v703
      %vm709 = vcmask 261120
      %v711 = vsel %vm709, %v692, 0
      %713 = vmatprep.subr.bf16.mxu0 0
      %714 = vmatpush1.bf16.msra.mxu0 0
      %715 = vmatprep.subr.bf16.mxu0 0
      %716 = vmatpush1.bf16.msra.mxu0 0
      %717 = vmatprep.subr.bf16.mxu0 0
      %718 = vmatpush1.bf16.msra.mxu0 0
      %719 = vmatprep.subr.bf16.mxu0 0
      %720 = vmatpush1.bf16.msra.mxu0 0
      %721 = vmatprep.subr.bf16.mxu0 0
      %722 = vmatpush1.bf16.msra.mxu0 0
      %723 = vmatprep.subr.bf16.mxu0 0
      %724 = vmatpush1.bf16.msra.mxu0 0
      %725 = vmatprep.subr.bf16.mxu0 0
      %726 = vmatpush1.bf16.msra.mxu0 %v706
      %727 = vmatprep.subr.bf16.mxu0 0
      %728 = vmatpush1.bf16.msra.mxu0 %v705
      %729 = vmatprep.subr.bf16.mxu0 0
      %730 = vmatpush2.bf16.msra.mxu0 0
      %731 = vmatprep.subr.bf16.mxu0 0
      %732 = vmatpush2.bf16.msra.mxu0 0
      %733 = vmatprep.subr.bf16.mxu0 0
      %734 = vmatpush2.bf16.msra.mxu0 0
      %735 = vmatprep.subr.bf16.mxu0 0
      %736 = vmatpush2.bf16.msra.mxu0 0
      %737 = vmatprep.subr.bf16.mxu0 0
      %738 = vmatpush2.bf16.msra.mxu0 0
      %739 = vmatprep.subr.bf16.mxu0 0
      %740 = vmatpush2.bf16.msra.mxu0 0
      %741 = vmatprep.subr.bf16.mxu0 0
      %742 = vmatpush2.bf16.msra.mxu0 0
      %743 = vmatprep.subr.bf16.mxu0 0
      %744 = vmatpush2.bf16.msra.mxu0 0
      %745 = vmatprep.mubr.bf16.mxu0 0
      %746 = vmatmul.mubr.bf16.gmra.mxu0 %v711
      %v747 = vpop.f32.mrf.mxu0
      %v748 = vadd.f32 0.0, %v747
      %v749 = vpop.f32.mrf.mxu0
      %v750 = vpop.f32.mrf.mxu0
      %v751 = vpop.f32.mrf.mxu0
      %752 = vdwg.mxu0
      %v753 = vadd.f32 %v691, %v748
      %v754 = vld [vmem:[%s619] sm:$0xf]
      %v755 = vld [vmem:[%s660] sm:$0xf]
      %v756 = vld [vmem:[%s660 + $0x4] sm:$0xf]
      %v757 = vld [vmem:[%s660 + $0x8] sm:$0xf]
      %v758 = vld [vmem:[%s660 + $0xc] sm:$0xf]
      %v763 = vunpack.c.l.b16 %v755
      %v764 = vunpack.c.l.b16 %v756
      %v765 = vunpack.c.l.b16 %v757
      %v766 = vunpack.c.l.b16 %v758
      %v767 = vpack.c.b16 %v764, %v763
      %v768 = vpack.c.b16 %v766, %v765
      %v772 = vsel %vm709, %v754, 0
      %774 = vmatprep.subr.bf16.mxu0 0
      %775 = vmatpush1.bf16.msra.mxu0 0
      %776 = vmatprep.subr.bf16.mxu0 0
      %777 = vmatpush1.bf16.msra.mxu0 0
      %778 = vmatprep.subr.bf16.mxu0 0
      %779 = vmatpush1.bf16.msra.mxu0 0
      %780 = vmatprep.subr.bf16.mxu0 0
      %781 = vmatpush1.bf16.msra.mxu0 0
      %782 = vmatprep.subr.bf16.mxu0 0
      %783 = vmatpush1.bf16.msra.mxu0 0
      %784 = vmatprep.subr.bf16.mxu0 0
      %785 = vmatpush1.bf16.msra.mxu0 0
      %786 = vmatprep.subr.bf16.mxu0 0
      %787 = vmatpush1.bf16.msra.mxu0 %v768
      %788 = vmatprep.subr.bf16.mxu0 0
      %789 = vmatpush1.bf16.msra.mxu0 %v767
      %790 = vmatprep.subr.bf16.mxu0 0
      %791 = vmatpush2.bf16.msra.mxu0 0
      %792 = vmatprep.subr.bf16.mxu0 0
      %793 = vmatpush2.bf16.msra.mxu0 0
      %794 = vmatprep.subr.bf16.mxu0 0
      %795 = vmatpush2.bf16.msra.mxu0 0
      %796 = vmatprep.subr.bf16.mxu0 0
      %797 = vmatpush2.bf16.msra.mxu0 0
      %798 = vmatprep.subr.bf16.mxu0 0
      %799 = vmatpush2.bf16.msra.mxu0 0
      %800 = vmatprep.subr.bf16.mxu0 0
      %801 = vmatpush2.bf16.msra.mxu0 0
      %802 = vmatprep.subr.bf16.mxu0 0
      %803 = vmatpush2.bf16.msra.mxu0 0
      %804 = vmatprep.subr.bf16.mxu0 0
      %805 = vmatpush2.bf16.msra.mxu0 0
      %806 = vmatprep.mubr.bf16.mxu0 0
      %807 = vmatmul.mubr.bf16.gmra.mxu0 %v772
      %v808 = vpop.f32.mrf.mxu0
      %v809 = vadd.f32 0.0, %v808
      %v810 = vpop.f32.mrf.mxu0
      %v811 = vpop.f32.mrf.mxu0
      %v812 = vpop.f32.mrf.mxu0
      %813 = vdwg.mxu0
      %v814 = vadd.f32 %v753, %v809
      %v815 = vld [vmem:[%s629] sm:$0xf]
      %v816 = vld [vmem:[%s665] sm:$0xf]
      %v817 = vld [vmem:[%s665 + $0x4] sm:$0xf]
      %v818 = vld [vmem:[%s665 + $0x8] sm:$0xf]
      %v819 = vld [vmem:[%s665 + $0xc] sm:$0xf]
      %v824 = vunpack.c.l.b16 %v816
      %v825 = vunpack.c.l.b16 %v817
      %v826 = vunpack.c.l.b16 %v818
      %v827 = vunpack.c.l.b16 %v819
      %v828 = vpack.c.b16 %v825, %v824
      %v829 = vpack.c.b16 %v827, %v826
      %v833 = vsel %vm709, %v815, 0
      %835 = vmatprep.subr.bf16.mxu0 0
      %836 = vmatpush1.bf16.msra.mxu0 0
      %837 = vmatprep.subr.bf16.mxu0 0
      %838 = vmatpush1.bf16.msra.mxu0 0
      %839 = vmatprep.subr.bf16.mxu0 0
      %840 = vmatpush1.bf16.msra.mxu0 0
      %841 = vmatprep.subr.bf16.mxu0 0
      %842 = vmatpush1.bf16.msra.mxu0 0
      %843 = vmatprep.subr.bf16.mxu0 0
      %844 = vmatpush1.bf16.msra.mxu0 0
      %845 = vmatprep.subr.bf16.mxu0 0
      %846 = vmatpush1.bf16.msra.mxu0 0
      %847 = vmatprep.subr.bf16.mxu0 0
      %848 = vmatpush1.bf16.msra.mxu0 %v829
      %849 = vmatprep.subr.bf16.mxu0 0
      %850 = vmatpush1.bf16.msra.mxu0 %v828
      %851 = vmatprep.subr.bf16.mxu0 0
      %852 = vmatpush2.bf16.msra.mxu0 0
      %853 = vmatprep.subr.bf16.mxu0 0
      %854 = vmatpush2.bf16.msra.mxu0 0
      %855 = vmatprep.subr.bf16.mxu0 0
      %856 = vmatpush2.bf16.msra.mxu0 0
      %857 = vmatprep.subr.bf16.mxu0 0
      %858 = vmatpush2.bf16.msra.mxu0 0
      %859 = vmatprep.subr.bf16.mxu0 0
      %860 = vmatpush2.bf16.msra.mxu0 0
      %861 = vmatprep.subr.bf16.mxu0 0
      %862 = vmatpush2.bf16.msra.mxu0 0
      %863 = vmatprep.subr.bf16.mxu0 0
      %864 = vmatpush2.bf16.msra.mxu0 0
      %865 = vmatprep.subr.bf16.mxu0 0
      %866 = vmatpush2.bf16.msra.mxu0 0
      %867 = vmatprep.mubr.bf16.mxu0 0
      %868 = vmatmul.mubr.bf16.gmra.mxu0 %v833
      %v869 = vpop.f32.mrf.mxu0
      %v870 = vadd.f32 0.0, %v869
      %v871 = vpop.f32.mrf.mxu0
      %v872 = vpop.f32.mrf.mxu0
      %v873 = vpop.f32.mrf.mxu0
      %874 = vdwg.mxu0
      %v875 = vadd.f32 %v814, %v870
      %v876 = vld [vmem:[%s639] sm:$0xf]
      %v877 = vld [vmem:[%s670] sm:$0xf]
      %v878 = vld [vmem:[%s670 + $0x4] sm:$0xf]
      %v879 = vld [vmem:[%s670 + $0x8] sm:$0xf]
      %v880 = vld [vmem:[%s670 + $0xc] sm:$0xf]
      %v885 = vunpack.c.l.b16 %v877
      %v886 = vunpack.c.l.b16 %v878
      %v887 = vunpack.c.l.b16 %v879
      %v888 = vunpack.c.l.b16 %v880
      %v889 = vpack.c.b16 %v886, %v885
      %v890 = vpack.c.b16 %v888, %v887
      %v894 = vsel %vm709, %v876, 0
      %896 = vmatprep.subr.bf16.mxu0 0
      %897 = vmatpush1.bf16.msra.mxu0 0
      %898 = vmatprep.subr.bf16.mxu0 0
      %899 = vmatpush1.bf16.msra.mxu0 0
      %900 = vmatprep.subr.bf16.mxu0 0
      %901 = vmatpush1.bf16.msra.mxu0 0
      %902 = vmatprep.subr.bf16.mxu0 0
      %903 = vmatpush1.bf16.msra.mxu0 0
      %904 = vmatprep.subr.bf16.mxu0 0
      %905 = vmatpush1.bf16.msra.mxu0 0
      %906 = vmatprep.subr.bf16.mxu0 0
      %907 = vmatpush1.bf16.msra.mxu0 0
      %908 = vmatprep.subr.bf16.mxu0 0
      %909 = vmatpush1.bf16.msra.mxu0 %v890
      %910 = vmatprep.subr.bf16.mxu0 0
      %911 = vmatpush1.bf16.msra.mxu0 %v889
      %912 = vmatprep.subr.bf16.mxu0 0
      %913 = vmatpush2.bf16.msra.mxu0 0
      %914 = vmatprep.subr.bf16.mxu0 0
      %915 = vmatpush2.bf16.msra.mxu0 0
      %916 = vmatprep.subr.bf16.mxu0 0
      %917 = vmatpush2.bf16.msra.mxu0 0
      %918 = vmatprep.subr.bf16.mxu0 0
      %919 = vmatpush2.bf16.msra.mxu0 0
      %920 = vmatprep.subr.bf16.mxu0 0
      %921 = vmatpush2.bf16.msra.mxu0 0
      %922 = vmatprep.subr.bf16.mxu0 0
      %923 = vmatpush2.bf16.msra.mxu0 0
      %924 = vmatprep.subr.bf16.mxu0 0
      %925 = vmatpush2.bf16.msra.mxu0 0
      %926 = vmatprep.subr.bf16.mxu0 0
      %927 = vmatpush2.bf16.msra.mxu0 0
      %928 = vmatprep.mubr.bf16.mxu0 0
      %929 = vmatmul.mubr.bf16.gmra.mxu0 %v894
      %v930 = vpop.f32.mrf.mxu0
      %v931 = vadd.f32 0.0, %v930
      %v932 = vpop.f32.mrf.mxu0
      %v933 = vpop.f32.mrf.mxu0
      %v934 = vpop.f32.mrf.mxu0
      %935 = vdwg.mxu0
      %v936 = vadd.f32 %v875, %v931
      %v937 = vld [vmem:[%s649] sm:$0xf]
      %v938 = vld [vmem:[%s675] sm:$0xf]
      %v939 = vld [vmem:[%s675 + $0x4] sm:$0xf]
      %v940 = vld [vmem:[%s675 + $0x8] sm:$0xf]
      %v941 = vld [vmem:[%s675 + $0xc] sm:$0xf]
      %v946 = vunpack.c.l.b16 %v938
      %v947 = vunpack.c.l.b16 %v939
      %v948 = vunpack.c.l.b16 %v940
      %v949 = vunpack.c.l.b16 %v941
      %v950 = vpack.c.b16 %v947, %v946
      %v951 = vpack.c.b16 %v949, %v948
      %v955 = vsel %vm709, %v937, 0
      %957 = vmatprep.subr.bf16.mxu0 0
      %958 = vmatpush1.bf16.msra.mxu0 0
      %959 = vmatprep.subr.bf16.mxu0 0
      %960 = vmatpush1.bf16.msra.mxu0 0
      %961 = vmatprep.subr.bf16.mxu0 0
      %962 = vmatpush1.bf16.msra.mxu0 0
      %963 = vmatprep.subr.bf16.mxu0 0
      %964 = vmatpush1.bf16.msra.mxu0 0
      %965 = vmatprep.subr.bf16.mxu0 0
      %966 = vmatpush1.bf16.msra.mxu0 0
      %967 = vmatprep.subr.bf16.mxu0 0
      %968 = vmatpush1.bf16.msra.mxu0 0
      %969 = vmatprep.subr.bf16.mxu0 0
      %970 = vmatpush1.bf16.msra.mxu0 %v951
      %971 = vmatprep.subr.bf16.mxu0 0
      %972 = vmatpush1.bf16.msra.mxu0 %v950
      %973 = vmatprep.subr.bf16.mxu0 0
      %974 = vmatpush2.bf16.msra.mxu0 0
      %975 = vmatprep.subr.bf16.mxu0 0
      %976 = vmatpush2.bf16.msra.mxu0 0
      %977 = vmatprep.subr.bf16.mxu0 0
      %978 = vmatpush2.bf16.msra.mxu0 0
      %979 = vmatprep.subr.bf16.mxu0 0
      %980 = vmatpush2.bf16.msra.mxu0 0
      %981 = vmatprep.subr.bf16.mxu0 0
      %982 = vmatpush2.bf16.msra.mxu0 0
      %983 = vmatprep.subr.bf16.mxu0 0
      %984 = vmatpush2.bf16.msra.mxu0 0
      %985 = vmatprep.subr.bf16.mxu0 0
      %986 = vmatpush2.bf16.msra.mxu0 0
      %987 = vmatprep.subr.bf16.mxu0 0
      %988 = vmatpush2.bf16.msra.mxu0 0
      %989 = vmatprep.mubr.bf16.mxu0 0
      %990 = vmatmul.mubr.bf16.gmra.mxu0 %v955
      %v991 = vpop.f32.mrf.mxu0
      %v992 = vadd.f32 0.0, %v991
      %v993 = vpop.f32.mrf.mxu0
      %v994 = vpop.f32.mrf.mxu0
      %v995 = vpop.f32.mrf.mxu0
      %996 = vdwg.mxu0
      %v997 = vadd.f32 %v936, %v992
      %998 = vst.msk [vmem:[#allocation2] sm:$0xff] %vm709, %v997
      // Predicated region
      $region69: #{deeplab_forward.15} parent=63 // pred_check
        %p999 = pneg %p685
      $region70: #{deeplab_forward.15} parent=63 // pred_check_branch
        %1001 = sbr.rel (%p999) target = $region72
      $region71: #{deeplab_forward.15} parent=63 // pred_region
        %v1002 = vld [vmem:[#allocation2] sm:$0xff]
        %v1003 = vld [vmem:[%s10] sm:$0x1]
        %v1005 = vlaneseq
        %v1006 = vshrl.u32 %v1005, 7
        %v1007 = vsub.s32 0, %v1006
        %v1008 = vrot.slane %v1003, %v1007
        %v1010 = vadd.f32 %v1002, %v1008
        %v1011 = vmax.f32 %v1010, 0.0
        %v1012 = vpack.c.bf16 %v1011, %v1011
        %vm1013 = vcmask 257024
        %1014 = vst.msk [vmem:[%s683] sm:$0xf] %vm1013, %v1012
      $region72: #{deeplab_forward.15} parent=63 // pred_fallthru
        _
      %p1015 = scmp.lt.s32.totalorder %s27, 1
      %s1016 = scalar_select %p1015, %s27, 1
      %p1017 = scmp.lt.s32.totalorder %s28, 7
      %s1018 = scalar_select %p1017, %s28, 7
      %s1019 = smul.addr %s1016, 8
      %s1020 = sadd.s32 %s1018, %s1019
      %s1021 = smul.addr %s1020, 4
      %s1022 = scalar_lea.vmem %s11, %s1021
      // Predicated region
      $region73: #{deeplab_forward.15} parent=63 // pred_check
        %p1023 = pneg %p362
      $region74: #{deeplab_forward.15} parent=63 // pred_check_branch
        %1025 = sbr.rel (%p1023) target = $region76
      $region75: #{deeplab_forward.15} parent=63 // pred_region
        _
      $region76: #{deeplab_forward.15} parent=63 // pred_fallthru
        _
    $region64: #{deeplab_forward.15} parent=5 // pred_fallthru
      _
    %p1026 = scmp.le.s32.totalorder 2, %s17
    // Predicated region
    $region77: #{deeplab_forward.15} parent=5 // pred_check
      %p1027 = pneg %p1026
    $region78: #{deeplab_forward.15} parent=5 // pred_check_branch
      %1029 = sbr.rel (%p1027) target = $region80
    $region79: #{deeplab_forward.15} parent=5 // pred_region
      %s1030 = ssub.s32 %s17, 2
      // Predicated region
      $region81: #{deeplab_forward.15} parent=79 // pred_check
        %p1031 = pneg %p368
      $region82: #{deeplab_forward.15} parent=79 // pred_check_branch
        %1033 = sbr.rel (%p1031) target = $region84
      $region83: #{deeplab_forward.15} parent=79 // pred_region
        %p1034 = scmp.lt.s32.totalorder %s30, 1
        %s1035 = scalar_select %p1034, %s30, 1
        %p1036 = scmp.lt.s32.totalorder %s31, 7
        %s1037 = scalar_select %p1036, %s31, 7
        %s1038 = smul.addr %s1035, 8
        %s1039 = sadd.s32 %s1037, %s1038
        %s1040 = smul.addr %s1039, 4
        %s1041 = scalar_lea.vmem %s11, %s1040
      $region84: #{deeplab_forward.15} parent=79 // pred_fallthru
        _
    $region80: #{deeplab_forward.15} parent=5 // pred_fallthru
      _
  $region6: #{deeplab_forward.15} parent=0 // loop_footer
    %s21 = sadd.s32 1, %s17
  $region7: #{deeplab_forward.15} parent=0 // loop_footer_branch
    %16 = sbr.rel target = $region3
  $region8: #{deeplab_forward.15} parent=0 // loop_exit
    _

// kernel: deeplab_forward.16
$region0: #{deeplab_forward.16}
  #allocation0 [shape = 'u32[]', space=smem, size = 0x4, offset = 0x4, fixed_abs, tag = 'smem constant byte address 0x4 - core index']
  #allocation1 [shape = 'u32[144,128]{1,0:T(1,128)}', space=vmem, size = 0x12000, scoped, tag = 'internal scratch']
  #allocation2 [shape = 'f32[256,128]{1,0:T(8,128)}', space=vmem, size = 0x20000, scoped, tag = 'scratch operand']
  %s0 = inlined_call_operand.vmem [shape: bf16[512,8], index: 0, kind: input, shape index: {}]
  %s1 = inlined_call_operand.vmem [shape: bf16[8,128], index: 1, kind: input, shape index: {}]
  %s2 = inlined_call_operand.vmem [shape: f32[1,128], index: 2, kind: input, shape index: {}]
  %s3 = inlined_call_operand.vmem [shape: bf16[512,128], index: 3, kind: output, shape index: {}]
  %s4 = sld [smem:[#allocation0]]
  $region53: #{deeplab_forward.16} parent=0
    _
  %s6 = ssub.s32 1, %s4
  %s7 = scalar_select 0, %s6, %s4
  loop: start=0, step=1, limit=4
  $region2: #{deeplab_forward.16} parent=0 // loop_pre_header
    _
  $region3: #{deeplab_forward.16} parent=0 // loop_header
    %s9 = sphi 0, %s13
    %p10 = scmp.ge.s32.totalorder %s9, 4
    %s16 = sphi 0, %s35
    %s17 = sphi 0, %s31
    %s18 = sphi 0, %s27
    %s19 = sphi 0, %s16
    %s20 = sphi 0, %s17
    %s21 = sphi 0, %s18
    %s22 = sphi 0, %s19
    %s23 = sphi 0, %s20
    %s24 = sphi 0, %s21
    %s40 = sphi 0, %s42
    %s43 = sphi 0, %s40
    %s44 = sphi 0, %s43
    %s60 = sphi 0, %s44
    %s68 = sphi 0, %s70
    %s71 = sphi 0, %s68
    %s72 = sphi 0, %s71
    %s88 = sphi 0, %s72
    %s94 = sphi 0, %s96
    %s97 = sphi 0, %s94
    %s98 = sphi 0, %s97
    %s114 = sphi 0, %s98
    %s122 = sphi 0, %s124
    %s125 = sphi 0, %s122
    %s126 = sphi 0, %s125
    %s142 = sphi 0, %s126
  $region4: #{deeplab_forward.16} parent=0 // loop_header_branch
    %12 = sbr.rel (%p10) target = $region8
  $region5: #{deeplab_forward.16} parent=0 // loop_body
    %s14 = ssub.s32 %s9, 1
    %s15 = ssub.s32 %s9, 2
    %s25 = sadd.s32 1, %s18
    %p26 = scmp.ge.s32.totalorder %s25, 1
    %s27 = scalar_select %p26, 0, %s25
    %s28 = sadd.s32 1, %s17
    %s29 = scalar_select %p26, %s28, %s17
    %p30 = scmp.ge.s32.totalorder %s29, 1
    %s31 = scalar_select %p30, 0, %s29
    %s32 = sadd.s32 1, %s16
    %s33 = scalar_select %p30, %s32, %s16
    %p34 = scmp.ge.s32.totalorder %s33, 2
    %s35 = scalar_select %p34, 0, %s33
    %s36 = ssub.s32 %s16, %s35
    %s37 = ssub.s32 %s18, %s27
    %s38 = sor.u32 %s36, %s37
    %p39 = scmp.eq.s32.totalorder %s38, 0
    %s41 = sadd.s32 %s40, 1
    %s42 = scalar_select %p39, %s40, %s41
    %p45 = pneg %p39
    %p46 = scmp.eq.s32.totalorder %s9, 1
    %p47 = por %p45, %p46
    %p48 = scmp.ne.s32.totalorder %s40, %s43
    %p49 = scmp.eq.s32.totalorder %s9, 0
    %p50 = por %p48, %p49
    %p51 = scmp.ne.s32.totalorder %s40, %s43
    %p52 = scmp.eq.s32.totalorder %s14, 1
    %p53 = por %p51, %p52
    %p54 = scmp.ne.s32.totalorder %s43, %s44
    %p55 = scmp.eq.s32.totalorder %s14, 0
    %p56 = por %p54, %p55
    %p57 = scmp.ne.s32.totalorder %s43, %s44
    %p58 = scmp.eq.s32.totalorder %s15, 1
    %p59 = por %p57, %p58
    %p61 = scmp.ne.s32.totalorder %s44, %s60
    %p62 = scmp.eq.s32.totalorder %s15, 0
    %p63 = por %p61, %p62
    %s64 = ssub.s32 %s18, %s27
    %s65 = ssub.s32 %s17, %s31
    %s66 = sor.u32 %s64, %s65
    %p67 = scmp.eq.s32.totalorder %s66, 0
    %s69 = sadd.s32 %s68, 1
    %s70 = scalar_select %p67, %s68, %s69
    %p73 = pneg %p67
    %p74 = scmp.eq.s32.totalorder %s9, 1
    %p75 = por %p73, %p74
    %p76 = scmp.ne.s32.totalorder %s68, %s71
    %p77 = scmp.eq.s32.totalorder %s9, 0
    %p78 = por %p76, %p77
    %p79 = scmp.ne.s32.totalorder %s68, %s71
    %p80 = scmp.eq.s32.totalorder %s14, 1
    %p81 = por %p79, %p80
    %p82 = scmp.ne.s32.totalorder %s71, %s72
    %p83 = scmp.eq.s32.totalorder %s14, 0
    %p84 = por %p82, %p83
    %p85 = scmp.ne.s32.totalorder %s71, %s72
    %p86 = scmp.eq.s32.totalorder %s15, 1
    %p87 = por %p85, %p86
    %p89 = scmp.ne.s32.totalorder %s72, %s88
    %p90 = scmp.eq.s32.totalorder %s15, 0
    %p91 = por %p89, %p90
    %s92 = ssub.s32 %s17, %s31
    %p93 = scmp.eq.s32.totalorder %s92, 0
    %s95 = sadd.s32 %s94, 1
    %s96 = scalar_select %p93, %s94, %s95
    %p99 = pneg %p93
    %p100 = scmp.eq.s32.totalorder %s9, 1
    %p101 = por %p99, %p100
    %p102 = scmp.ne.s32.totalorder %s94, %s97
    %p103 = scmp.eq.s32.totalorder %s9, 0
    %p104 = por %p102, %p103
    %p105 = scmp.ne.s32.totalorder %s94, %s97
    %p106 = scmp.eq.s32.totalorder %s14, 1
    %p107 = por %p105, %p106
    %p108 = scmp.ne.s32.totalorder %s97, %s98
    %p109 = scmp.eq.s32.totalorder %s14, 0
    %p110 = por %p108, %p109
    %p111 = scmp.ne.s32.totalorder %s97, %s98
    %p112 = scmp.eq.s32.totalorder %s15, 1
    %p113 = por %p111, %p112
    %p115 = scmp.ne.s32.totalorder %s98, %s114
    %p116 = scmp.eq.s32.totalorder %s15, 0
    %p117 = por %p115, %p116
    %s118 = ssub.s32 %s16, %s35
    %s119 = ssub.s32 %s17, %s31
    %s120 = sor.u32 %s118, %s119
    %p121 = scmp.eq.s32.totalorder %s120, 0
    %s123 = sadd.s32 %s122, 1
    %s124 = scalar_select %p121, %s122, %s123
    %p127 = pneg %p121
    %p128 = scmp.eq.s32.totalorder %s9, 1
    %p129 = por %p127, %p128
    %p130 = scmp.ne.s32.totalorder %s122, %s125
    %p131 = scmp.eq.s32.totalorder %s9, 0
    %p132 = por %p130, %p131
    %p133 = scmp.ne.s32.totalorder %s122, %s125
    %p134 = scmp.eq.s32.totalorder %s14, 1
    %p135 = por %p133, %p134
    %p136 = scmp.ne.s32.totalorder %s125, %s126
    %p137 = scmp.eq.s32.totalorder %s14, 0
    %p138 = por %p136, %p137
    %p139 = scmp.ne.s32.totalorder %s125, %s126
    %p140 = scmp.eq.s32.totalorder %s15, 1
    %p141 = por %p139, %p140
    %p143 = scmp.ne.s32.totalorder %s126, %s142
    %p144 = scmp.eq.s32.totalorder %s15, 0
    %p145 = por %p143, %p144
    %p146 = scmp.le.s32.totalorder 1, %s9
    %p147 = scmp.lt.s32.totalorder %s9, 3
    %p148 = pnand %p146, %p147
    %p149 = pneg %p148
    // Predicated region
    $region9: #{deeplab_forward.16} parent=5 // pred_check
      _
    $region10: #{deeplab_forward.16} parent=5 // pred_check_branch
      %151 = sbr.rel (%p148) target = $region12
    $region11: #{deeplab_forward.16} parent=5 // pred_region
      %s152 = ssub.s32 %s9, 1
      // Predicated region
      $region13: #{deeplab_forward.16} parent=11 // pred_check
        %p153 = pneg %p84
      $region14: #{deeplab_forward.16} parent=11 // pred_check_branch
        %155 = sbr.rel (%p153) target = $region16
      $region15: #{deeplab_forward.16} parent=11 // pred_region
        %p156 = scmp.lt.s32.totalorder %s21, 0
        %s157 = scalar_select %p156, %s21, 0
        %p158 = scmp.lt.s32.totalorder %s20, 0
        %s159 = scalar_select %p158, %s20, 0
        %s160 = sadd.s32 %s159, %s157
        %s161 = smul.addr %s160, 4
        %s162 = scalar_lea.vmem %s1, %s161
      $region16: #{deeplab_forward.16} parent=11 // pred_fallthru
        _
      // Predicated region
      $region17: #{deeplab_forward.16} parent=11 // pred_check
        %p163 = pneg %p110
      $region18: #{deeplab_forward.16} parent=11 // pred_check_branch
        %165 = sbr.rel (%p163) target = $region20
      $region19: #{deeplab_forward.16} parent=11 // pred_region
        %p166 = scmp.lt.s32.totalorder %s20, 0
        %s167 = scalar_select %p166, %s20, 0
        %s168 = scalar_lea.vmem %s2, %s167
      $region20: #{deeplab_forward.16} parent=11 // pred_fallthru
        _
    $region12: #{deeplab_forward.16} parent=5 // pred_fallthru
      _
    %p169 = scmp.lt.s32.totalorder %s9, 2
    // Predicated region
    $region21: #{deeplab_forward.16} parent=5 // pred_check
      %p170 = pneg %p169
    $region22: #{deeplab_forward.16} parent=5 // pred_check_branch
      %172 = sbr.rel (%p170) target = $region24
    $region23: #{deeplab_forward.16} parent=5 // pred_region
      // Predicated region
      $region25: #{deeplab_forward.16} parent=23 // pred_check
        %p173 = pneg %p50
      $region26: #{deeplab_forward.16} parent=23 // pred_check_branch
        %175 = sbr.rel (%p173) target = $region28
      $region27: #{deeplab_forward.16} parent=23 // pred_region
        %s176 = smul.u32 32, %s16
        %p177 = scmp.lt.s32.totalorder %s176, 63
        %s178 = scalar_select %p177, %s176, 63
        %p179 = scmp.lt.s32.totalorder %s18, 0
        %s180 = scalar_select %p179, %s18, 0
        %s181 = sadd.s32 %s180, %s178
        %s182 = smul.addr %s181, 4
        %s183 = scalar_lea.vmem %s0, %s182
        %s184 = smul.u32 32, %s16
      $region28: #{deeplab_forward.16} parent=23 // pred_fallthru
        _
    $region24: #{deeplab_forward.16} parent=5 // pred_fallthru
      _
    %p185 = scmp.le.s32.totalorder 1, %s9
    %p186 = scmp.lt.s32.totalorder %s9, 3
    %p187 = pnand %p185, %p186
    %p188 = pneg %p187
    // Predicated region
    $region29: #{deeplab_forward.16} parent=5 // pred_check
      _
    $region30: #{deeplab_forward.16} parent=5 // pred_check_branch
      %190 = sbr.rel (%p187) target = $region32
    $region31: #{deeplab_forward.16} parent=5 // pred_region
      %s191 = ssub.s32 %s9, 1
      %s192 = smul.u32 32, %s19
      %p193 = scmp.lt.s32.totalorder %s192, 63
      %s194 = scalar_select %p193, %s192, 63
      %p195 = scmp.lt.s32.totalorder %s21, 0
      %s196 = scalar_select %p195, %s21, 0
      %s197 = sadd.s32 %s196, %s194
      %s198 = smul.addr %s197, 4
      %s199 = scalar_lea.vmem %s0, %s198
      %p200 = pneg %p56
      %p201 = pneg %p53
      %p202 = scmp.lt.s32.totalorder %s21, 0
      %s203 = scalar_select %p202, %s21, 0
      %p204 = scmp.lt.s32.totalorder %s20, 0
      %s205 = scalar_select %p204, %s20, 0
      %s206 = sadd.s32 %s205, %s203
      %s207 = smul.addr %s206, 4
      %s208 = scalar_lea.vmem %s1, %s207
      %p209 = pneg %p84
      %p210 = pneg %p81
      %p211 = scmp.lt.s32.totalorder %s20, 0
      %s212 = scalar_select %p211, %s20, 0
      %s213 = scalar_lea.vmem %s2, %s212
      %p214 = pneg %p110
      %p215 = pneg %p107
      %p216 = pneg %p138
      %p217 = pneg %p135
      %s218 = smul.u32 32, %s19
      %p219 = scmp.lt.s32.totalorder %s218, 63
      %s220 = scalar_select %p219, %s218, 63
      %p221 = scmp.lt.s32.totalorder %s20, 0
      %s222 = scalar_select %p221, %s20, 0
      %s223 = sadd.s32 %s222, %s220
      %s224 = smul.addr %s223, 4
      %s225 = scalar_lea.vmem %s3, %s224
      %s226 = smul.u32 32, %s19
      %p227 = scmp.lt.s32.totalorder %s226, 63
      %s228 = scalar_select %p227, %s226, 63
      %p229 = scmp.lt.s32.totalorder %s21, 0
      %s230 = scalar_select %p229, %s21, 0
      %s231 = sadd.s32 %s230, %s228
      %s232 = smul.addr %s231, 4
      %s233 = scalar_lea.vmem %s0, %s232
      %s234 = smul.u32 32, %s19
      %p235 = scmp.lt.s32.totalorder %s21, 0
      %s236 = scalar_select %p235, %s21, 0
      %p237 = scmp.lt.s32.totalorder %s20, 0
      %s238 = scalar_select %p237, %s20, 0
      %s239 = sadd.s32 %s238, %s236
      %s240 = smul.addr %s239, 4
      %s241 = scalar_lea.vmem %s1, %s240
      %p242 = scmp.lt.s32.totalorder %s20, 0
      %s243 = scalar_select %p242, %s20, 0
      %s244 = scalar_lea.vmem %s2, %s243
      %s245 = smul.u32 32, %s19
      %p246 = scmp.lt.s32.totalorder %s245, 63
      %s247 = scalar_select %p246, %s245, 63
      %p248 = scmp.lt.s32.totalorder %s20, 0
      %s249 = scalar_select %p248, %s20, 0
      %s250 = sadd.s32 %s249, %s247
      %s251 = smul.addr %s250, 4
      %s252 = scalar_lea.vmem %s3, %s251
      %s253 = smul.u32 32, %s19
      %p255 = scmp.eq.s32.totalorder %s21, 0
      // Predicated region
      $region33: #{deeplab_forward.16} parent=31 // pred_check
        %p256 = pneg %p255
      $region34: #{deeplab_forward.16} parent=31 // pred_check_branch
        %258 = sbr.rel (%p256) target = $region36
      $region35: #{deeplab_forward.16} parent=31 // pred_region
        %259 = vst [vmem:[#allocation2] sm:$0xff] 0.0
        %260 = vst [vmem:[#allocation2 + $0x8] sm:$0xff] 0.0
        %261 = vst [vmem:[#allocation2 + $0x10] sm:$0xff] 0.0
        %262 = vst [vmem:[#allocation2 + $0x18] sm:$0xff] 0.0
        %263 = vst [vmem:[#allocation2 + $0x20] sm:$0xff] 0.0
        %264 = vst [vmem:[#allocation2 + $0x28] sm:$0xff] 0.0
        %265 = vst [vmem:[#allocation2 + $0x30] sm:$0xff] 0.0
        %266 = vst [vmem:[#allocation2 + $0x38] sm:$0xff] 0.0
        %267 = vst [vmem:[#allocation2 + $0x40] sm:$0xff] 0.0
        %268 = vst [vmem:[#allocation2 + $0x48] sm:$0xff] 0.0
        %269 = vst [vmem:[#allocation2 + $0x50] sm:$0xff] 0.0
        %270 = vst [vmem:[#allocation2 + $0x58] sm:$0xff] 0.0
        %271 = vst [vmem:[#allocation2 + $0x60] sm:$0xff] 0.0
        %272 = vst [vmem:[#allocation2 + $0x68] sm:$0xff] 0.0
        %273 = vst [vmem:[#allocation2 + $0x70] sm:$0xff] 0.0
        %274 = vst [vmem:[#allocation2 + $0x78] sm:$0xff] 0.0
        %275 = vst [vmem:[#allocation2 + $0x80] sm:$0xff] 0.0
        %276 = vst [vmem:[#allocation2 + $0x88] sm:$0xff] 0.0
        %277 = vst [vmem:[#allocation2 + $0x90] sm:$0xff] 0.0
        %278 = vst [vmem:[#allocation2 + $0x98] sm:$0xff] 0.0
        %279 = vst [vmem:[#allocation2 + $0xa0] sm:$0xff] 0.0
        %280 = vst [vmem:[#allocation2 + $0xa8] sm:$0xff] 0.0
        %281 = vst [vmem:[#allocation2 + $0xb0] sm:$0xff] 0.0
        %282 = vst [vmem:[#allocation2 + $0xb8] sm:$0xff] 0.0
        %283 = vst [vmem:[#allocation2 + $0xc0] sm:$0xff] 0.0
        %284 = vst [vmem:[#allocation2 + $0xc8] sm:$0xff] 0.0
        %285 = vst [vmem:[#allocation2 + $0xd0] sm:$0xff] 0.0
        %286 = vst [vmem:[#allocation2 + $0xd8] sm:$0xff] 0.0
        %287 = vst [vmem:[#allocation2 + $0xe0] sm:$0xff] 0.0
        %288 = vst [vmem:[#allocation2 + $0xe8] sm:$0xff] 0.0
        %289 = vst [vmem:[#allocation2 + $0xf0] sm:$0xff] 0.0
        %290 = vst [vmem:[#allocation2 + $0xf8] sm:$0xff] 0.0
      $region36: #{deeplab_forward.16} parent=31 // pred_fallthru
        _
      %v291 = vld [vmem:[#allocation2] sm:$0xff]
      %v292 = vld [vmem:[#allocation2 + $0x8] sm:$0xff]
      %v293 = vld [vmem:[#allocation2 + $0x10] sm:$0xff]
      %v294 = vld [vmem:[#allocation2 + $0x18] sm:$0xff]
      %v295 = vld [vmem:[#allocation2 + $0x20] sm:$0xff]
      %v296 = vld [vmem:[#allocation2 + $0x28] sm:$0xff]
      %v297 = vld [vmem:[#allocation2 + $0x30] sm:$0xff]
      %v298 = vld [vmem:[#allocation2 + $0x38] sm:$0xff]
      %v299 = vld [vmem:[#allocation2 + $0x40] sm:$0xff]
      %v300 = vld [vmem:[#allocation2 + $0x48] sm:$0xff]
      %v301 = vld [vmem:[#allocation2 + $0x50] sm:$0xff]
      %v302 = vld [vmem:[#allocation2 + $0x58] sm:$0xff]
      %v303 = vld [vmem:[#allocation2 + $0x60] sm:$0xff]
      %v304 = vld [vmem:[#allocation2 + $0x68] sm:$0xff]
      %v305 = vld [vmem:[#allocation2 + $0x70] sm:$0xff]
      %v306 = vld [vmem:[#allocation2 + $0x78] sm:$0xff]
      %v307 = vld [vmem:[#allocation2 + $0x80] sm:$0xff]
      %v308 = vld [vmem:[#allocation2 + $0x88] sm:$0xff]
      %v309 = vld [vmem:[#allocation2 + $0x90] sm:$0xff]
      %v310 = vld [vmem:[#allocation2 + $0x98] sm:$0xff]
      %v311 = vld [vmem:[#allocation2 + $0xa0] sm:$0xff]
      %v312 = vld [vmem:[#allocation2 + $0xa8] sm:$0xff]
      %v313 = vld [vmem:[#allocation2 + $0xb0] sm:$0xff]
      %v314 = vld [vmem:[#allocation2 + $0xb8] sm:$0xff]
      %v315 = vld [vmem:[#allocation2 + $0xc0] sm:$0xff]
      %v316 = vld [vmem:[#allocation2 + $0xc8] sm:$0xff]
      %v317 = vld [vmem:[#allocation2 + $0xd0] sm:$0xff]
      %v318 = vld [vmem:[#allocation2 + $0xd8] sm:$0xff]
      %v319 = vld [vmem:[#allocation2 + $0xe0] sm:$0xff]
      %v320 = vld [vmem:[#allocation2 + $0xe8] sm:$0xff]
      %v321 = vld [vmem:[#allocation2 + $0xf0] sm:$0xff]
      %v322 = vld [vmem:[#allocation2 + $0xf8] sm:$0xff]
      %v323 = vld [vmem:[%s233] sm:$0xf]
      %v324 = vld [vmem:[%s233 + $0x4] sm:$0xf]
      %v325 = vld [vmem:[%s233 + $0x8] sm:$0xf]
      %v326 = vld [vmem:[%s233 + $0xc] sm:$0xf]
      %v327 = vld [vmem:[%s233 + $0x10] sm:$0xf]
      %v328 = vld [vmem:[%s233 + $0x14] sm:$0xf]
      %v329 = vld [vmem:[%s233 + $0x18] sm:$0xf]
      %v330 = vld [vmem:[%s233 + $0x1c] sm:$0xf]
      %v331 = vld [vmem:[%s233 + $0x20] sm:$0xf]
      %v332 = vld [vmem:[%s233 + $0x24] sm:$0xf]
      %v333 = vld [vmem:[%s233 + $0x28] sm:$0xf]
      %v334 = vld [vmem:[%s233 + $0x2c] sm:$0xf]
      %v335 = vld [vmem:[%s233 + $0x30] sm:$0xf]
      %v336 = vld [vmem:[%s233 + $0x34] sm:$0xf]
      %v337 = vld [vmem:[%s233 + $0x38] sm:$0xf]
      %v338 = vld [vmem:[%s233 + $0x3c] sm:$0xf]
      %v339 = vld [vmem:[%s233 + $0x40] sm:$0xf]
      %v340 = vld [vmem:[%s233 + $0x44] sm:$0xf]
      %v341 = vld [vmem:[%s233 + $0x48] sm:$0xf]
      %v342 = vld [vmem:[%s233 + $0x4c] sm:$0xf]
      %v343 = vld [vmem:[%s233 + $0x50] sm:$0xf]
      %v344 = vld [vmem:[%s233 + $0x54] sm:$0xf]
      %v345 = vld [vmem:[%s233 + $0x58] sm:$0xf]
      %v346 = vld [vmem:[%s233 + $0x5c] sm:$0xf]
      %v347 = vld [vmem:[%s233 + $0x60] sm:$0xf]
      %v348 = vld [vmem:[%s233 + $0x64] sm:$0xf]
      %v349 = vld [vmem:[%s233 + $0x68] sm:$0xf]
      %v350 = vld [vmem:[%s233 + $0x6c] sm:$0xf]
      %v351 = vld [vmem:[%s233 + $0x70] sm:$0xf]
      %v352 = vld [vmem:[%s233 + $0x74] sm:$0xf]
      %v353 = vld [vmem:[%s233 + $0x78] sm:$0xf]
      %v354 = vld [vmem:[%s233 + $0x7c] sm:$0xf]
      %v355 = vld [vmem:[%s241] sm:$0xf]
      %v388 = vunpack.c.l.b16 %v323
      %v389 = vunpack.c.l.b16 %v324
      %v390 = vunpack.c.l.b16 %v325
      %v391 = vunpack.c.l.b16 %v326
      %v392 = vunpack.c.l.b16 %v327
      %v393 = vunpack.c.l.b16 %v328
      %v394 = vunpack.c.l.b16 %v329
      %v395 = vunpack.c.l.b16 %v330
      %v396 = vunpack.c.l.b16 %v331
      %v397 = vunpack.c.l.b16 %v332
      %v398 = vunpack.c.l.b16 %v333
      %v399 = vunpack.c.l.b16 %v334
      %v400 = vunpack.c.l.b16 %v335
      %v401 = vunpack.c.l.b16 %v336
      %v402 = vunpack.c.l.b16 %v337
      %v403 = vunpack.c.l.b16 %v338
      %v404 = vunpack.c.l.b16 %v339
      %v405 = vunpack.c.l.b16 %v340
      %v406 = vunpack.c.l.b16 %v341
      %v407 = vunpack.c.l.b16 %v342
      %v408 = vunpack.c.l.b16 %v343
      %v409 = vunpack.c.l.b16 %v344
      %v410 = vunpack.c.l.b16 %v345
      %v411 = vunpack.c.l.b16 %v346
      %v412 = vunpack.c.l.b16 %v347
      %v413 = vunpack.c.l.b16 %v348
      %v414 = vunpack.c.l.b16 %v349
      %v415 = vunpack.c.l.b16 %v350
      %v416 = vunpack.c.l.b16 %v351
      %v417 = vunpack.c.l.b16 %v352
      %v418 = vunpack.c.l.b16 %v353
      %v419 = vunpack.c.l.b16 %v354
      %v420 = vpack.c.b16 %v389, %v388
      %v421 = vpack.c.b16 %v391, %v390
      %v422 = vpack.c.b16 %v393, %v392
      %v423 = vpack.c.b16 %v395, %v394
      %v424 = vpack.c.b16 %v397, %v396
      %v425 = vpack.c.b16 %v399, %v398
      %v426 = vpack.c.b16 %v401, %v400
      %v427 = vpack.c.b16 %v403, %v402
      %v428 = vpack.c.b16 %v405, %v404
      %v429 = vpack.c.b16 %v407, %v406
      %v430 = vpack.c.b16 %v409, %v408
      %v431 = vpack.c.b16 %v411, %v410
      %v432 = vpack.c.b16 %v413, %v412
      %v433 = vpack.c.b16 %v415, %v414
      %v434 = vpack.c.b16 %v417, %v416
      %v435 = vpack.c.b16 %v419, %v418
      %vm436 = vcmask 64512
      %v438 = vsel %vm436, %v420, 0
      %v441 = vsel %vm436, %v421, 0
      %v444 = vsel %vm436, %v422, 0
      %v447 = vsel %vm436, %v423, 0
      %v450 = vsel %vm436, %v424, 0
      %v453 = vsel %vm436, %v425, 0
      %v456 = vsel %vm436, %v426, 0
      %v459 = vsel %vm436, %v427, 0
      %v462 = vsel %vm436, %v428, 0
      %v465 = vsel %vm436, %v429, 0
      %v468 = vsel %vm436, %v430, 0
      %v471 = vsel %vm436, %v431, 0
      %v474 = vsel %vm436, %v432, 0
      %v477 = vsel %vm436, %v433, 0
      %v480 = vsel %vm436, %v434, 0
      %v483 = vsel %vm436, %v435, 0
      %vm485 = vcmask 1043456
      %v487 = vsel %vm485, %v355, 0
      %489 = vmatprep.subr.bf16.mxu0 0
      %490 = vmatpush1.bf16.msra.mxu0 0
      %491 = vmatprep.subr.bf16.mxu0 0
      %492 = vmatpush1.bf16.msra.mxu0 0
      %493 = vmatprep.subr.bf16.mxu0 0
      %494 = vmatpush1.bf16.msra.mxu0 0
      %495 = vmatprep.subr.bf16.mxu0 0
      %496 = vmatpush1.bf16.msra.mxu0 0
      %497 = vmatprep.subr.bf16.mxu0 0
      %498 = vmatpush1.bf16.msra.mxu0 0
      %499 = vmatprep.subr.bf16.mxu0 0
      %500 = vmatpush1.bf16.msra.mxu0 0
      %501 = vmatprep.subr.bf16.mxu0 0
      %502 = vmatpush1.bf16.msra.mxu0 0
      %503 = vmatprep.subr.bf16.mxu0 0
      %504 = vmatpush1.bf16.msra.mxu0 %v487
      %505 = vmatprep.subr.bf16.mxu0 0
      %506 = vmatpush2.bf16.msra.mxu0 0
      %507 = vmatprep.subr.bf16.mxu0 0
      %508 = vmatpush2.bf16.msra.mxu0 0
      %509 = vmatprep.subr.bf16.mxu0 0
      %510 = vmatpush2.bf16.msra.mxu0 0
      %511 = vmatprep.subr.bf16.mxu0 0
      %512 = vmatpush2.bf16.msra.mxu0 0
      %513 = vmatprep.subr.bf16.mxu0 0
      %514 = vmatpush2.bf16.msra.mxu0 0
      %515 = vmatprep.subr.bf16.mxu0 0
      %516 = vmatpush2.bf16.msra.mxu0 0
      %517 = vmatprep.subr.bf16.mxu0 0
      %518 = vmatpush2.bf16.msra.mxu0 0
      %519 = vmatprep.subr.bf16.mxu0 0
      %520 = vmatpush2.bf16.msra.mxu0 0
      %521 = vmatprep.mubr.bf16.mxu0 0
      %522 = vmatmul.mubr.bf16.gmra.mxu0 %v438
      %v523 = vpop.f32.mrf.mxu0
      %v524 = vadd.f32 0.0, %v523
      %v525 = vpop.f32.mrf.mxu0
      %v526 = vpop.f32.mrf.mxu0
      %v527 = vadd.f32 0.0, %v526
      %v528 = vpop.f32.mrf.mxu0
      %529 = vmatprep.mubr.bf16.mxu0 0
      %530 = vmatmul.mubr.bf16.gmra.mxu0 %v441
      %v531 = vpop.f32.mrf.mxu0
      %v532 = vadd.f32 0.0, %v531
      %v533 = vpop.f32.mrf.mxu0
      %v534 = vpop.f32.mrf.mxu0
      %v535 = vadd.f32 0.0, %v534
      %v536 = vpop.f32.mrf.mxu0
      %537 = vmatprep.mubr.bf16.mxu0 0
      %538 = vmatmul.mubr.bf16.gmra.mxu0 %v444
      %v539 = vpop.f32.mrf.mxu0
      %v540 = vadd.f32 0.0, %v539
      %v541 = vpop.f32.mrf.mxu0
      %v542 = vpop.f32.mrf.mxu0
      %v543 = vadd.f32 0.0, %v542
      %v544 = vpop.f32.mrf.mxu0
      %545 = vmatprep.mubr.bf16.mxu0 0
      %546 = vmatmul.mubr.bf16.gmra.mxu0 %v447
      %v547 = vpop.f32.mrf.mxu0
      %v548 = vadd.f32 0.0, %v547
      %v549 = vpop.f32.mrf.mxu0
      %v550 = vpop.f32.mrf.mxu0
      %v551 = vadd.f32 0.0, %v550
      %v552 = vpop.f32.mrf.mxu0
      %553 = vmatprep.mubr.bf16.mxu0 0
      %554 = vmatmul.mubr.bf16.gmra.mxu0 %v450
      %v555 = vpop.f32.mrf.mxu0
      %v556 = vadd.f32 0.0, %v555
      %v557 = vpop.f32.mrf.mxu0
      %v558 = vpop.f32.mrf.mxu0
      %v559 = vadd.f32 0.0, %v558
      %v560 = vpop.f32.mrf.mxu0
      %561 = vmatprep.mubr.bf16.mxu0 0
      %562 = vmatmul.mubr.bf16.gmra.mxu0 %v453
      %v563 = vpop.f32.mrf.mxu0
      %v564 = vadd.f32 0.0, %v563
      %v565 = vpop.f32.mrf.mxu0
      %v566 = vpop.f32.mrf.mxu0
      %v567 = vadd.f32 0.0, %v566
      %v568 = vpop.f32.mrf.mxu0
      %569 = vmatprep.mubr.bf16.mxu0 0
      %570 = vmatmul.mubr.bf16.gmra.mxu0 %v456
      %v571 = vpop.f32.mrf.mxu0
      %v572 = vadd.f32 0.0, %v571
      %v573 = vpop.f32.mrf.mxu0
      %v574 = vpop.f32.mrf.mxu0
      %v575 = vadd.f32 0.0, %v574
      %v576 = vpop.f32.mrf.mxu0
      %577 = vmatprep.mubr.bf16.mxu0 0
      %578 = vmatmul.mubr.bf16.gmra.mxu0 %v459
      %v579 = vpop.f32.mrf.mxu0
      %v580 = vadd.f32 0.0, %v579
      %v581 = vpop.f32.mrf.mxu0
      %v582 = vpop.f32.mrf.mxu0
      %v583 = vadd.f32 0.0, %v582
      %v584 = vpop.f32.mrf.mxu0
      %585 = vmatprep.mubr.bf16.mxu0 0
      %586 = vmatmul.mubr.bf16.gmra.mxu0 %v462
      %v587 = vpop.f32.mrf.mxu0
      %v588 = vadd.f32 0.0, %v587
      %v589 = vpop.f32.mrf.mxu0
      %v590 = vpop.f32.mrf.mxu0
      %v591 = vadd.f32 0.0, %v590
      %v592 = vpop.f32.mrf.mxu0
      %593 = vmatprep.mubr.bf16.mxu0 0
      %594 = vmatmul.mubr.bf16.gmra.mxu0 %v465
      %v595 = vpop.f32.mrf.mxu0
      %v596 = vadd.f32 0.0, %v595
      %v597 = vpop.f32.mrf.mxu0
      %v598 = vpop.f32.mrf.mxu0
      %v599 = vadd.f32 0.0, %v598
      %v600 = vpop.f32.mrf.mxu0
      %601 = vmatprep.mubr.bf16.mxu0 0
      %602 = vmatmul.mubr.bf16.gmra.mxu0 %v468
      %v603 = vpop.f32.mrf.mxu0
      %v604 = vadd.f32 0.0, %v603
      %v605 = vpop.f32.mrf.mxu0
      %v606 = vpop.f32.mrf.mxu0
      %v607 = vadd.f32 0.0, %v606
      %v608 = vpop.f32.mrf.mxu0
      %609 = vmatprep.mubr.bf16.mxu0 0
      %610 = vmatmul.mubr.bf16.gmra.mxu0 %v471
      %v611 = vpop.f32.mrf.mxu0
      %v612 = vadd.f32 0.0, %v611
      %v613 = vpop.f32.mrf.mxu0
      %v614 = vpop.f32.mrf.mxu0
      %v615 = vadd.f32 0.0, %v614
      %v616 = vpop.f32.mrf.mxu0
      %617 = vmatprep.mubr.bf16.mxu0 0
      %618 = vmatmul.mubr.bf16.gmra.mxu0 %v474
      %v619 = vpop.f32.mrf.mxu0
      %v620 = vadd.f32 0.0, %v619
      %v621 = vpop.f32.mrf.mxu0
      %v622 = vpop.f32.mrf.mxu0
      %v623 = vadd.f32 0.0, %v622
      %v624 = vpop.f32.mrf.mxu0
      %625 = vmatprep.mubr.bf16.mxu0 0
      %626 = vmatmul.mubr.bf16.gmra.mxu0 %v477
      %v627 = vpop.f32.mrf.mxu0
      %v628 = vadd.f32 0.0, %v627
      %v629 = vpop.f32.mrf.mxu0
      %v630 = vpop.f32.mrf.mxu0
      %v631 = vadd.f32 0.0, %v630
      %v632 = vpop.f32.mrf.mxu0
      %633 = vmatprep.mubr.bf16.mxu0 0
      %634 = vmatmul.mubr.bf16.gmra.mxu0 %v480
      %v635 = vpop.f32.mrf.mxu0
      %v636 = vadd.f32 0.0, %v635
      %v637 = vpop.f32.mrf.mxu0
      %v638 = vpop.f32.mrf.mxu0
      %v639 = vadd.f32 0.0, %v638
      %v640 = vpop.f32.mrf.mxu0
      %641 = vmatprep.mubr.bf16.mxu0 0
      %642 = vmatmul.mubr.bf16.gmra.mxu0 %v483
      %v643 = vpop.f32.mrf.mxu0
      %v644 = vadd.f32 0.0, %v643
      %v645 = vpop.f32.mrf.mxu0
      %v646 = vpop.f32.mrf.mxu0
      %v647 = vadd.f32 0.0, %v646
      %v648 = vpop.f32.mrf.mxu0
      %649 = vdwg.mxu0
      %v650 = vadd.f32 %v291, %v524
      %v651 = vadd.f32 %v292, %v527
      %v652 = vadd.f32 %v293, %v532
      %v653 = vadd.f32 %v294, %v535
      %v654 = vadd.f32 %v295, %v540
      %v655 = vadd.f32 %v296, %v543
      %v656 = vadd.f32 %v297, %v548
      %v657 = vadd.f32 %v298, %v551
      %v658 = vadd.f32 %v299, %v556
      %v659 = vadd.f32 %v300, %v559
      %v660 = vadd.f32 %v301, %v564
      %v661 = vadd.f32 %v302, %v567
      %v662 = vadd.f32 %v303, %v572
      %v663 = vadd.f32 %v304, %v575
      %v664 = vadd.f32 %v305, %v580
      %v665 = vadd.f32 %v306, %v583
      %v666 = vadd.f32 %v307, %v588
      %v667 = vadd.f32 %v308, %v591
      %v668 = vadd.f32 %v309, %v596
      %v669 = vadd.f32 %v310, %v599
      %v670 = vadd.f32 %v311, %v604
      %v671 = vadd.f32 %v312, %v607
      %v672 = vadd.f32 %v313, %v612
      %v673 = vadd.f32 %v314, %v615
      %v674 = vadd.f32 %v315, %v620
      %v675 = vadd.f32 %v316, %v623
      %v676 = vadd.f32 %v317, %v628
      %v677 = vadd.f32 %v318, %v631
      %v678 = vadd.f32 %v319, %v636
      %v679 = vadd.f32 %v320, %v639
      %v680 = vadd.f32 %v321, %v644
      %v681 = vadd.f32 %v322, %v647
      %682 = vst [vmem:[#allocation2] sm:$0xff] %v650
      %683 = vst [vmem:[#allocation2 + $0x8] sm:$0xff] %v651
      %684 = vst [vmem:[#allocation2 + $0x10] sm:$0xff] %v652
      %685 = vst [vmem:[#allocation2 + $0x18] sm:$0xff] %v653
      %686 = vst [vmem:[#allocation2 + $0x20] sm:$0xff] %v654
      %687 = vst [vmem:[#allocation2 + $0x28] sm:$0xff] %v655
      %688 = vst [vmem:[#allocation2 + $0x30] sm:$0xff] %v656
      %689 = vst [vmem:[#allocation2 + $0x38] sm:$0xff] %v657
      %690 = vst [vmem:[#allocation2 + $0x40] sm:$0xff] %v658
      %691 = vst [vmem:[#allocation2 + $0x48] sm:$0xff] %v659
      %692 = vst [vmem:[#allocation2 + $0x50] sm:$0xff] %v660
      %693 = vst [vmem:[#allocation2 + $0x58] sm:$0xff] %v661
      %694 = vst [vmem:[#allocation2 + $0x60] sm:$0xff] %v662
      %695 = vst [vmem:[#allocation2 + $0x68] sm:$0xff] %v663
      %696 = vst [vmem:[#allocation2 + $0x70] sm:$0xff] %v664
      %697 = vst [vmem:[#allocation2 + $0x78] sm:$0xff] %v665
      %698 = vst [vmem:[#allocation2 + $0x80] sm:$0xff] %v666
      %699 = vst [vmem:[#allocation2 + $0x88] sm:$0xff] %v667
      %700 = vst [vmem:[#allocation2 + $0x90] sm:$0xff] %v668
      %701 = vst [vmem:[#allocation2 + $0x98] sm:$0xff] %v669
      %702 = vst [vmem:[#allocation2 + $0xa0] sm:$0xff] %v670
      %703 = vst [vmem:[#allocation2 + $0xa8] sm:$0xff] %v671
      %704 = vst [vmem:[#allocation2 + $0xb0] sm:$0xff] %v672
      %705 = vst [vmem:[#allocation2 + $0xb8] sm:$0xff] %v673
      %706 = vst [vmem:[#allocation2 + $0xc0] sm:$0xff] %v674
      %707 = vst [vmem:[#allocation2 + $0xc8] sm:$0xff] %v675
      %708 = vst [vmem:[#allocation2 + $0xd0] sm:$0xff] %v676
      %709 = vst [vmem:[#allocation2 + $0xd8] sm:$0xff] %v677
      %710 = vst [vmem:[#allocation2 + $0xe0] sm:$0xff] %v678
      %711 = vst [vmem:[#allocation2 + $0xe8] sm:$0xff] %v679
      %712 = vst [vmem:[#allocation2 + $0xf0] sm:$0xff] %v680
      %713 = vst [vmem:[#allocation2 + $0xf8] sm:$0xff] %v681
      // Predicated region
      $region37: #{deeplab_forward.16} parent=31 // pred_check
        %p714 = pneg %p255
      $region38: #{deeplab_forward.16} parent=31 // pred_check_branch
        %716 = sbr.rel (%p714) target = $region40
      $region39: #{deeplab_forward.16} parent=31 // pred_region
        %v717 = vld [vmem:[#allocation2] sm:$0xff]
        %v718 = vld [vmem:[#allocation2 + $0x8] sm:$0xff]
        %v719 = vld [vmem:[#allocation2 + $0x10] sm:$0xff]
        %v720 = vld [vmem:[#allocation2 + $0x18] sm:$0xff]
        %v721 = vld [vmem:[#allocation2 + $0x20] sm:$0xff]
        %v722 = vld [vmem:[#allocation2 + $0x28] sm:$0xff]
        %v723 = vld [vmem:[#allocation2 + $0x30] sm:$0xff]
        %v724 = vld [vmem:[#allocation2 + $0x38] sm:$0xff]
        %v725 = vld [vmem:[#allocation2 + $0x40] sm:$0xff]
        %v726 = vld [vmem:[#allocation2 + $0x48] sm:$0xff]
        %v727 = vld [vmem:[#allocation2 + $0x50] sm:$0xff]
        %v728 = vld [vmem:[#allocation2 + $0x58] sm:$0xff]
        %v729 = vld [vmem:[#allocation2 + $0x60] sm:$0xff]
        %v730 = vld [vmem:[#allocation2 + $0x68] sm:$0xff]
        %v731 = vld [vmem:[#allocation2 + $0x70] sm:$0xff]
        %v732 = vld [vmem:[#allocation2 + $0x78] sm:$0xff]
        %v733 = vld [vmem:[#allocation2 + $0x80] sm:$0xff]
        %v734 = vld [vmem:[#allocation2 + $0x88] sm:$0xff]
        %v735 = vld [vmem:[#allocation2 + $0x90] sm:$0xff]
        %v736 = vld [vmem:[#allocation2 + $0x98] sm:$0xff]
        %v737 = vld [vmem:[#allocation2 + $0xa0] sm:$0xff]
        %v738 = vld [vmem:[#allocation2 + $0xa8] sm:$0xff]
        %v739 = vld [vmem:[#allocation2 + $0xb0] sm:$0xff]
        %v740 = vld [vmem:[#allocation2 + $0xb8] sm:$0xff]
        %v741 = vld [vmem:[#allocation2 + $0xc0] sm:$0xff]
        %v742 = vld [vmem:[#allocation2 + $0xc8] sm:$0xff]
        %v743 = vld [vmem:[#allocation2 + $0xd0] sm:$0xff]
        %v744 = vld [vmem:[#allocation2 + $0xd8] sm:$0xff]
        %v745 = vld [vmem:[#allocation2 + $0xe0] sm:$0xff]
        %v746 = vld [vmem:[#allocation2 + $0xe8] sm:$0xff]
        %v747 = vld [vmem:[#allocation2 + $0xf0] sm:$0xff]
        %v748 = vld [vmem:[#allocation2 + $0xf8] sm:$0xff]
        %v749 = vld [vmem:[%s244] sm:$0x1]
        %v751 = vlaneseq
        %v752 = vshrl.u32 %v751, 7
        %v753 = vsub.s32 0, %v752
        %v754 = vrot.slane %v749, %v753
        %v756 = vadd.f32 %v717, %v754
        %v757 = vadd.f32 %v718, %v754
        %v758 = vadd.f32 %v719, %v754
        %v759 = vadd.f32 %v720, %v754
        %v760 = vadd.f32 %v721, %v754
        %v761 = vadd.f32 %v722, %v754
        %v762 = vadd.f32 %v723, %v754
        %v763 = vadd.f32 %v724, %v754
        %v764 = vadd.f32 %v725, %v754
        %v765 = vadd.f32 %v726, %v754
        %v766 = vadd.f32 %v727, %v754
        %v767 = vadd.f32 %v728, %v754
        %v768 = vadd.f32 %v729, %v754
        %v769 = vadd.f32 %v730, %v754
        %v770 = vadd.f32 %v731, %v754
        %v771 = vadd.f32 %v732, %v754
        %v772 = vadd.f32 %v733, %v754
        %v773 = vadd.f32 %v734, %v754
        %v774 = vadd.f32 %v735, %v754
        %v775 = vadd.f32 %v736, %v754
        %v776 = vadd.f32 %v737, %v754
        %v777 = vadd.f32 %v738, %v754
        %v778 = vadd.f32 %v739, %v754
        %v779 = vadd.f32 %v740, %v754
        %v780 = vadd.f32 %v741, %v754
        %v781 = vadd.f32 %v742, %v754
        %v782 = vadd.f32 %v743, %v754
        %v783 = vadd.f32 %v744, %v754
        %v784 = vadd.f32 %v745, %v754
        %v785 = vadd.f32 %v746, %v754
        %v786 = vadd.f32 %v747, %v754
        %v787 = vadd.f32 %v748, %v754
        %v788 = vmax.f32 %v756, 0.0
        %v789 = vmax.f32 %v757, 0.0
        %v790 = vmax.f32 %v758, 0.0
        %v791 = vmax.f32 %v759, 0.0
        %v792 = vmax.f32 %v760, 0.0
        %v793 = vmax.f32 %v761, 0.0
        %v794 = vmax.f32 %v762, 0.0
        %v795 = vmax.f32 %v763, 0.0
        %v796 = vmax.f32 %v764, 0.0
        %v797 = vmax.f32 %v765, 0.0
        %v798 = vmax.f32 %v766, 0.0
        %v799 = vmax.f32 %v767, 0.0
        %v800 = vmax.f32 %v768, 0.0
        %v801 = vmax.f32 %v769, 0.0
        %v802 = vmax.f32 %v770, 0.0
        %v803 = vmax.f32 %v771, 0.0
        %v804 = vmax.f32 %v772, 0.0
        %v805 = vmax.f32 %v773, 0.0
        %v806 = vmax.f32 %v774, 0.0
        %v807 = vmax.f32 %v775, 0.0
        %v808 = vmax.f32 %v776, 0.0
        %v809 = vmax.f32 %v777, 0.0
        %v810 = vmax.f32 %v778, 0.0
        %v811 = vmax.f32 %v779, 0.0
        %v812 = vmax.f32 %v780, 0.0
        %v813 = vmax.f32 %v781, 0.0
        %v814 = vmax.f32 %v782, 0.0
        %v815 = vmax.f32 %v783, 0.0
        %v816 = vmax.f32 %v784, 0.0
        %v817 = vmax.f32 %v785, 0.0
        %v818 = vmax.f32 %v786, 0.0
        %v819 = vmax.f32 %v787, 0.0
        %v820 = vpack.c.bf16 %v789, %v788
        %v821 = vpack.c.bf16 %v791, %v790
        %v822 = vpack.c.bf16 %v793, %v792
        %v823 = vpack.c.bf16 %v795, %v794
        %v824 = vpack.c.bf16 %v797, %v796
        %v825 = vpack.c.bf16 %v799, %v798
        %v826 = vpack.c.bf16 %v801, %v800
        %v827 = vpack.c.bf16 %v803, %v802
        %v828 = vpack.c.bf16 %v805, %v804
        %v829 = vpack.c.bf16 %v807, %v806
        %v830 = vpack.c.bf16 %v809, %v808
        %v831 = vpack.c.bf16 %v811, %v810
        %v832 = vpack.c.bf16 %v813, %v812
        %v833 = vpack.c.bf16 %v815, %v814
        %v834 = vpack.c.bf16 %v817, %v816
        %v835 = vpack.c.bf16 %v819, %v818
        %v852 = vunpack.c.l.b16 %v820
        %v853 = vunpack.c.h.b16 %v820
        %v854 = vunpack.c.l.b16 %v821
        %v855 = vunpack.c.h.b16 %v821
        %v856 = vunpack.c.l.b16 %v822
        %v857 = vunpack.c.h.b16 %v822
        %v858 = vunpack.c.l.b16 %v823
        %v859 = vunpack.c.h.b16 %v823
        %v860 = vunpack.c.l.b16 %v824
        %v861 = vunpack.c.h.b16 %v824
        %v862 = vunpack.c.l.b16 %v825
        %v863 = vunpack.c.h.b16 %v825
        %v864 = vunpack.c.l.b16 %v826
        %v865 = vunpack.c.h.b16 %v826
        %v866 = vunpack.c.l.b16 %v827
        %v867 = vunpack.c.h.b16 %v827
        %v868 = vunpack.c.l.b16 %v828
        %v869 = vunpack.c.h.b16 %v828
        %v870 = vunpack.c.l.b16 %v829
        %v871 = vunpack.c.h.b16 %v829
        %v872 = vunpack.c.l.b16 %v830
        %v873 = vunpack.c.h.b16 %v830
        %v874 = vunpack.c.l.b16 %v831
        %v875 = vunpack.c.h.b16 %v831
        %v876 = vunpack.c.l.b16 %v832
        %v877 = vunpack.c.h.b16 %v832
        %v878 = vunpack.c.l.b16 %v833
        %v879 = vunpack.c.h.b16 %v833
        %v880 = vunpack.c.l.b16 %v834
        %v881 = vunpack.c.h.b16 %v834
        %v882 = vunpack.c.l.b16 %v835
        %v883 = vunpack.c.h.b16 %v835
        %v884 = vpack.c.b16 %v852, %v852
        %v885 = vpack.c.b16 %v853, %v853
        %v886 = vpack.c.b16 %v854, %v854
        %v887 = vpack.c.b16 %v855, %v855
        %v888 = vpack.c.b16 %v856, %v856
        %v889 = vpack.c.b16 %v857, %v857
        %v890 = vpack.c.b16 %v858, %v858
        %v891 = vpack.c.b16 %v859, %v859
        %v892 = vpack.c.b16 %v860, %v860
        %v893 = vpack.c.b16 %v861, %v861
        %v894 = vpack.c.b16 %v862, %v862
        %v895 = vpack.c.b16 %v863, %v863
        %v896 = vpack.c.b16 %v864, %v864
        %v897 = vpack.c.b16 %v865, %v865
        %v898 = vpack.c.b16 %v866, %v866
        %v899 = vpack.c.b16 %v867, %v867
        %v900 = vpack.c.b16 %v868, %v868
        %v901 = vpack.c.b16 %v869, %v869
        %v902 = vpack.c.b16 %v870, %v870
        %v903 = vpack.c.b16 %v871, %v871
        %v904 = vpack.c.b16 %v872, %v872
        %v905 = vpack.c.b16 %v873, %v873
        %v906 = vpack.c.b16 %v874, %v874
        %v907 = vpack.c.b16 %v875, %v875
        %v908 = vpack.c.b16 %v876, %v876
        %v909 = vpack.c.b16 %v877, %v877
        %v910 = vpack.c.b16 %v878, %v878
        %v911 = vpack.c.b16 %v879, %v879
        %v912 = vpack.c.b16 %v880, %v880
        %v913 = vpack.c.b16 %v881, %v881
        %v914 = vpack.c.b16 %v882, %v882
        %v915 = vpack.c.b16 %v883, %v883
        %948 = vst [vmem:[%s252] sm:$0xf] %v884
        %949 = vst [vmem:[%s252 + $0x4] sm:$0xf] %v885
        %950 = vst [vmem:[%s252 + $0x8] sm:$0xf] %v886
        %951 = vst [vmem:[%s252 + $0xc] sm:$0xf] %v887
        %952 = vst [vmem:[%s252 + $0x10] sm:$0xf] %v888
        %953 = vst [vmem:[%s252 + $0x14] sm:$0xf] %v889
        %954 = vst [vmem:[%s252 + $0x18] sm:$0xf] %v890
        %955 = vst [vmem:[%s252 + $0x1c] sm:$0xf] %v891
        %956 = vst [vmem:[%s252 + $0x20] sm:$0xf] %v892
        %957 = vst [vmem:[%s252 + $0x24] sm:$0xf] %v893
        %958 = vst [vmem:[%s252 + $0x28] sm:$0xf] %v894
        %959 = vst [vmem:[%s252 + $0x2c] sm:$0xf] %v895
        %960 = vst [vmem:[%s252 + $0x30] sm:$0xf] %v896
        %961 = vst [vmem:[%s252 + $0x34] sm:$0xf] %v897
        %962 = vst [vmem:[%s252 + $0x38] sm:$0xf] %v898
        %963 = vst [vmem:[%s252 + $0x3c] sm:$0xf] %v899
        %964 = vst [vmem:[%s252 + $0x40] sm:$0xf] %v900
        %965 = vst [vmem:[%s252 + $0x44] sm:$0xf] %v901
        %966 = vst [vmem:[%s252 + $0x48] sm:$0xf] %v902
        %967 = vst [vmem:[%s252 + $0x4c] sm:$0xf] %v903
        %968 = vst [vmem:[%s252 + $0x50] sm:$0xf] %v904
        %969 = vst [vmem:[%s252 + $0x54] sm:$0xf] %v905
        %970 = vst [vmem:[%s252 + $0x58] sm:$0xf] %v906
        %971 = vst [vmem:[%s252 + $0x5c] sm:$0xf] %v907
        %972 = vst [vmem:[%s252 + $0x60] sm:$0xf] %v908
        %973 = vst [vmem:[%s252 + $0x64] sm:$0xf] %v909
        %974 = vst [vmem:[%s252 + $0x68] sm:$0xf] %v910
        %975 = vst [vmem:[%s252 + $0x6c] sm:$0xf] %v911
        %976 = vst [vmem:[%s252 + $0x70] sm:$0xf] %v912
        %977 = vst [vmem:[%s252 + $0x74] sm:$0xf] %v913
        %978 = vst [vmem:[%s252 + $0x78] sm:$0xf] %v914
        %979 = vst [vmem:[%s252 + $0x7c] sm:$0xf] %v915
      $region40: #{deeplab_forward.16} parent=31 // pred_fallthru
        _
      %s980 = smul.u32 32, %s19
      %p981 = scmp.lt.s32.totalorder %s980, 63
      %s982 = scalar_select %p981, %s980, 63
      %p983 = scmp.lt.s32.totalorder %s20, 0
      %s984 = scalar_select %p983, %s20, 0
      %s985 = sadd.s32 %s984, %s982
      %s986 = smul.addr %s985, 4
      %s987 = scalar_lea.vmem %s3, %s986
      // Predicated region
      $region41: #{deeplab_forward.16} parent=31 // pred_check
        %p988 = pneg %p135
      $region42: #{deeplab_forward.16} parent=31 // pred_check_branch
        %990 = sbr.rel (%p988) target = $region44
      $region43: #{deeplab_forward.16} parent=31 // pred_region
        %s991 = smul.u32 32, %s19
      $region44: #{deeplab_forward.16} parent=31 // pred_fallthru
        _
    $region32: #{deeplab_forward.16} parent=5 // pred_fallthru
      _
    %p992 = scmp.le.s32.totalorder 2, %s9
    // Predicated region
    $region45: #{deeplab_forward.16} parent=5 // pred_check
      %p993 = pneg %p992
    $region46: #{deeplab_forward.16} parent=5 // pred_check_branch
      %995 = sbr.rel (%p993) target = $region48
    $region47: #{deeplab_forward.16} parent=5 // pred_region
      %s996 = ssub.s32 %s9, 2
      // Predicated region
      $region49: #{deeplab_forward.16} parent=47 // pred_check
        %p997 = pneg %p141
      $region50: #{deeplab_forward.16} parent=47 // pred_check_branch
        %999 = sbr.rel (%p997) target = $region52
      $region51: #{deeplab_forward.16} parent=47 // pred_region
        %s1000 = smul.u32 32, %s22
        %p1001 = scmp.lt.s32.totalorder %s1000, 63
        %s1002 = scalar_select %p1001, %s1000, 63
        %p1003 = scmp.lt.s32.totalorder %s23, 0
        %s1004 = scalar_select %p1003, %s23, 0
        %s1005 = sadd.s32 %s1004, %s1002
        %s1006 = smul.addr %s1005, 4
        %s1007 = scalar_lea.vmem %s3, %s1006
      $region52: #{deeplab_forward.16} parent=47 // pred_fallthru
        _
    $region48: #{deeplab_forward.16} parent=5 // pred_fallthru
      _
  $region6: #{deeplab_forward.16} parent=0 // loop_footer
    %s13 = sadd.s32 1, %s9
  $region7: #{deeplab_forward.16} parent=0 // loop_footer_branch
    %8 = sbr.rel target = $region3
  $region8: #{deeplab_forward.16} parent=0 // loop_exit
    _

// kernel: deeplab_forward.18
$region0: #{deeplab_forward.18}
  #allocation0 [shape = 'u32[]', space=smem, size = 0x4, offset = 0x4, fixed_abs, tag = 'smem constant byte address 0x4 - core index']
  #allocation1 [shape = 'u32[144,128]{1,0:T(1,128)}', space=vmem, size = 0x12000, scoped, tag = 'internal scratch']
  #allocation2 [shape = 'f32[16,32]{1,0:T(8,128)}', space=vmem, size = 0x2000, scoped, tag = 'scratch operand']
  %s0 = inlined_call_operand.vmem [shape: bf16[2,18,18,32], index: 0, kind: input, shape index: {}]
  %s1 = inlined_call_operand.vmem [shape: bf16[3,3,32,32], index: 1, kind: input, shape index: {}]
  %s2 = inlined_call_operand.vmem [shape: f32[1,32], index: 2, kind: input, shape index: {}]
  %s3 = inlined_call_operand.vmem [shape: bf16[2,16,16,32], index: 3, kind: output, shape index: {}]
  %s4 = sld [smem:[#allocation0]]
  $region53: #{deeplab_forward.18} parent=0
    _
  %s6 = ssub.s32 1, %s4
  %s7 = scalar_select 0, %s6, %s4
  loop: start=0, step=1, limit=98
  $region2: #{deeplab_forward.18} parent=0 // loop_pre_header
    _
  $region3: #{deeplab_forward.18} parent=0 // loop_header
    %s9 = sphi 0, %s13
    %p10 = scmp.ge.s32.totalorder %s9, 98
    %s16 = sphi 0, %s35
    %s17 = sphi 0, %s31
    %s18 = sphi 0, %s27
    %s19 = sphi 0, %s16
    %s20 = sphi 0, %s17
    %s21 = sphi 0, %s18
    %s22 = sphi 0, %s19
    %s23 = sphi 0, %s20
    %s24 = sphi 0, %s21
    %s42 = sphi 0, %s44
    %s45 = sphi 0, %s42
    %s46 = sphi 0, %s45
    %s62 = sphi 0, %s46
    %s68 = sphi 0, %s70
    %s71 = sphi 0, %s68
    %s72 = sphi 0, %s71
    %s88 = sphi 0, %s72
    %s92 = sphi 0, %s92
    %s94 = sphi 0, %s92
    %s95 = sphi 0, %s94
    %s109 = sphi 0, %s95
    %s117 = sphi 0, %s119
    %s120 = sphi 0, %s117
    %s121 = sphi 0, %s120
    %s137 = sphi 0, %s121
  $region4: #{deeplab_forward.18} parent=0 // loop_header_branch
    %12 = sbr.rel (%p10) target = $region8
  $region5: #{deeplab_forward.18} parent=0 // loop_body
    %s14 = ssub.s32 %s9, 1
    %s15 = ssub.s32 %s9, 2
    %s25 = sadd.s32 1, %s18
    %p26 = scmp.ge.s32.totalorder %s25, 3
    %s27 = scalar_select %p26, 0, %s25
    %s28 = sadd.s32 1, %s17
    %s29 = scalar_select %p26, %s28, %s17
    %p30 = scmp.ge.s32.totalorder %s29, 16
    %s31 = scalar_select %p30, 0, %s29
    %s32 = sadd.s32 1, %s16
    %s33 = scalar_select %p30, %s32, %s16
    %p34 = scmp.ge.s32.totalorder %s33, 2
    %s35 = scalar_select %p34, 0, %s33
    %s36 = sadd.s32 %s17, %s18
    %s37 = sadd.s32 %s31, %s27
    %s38 = ssub.s32 %s16, %s35
    %s39 = ssub.s32 %s36, %s37
    %s40 = sor.u32 %s38, %s39
    %p41 = scmp.eq.s32.totalorder %s40, 0
    %s43 = sadd.s32 %s42, 1
    %s44 = scalar_select %p41, %s42, %s43
    %p47 = pneg %p41
    %p48 = scmp.eq.s32.totalorder %s9, 95
    %p49 = por %p47, %p48
    %p50 = scmp.ne.s32.totalorder %s42, %s45
    %p51 = scmp.eq.s32.totalorder %s9, 0
    %p52 = por %p50, %p51
    %p53 = scmp.ne.s32.totalorder %s42, %s45
    %p54 = scmp.eq.s32.totalorder %s14, 95
    %p55 = por %p53, %p54
    %p56 = scmp.ne.s32.totalorder %s45, %s46
    %p57 = scmp.eq.s32.totalorder %s14, 0
    %p58 = por %p56, %p57
    %p59 = scmp.ne.s32.totalorder %s45, %s46
    %p60 = scmp.eq.s32.totalorder %s15, 95
    %p61 = por %p59, %p60
    %p63 = scmp.ne.s32.totalorder %s46, %s62
    %p64 = scmp.eq.s32.totalorder %s15, 0
    %p65 = por %p63, %p64
    %s66 = ssub.s32 %s18, %s27
    %p67 = scmp.eq.s32.totalorder %s66, 0
    %s69 = sadd.s32 %s68, 1
    %s70 = scalar_select %p67, %s68, %s69
    %p73 = pneg %p67
    %p74 = scmp.eq.s32.totalorder %s9, 95
    %p75 = por %p73, %p74
    %p76 = scmp.ne.s32.totalorder %s68, %s71
    %p77 = scmp.eq.s32.totalorder %s9, 0
    %p78 = por %p76, %p77
    %p79 = scmp.ne.s32.totalorder %s68, %s71
    %p80 = scmp.eq.s32.totalorder %s14, 95
    %p81 = por %p79, %p80
    %p82 = scmp.ne.s32.totalorder %s71, %s72
    %p83 = scmp.eq.s32.totalorder %s14, 0
    %p84 = por %p82, %p83
    %p85 = scmp.ne.s32.totalorder %s71, %s72
    %p86 = scmp.eq.s32.totalorder %s15, 95
    %p87 = por %p85, %p86
    %p89 = scmp.ne.s32.totalorder %s72, %s88
    %p90 = scmp.eq.s32.totalorder %s15, 0
    %p91 = por %p89, %p90
    %s93 = sadd.s32 %s92, 1
    %p96 = scmp.eq.s32.totalorder %s9, 95
    %p97 = scmp.ne.s32.totalorder %s92, %s94
    %p98 = scmp.eq.s32.totalorder %s9, 0
    %p99 = por %p97, %p98
    %p100 = scmp.ne.s32.totalorder %s92, %s94
    %p101 = scmp.eq.s32.totalorder %s14, 95
    %p102 = por %p100, %p101
    %p103 = scmp.ne.s32.totalorder %s94, %s95
    %p104 = scmp.eq.s32.totalorder %s14, 0
    %p105 = por %p103, %p104
    %p106 = scmp.ne.s32.totalorder %s94, %s95
    %p107 = scmp.eq.s32.totalorder %s15, 95
    %p108 = por %p106, %p107
    %p110 = scmp.ne.s32.totalorder %s95, %s109
    %p111 = scmp.eq.s32.totalorder %s15, 0
    %p112 = por %p110, %p111
    %s113 = ssub.s32 %s16, %s35
    %s114 = ssub.s32 %s17, %s31
    %s115 = sor.u32 %s113, %s114
    %p116 = scmp.eq.s32.totalorder %s115, 0
    %s118 = sadd.s32 %s117, 1
    %s119 = scalar_select %p116, %s117, %s118
    %p122 = pneg %p116
    %p123 = scmp.eq.s32.totalorder %s9, 95
    %p124 = por %p122, %p123
    %p125 = scmp.ne.s32.totalorder %s117, %s120
    %p126 = scmp.eq.s32.totalorder %s9, 0
    %p127 = por %p125, %p126
    %p128 = scmp.ne.s32.totalorder %s117, %s120
    %p129 = scmp.eq.s32.totalorder %s14, 95
    %p130 = por %p128, %p129
    %p131 = scmp.ne.s32.totalorder %s120, %s121
    %p132 = scmp.eq.s32.totalorder %s14, 0
    %p133 = por %p131, %p132
    %p134 = scmp.ne.s32.totalorder %s120, %s121
    %p135 = scmp.eq.s32.totalorder %s15, 95
    %p136 = por %p134, %p135
    %p138 = scmp.ne.s32.totalorder %s121, %s137
    %p139 = scmp.eq.s32.totalorder %s15, 0
    %p140 = por %p138, %p139
    %p141 = scmp.le.s32.totalorder 1, %s9
    %p142 = scmp.lt.s32.totalorder %s9, 97
    %p143 = pnand %p141, %p142
    %p144 = pneg %p143
    // Predicated region
    $region9: #{deeplab_forward.18} parent=5 // pred_check
      _
    $region10: #{deeplab_forward.18} parent=5 // pred_check_branch
      %146 = sbr.rel (%p143) target = $region12
    $region11: #{deeplab_forward.18} parent=5 // pred_region
      %s147 = ssub.s32 %s9, 1
      // Predicated region
      $region13: #{deeplab_forward.18} parent=11 // pred_check
        %p148 = pneg %p105
      $region14: #{deeplab_forward.18} parent=11 // pred_check_branch
        %150 = sbr.rel (%p148) target = $region16
      $region15: #{deeplab_forward.18} parent=11 // pred_region
        _
      $region16: #{deeplab_forward.18} parent=11 // pred_fallthru
        _
    $region12: #{deeplab_forward.18} parent=5 // pred_fallthru
      _
    %p151 = scmp.lt.s32.totalorder %s9, 96
    // Predicated region
    $region17: #{deeplab_forward.18} parent=5 // pred_check
      %p152 = pneg %p151
    $region18: #{deeplab_forward.18} parent=5 // pred_check_branch
      %154 = sbr.rel (%p152) target = $region20
    $region19: #{deeplab_forward.18} parent=5 // pred_region
      // Predicated region
      $region21: #{deeplab_forward.18} parent=19 // pred_check
        %p155 = pneg %p52
      $region22: #{deeplab_forward.18} parent=19 // pred_check_branch
        %157 = sbr.rel (%p155) target = $region24
      $region23: #{deeplab_forward.18} parent=19 // pred_region
        %s158 = sadd.s32 %s17, %s18
        %p159 = scmp.lt.s32.totalorder %s16, 1
        %s160 = scalar_select %p159, %s16, 1
        %p161 = scmp.lt.s32.totalorder %s158, 17
        %s162 = scalar_select %p161, %s158, 17
        %s163 = smul.addr %s162, 3
        %s164 = smul.addr %s160, 54
        %s165 = sadd.s32 %s163, %s164
        %s166 = smul.addr %s165, 4
        %s167 = scalar_lea.vmem %s0, %s166
        %s168 = sadd.s32 %s17, %s18
      $region24: #{deeplab_forward.18} parent=19 // pred_fallthru
        _
      // Predicated region
      $region25: #{deeplab_forward.18} parent=19 // pred_check
        %p169 = pneg %p78
      $region26: #{deeplab_forward.18} parent=19 // pred_check_branch
        %171 = sbr.rel (%p169) target = $region28
      $region27: #{deeplab_forward.18} parent=19 // pred_region
        %p172 = scmp.lt.s32.totalorder %s18, 2
        %s173 = scalar_select %p172, %s18, 2
        %s174 = smul.addr %s173, 12
        %s175 = smul.addr %s174, 4
        %s176 = scalar_lea.vmem %s1, %s175
      $region28: #{deeplab_forward.18} parent=19 // pred_fallthru
        _
    $region20: #{deeplab_forward.18} parent=5 // pred_fallthru
      _
    %p177 = scmp.le.s32.totalorder 1, %s9
    %p178 = scmp.lt.s32.totalorder %s9, 97
    %p179 = pnand %p177, %p178
    %p180 = pneg %p179
    // Predicated region
    $region29: #{deeplab_forward.18} parent=5 // pred_check
      _
    $region30: #{deeplab_forward.18} parent=5 // pred_check_branch
      %182 = sbr.rel (%p179) target = $region32
    $region31: #{deeplab_forward.18} parent=5 // pred_region
      %s183 = ssub.s32 %s9, 1
      %s184 = sadd.s32 %s20, %s21
      %p185 = scmp.lt.s32.totalorder %s19, 1
      %s186 = scalar_select %p185, %s19, 1
      %p187 = scmp.lt.s32.totalorder %s184, 17
      %s188 = scalar_select %p187, %s184, 17
      %s189 = smul.addr %s188, 3
      %s190 = smul.addr %s186, 54
      %s191 = sadd.s32 %s189, %s190
      %s192 = smul.addr %s191, 4
      %s193 = scalar_lea.vmem %s0, %s192
      %p194 = pneg %p58
      %p195 = pneg %p55
      %p196 = scmp.lt.s32.totalorder %s21, 2
      %s197 = scalar_select %p196, %s21, 2
      %s198 = smul.addr %s197, 12
      %s199 = smul.addr %s198, 4
      %s200 = scalar_lea.vmem %s1, %s199
      %p201 = pneg %p84
      %p202 = pneg %p81
      %p203 = pneg %p105
      %p204 = pneg %p102
      %p205 = pneg %p133
      %p206 = pneg %p130
      %p207 = scmp.lt.s32.totalorder %s19, 1
      %s208 = scalar_select %p207, %s19, 1
      %p209 = scmp.lt.s32.totalorder %s20, 15
      %s210 = scalar_select %p209, %s20, 15
      %s211 = smul.addr %s210, 2
      %s212 = smul.addr %s208, 32
      %s213 = sadd.s32 %s211, %s212
      %s214 = smul.addr %s213, 4
      %s215 = scalar_lea.vmem %s3, %s214
      %s216 = sadd.s32 %s20, %s21
      %p217 = scmp.lt.s32.totalorder %s19, 1
      %s218 = scalar_select %p217, %s19, 1
      %p219 = scmp.lt.s32.totalorder %s216, 17
      %s220 = scalar_select %p219, %s216, 17
      %s221 = smul.addr %s220, 3
      %s222 = smul.addr %s218, 54
      %s223 = sadd.s32 %s221, %s222
      %s224 = smul.addr %s223, 4
      %s225 = scalar_lea.vmem %s0, %s224
      %s226 = sadd.s32 %s20, %s21
      %p227 = scmp.lt.s32.totalorder %s21, 2
      %s228 = scalar_select %p227, %s21, 2
      %s229 = smul.addr %s228, 12
      %s230 = smul.addr %s229, 4
      %s231 = scalar_lea.vmem %s1, %s230
      %p232 = scmp.lt.s32.totalorder %s19, 1
      %s233 = scalar_select %p232, %s19, 1
      %p234 = scmp.lt.s32.totalorder %s20, 15
      %s235 = scalar_select %p234, %s20, 15
      %s236 = smul.addr %s235, 2
      %s237 = smul.addr %s233, 32
      %s238 = sadd.s32 %s236, %s237
      %s239 = smul.addr %s238, 4
      %s240 = scalar_lea.vmem %s3, %s239
      %p242 = scmp.eq.s32.totalorder %s21, 0
      // Predicated region
      $region33: #{deeplab_forward.18} parent=31 // pred_check
        %p243 = pneg %p242
      $region34: #{deeplab_forward.18} parent=31 // pred_check_branch
        %245 = sbr.rel (%p243) target = $region36
      $region35: #{deeplab_forward.18} parent=31 // pred_region
        %vm246 = vcmask 261120
        %247 = vst.msk [vmem:[#allocation2] sm:$0xff] %vm246, 0.0
        %248 = vst.msk [vmem:[#allocation2 + $0x8] sm:$0xff] %vm246, 0.0
      $region36: #{deeplab_forward.18} parent=31 // pred_fallthru
        _
      %v249 = vld [vmem:[#allocation2] sm:$0xff]
      %v250 = vld [vmem:[#allocation2 + $0x8] sm:$0xff]
      %v251 = vld [vmem:[%s225] sm:$0xf]
      %v252 = vld [vmem:[%s225 + $0x4] sm:$0xf]
      %v253 = vld [vmem:[%s231] sm:$0xf]
      %v254 = vld [vmem:[%s231 + $0x4] sm:$0xf]
      %v255 = vld [vmem:[%s231 + $0x8] sm:$0xf]
      %v256 = vld [vmem:[%s231 + $0xc] sm:$0xf]
      %v259 = vunpack.c.l.b16 %v251
      %v260 = vunpack.c.l.b16 %v252
      %v261 = vpack.c.b16 %v260, %v259
      %v266 = vunpack.c.l.b16 %v253
      %v267 = vunpack.c.l.b16 %v254
      %v268 = vunpack.c.l.b16 %v255
      %v269 = vunpack.c.l.b16 %v256
      %v270 = vpack.c.b16 %v267, %v266
      %v271 = vpack.c.b16 %v269, %v268
      %vm274 = vcmask 261120
      %v276 = vsel %vm274, %v261, 0
      %278 = vmatprep.subr.bf16.mxu0 0
      %279 = vmatpush1.bf16.msra.mxu0 0
      %280 = vmatprep.subr.bf16.mxu0 0
      %281 = vmatpush1.bf16.msra.mxu0 0
      %282 = vmatprep.subr.bf16.mxu0 0
      %283 = vmatpush1.bf16.msra.mxu0 0
      %284 = vmatprep.subr.bf16.mxu0 0
      %285 = vmatpush1.bf16.msra.mxu0 0
      %286 = vmatprep.subr.bf16.mxu0 0
      %287 = vmatpush1.bf16.msra.mxu0 0
      %288 = vmatprep.subr.bf16.mxu0 0
      %289 = vmatpush1.bf16.msra.mxu0 0
      %290 = vmatprep.subr.bf16.mxu0 0
      %291 = vmatpush1.bf16.msra.mxu0 %v271
      %292 = vmatprep.subr.bf16.mxu0 0
      %293 = vmatpush1.bf16.msra.mxu0 %v270
      %294 = vmatprep.subr.bf16.mxu0 0
      %295 = vmatpush2.bf16.msra.mxu0 0
      %296 = vmatprep.subr.bf16.mxu0 0
      %297 = vmatpush2.bf16.msra.mxu0 0
      %298 = vmatprep.subr.bf16.mxu0 0
      %299 = vmatpush2.bf16.msra.mxu0 0
      %300 = vmatprep.subr.bf16.mxu0 0
      %301 = vmatpush2.bf16.msra.mxu0 0
      %302 = vmatprep.subr.bf16.mxu0 0
      %303 = vmatpush2.bf16.msra.mxu0 0
      %304 = vmatprep.subr.bf16.mxu0 0
      %305 = vmatpush2.bf16.msra.mxu0 0
      %306 = vmatprep.subr.bf16.mxu0 0
      %307 = vmatpush2.bf16.msra.mxu0 0
      %308 = vmatprep.subr.bf16.mxu0 0
      %309 = vmatpush2.bf16.msra.mxu0 0
      %310 = vmatprep.mubr.bf16.mxu0 0
      %311 = vmatmul.mubr.bf16.gmra.mxu0 %v276
      %v312 = vpop.f32.mrf.mxu0
      %v313 = vadd.f32 0.0, %v312
      %v314 = vpop.f32.mrf.mxu0
      %v315 = vpop.f32.mrf.mxu0
      %v316 = vadd.f32 0.0, %v315
      %v317 = vpop.f32.mrf.mxu0
      %318 = vdwg.mxu0
      %v319 = vadd.f32 %v249, %v313
      %v320 = vadd.f32 %v250, %v316
      %v321 = vld [vmem:[%s225] sm:$0xf]
      %v322 = vld [vmem:[%s225 + $0x4] sm:$0xf]
      %v323 = vld [vmem:[%s225 + $0x8] sm:$0x1]
      %s324 = scalar_lea.vmem %s231, 16
      %v325 = vld [vmem:[%s324] sm:$0xf]
      %v326 = vld [vmem:[%s324 + $0x4] sm:$0xf]
      %v327 = vld [vmem:[%s324 + $0x8] sm:$0xf]
      %v328 = vld [vmem:[%s324 + $0xc] sm:$0xf]
      %v332 = vunpack.c.l.b16 %v321
      %v333 = vunpack.c.l.b16 %v322
      %v334 = vunpack.c.l.b16 %v323
      %v335 = vpack.c.b16 %v333, %v332
      %v336 = vpack.c.b16 %v334, %v334
      %vm337 = vsmask.f32 7424
      %v339 = vshrl.u32 %v335, 16
      %v341 = vshll.u32 %v335, 16
      %v343 = vrot.slane %v341, 1
      %v344 = vor.u32 %v339, %v343
      %v346 = vshll.u32 %v336, 16
      %v348 = vrot.slane %v346, 1
      %v349 = vsel %vm337, %v344, %v348
      %v354 = vunpack.c.l.b16 %v325
      %v355 = vunpack.c.l.b16 %v326
      %v356 = vunpack.c.l.b16 %v327
      %v357 = vunpack.c.l.b16 %v328
      %v358 = vpack.c.b16 %v355, %v354
      %v359 = vpack.c.b16 %v357, %v356
      %v363 = vsel %vm274, %v349, 0
      %365 = vmatprep.subr.bf16.mxu0 0
      %366 = vmatpush1.bf16.msra.mxu0 0
      %367 = vmatprep.subr.bf16.mxu0 0
      %368 = vmatpush1.bf16.msra.mxu0 0
      %369 = vmatprep.subr.bf16.mxu0 0
      %370 = vmatpush1.bf16.msra.mxu0 0
      %371 = vmatprep.subr.bf16.mxu0 0
      %372 = vmatpush1.bf16.msra.mxu0 0
      %373 = vmatprep.subr.bf16.mxu0 0
      %374 = vmatpush1.bf16.msra.mxu0 0
      %375 = vmatprep.subr.bf16.mxu0 0
      %376 = vmatpush1.bf16.msra.mxu0 0
      %377 = vmatprep.subr.bf16.mxu0 0
      %378 = vmatpush1.bf16.msra.mxu0 %v359
      %379 = vmatprep.subr.bf16.mxu0 0
      %380 = vmatpush1.bf16.msra.mxu0 %v358
      %381 = vmatprep.subr.bf16.mxu0 0
      %382 = vmatpush2.bf16.msra.mxu0 0
      %383 = vmatprep.subr.bf16.mxu0 0
      %384 = vmatpush2.bf16.msra.mxu0 0
      %385 = vmatprep.subr.bf16.mxu0 0
      %386 = vmatpush2.bf16.msra.mxu0 0
      %387 = vmatprep.subr.bf16.mxu0 0
      %388 = vmatpush2.bf16.msra.mxu0 0
      %389 = vmatprep.subr.bf16.mxu0 0
      %390 = vmatpush2.bf16.msra.mxu0 0
      %391 = vmatprep.subr.bf16.mxu0 0
      %392 = vmatpush2.bf16.msra.mxu0 0
      %393 = vmatprep.subr.bf16.mxu0 0
      %394 = vmatpush2.bf16.msra.mxu0 0
      %395 = vmatprep.subr.bf16.mxu0 0
      %396 = vmatpush2.bf16.msra.mxu0 0
      %397 = vmatprep.mubr.bf16.mxu0 0
      %398 = vmatmul.mubr.bf16.gmra.mxu0 %v363
      %v399 = vpop.f32.mrf.mxu0
      %v400 = vadd.f32 0.0, %v399
      %v401 = vpop.f32.mrf.mxu0
      %v402 = vpop.f32.mrf.mxu0
      %v403 = vadd.f32 0.0, %v402
      %v404 = vpop.f32.mrf.mxu0
      %405 = vdwg.mxu0
      %v406 = vadd.f32 %v319, %v400
      %v407 = vadd.f32 %v320, %v403
      %v408 = vld [vmem:[%s225] sm:$0xe]
      %s409 = scalar_lea.vmem %s231, 32
      %v410 = vld [vmem:[%s409] sm:$0xf]
      %v411 = vld [vmem:[%s409 + $0x4] sm:$0xf]
      %v412 = vld [vmem:[%s409 + $0x8] sm:$0xf]
      %v413 = vld [vmem:[%s409 + $0xc] sm:$0xf]
      %v415 = vunpack.c.l.b16 %v408
      %v416 = vpack.c.b16 %v333, %v415
      %vm417 = vcmask 1046528
      %v418 = vrot.slane %v416, 1
      %v419 = vrot.slane %v336, 1
      %v420 = vsel %vm417, %v418, %v419
      %v425 = vunpack.c.l.b16 %v410
      %v426 = vunpack.c.l.b16 %v411
      %v427 = vunpack.c.l.b16 %v412
      %v428 = vunpack.c.l.b16 %v413
      %v429 = vpack.c.b16 %v426, %v425
      %v430 = vpack.c.b16 %v428, %v427
      %v434 = vsel %vm274, %v420, 0
      %436 = vmatprep.subr.bf16.mxu0 0
      %437 = vmatpush1.bf16.msra.mxu0 0
      %438 = vmatprep.subr.bf16.mxu0 0
      %439 = vmatpush1.bf16.msra.mxu0 0
      %440 = vmatprep.subr.bf16.mxu0 0
      %441 = vmatpush1.bf16.msra.mxu0 0
      %442 = vmatprep.subr.bf16.mxu0 0
      %443 = vmatpush1.bf16.msra.mxu0 0
      %444 = vmatprep.subr.bf16.mxu0 0
      %445 = vmatpush1.bf16.msra.mxu0 0
      %446 = vmatprep.subr.bf16.mxu0 0
      %447 = vmatpush1.bf16.msra.mxu0 0
      %448 = vmatprep.subr.bf16.mxu0 0
      %449 = vmatpush1.bf16.msra.mxu0 %v430
      %450 = vmatprep.subr.bf16.mxu0 0
      %451 = vmatpush1.bf16.msra.mxu0 %v429
      %452 = vmatprep.subr.bf16.mxu0 0
      %453 = vmatpush2.bf16.msra.mxu0 0
      %454 = vmatprep.subr.bf16.mxu0 0
      %455 = vmatpush2.bf16.msra.mxu0 0
      %456 = vmatprep.subr.bf16.mxu0 0
      %457 = vmatpush2.bf16.msra.mxu0 0
      %458 = vmatprep.subr.bf16.mxu0 0
      %459 = vmatpush2.bf16.msra.mxu0 0
      %460 = vmatprep.subr.bf16.mxu0 0
      %461 = vmatpush2.bf16.msra.mxu0 0
      %462 = vmatprep.subr.bf16.mxu0 0
      %463 = vmatpush2.bf16.msra.mxu0 0
      %464 = vmatprep.subr.bf16.mxu0 0
      %465 = vmatpush2.bf16.msra.mxu0 0
      %466 = vmatprep.subr.bf16.mxu0 0
      %467 = vmatpush2.bf16.msra.mxu0 0
      %468 = vmatprep.mubr.bf16.mxu0 0
      %469 = vmatmul.mubr.bf16.gmra.mxu0 %v434
      %v470 = vpop.f32.mrf.mxu0
      %v471 = vadd.f32 0.0, %v470
      %v472 = vpop.f32.mrf.mxu0
      %v473 = vpop.f32.mrf.mxu0
      %v474 = vadd.f32 0.0, %v473
      %v475 = vpop.f32.mrf.mxu0
      %476 = vdwg.mxu0
      %v477 = vadd.f32 %v406, %v471
      %v478 = vadd.f32 %v407, %v474
      %479 = vst.msk [vmem:[#allocation2] sm:$0xff] %vm274, %v477
      %480 = vst.msk [vmem:[#allocation2 + $0x8] sm:$0xff] %vm274, %v478
      %p481 = scmp.eq.s32.totalorder %s21, 2
      // Predicated region
      $region37: #{deeplab_forward.18} parent=31 // pred_check
        %p482 = pneg %p481
      $region38: #{deeplab_forward.18} parent=31 // pred_check_branch
        %484 = sbr.rel (%p482) target = $region40
      $region39: #{deeplab_forward.18} parent=31 // pred_region
        %v485 = vld [vmem:[#allocation2] sm:$0xff]
        %v486 = vld [vmem:[#allocation2 + $0x8] sm:$0xff]
        %v487 = vld [vmem:[%s2] sm:$0x1]
        %v489 = vlaneseq
        %v490 = vshrl.u32 %v489, 7
        %v491 = vsub.s32 0, %v490
        %v492 = vrot.slane %v487, %v491
        %v494 = vadd.f32 %v485, %v492
        %v495 = vadd.f32 %v486, %v492
        %v496 = vmax.f32 %v494, 0.0
        %v497 = vmax.f32 %v495, 0.0
        %v498 = vpack.c.bf16 %v497, %v496
        %v500 = vunpack.c.l.b16 %v498
        %v501 = vunpack.c.h.b16 %v498
        %v502 = vpack.c.b16 %v500, %v500
        %v503 = vpack.c.b16 %v501, %v501
        %vm506 = vcmask 257024
        %507 = vst.msk [vmem:[%s240] sm:$0xf] %vm506, %v502
        %508 = vst.msk [vmem:[%s240 + $0x4] sm:$0xf] %vm506, %v503
      $region40: #{deeplab_forward.18} parent=31 // pred_fallthru
        _
      %p509 = scmp.lt.s32.totalorder %s19, 1
      %s510 = scalar_select %p509, %s19, 1
      %p511 = scmp.lt.s32.totalorder %s20, 15
      %s512 = scalar_select %p511, %s20, 15
      %s513 = smul.addr %s512, 2
      %s514 = smul.addr %s510, 32
      %s515 = sadd.s32 %s513, %s514
      %s516 = smul.addr %s515, 4
      %s517 = scalar_lea.vmem %s3, %s516
      // Predicated region
      $region41: #{deeplab_forward.18} parent=31 // pred_check
        %p518 = pneg %p130
      $region42: #{deeplab_forward.18} parent=31 // pred_check_branch
        %520 = sbr.rel (%p518) target = $region44
      $region43: #{deeplab_forward.18} parent=31 // pred_region
        _
      $region44: #{deeplab_forward.18} parent=31 // pred_fallthru
        _
    $region32: #{deeplab_forward.18} parent=5 // pred_fallthru
      _
    %p521 = scmp.le.s32.totalorder 2, %s9
    // Predicated region
    $region45: #{deeplab_forward.18} parent=5 // pred_check
      %p522 = pneg %p521
    $region46: #{deeplab_forward.18} parent=5 // pred_check_branch
      %524 = sbr.rel (%p522) target = $region48
    $region47: #{deeplab_forward.18} parent=5 // pred_region
      %s525 = ssub.s32 %s9, 2
      // Predicated region
      $region49: #{deeplab_forward.18} parent=47 // pred_check
        %p526 = pneg %p136
      $region50: #{deeplab_forward.18} parent=47 // pred_check_branch
        %528 = sbr.rel (%p526) target = $region52
      $region51: #{deeplab_forward.18} parent=47 // pred_region
        %p529 = scmp.lt.s32.totalorder %s22, 1
        %s530 = scalar_select %p529, %s22, 1
        %p531 = scmp.lt.s32.totalorder %s23, 15
        %s532 = scalar_select %p531, %s23, 15
        %s533 = smul.addr %s532, 2
        %s534 = smul.addr %s530, 32
        %s535 = sadd.s32 %s533, %s534
        %s536 = smul.addr %s535, 4
        %s537 = scalar_lea.vmem %s3, %s536
      $region52: #{deeplab_forward.18} parent=47 // pred_fallthru
        _
    $region48: #{deeplab_forward.18} parent=5 // pred_fallthru
      _
  $region6: #{deeplab_forward.18} parent=0 // loop_footer
    %s13 = sadd.s32 1, %s9
  $region7: #{deeplab_forward.18} parent=0 // loop_footer_branch
    %8 = sbr.rel target = $region3
  $region8: #{deeplab_forward.18} parent=0 // loop_exit
    _

// kernel: deeplab_forward.17
$region0: #{deeplab_forward.17}
  #allocation0 [shape = 'u32[]', space=smem, size = 0x4, offset = 0x4, fixed_abs, tag = 'smem constant byte address 0x4 - core index']
  #allocation1 [shape = 'u32[144,128]{1,0:T(1,128)}', space=vmem, size = 0x12000, scoped, tag = 'internal scratch']
  #allocation2 [shape = 'f32[16,32]{1,0:T(8,128)}', space=vmem, size = 0x2000, scoped, tag = 'scratch operand']
  %s0 = inlined_call_operand.vmem [shape: bf16[2,18,18,32], index: 0, kind: input, shape index: {}]
  %s1 = inlined_call_operand.vmem [shape: bf16[2,18,18,16], index: 1, kind: input, shape index: {}]
  %s2 = inlined_call_operand.vmem [shape: bf16[3,3,32,32], index: 2, kind: input, shape index: {}]
  %s3 = inlined_call_operand.vmem [shape: bf16[3,3,16,32], index: 3, kind: input, shape index: {}]
  %s4 = inlined_call_operand.vmem [shape: f32[1,32], index: 4, kind: input, shape index: {}]
  %s5 = inlined_call_operand.vmem [shape: bf16[2,16,16,32], index: 5, kind: output, shape index: {}]
  %s6 = sld [smem:[#allocation0]]
  $region61: #{deeplab_forward.17} parent=0
    _
  %s8 = ssub.s32 1, %s6
  %s9 = scalar_select 0, %s8, %s6
  loop: start=0, step=1, limit=98
  $region2: #{deeplab_forward.17} parent=0 // loop_pre_header
    _
  $region3: #{deeplab_forward.17} parent=0 // loop_header
    %s11 = sphi 0, %s15
    %p12 = scmp.ge.s32.totalorder %s11, 98
    %s18 = sphi 0, %s37
    %s19 = sphi 0, %s33
    %s20 = sphi 0, %s29
    %s21 = sphi 0, %s18
    %s22 = sphi 0, %s19
    %s23 = sphi 0, %s20
    %s24 = sphi 0, %s21
    %s25 = sphi 0, %s22
    %s26 = sphi 0, %s23
    %s44 = sphi 0, %s46
    %s47 = sphi 0, %s44
    %s48 = sphi 0, %s47
    %s64 = sphi 0, %s48
    %s74 = sphi 0, %s76
    %s77 = sphi 0, %s74
    %s78 = sphi 0, %s77
    %s94 = sphi 0, %s78
    %s100 = sphi 0, %s102
    %s103 = sphi 0, %s100
    %s104 = sphi 0, %s103
    %s120 = sphi 0, %s104
    %s126 = sphi 0, %s128
    %s129 = sphi 0, %s126
    %s130 = sphi 0, %s129
    %s146 = sphi 0, %s130
    %s150 = sphi 0, %s150
    %s152 = sphi 0, %s150
    %s153 = sphi 0, %s152
    %s167 = sphi 0, %s153
    %s175 = sphi 0, %s177
    %s178 = sphi 0, %s175
    %s179 = sphi 0, %s178
    %s195 = sphi 0, %s179
  $region4: #{deeplab_forward.17} parent=0 // loop_header_branch
    %14 = sbr.rel (%p12) target = $region8
  $region5: #{deeplab_forward.17} parent=0 // loop_body
    %s16 = ssub.s32 %s11, 1
    %s17 = ssub.s32 %s11, 2
    %s27 = sadd.s32 1, %s20
    %p28 = scmp.ge.s32.totalorder %s27, 3
    %s29 = scalar_select %p28, 0, %s27
    %s30 = sadd.s32 1, %s19
    %s31 = scalar_select %p28, %s30, %s19
    %p32 = scmp.ge.s32.totalorder %s31, 16
    %s33 = scalar_select %p32, 0, %s31
    %s34 = sadd.s32 1, %s18
    %s35 = scalar_select %p32, %s34, %s18
    %p36 = scmp.ge.s32.totalorder %s35, 2
    %s37 = scalar_select %p36, 0, %s35
    %s38 = sadd.s32 %s19, %s20
    %s39 = sadd.s32 %s33, %s29
    %s40 = ssub.s32 %s18, %s37
    %s41 = ssub.s32 %s38, %s39
    %s42 = sor.u32 %s40, %s41
    %p43 = scmp.eq.s32.totalorder %s42, 0
    %s45 = sadd.s32 %s44, 1
    %s46 = scalar_select %p43, %s44, %s45
    %p49 = pneg %p43
    %p50 = scmp.eq.s32.totalorder %s11, 95
    %p51 = por %p49, %p50
    %p52 = scmp.ne.s32.totalorder %s44, %s47
    %p53 = scmp.eq.s32.totalorder %s11, 0
    %p54 = por %p52, %p53
    %p55 = scmp.ne.s32.totalorder %s44, %s47
    %p56 = scmp.eq.s32.totalorder %s16, 95
    %p57 = por %p55, %p56
    %p58 = scmp.ne.s32.totalorder %s47, %s48
    %p59 = scmp.eq.s32.totalorder %s16, 0
    %p60 = por %p58, %p59
    %p61 = scmp.ne.s32.totalorder %s47, %s48
    %p62 = scmp.eq.s32.totalorder %s17, 95
    %p63 = por %p61, %p62
    %p65 = scmp.ne.s32.totalorder %s48, %s64
    %p66 = scmp.eq.s32.totalorder %s17, 0
    %p67 = por %p65, %p66
    %s68 = sadd.s32 %s19, %s20
    %s69 = sadd.s32 %s33, %s29
    %s70 = ssub.s32 %s18, %s37
    %s71 = ssub.s32 %s68, %s69
    %s72 = sor.u32 %s70, %s71
    %p73 = scmp.eq.s32.totalorder %s72, 0
    %s75 = sadd.s32 %s74, 1
    %s76 = scalar_select %p73, %s74, %s75
    %p79 = pneg %p73
    %p80 = scmp.eq.s32.totalorder %s11, 95
    %p81 = por %p79, %p80
    %p82 = scmp.ne.s32.totalorder %s74, %s77
    %p83 = scmp.eq.s32.totalorder %s11, 0
    %p84 = por %p82, %p83
    %p85 = scmp.ne.s32.totalorder %s74, %s77
    %p86 = scmp.eq.s32.totalorder %s16, 95
    %p87 = por %p85, %p86
    %p88 = scmp.ne.s32.totalorder %s77, %s78
    %p89 = scmp.eq.s32.totalorder %s16, 0
    %p90 = por %p88, %p89
    %p91 = scmp.ne.s32.totalorder %s77, %s78
    %p92 = scmp.eq.s32.totalorder %s17, 95
    %p93 = por %p91, %p92
    %p95 = scmp.ne.s32.totalorder %s78, %s94
    %p96 = scmp.eq.s32.totalorder %s17, 0
    %p97 = por %p95, %p96
    %s98 = ssub.s32 %s20, %s29
    %p99 = scmp.eq.s32.totalorder %s98, 0
    %s101 = sadd.s32 %s100, 1
    %s102 = scalar_select %p99, %s100, %s101
    %p105 = pneg %p99
    %p106 = scmp.eq.s32.totalorder %s11, 95
    %p107 = por %p105, %p106
    %p108 = scmp.ne.s32.totalorder %s100, %s103
    %p109 = scmp.eq.s32.totalorder %s11, 0
    %p110 = por %p108, %p109
    %p111 = scmp.ne.s32.totalorder %s100, %s103
    %p112 = scmp.eq.s32.totalorder %s16, 95
    %p113 = por %p111, %p112
    %p114 = scmp.ne.s32.totalorder %s103, %s104
    %p115 = scmp.eq.s32.totalorder %s16, 0
    %p116 = por %p114, %p115
    %p117 = scmp.ne.s32.totalorder %s103, %s104
    %p118 = scmp.eq.s32.totalorder %s17, 95
    %p119 = por %p117, %p118
    %p121 = scmp.ne.s32.totalorder %s104, %s120
    %p122 = scmp.eq.s32.totalorder %s17, 0
    %p123 = por %p121, %p122
    %s124 = ssub.s32 %s20, %s29
    %p125 = scmp.eq.s32.totalorder %s124, 0
    %s127 = sadd.s32 %s126, 1
    %s128 = scalar_select %p125, %s126, %s127
    %p131 = pneg %p125
    %p132 = scmp.eq.s32.totalorder %s11, 95
    %p133 = por %p131, %p132
    %p134 = scmp.ne.s32.totalorder %s126, %s129
    %p135 = scmp.eq.s32.totalorder %s11, 0
    %p136 = por %p134, %p135
    %p137 = scmp.ne.s32.totalorder %s126, %s129
    %p138 = scmp.eq.s32.totalorder %s16, 95
    %p139 = por %p137, %p138
    %p140 = scmp.ne.s32.totalorder %s129, %s130
    %p141 = scmp.eq.s32.totalorder %s16, 0
    %p142 = por %p140, %p141
    %p143 = scmp.ne.s32.totalorder %s129, %s130
    %p144 = scmp.eq.s32.totalorder %s17, 95
    %p145 = por %p143, %p144
    %p147 = scmp.ne.s32.totalorder %s130, %s146
    %p148 = scmp.eq.s32.totalorder %s17, 0
    %p149 = por %p147, %p148
    %s151 = sadd.s32 %s150, 1
    %p154 = scmp.eq.s32.totalorder %s11, 95
    %p155 = scmp.ne.s32.totalorder %s150, %s152
    %p156 = scmp.eq.s32.totalorder %s11, 0
    %p157 = por %p155, %p156
    %p158 = scmp.ne.s32.totalorder %s150, %s152
    %p159 = scmp.eq.s32.totalorder %s16, 95
    %p160 = por %p158, %p159
    %p161 = scmp.ne.s32.totalorder %s152, %s153
    %p162 = scmp.eq.s32.totalorder %s16, 0
    %p163 = por %p161, %p162
    %p164 = scmp.ne.s32.totalorder %s152, %s153
    %p165 = scmp.eq.s32.totalorder %s17, 95
    %p166 = por %p164, %p165
    %p168 = scmp.ne.s32.totalorder %s153, %s167
    %p169 = scmp.eq.s32.totalorder %s17, 0
    %p170 = por %p168, %p169
    %s171 = ssub.s32 %s18, %s37
    %s172 = ssub.s32 %s19, %s33
    %s173 = sor.u32 %s171, %s172
    %p174 = scmp.eq.s32.totalorder %s173, 0
    %s176 = sadd.s32 %s175, 1
    %s177 = scalar_select %p174, %s175, %s176
    %p180 = pneg %p174
    %p181 = scmp.eq.s32.totalorder %s11, 95
    %p182 = por %p180, %p181
    %p183 = scmp.ne.s32.totalorder %s175, %s178
    %p184 = scmp.eq.s32.totalorder %s11, 0
    %p185 = por %p183, %p184
    %p186 = scmp.ne.s32.totalorder %s175, %s178
    %p187 = scmp.eq.s32.totalorder %s16, 95
    %p188 = por %p186, %p187
    %p189 = scmp.ne.s32.totalorder %s178, %s179
    %p190 = scmp.eq.s32.totalorder %s16, 0
    %p191 = por %p189, %p190
    %p192 = scmp.ne.s32.totalorder %s178, %s179
    %p193 = scmp.eq.s32.totalorder %s17, 95
    %p194 = por %p192, %p193
    %p196 = scmp.ne.s32.totalorder %s179, %s195
    %p197 = scmp.eq.s32.totalorder %s17, 0
    %p198 = por %p196, %p197
    %p199 = scmp.le.s32.totalorder 1, %s11
    %p200 = scmp.lt.s32.totalorder %s11, 97
    %p201 = pnand %p199, %p200
    %p202 = pneg %p201
    // Predicated region
    $region9: #{deeplab_forward.17} parent=5 // pred_check
      _
    $region10: #{deeplab_forward.17} parent=5 // pred_check_branch
      %204 = sbr.rel (%p201) target = $region12
    $region11: #{deeplab_forward.17} parent=5 // pred_region
      %s205 = ssub.s32 %s11, 1
      // Predicated region
      $region13: #{deeplab_forward.17} parent=11 // pred_check
        %p206 = pneg %p163
      $region14: #{deeplab_forward.17} parent=11 // pred_check_branch
        %208 = sbr.rel (%p206) target = $region16
      $region15: #{deeplab_forward.17} parent=11 // pred_region
        _
      $region16: #{deeplab_forward.17} parent=11 // pred_fallthru
        _
    $region12: #{deeplab_forward.17} parent=5 // pred_fallthru
      _
    %p209 = scmp.lt.s32.totalorder %s11, 96
    // Predicated region
    $region17: #{deeplab_forward.17} parent=5 // pred_check
      %p210 = pneg %p209
    $region18: #{deeplab_forward.17} parent=5 // pred_check_branch
      %212 = sbr.rel (%p210) target = $region20
    $region19: #{deeplab_forward.17} parent=5 // pred_region
      // Predicated region
      $region21: #{deeplab_forward.17} parent=19 // pred_check
        %p213 = pneg %p54
      $region22: #{deeplab_forward.17} parent=19 // pred_check_branch
        %215 = sbr.rel (%p213) target = $region24
      $region23: #{deeplab_forward.17} parent=19 // pred_region
        %s216 = sadd.s32 %s19, %s20
        %p217 = scmp.lt.s32.totalorder %s18, 1
        %s218 = scalar_select %p217, %s18, 1
        %p219 = scmp.lt.s32.totalorder %s216, 17
        %s220 = scalar_select %p219, %s216, 17
        %s221 = smul.addr %s220, 3
        %s222 = smul.addr %s218, 54
        %s223 = sadd.s32 %s221, %s222
        %s224 = smul.addr %s223, 4
        %s225 = scalar_lea.vmem %s0, %s224
        %s226 = sadd.s32 %s19, %s20
      $region24: #{deeplab_forward.17} parent=19 // pred_fallthru
        _
      // Predicated region
      $region25: #{deeplab_forward.17} parent=19 // pred_check
        %p227 = pneg %p84
      $region26: #{deeplab_forward.17} parent=19 // pred_check_branch
        %229 = sbr.rel (%p227) target = $region28
      $region27: #{deeplab_forward.17} parent=19 // pred_region
        %s230 = sadd.s32 %s19, %s20
        %p231 = scmp.lt.s32.totalorder %s18, 1
        %s232 = scalar_select %p231, %s18, 1
        %p233 = scmp.lt.s32.totalorder %s230, 17
        %s234 = scalar_select %p233, %s230, 17
        %s235 = smul.addr %s234, 3
        %s236 = smul.addr %s232, 54
        %s237 = sadd.s32 %s235, %s236
        %s238 = smul.addr %s237, 4
        %s239 = scalar_lea.vmem %s1, %s238
        %s240 = sadd.s32 %s19, %s20
      $region28: #{deeplab_forward.17} parent=19 // pred_fallthru
        _
      // Predicated region
      $region29: #{deeplab_forward.17} parent=19 // pred_check
        %p241 = pneg %p110
      $region30: #{deeplab_forward.17} parent=19 // pred_check_branch
        %243 = sbr.rel (%p241) target = $region32
      $region31: #{deeplab_forward.17} parent=19 // pred_region
        %p244 = scmp.lt.s32.totalorder %s20, 2
        %s245 = scalar_select %p244, %s20, 2
        %s246 = smul.addr %s245, 12
        %s247 = smul.addr %s246, 4
        %s248 = scalar_lea.vmem %s2, %s247
      $region32: #{deeplab_forward.17} parent=19 // pred_fallthru
        _
      // Predicated region
      $region33: #{deeplab_forward.17} parent=19 // pred_check
        %p249 = pneg %p136
      $region34: #{deeplab_forward.17} parent=19 // pred_check_branch
        %251 = sbr.rel (%p249) target = $region36
      $region35: #{deeplab_forward.17} parent=19 // pred_region
        %p252 = scmp.lt.s32.totalorder %s20, 2
        %s253 = scalar_select %p252, %s20, 2
        %s254 = smul.addr %s253, 6
        %s255 = smul.addr %s254, 4
        %s256 = scalar_lea.vmem %s3, %s255
      $region36: #{deeplab_forward.17} parent=19 // pred_fallthru
        _
    $region20: #{deeplab_forward.17} parent=5 // pred_fallthru
      _
    %p257 = scmp.le.s32.totalorder 1, %s11
    %p258 = scmp.lt.s32.totalorder %s11, 97
    %p259 = pnand %p257, %p258
    %p260 = pneg %p259
    // Predicated region
    $region37: #{deeplab_forward.17} parent=5 // pred_check
      _
    $region38: #{deeplab_forward.17} parent=5 // pred_check_branch
      %262 = sbr.rel (%p259) target = $region40
    $region39: #{deeplab_forward.17} parent=5 // pred_region
      %s263 = ssub.s32 %s11, 1
      %s264 = sadd.s32 %s22, %s23
      %p265 = scmp.lt.s32.totalorder %s21, 1
      %s266 = scalar_select %p265, %s21, 1
      %p267 = scmp.lt.s32.totalorder %s264, 17
      %s268 = scalar_select %p267, %s264, 17
      %s269 = smul.addr %s268, 3
      %s270 = smul.addr %s266, 54
      %s271 = sadd.s32 %s269, %s270
      %s272 = smul.addr %s271, 4
      %s273 = scalar_lea.vmem %s0, %s272
      %p274 = pneg %p60
      %p275 = pneg %p57
      %s276 = sadd.s32 %s22, %s23
      %p277 = scmp.lt.s32.totalorder %s21, 1
      %s278 = scalar_select %p277, %s21, 1
      %p279 = scmp.lt.s32.totalorder %s276, 17
      %s280 = scalar_select %p279, %s276, 17
      %s281 = smul.addr %s280, 3
      %s282 = smul.addr %s278, 54
      %s283 = sadd.s32 %s281, %s282
      %s284 = smul.addr %s283, 4
      %s285 = scalar_lea.vmem %s1, %s284
      %p286 = pneg %p90
      %p287 = pneg %p87
      %p288 = scmp.lt.s32.totalorder %s23, 2
      %s289 = scalar_select %p288, %s23, 2
      %s290 = smul.addr %s289, 12
      %s291 = smul.addr %s290, 4
      %s292 = scalar_lea.vmem %s2, %s291
      %p293 = pneg %p116
      %p294 = pneg %p113
      %p295 = scmp.lt.s32.totalorder %s23, 2
      %s296 = scalar_select %p295, %s23, 2
      %s297 = smul.addr %s296, 6
      %s298 = smul.addr %s297, 4
      %s299 = scalar_lea.vmem %s3, %s298
      %p300 = pneg %p142
      %p301 = pneg %p139
      %p302 = pneg %p163
      %p303 = pneg %p160
      %p304 = pneg %p191
      %p305 = pneg %p188
      %p306 = scmp.lt.s32.totalorder %s21, 1
      %s307 = scalar_select %p306, %s21, 1
      %p308 = scmp.lt.s32.totalorder %s22, 15
      %s309 = scalar_select %p308, %s22, 15
      %s310 = smul.addr %s309, 2
      %s311 = smul.addr %s307, 32
      %s312 = sadd.s32 %s310, %s311
      %s313 = smul.addr %s312, 4
      %s314 = scalar_lea.vmem %s5, %s313
      %s315 = sadd.s32 %s22, %s23
      %p316 = scmp.lt.s32.totalorder %s21, 1
      %s317 = scalar_select %p316, %s21, 1
      %p318 = scmp.lt.s32.totalorder %s315, 17
      %s319 = scalar_select %p318, %s315, 17
      %s320 = smul.addr %s319, 3
      %s321 = smul.addr %s317, 54
      %s322 = sadd.s32 %s320, %s321
      %s323 = smul.addr %s322, 4
      %s324 = scalar_lea.vmem %s0, %s323
      %s325 = sadd.s32 %s22, %s23
      %s326 = sadd.s32 %s22, %s23
      %p327 = scmp.lt.s32.totalorder %s21, 1
      %s328 = scalar_select %p327, %s21, 1
      %p329 = scmp.lt.s32.totalorder %s326, 17
      %s330 = scalar_select %p329, %s326, 17
      %s331 = smul.addr %s330, 3
      %s332 = smul.addr %s328, 54
      %s333 = sadd.s32 %s331, %s332
      %s334 = smul.addr %s333, 4
      %s335 = scalar_lea.vmem %s1, %s334
      %s336 = sadd.s32 %s22, %s23
      %p337 = scmp.lt.s32.totalorder %s23, 2
      %s338 = scalar_select %p337, %s23, 2
      %s339 = smul.addr %s338, 12
      %s340 = smul.addr %s339, 4
      %s341 = scalar_lea.vmem %s2, %s340
      %p342 = scmp.lt.s32.totalorder %s23, 2
      %s343 = scalar_select %p342, %s23, 2
      %s344 = smul.addr %s343, 6
      %s345 = smul.addr %s344, 4
      %s346 = scalar_lea.vmem %s3, %s345
      %p347 = scmp.lt.s32.totalorder %s21, 1
      %s348 = scalar_select %p347, %s21, 1
      %p349 = scmp.lt.s32.totalorder %s22, 15
      %s350 = scalar_select %p349, %s22, 15
      %s351 = smul.addr %s350, 2
      %s352 = smul.addr %s348, 32
      %s353 = sadd.s32 %s351, %s352
      %s354 = smul.addr %s353, 4
      %s355 = scalar_lea.vmem %s5, %s354
      %p357 = scmp.eq.s32.totalorder %s23, 0
      // Predicated region
      $region41: #{deeplab_forward.17} parent=39 // pred_check
        %p358 = pneg %p357
      $region42: #{deeplab_forward.17} parent=39 // pred_check_branch
        %360 = sbr.rel (%p358) target = $region44
      $region43: #{deeplab_forward.17} parent=39 // pred_region
        %vm361 = vcmask 261120
        %362 = vst.msk [vmem:[#allocation2] sm:$0xff] %vm361, 0.0
        %363 = vst.msk [vmem:[#allocation2 + $0x8] sm:$0xff] %vm361, 0.0
      $region44: #{deeplab_forward.17} parent=39 // pred_fallthru
        _
      %v364 = vld [vmem:[#allocation2] sm:$0xff]
      %v365 = vld [vmem:[#allocation2 + $0x8] sm:$0xff]
      %v366 = vld [vmem:[%s324] sm:$0xf]
      %v367 = vld [vmem:[%s324 + $0x4] sm:$0xf]
      %v368 = vld [vmem:[%s341] sm:$0xf]
      %v369 = vld [vmem:[%s341 + $0x4] sm:$0xf]
      %v370 = vld [vmem:[%s341 + $0x8] sm:$0xf]
      %v371 = vld [vmem:[%s341 + $0xc] sm:$0xf]
      %v374 = vunpack.c.l.b16 %v366
      %v375 = vunpack.c.l.b16 %v367
      %v376 = vpack.c.b16 %v375, %v374
      %v381 = vunpack.c.l.b16 %v368
      %v382 = vunpack.c.l.b16 %v369
      %v383 = vunpack.c.l.b16 %v370
      %v384 = vunpack.c.l.b16 %v371
      %v385 = vpack.c.b16 %v382, %v381
      %v386 = vpack.c.b16 %v384, %v383
      %vm389 = vcmask 261120
      %v391 = vsel %vm389, %v376, 0
      %393 = vmatprep.subr.bf16.mxu0 0
      %394 = vmatpush1.bf16.msra.mxu0 0
      %395 = vmatprep.subr.bf16.mxu0 0
      %396 = vmatpush1.bf16.msra.mxu0 0
      %397 = vmatprep.subr.bf16.mxu0 0
      %398 = vmatpush1.bf16.msra.mxu0 0
      %399 = vmatprep.subr.bf16.mxu0 0
      %400 = vmatpush1.bf16.msra.mxu0 0
      %401 = vmatprep.subr.bf16.mxu0 0
      %402 = vmatpush1.bf16.msra.mxu0 0
      %403 = vmatprep.subr.bf16.mxu0 0
      %404 = vmatpush1.bf16.msra.mxu0 0
      %405 = vmatprep.subr.bf16.mxu0 0
      %406 = vmatpush1.bf16.msra.mxu0 %v386
      %407 = vmatprep.subr.bf16.mxu0 0
      %408 = vmatpush1.bf16.msra.mxu0 %v385
      %409 = vmatprep.subr.bf16.mxu0 0
      %410 = vmatpush2.bf16.msra.mxu0 0
      %411 = vmatprep.subr.bf16.mxu0 0
      %412 = vmatpush2.bf16.msra.mxu0 0
      %413 = vmatprep.subr.bf16.mxu0 0
      %414 = vmatpush2.bf16.msra.mxu0 0
      %415 = vmatprep.subr.bf16.mxu0 0
      %416 = vmatpush2.bf16.msra.mxu0 0
      %417 = vmatprep.subr.bf16.mxu0 0
      %418 = vmatpush2.bf16.msra.mxu0 0
      %419 = vmatprep.subr.bf16.mxu0 0
      %420 = vmatpush2.bf16.msra.mxu0 0
      %421 = vmatprep.subr.bf16.mxu0 0
      %422 = vmatpush2.bf16.msra.mxu0 0
      %423 = vmatprep.subr.bf16.mxu0 0
      %424 = vmatpush2.bf16.msra.mxu0 0
      %425 = vmatprep.mubr.bf16.mxu0 0
      %426 = vmatmul.mubr.bf16.gmra.mxu0 %v391
      %v427 = vpop.f32.mrf.mxu0
      %v428 = vadd.f32 0.0, %v427
      %v429 = vpop.f32.mrf.mxu0
      %v430 = vpop.f32.mrf.mxu0
      %v431 = vadd.f32 0.0, %v430
      %v432 = vpop.f32.mrf.mxu0
      %433 = vdwg.mxu0
      %v434 = vadd.f32 %v364, %v428
      %v435 = vadd.f32 %v365, %v431
      %v436 = vld [vmem:[%s324] sm:$0xf]
      %v437 = vld [vmem:[%s324 + $0x4] sm:$0xf]
      %v438 = vld [vmem:[%s324 + $0x8] sm:$0x1]
      %s439 = scalar_lea.vmem %s341, 16
      %v440 = vld [vmem:[%s439] sm:$0xf]
      %v441 = vld [vmem:[%s439 + $0x4] sm:$0xf]
      %v442 = vld [vmem:[%s439 + $0x8] sm:$0xf]
      %v443 = vld [vmem:[%s439 + $0xc] sm:$0xf]
      %v447 = vunpack.c.l.b16 %v436
      %v448 = vunpack.c.l.b16 %v437
      %v449 = vunpack.c.l.b16 %v438
      %v450 = vpack.c.b16 %v448, %v447
      %v451 = vpack.c.b16 %v449, %v449
      %vm452 = vsmask.f32 7424
      %v454 = vshrl.u32 %v450, 16
      %v456 = vshll.u32 %v450, 16
      %v458 = vrot.slane %v456, 1
      %v459 = vor.u32 %v454, %v458
      %v461 = vshll.u32 %v451, 16
      %v463 = vrot.slane %v461, 1
      %v464 = vsel %vm452, %v459, %v463
      %v469 = vunpack.c.l.b16 %v440
      %v470 = vunpack.c.l.b16 %v441
      %v471 = vunpack.c.l.b16 %v442
      %v472 = vunpack.c.l.b16 %v443
      %v473 = vpack.c.b16 %v470, %v469
      %v474 = vpack.c.b16 %v472, %v471
      %v478 = vsel %vm389, %v464, 0
      %480 = vmatprep.subr.bf16.mxu0 0
      %481 = vmatpush1.bf16.msra.mxu0 0
      %482 = vmatprep.subr.bf16.mxu0 0
      %483 = vmatpush1.bf16.msra.mxu0 0
      %484 = vmatprep.subr.bf16.mxu0 0
      %485 = vmatpush1.bf16.msra.mxu0 0
      %486 = vmatprep.subr.bf16.mxu0 0
      %487 = vmatpush1.bf16.msra.mxu0 0
      %488 = vmatprep.subr.bf16.mxu0 0
      %489 = vmatpush1.bf16.msra.mxu0 0
      %490 = vmatprep.subr.bf16.mxu0 0
      %491 = vmatpush1.bf16.msra.mxu0 0
      %492 = vmatprep.subr.bf16.mxu0 0
      %493 = vmatpush1.bf16.msra.mxu0 %v474
      %494 = vmatprep.subr.bf16.mxu0 0
      %495 = vmatpush1.bf16.msra.mxu0 %v473
      %496 = vmatprep.subr.bf16.mxu0 0
      %497 = vmatpush2.bf16.msra.mxu0 0
      %498 = vmatprep.subr.bf16.mxu0 0
      %499 = vmatpush2.bf16.msra.mxu0 0
      %500 = vmatprep.subr.bf16.mxu0 0
      %501 = vmatpush2.bf16.msra.mxu0 0
      %502 = vmatprep.subr.bf16.mxu0 0
      %503 = vmatpush2.bf16.msra.mxu0 0
      %504 = vmatprep.subr.bf16.mxu0 0
      %505 = vmatpush2.bf16.msra.mxu0 0
      %506 = vmatprep.subr.bf16.mxu0 0
      %507 = vmatpush2.bf16.msra.mxu0 0
      %508 = vmatprep.subr.bf16.mxu0 0
      %509 = vmatpush2.bf16.msra.mxu0 0
      %510 = vmatprep.subr.bf16.mxu0 0
      %511 = vmatpush2.bf16.msra.mxu0 0
      %512 = vmatprep.mubr.bf16.mxu0 0
      %513 = vmatmul.mubr.bf16.gmra.mxu0 %v478
      %v514 = vpop.f32.mrf.mxu0
      %v515 = vadd.f32 0.0, %v514
      %v516 = vpop.f32.mrf.mxu0
      %v517 = vpop.f32.mrf.mxu0
      %v518 = vadd.f32 0.0, %v517
      %v519 = vpop.f32.mrf.mxu0
      %520 = vdwg.mxu0
      %v521 = vadd.f32 %v434, %v515
      %v522 = vadd.f32 %v435, %v518
      %v523 = vld [vmem:[%s324] sm:$0xe]
      %s524 = scalar_lea.vmem %s341, 32
      %v525 = vld [vmem:[%s524] sm:$0xf]
      %v526 = vld [vmem:[%s524 + $0x4] sm:$0xf]
      %v527 = vld [vmem:[%s524 + $0x8] sm:$0xf]
      %v528 = vld [vmem:[%s524 + $0xc] sm:$0xf]
      %v530 = vunpack.c.l.b16 %v523
      %v531 = vpack.c.b16 %v448, %v530
      %vm532 = vcmask 1046528
      %v533 = vrot.slane %v531, 1
      %v534 = vrot.slane %v451, 1
      %v535 = vsel %vm532, %v533, %v534
      %v540 = vunpack.c.l.b16 %v525
      %v541 = vunpack.c.l.b16 %v526
      %v542 = vunpack.c.l.b16 %v527
      %v543 = vunpack.c.l.b16 %v528
      %v544 = vpack.c.b16 %v541, %v540
      %v545 = vpack.c.b16 %v543, %v542
      %v549 = vsel %vm389, %v535, 0
      %551 = vmatprep.subr.bf16.mxu0 0
      %552 = vmatpush1.bf16.msra.mxu0 0
      %553 = vmatprep.subr.bf16.mxu0 0
      %554 = vmatpush1.bf16.msra.mxu0 0
      %555 = vmatprep.subr.bf16.mxu0 0
      %556 = vmatpush1.bf16.msra.mxu0 0
      %557 = vmatprep.subr.bf16.mxu0 0
      %558 = vmatpush1.bf16.msra.mxu0 0
      %559 = vmatprep.subr.bf16.mxu0 0
      %560 = vmatpush1.bf16.msra.mxu0 0
      %561 = vmatprep.subr.bf16.mxu0 0
      %562 = vmatpush1.bf16.msra.mxu0 0
      %563 = vmatprep.subr.bf16.mxu0 0
      %564 = vmatpush1.bf16.msra.mxu0 %v545
      %565 = vmatprep.subr.bf16.mxu0 0
      %566 = vmatpush1.bf16.msra.mxu0 %v544
      %567 = vmatprep.subr.bf16.mxu0 0
      %568 = vmatpush2.bf16.msra.mxu0 0
      %569 = vmatprep.subr.bf16.mxu0 0
      %570 = vmatpush2.bf16.msra.mxu0 0
      %571 = vmatprep.subr.bf16.mxu0 0
      %572 = vmatpush2.bf16.msra.mxu0 0
      %573 = vmatprep.subr.bf16.mxu0 0
      %574 = vmatpush2.bf16.msra.mxu0 0
      %575 = vmatprep.subr.bf16.mxu0 0
      %576 = vmatpush2.bf16.msra.mxu0 0
      %577 = vmatprep.subr.bf16.mxu0 0
      %578 = vmatpush2.bf16.msra.mxu0 0
      %579 = vmatprep.subr.bf16.mxu0 0
      %580 = vmatpush2.bf16.msra.mxu0 0
      %581 = vmatprep.subr.bf16.mxu0 0
      %582 = vmatpush2.bf16.msra.mxu0 0
      %583 = vmatprep.mubr.bf16.mxu0 0
      %584 = vmatmul.mubr.bf16.gmra.mxu0 %v549
      %v585 = vpop.f32.mrf.mxu0
      %v586 = vadd.f32 0.0, %v585
      %v587 = vpop.f32.mrf.mxu0
      %v588 = vpop.f32.mrf.mxu0
      %v589 = vadd.f32 0.0, %v588
      %v590 = vpop.f32.mrf.mxu0
      %591 = vdwg.mxu0
      %v592 = vadd.f32 %v521, %v586
      %v593 = vadd.f32 %v522, %v589
      %v594 = vld [vmem:[%s335] sm:$0xf]
      %v595 = vld [vmem:[%s335 + $0x4] sm:$0xf]
      %v596 = vld [vmem:[%s346] sm:$0xf]
      %v597 = vld [vmem:[%s346 + $0x4] sm:$0xf]
      %v600 = vunpack.c.l.b16 %v594
      %v601 = vunpack.c.l.b16 %v595
      %v602 = vpack.c.b16 %v601, %v600
      %v605 = vunpack.c.l.b16 %v596
      %v606 = vunpack.c.l.b16 %v597
      %v607 = vpack.c.b16 %v606, %v605
      %vm609 = vcmask 130048
      %v611 = vsel %vm609, %v602, 0
      %613 = vmatprep.subr.bf16.mxu0 0
      %614 = vmatpush1.bf16.msra.mxu0 0
      %615 = vmatprep.subr.bf16.mxu0 0
      %616 = vmatpush1.bf16.msra.mxu0 0
      %617 = vmatprep.subr.bf16.mxu0 0
      %618 = vmatpush1.bf16.msra.mxu0 0
      %619 = vmatprep.subr.bf16.mxu0 0
      %620 = vmatpush1.bf16.msra.mxu0 0
      %621 = vmatprep.subr.bf16.mxu0 0
      %622 = vmatpush1.bf16.msra.mxu0 0
      %623 = vmatprep.subr.bf16.mxu0 0
      %624 = vmatpush1.bf16.msra.mxu0 0
      %625 = vmatprep.subr.bf16.mxu0 0
      %626 = vmatpush1.bf16.msra.mxu0 0
      %627 = vmatprep.subr.bf16.mxu0 0
      %628 = vmatpush1.bf16.msra.mxu0 %v607
      %629 = vmatprep.subr.bf16.mxu0 0
      %630 = vmatpush2.bf16.msra.mxu0 0
      %631 = vmatprep.subr.bf16.mxu0 0
      %632 = vmatpush2.bf16.msra.mxu0 0
      %633 = vmatprep.subr.bf16.mxu0 0
      %634 = vmatpush2.bf16.msra.mxu0 0
      %635 = vmatprep.subr.bf16.mxu0 0
      %636 = vmatpush2.bf16.msra.mxu0 0
      %637 = vmatprep.subr.bf16.mxu0 0
      %638 = vmatpush2.bf16.msra.mxu0 0
      %639 = vmatprep.subr.bf16.mxu0 0
      %640 = vmatpush2.bf16.msra.mxu0 0
      %641 = vmatprep.subr.bf16.mxu0 0
      %642 = vmatpush2.bf16.msra.mxu0 0
      %643 = vmatprep.subr.bf16.mxu0 0
      %644 = vmatpush2.bf16.msra.mxu0 0
      %645 = vmatprep.mubr.bf16.mxu0 0
      %646 = vmatmul.mubr.bf16.gmra.mxu0 %v611
      %v647 = vpop.f32.mrf.mxu0
      %v648 = vadd.f32 0.0, %v647
      %v649 = vpop.f32.mrf.mxu0
      %v650 = vpop.f32.mrf.mxu0
      %v651 = vadd.f32 0.0, %v650
      %v652 = vpop.f32.mrf.mxu0
      %653 = vdwg.mxu0
      %v654 = vadd.f32 %v592, %v648
      %v655 = vadd.f32 %v593, %v651
      %v656 = vld [vmem:[%s335] sm:$0xf]
      %v657 = vld [vmem:[%s335 + $0x4] sm:$0xf]
      %v658 = vld [vmem:[%s335 + $0x8] sm:$0x1]
      %s659 = scalar_lea.vmem %s346, 8
      %v660 = vld [vmem:[%s659] sm:$0xf]
      %v661 = vld [vmem:[%s659 + $0x4] sm:$0xf]
      %v665 = vunpack.c.l.b16 %v656
      %v666 = vunpack.c.l.b16 %v657
      %v667 = vunpack.c.l.b16 %v658
      %v668 = vpack.c.b16 %v666, %v665
      %v669 = vpack.c.b16 %v667, %v667
      %v671 = vshrl.u32 %v668, 16
      %v673 = vshll.u32 %v668, 16
      %v675 = vrot.slane %v673, 1
      %v676 = vor.u32 %v671, %v675
      %v678 = vshll.u32 %v669, 16
      %v680 = vrot.slane %v678, 1
      %v681 = vsel %vm452, %v676, %v680
      %v684 = vunpack.c.l.b16 %v660
      %v685 = vunpack.c.l.b16 %v661
      %v686 = vpack.c.b16 %v685, %v684
      %v689 = vsel %vm609, %v681, 0
      %691 = vmatprep.subr.bf16.mxu0 0
      %692 = vmatpush1.bf16.msra.mxu0 0
      %693 = vmatprep.subr.bf16.mxu0 0
      %694 = vmatpush1.bf16.msra.mxu0 0
      %695 = vmatprep.subr.bf16.mxu0 0
      %696 = vmatpush1.bf16.msra.mxu0 0
      %697 = vmatprep.subr.bf16.mxu0 0
      %698 = vmatpush1.bf16.msra.mxu0 0
      %699 = vmatprep.subr.bf16.mxu0 0
      %700 = vmatpush1.bf16.msra.mxu0 0
      %701 = vmatprep.subr.bf16.mxu0 0
      %702 = vmatpush1.bf16.msra.mxu0 0
      %703 = vmatprep.subr.bf16.mxu0 0
      %704 = vmatpush1.bf16.msra.mxu0 0
      %705 = vmatprep.subr.bf16.mxu0 0
      %706 = vmatpush1.bf16.msra.mxu0 %v686
      %707 = vmatprep.subr.bf16.mxu0 0
      %708 = vmatpush2.bf16.msra.mxu0 0
      %709 = vmatprep.subr.bf16.mxu0 0
      %710 = vmatpush2.bf16.msra.mxu0 0
      %711 = vmatprep.subr.bf16.mxu0 0
      %712 = vmatpush2.bf16.msra.mxu0 0
      %713 = vmatprep.subr.bf16.mxu0 0
      %714 = vmatpush2.bf16.msra.mxu0 0
      %715 = vmatprep.subr.bf16.mxu0 0
      %716 = vmatpush2.bf16.msra.mxu0 0
      %717 = vmatprep.subr.bf16.mxu0 0
      %718 = vmatpush2.bf16.msra.mxu0 0
      %719 = vmatprep.subr.bf16.mxu0 0
      %720 = vmatpush2.bf16.msra.mxu0 0
      %721 = vmatprep.subr.bf16.mxu0 0
      %722 = vmatpush2.bf16.msra.mxu0 0
      %723 = vmatprep.mubr.bf16.mxu0 0
      %724 = vmatmul.mubr.bf16.gmra.mxu0 %v689
      %v725 = vpop.f32.mrf.mxu0
      %v726 = vadd.f32 0.0, %v725
      %v727 = vpop.f32.mrf.mxu0
      %v728 = vpop.f32.mrf.mxu0
      %v729 = vadd.f32 0.0, %v728
      %v730 = vpop.f32.mrf.mxu0
      %731 = vdwg.mxu0
      %v732 = vadd.f32 %v654, %v726
      %v733 = vadd.f32 %v655, %v729
      %v734 = vld [vmem:[%s335] sm:$0xe]
      %s735 = scalar_lea.vmem %s346, 16
      %v736 = vld [vmem:[%s735] sm:$0xf]
      %v737 = vld [vmem:[%s735 + $0x4] sm:$0xf]
      %v739 = vunpack.c.l.b16 %v734
      %v740 = vpack.c.b16 %v666, %v739
      %v741 = vrot.slane %v740, 1
      %v742 = vrot.slane %v669, 1
      %v743 = vsel %vm532, %v741, %v742
      %v746 = vunpack.c.l.b16 %v736
      %v747 = vunpack.c.l.b16 %v737
      %v748 = vpack.c.b16 %v747, %v746
      %v751 = vsel %vm609, %v743, 0
      %753 = vmatprep.subr.bf16.mxu0 0
      %754 = vmatpush1.bf16.msra.mxu0 0
      %755 = vmatprep.subr.bf16.mxu0 0
      %756 = vmatpush1.bf16.msra.mxu0 0
      %757 = vmatprep.subr.bf16.mxu0 0
      %758 = vmatpush1.bf16.msra.mxu0 0
      %759 = vmatprep.subr.bf16.mxu0 0
      %760 = vmatpush1.bf16.msra.mxu0 0
      %761 = vmatprep.subr.bf16.mxu0 0
      %762 = vmatpush1.bf16.msra.mxu0 0
      %763 = vmatprep.subr.bf16.mxu0 0
      %764 = vmatpush1.bf16.msra.mxu0 0
      %765 = vmatprep.subr.bf16.mxu0 0
      %766 = vmatpush1.bf16.msra.mxu0 0
      %767 = vmatprep.subr.bf16.mxu0 0
      %768 = vmatpush1.bf16.msra.mxu0 %v748
      %769 = vmatprep.subr.bf16.mxu0 0
      %770 = vmatpush2.bf16.msra.mxu0 0
      %771 = vmatprep.subr.bf16.mxu0 0
      %772 = vmatpush2.bf16.msra.mxu0 0
      %773 = vmatprep.subr.bf16.mxu0 0
      %774 = vmatpush2.bf16.msra.mxu0 0
      %775 = vmatprep.subr.bf16.mxu0 0
      %776 = vmatpush2.bf16.msra.mxu0 0
      %777 = vmatprep.subr.bf16.mxu0 0
      %778 = vmatpush2.bf16.msra.mxu0 0
      %779 = vmatprep.subr.bf16.mxu0 0
      %780 = vmatpush2.bf16.msra.mxu0 0
      %781 = vmatprep.subr.bf16.mxu0 0
      %782 = vmatpush2.bf16.msra.mxu0 0
      %783 = vmatprep.subr.bf16.mxu0 0
      %784 = vmatpush2.bf16.msra.mxu0 0
      %785 = vmatprep.mubr.bf16.mxu0 0
      %786 = vmatmul.mubr.bf16.gmra.mxu0 %v751
      %v787 = vpop.f32.mrf.mxu0
      %v788 = vadd.f32 0.0, %v787
      %v789 = vpop.f32.mrf.mxu0
      %v790 = vpop.f32.mrf.mxu0
      %v791 = vadd.f32 0.0, %v790
      %v792 = vpop.f32.mrf.mxu0
      %793 = vdwg.mxu0
      %v794 = vadd.f32 %v732, %v788
      %v795 = vadd.f32 %v733, %v791
      %796 = vst.msk [vmem:[#allocation2] sm:$0xff] %vm389, %v794
      %797 = vst.msk [vmem:[#allocation2 + $0x8] sm:$0xff] %vm389, %v795
      %p798 = scmp.eq.s32.totalorder %s23, 2
      // Predicated region
      $region45: #{deeplab_forward.17} parent=39 // pred_check
        %p799 = pneg %p798
      $region46: #{deeplab_forward.17} parent=39 // pred_check_branch
        %801 = sbr.rel (%p799) target = $region48
      $region47: #{deeplab_forward.17} parent=39 // pred_region
        %v802 = vld [vmem:[#allocation2] sm:$0xff]
        %v803 = vld [vmem:[#allocation2 + $0x8] sm:$0xff]
        %v804 = vld [vmem:[%s4] sm:$0x1]
        %v806 = vlaneseq
        %v807 = vshrl.u32 %v806, 7
        %v808 = vsub.s32 0, %v807
        %v809 = vrot.slane %v804, %v808
        %v811 = vadd.f32 %v802, %v809
        %v812 = vadd.f32 %v803, %v809
        %v813 = vmax.f32 %v811, 0.0
        %v814 = vmax.f32 %v812, 0.0
        %v815 = vpack.c.bf16 %v814, %v813
        %v817 = vunpack.c.l.b16 %v815
        %v818 = vunpack.c.h.b16 %v815
        %v819 = vpack.c.b16 %v817, %v817
        %v820 = vpack.c.b16 %v818, %v818
        %vm823 = vcmask 257024
        %824 = vst.msk [vmem:[%s355] sm:$0xf] %vm823, %v819
        %825 = vst.msk [vmem:[%s355 + $0x4] sm:$0xf] %vm823, %v820
      $region48: #{deeplab_forward.17} parent=39 // pred_fallthru
        _
      %p826 = scmp.lt.s32.totalorder %s21, 1
      %s827 = scalar_select %p826, %s21, 1
      %p828 = scmp.lt.s32.totalorder %s22, 15
      %s829 = scalar_select %p828, %s22, 15
      %s830 = smul.addr %s829, 2
      %s831 = smul.addr %s827, 32
      %s832 = sadd.s32 %s830, %s831
      %s833 = smul.addr %s832, 4
      %s834 = scalar_lea.vmem %s5, %s833
      // Predicated region
      $region49: #{deeplab_forward.17} parent=39 // pred_check
        %p835 = pneg %p188
      $region50: #{deeplab_forward.17} parent=39 // pred_check_branch
        %837 = sbr.rel (%p835) target = $region52
      $region51: #{deeplab_forward.17} parent=39 // pred_region
        _
      $region52: #{deeplab_forward.17} parent=39 // pred_fallthru
        _
    $region40: #{deeplab_forward.17} parent=5 // pred_fallthru
      _
    %p838 = scmp.le.s32.totalorder 2, %s11
    // Predicated region
    $region53: #{deeplab_forward.17} parent=5 // pred_check
      %p839 = pneg %p838
    $region54: #{deeplab_forward.17} parent=5 // pred_check_branch
      %841 = sbr.rel (%p839) target = $region56
    $region55: #{deeplab_forward.17} parent=5 // pred_region
      %s842 = ssub.s32 %s11, 2
      // Predicated region
      $region57: #{deeplab_forward.17} parent=55 // pred_check
        %p843 = pneg %p194
      $region58: #{deeplab_forward.17} parent=55 // pred_check_branch
        %845 = sbr.rel (%p843) target = $region60
      $region59: #{deeplab_forward.17} parent=55 // pred_region
        %p846 = scmp.lt.s32.totalorder %s24, 1
        %s847 = scalar_select %p846, %s24, 1
        %p848 = scmp.lt.s32.totalorder %s25, 15
        %s849 = scalar_select %p848, %s25, 15
        %s850 = smul.addr %s849, 2
        %s851 = smul.addr %s847, 32
        %s852 = sadd.s32 %s850, %s851
        %s853 = smul.addr %s852, 4
        %s854 = scalar_lea.vmem %s5, %s853
      $region60: #{deeplab_forward.17} parent=55 // pred_fallthru
        _
    $region56: #{deeplab_forward.17} parent=5 // pred_fallthru
      _
  $region6: #{deeplab_forward.17} parent=0 // loop_footer
    %s15 = sadd.s32 1, %s11
  $region7: #{deeplab_forward.17} parent=0 // loop_footer_branch
    %10 = sbr.rel target = $region3
  $region8: #{deeplab_forward.17} parent=0 // loop_exit
    _

// kernel: deeplab_forward.19
$region0: #{deeplab_forward.19}
  #allocation0 [shape = 'u32[]', space=smem, size = 0x4, offset = 0x4, fixed_abs, tag = 'smem constant byte address 0x4 - core index']
  #allocation1 [shape = 'u32[144,128]{1,0:T(1,128)}', space=vmem, size = 0x12000, scoped, tag = 'internal scratch']
  #allocation2 [shape = 'f32[256,128]{1,0:T(8,128)}', space=vmem, size = 0x20000, scoped, tag = 'scratch operand']
  %s0 = inlined_call_operand.vmem [shape: bf16[512,32], index: 0, kind: input, shape index: {}]
  %s1 = inlined_call_operand.vmem [shape: bf16[32,128], index: 1, kind: input, shape index: {}]
  %s2 = inlined_call_operand.vmem [shape: f32[1,128], index: 2, kind: input, shape index: {}]
  %s3 = inlined_call_operand.vmem [shape: f32[512,128], index: 3, kind: output, shape index: {}]
  %s4 = sld [smem:[#allocation0]]
  $region53: #{deeplab_forward.19} parent=0
    _
  %s6 = ssub.s32 1, %s4
  %s7 = scalar_select 0, %s6, %s4
  loop: start=0, step=1, limit=4
  $region2: #{deeplab_forward.19} parent=0 // loop_pre_header
    _
  $region3: #{deeplab_forward.19} parent=0 // loop_header
    %s9 = sphi 0, %s13
    %p10 = scmp.ge.s32.totalorder %s9, 4
    %s16 = sphi 0, %s35
    %s17 = sphi 0, %s31
    %s18 = sphi 0, %s27
    %s19 = sphi 0, %s16
    %s20 = sphi 0, %s17
    %s21 = sphi 0, %s18
    %s22 = sphi 0, %s19
    %s23 = sphi 0, %s20
    %s24 = sphi 0, %s21
    %s40 = sphi 0, %s42
    %s43 = sphi 0, %s40
    %s44 = sphi 0, %s43
    %s60 = sphi 0, %s44
    %s68 = sphi 0, %s70
    %s71 = sphi 0, %s68
    %s72 = sphi 0, %s71
    %s88 = sphi 0, %s72
    %s94 = sphi 0, %s96
    %s97 = sphi 0, %s94
    %s98 = sphi 0, %s97
    %s114 = sphi 0, %s98
    %s122 = sphi 0, %s124
    %s125 = sphi 0, %s122
    %s126 = sphi 0, %s125
    %s142 = sphi 0, %s126
  $region4: #{deeplab_forward.19} parent=0 // loop_header_branch
    %12 = sbr.rel (%p10) target = $region8
  $region5: #{deeplab_forward.19} parent=0 // loop_body
    %s14 = ssub.s32 %s9, 1
    %s15 = ssub.s32 %s9, 2
    %s25 = sadd.s32 1, %s18
    %p26 = scmp.ge.s32.totalorder %s25, 1
    %s27 = scalar_select %p26, 0, %s25
    %s28 = sadd.s32 1, %s17
    %s29 = scalar_select %p26, %s28, %s17
    %p30 = scmp.ge.s32.totalorder %s29, 1
    %s31 = scalar_select %p30, 0, %s29
    %s32 = sadd.s32 1, %s16
    %s33 = scalar_select %p30, %s32, %s16
    %p34 = scmp.ge.s32.totalorder %s33, 2
    %s35 = scalar_select %p34, 0, %s33
    %s36 = ssub.s32 %s16, %s35
    %s37 = ssub.s32 %s18, %s27
    %s38 = sor.u32 %s36, %s37
    %p39 = scmp.eq.s32.totalorder %s38, 0
    %s41 = sadd.s32 %s40, 1
    %s42 = scalar_select %p39, %s40, %s41
    %p45 = pneg %p39
    %p46 = scmp.eq.s32.totalorder %s9, 1
    %p47 = por %p45, %p46
    %p48 = scmp.ne.s32.totalorder %s40, %s43
    %p49 = scmp.eq.s32.totalorder %s9, 0
    %p50 = por %p48, %p49
    %p51 = scmp.ne.s32.totalorder %s40, %s43
    %p52 = scmp.eq.s32.totalorder %s14, 1
    %p53 = por %p51, %p52
    %p54 = scmp.ne.s32.totalorder %s43, %s44
    %p55 = scmp.eq.s32.totalorder %s14, 0
    %p56 = por %p54, %p55
    %p57 = scmp.ne.s32.totalorder %s43, %s44
    %p58 = scmp.eq.s32.totalorder %s15, 1
    %p59 = por %p57, %p58
    %p61 = scmp.ne.s32.totalorder %s44, %s60
    %p62 = scmp.eq.s32.totalorder %s15, 0
    %p63 = por %p61, %p62
    %s64 = ssub.s32 %s18, %s27
    %s65 = ssub.s32 %s17, %s31
    %s66 = sor.u32 %s64, %s65
    %p67 = scmp.eq.s32.totalorder %s66, 0
    %s69 = sadd.s32 %s68, 1
    %s70 = scalar_select %p67, %s68, %s69
    %p73 = pneg %p67
    %p74 = scmp.eq.s32.totalorder %s9, 1
    %p75 = por %p73, %p74
    %p76 = scmp.ne.s32.totalorder %s68, %s71
    %p77 = scmp.eq.s32.totalorder %s9, 0
    %p78 = por %p76, %p77
    %p79 = scmp.ne.s32.totalorder %s68, %s71
    %p80 = scmp.eq.s32.totalorder %s14, 1
    %p81 = por %p79, %p80
    %p82 = scmp.ne.s32.totalorder %s71, %s72
    %p83 = scmp.eq.s32.totalorder %s14, 0
    %p84 = por %p82, %p83
    %p85 = scmp.ne.s32.totalorder %s71, %s72
    %p86 = scmp.eq.s32.totalorder %s15, 1
    %p87 = por %p85, %p86
    %p89 = scmp.ne.s32.totalorder %s72, %s88
    %p90 = scmp.eq.s32.totalorder %s15, 0
    %p91 = por %p89, %p90
    %s92 = ssub.s32 %s17, %s31
    %p93 = scmp.eq.s32.totalorder %s92, 0
    %s95 = sadd.s32 %s94, 1
    %s96 = scalar_select %p93, %s94, %s95
    %p99 = pneg %p93
    %p100 = scmp.eq.s32.totalorder %s9, 1
    %p101 = por %p99, %p100
    %p102 = scmp.ne.s32.totalorder %s94, %s97
    %p103 = scmp.eq.s32.totalorder %s9, 0
    %p104 = por %p102, %p103
    %p105 = scmp.ne.s32.totalorder %s94, %s97
    %p106 = scmp.eq.s32.totalorder %s14, 1
    %p107 = por %p105, %p106
    %p108 = scmp.ne.s32.totalorder %s97, %s98
    %p109 = scmp.eq.s32.totalorder %s14, 0
    %p110 = por %p108, %p109
    %p111 = scmp.ne.s32.totalorder %s97, %s98
    %p112 = scmp.eq.s32.totalorder %s15, 1
    %p113 = por %p111, %p112
    %p115 = scmp.ne.s32.totalorder %s98, %s114
    %p116 = scmp.eq.s32.totalorder %s15, 0
    %p117 = por %p115, %p116
    %s118 = ssub.s32 %s16, %s35
    %s119 = ssub.s32 %s17, %s31
    %s120 = sor.u32 %s118, %s119
    %p121 = scmp.eq.s32.totalorder %s120, 0
    %s123 = sadd.s32 %s122, 1
    %s124 = scalar_select %p121, %s122, %s123
    %p127 = pneg %p121
    %p128 = scmp.eq.s32.totalorder %s9, 1
    %p129 = por %p127, %p128
    %p130 = scmp.ne.s32.totalorder %s122, %s125
    %p131 = scmp.eq.s32.totalorder %s9, 0
    %p132 = por %p130, %p131
    %p133 = scmp.ne.s32.totalorder %s122, %s125
    %p134 = scmp.eq.s32.totalorder %s14, 1
    %p135 = por %p133, %p134
    %p136 = scmp.ne.s32.totalorder %s125, %s126
    %p137 = scmp.eq.s32.totalorder %s14, 0
    %p138 = por %p136, %p137
    %p139 = scmp.ne.s32.totalorder %s125, %s126
    %p140 = scmp.eq.s32.totalorder %s15, 1
    %p141 = por %p139, %p140
    %p143 = scmp.ne.s32.totalorder %s126, %s142
    %p144 = scmp.eq.s32.totalorder %s15, 0
    %p145 = por %p143, %p144
    %p146 = scmp.le.s32.totalorder 1, %s9
    %p147 = scmp.lt.s32.totalorder %s9, 3
    %p148 = pnand %p146, %p147
    %p149 = pneg %p148
    // Predicated region
    $region9: #{deeplab_forward.19} parent=5 // pred_check
      _
    $region10: #{deeplab_forward.19} parent=5 // pred_check_branch
      %151 = sbr.rel (%p148) target = $region12
    $region11: #{deeplab_forward.19} parent=5 // pred_region
      %s152 = ssub.s32 %s9, 1
      // Predicated region
      $region13: #{deeplab_forward.19} parent=11 // pred_check
        %p153 = pneg %p84
      $region14: #{deeplab_forward.19} parent=11 // pred_check_branch
        %155 = sbr.rel (%p153) target = $region16
      $region15: #{deeplab_forward.19} parent=11 // pred_region
        %s156 = smul.u32 4, %s21
        %p157 = scmp.lt.s32.totalorder %s156, 3
        %s158 = scalar_select %p157, %s156, 3
        %p159 = scmp.lt.s32.totalorder %s20, 0
        %s160 = scalar_select %p159, %s20, 0
        %s161 = sadd.s32 %s160, %s158
        %s162 = smul.addr %s161, 4
        %s163 = scalar_lea.vmem %s1, %s162
        %s164 = smul.u32 4, %s21
      $region16: #{deeplab_forward.19} parent=11 // pred_fallthru
        _
      // Predicated region
      $region17: #{deeplab_forward.19} parent=11 // pred_check
        %p165 = pneg %p110
      $region18: #{deeplab_forward.19} parent=11 // pred_check_branch
        %167 = sbr.rel (%p165) target = $region20
      $region19: #{deeplab_forward.19} parent=11 // pred_region
        %p168 = scmp.lt.s32.totalorder %s20, 0
        %s169 = scalar_select %p168, %s20, 0
        %s170 = scalar_lea.vmem %s2, %s169
      $region20: #{deeplab_forward.19} parent=11 // pred_fallthru
        _
    $region12: #{deeplab_forward.19} parent=5 // pred_fallthru
      _
    %p171 = scmp.lt.s32.totalorder %s9, 2
    // Predicated region
    $region21: #{deeplab_forward.19} parent=5 // pred_check
      %p172 = pneg %p171
    $region22: #{deeplab_forward.19} parent=5 // pred_check_branch
      %174 = sbr.rel (%p172) target = $region24
    $region23: #{deeplab_forward.19} parent=5 // pred_region
      // Predicated region
      $region25: #{deeplab_forward.19} parent=23 // pred_check
        %p175 = pneg %p50
      $region26: #{deeplab_forward.19} parent=23 // pred_check_branch
        %177 = sbr.rel (%p175) target = $region28
      $region27: #{deeplab_forward.19} parent=23 // pred_region
        %s178 = smul.u32 32, %s16
        %p179 = scmp.lt.s32.totalorder %s178, 63
        %s180 = scalar_select %p179, %s178, 63
        %p181 = scmp.lt.s32.totalorder %s18, 0
        %s182 = scalar_select %p181, %s18, 0
        %s183 = sadd.s32 %s182, %s180
        %s184 = smul.addr %s183, 4
        %s185 = scalar_lea.vmem %s0, %s184
        %s186 = smul.u32 32, %s16
      $region28: #{deeplab_forward.19} parent=23 // pred_fallthru
        _
    $region24: #{deeplab_forward.19} parent=5 // pred_fallthru
      _
    %p187 = scmp.le.s32.totalorder 1, %s9
    %p188 = scmp.lt.s32.totalorder %s9, 3
    %p189 = pnand %p187, %p188
    %p190 = pneg %p189
    // Predicated region
    $region29: #{deeplab_forward.19} parent=5 // pred_check
      _
    $region30: #{deeplab_forward.19} parent=5 // pred_check_branch
      %192 = sbr.rel (%p189) target = $region32
    $region31: #{deeplab_forward.19} parent=5 // pred_region
      %s193 = ssub.s32 %s9, 1
      %s194 = smul.u32 32, %s19
      %p195 = scmp.lt.s32.totalorder %s194, 63
      %s196 = scalar_select %p195, %s194, 63
      %p197 = scmp.lt.s32.totalorder %s21, 0
      %s198 = scalar_select %p197, %s21, 0
      %s199 = sadd.s32 %s198, %s196
      %s200 = smul.addr %s199, 4
      %s201 = scalar_lea.vmem %s0, %s200
      %p202 = pneg %p56
      %p203 = pneg %p53
      %s204 = smul.u32 4, %s21
      %p205 = scmp.lt.s32.totalorder %s204, 3
      %s206 = scalar_select %p205, %s204, 3
      %p207 = scmp.lt.s32.totalorder %s20, 0
      %s208 = scalar_select %p207, %s20, 0
      %s209 = sadd.s32 %s208, %s206
      %s210 = smul.addr %s209, 4
      %s211 = scalar_lea.vmem %s1, %s210
      %p212 = pneg %p84
      %p213 = pneg %p81
      %p214 = scmp.lt.s32.totalorder %s20, 0
      %s215 = scalar_select %p214, %s20, 0
      %s216 = scalar_lea.vmem %s2, %s215
      %p217 = pneg %p110
      %p218 = pneg %p107
      %p219 = pneg %p138
      %p220 = pneg %p135
      %s221 = smul.u32 32, %s19
      %p222 = scmp.lt.s32.totalorder %s221, 63
      %s223 = scalar_select %p222, %s221, 63
      %p224 = scmp.lt.s32.totalorder %s20, 0
      %s225 = scalar_select %p224, %s20, 0
      %s226 = sadd.s32 %s225, %s223
      %s227 = smul.addr %s226, 8
      %s228 = scalar_lea.vmem %s3, %s227
      %s229 = smul.u32 32, %s19
      %p230 = scmp.lt.s32.totalorder %s229, 63
      %s231 = scalar_select %p230, %s229, 63
      %p232 = scmp.lt.s32.totalorder %s21, 0
      %s233 = scalar_select %p232, %s21, 0
      %s234 = sadd.s32 %s233, %s231
      %s235 = smul.addr %s234, 4
      %s236 = scalar_lea.vmem %s0, %s235
      %s237 = smul.u32 32, %s19
      %s238 = smul.u32 4, %s21
      %p239 = scmp.lt.s32.totalorder %s238, 3
      %s240 = scalar_select %p239, %s238, 3
      %p241 = scmp.lt.s32.totalorder %s20, 0
      %s242 = scalar_select %p241, %s20, 0
      %s243 = sadd.s32 %s242, %s240
      %s244 = smul.addr %s243, 4
      %s245 = scalar_lea.vmem %s1, %s244
      %s246 = smul.u32 4, %s21
      %p247 = scmp.lt.s32.totalorder %s20, 0
      %s248 = scalar_select %p247, %s20, 0
      %s249 = scalar_lea.vmem %s2, %s248
      %s250 = smul.u32 32, %s19
      %p251 = scmp.lt.s32.totalorder %s250, 63
      %s252 = scalar_select %p251, %s250, 63
      %p253 = scmp.lt.s32.totalorder %s20, 0
      %s254 = scalar_select %p253, %s20, 0
      %s255 = sadd.s32 %s254, %s252
      %s256 = smul.addr %s255, 8
      %s257 = scalar_lea.vmem %s3, %s256
      %s258 = smul.u32 32, %s19
      %p260 = scmp.eq.s32.totalorder %s21, 0
      // Predicated region
      $region33: #{deeplab_forward.19} parent=31 // pred_check
        %p261 = pneg %p260
      $region34: #{deeplab_forward.19} parent=31 // pred_check_branch
        %263 = sbr.rel (%p261) target = $region36
      $region35: #{deeplab_forward.19} parent=31 // pred_region
        %264 = vst [vmem:[#allocation2] sm:$0xff] 0.0
        %265 = vst [vmem:[#allocation2 + $0x8] sm:$0xff] 0.0
        %266 = vst [vmem:[#allocation2 + $0x10] sm:$0xff] 0.0
        %267 = vst [vmem:[#allocation2 + $0x18] sm:$0xff] 0.0
        %268 = vst [vmem:[#allocation2 + $0x20] sm:$0xff] 0.0
        %269 = vst [vmem:[#allocation2 + $0x28] sm:$0xff] 0.0
        %270 = vst [vmem:[#allocation2 + $0x30] sm:$0xff] 0.0
        %271 = vst [vmem:[#allocation2 + $0x38] sm:$0xff] 0.0
        %272 = vst [vmem:[#allocation2 + $0x40] sm:$0xff] 0.0
        %273 = vst [vmem:[#allocation2 + $0x48] sm:$0xff] 0.0
        %274 = vst [vmem:[#allocation2 + $0x50] sm:$0xff] 0.0
        %275 = vst [vmem:[#allocation2 + $0x58] sm:$0xff] 0.0
        %276 = vst [vmem:[#allocation2 + $0x60] sm:$0xff] 0.0
        %277 = vst [vmem:[#allocation2 + $0x68] sm:$0xff] 0.0
        %278 = vst [vmem:[#allocation2 + $0x70] sm:$0xff] 0.0
        %279 = vst [vmem:[#allocation2 + $0x78] sm:$0xff] 0.0
        %280 = vst [vmem:[#allocation2 + $0x80] sm:$0xff] 0.0
        %281 = vst [vmem:[#allocation2 + $0x88] sm:$0xff] 0.0
        %282 = vst [vmem:[#allocation2 + $0x90] sm:$0xff] 0.0
        %283 = vst [vmem:[#allocation2 + $0x98] sm:$0xff] 0.0
        %284 = vst [vmem:[#allocation2 + $0xa0] sm:$0xff] 0.0
        %285 = vst [vmem:[#allocation2 + $0xa8] sm:$0xff] 0.0
        %286 = vst [vmem:[#allocation2 + $0xb0] sm:$0xff] 0.0
        %287 = vst [vmem:[#allocation2 + $0xb8] sm:$0xff] 0.0
        %288 = vst [vmem:[#allocation2 + $0xc0] sm:$0xff] 0.0
        %289 = vst [vmem:[#allocation2 + $0xc8] sm:$0xff] 0.0
        %290 = vst [vmem:[#allocation2 + $0xd0] sm:$0xff] 0.0
        %291 = vst [vmem:[#allocation2 + $0xd8] sm:$0xff] 0.0
        %292 = vst [vmem:[#allocation2 + $0xe0] sm:$0xff] 0.0
        %293 = vst [vmem:[#allocation2 + $0xe8] sm:$0xff] 0.0
        %294 = vst [vmem:[#allocation2 + $0xf0] sm:$0xff] 0.0
        %295 = vst [vmem:[#allocation2 + $0xf8] sm:$0xff] 0.0
      $region36: #{deeplab_forward.19} parent=31 // pred_fallthru
        _
      %v296 = vld [vmem:[#allocation2] sm:$0xff]
      %v297 = vld [vmem:[#allocation2 + $0x8] sm:$0xff]
      %v298 = vld [vmem:[#allocation2 + $0x10] sm:$0xff]
      %v299 = vld [vmem:[#allocation2 + $0x18] sm:$0xff]
      %v300 = vld [vmem:[#allocation2 + $0x20] sm:$0xff]
      %v301 = vld [vmem:[#allocation2 + $0x28] sm:$0xff]
      %v302 = vld [vmem:[#allocation2 + $0x30] sm:$0xff]
      %v303 = vld [vmem:[#allocation2 + $0x38] sm:$0xff]
      %v304 = vld [vmem:[#allocation2 + $0x40] sm:$0xff]
      %v305 = vld [vmem:[#allocation2 + $0x48] sm:$0xff]
      %v306 = vld [vmem:[#allocation2 + $0x50] sm:$0xff]
      %v307 = vld [vmem:[#allocation2 + $0x58] sm:$0xff]
      %v308 = vld [vmem:[#allocation2 + $0x60] sm:$0xff]
      %v309 = vld [vmem:[#allocation2 + $0x68] sm:$0xff]
      %v310 = vld [vmem:[#allocation2 + $0x70] sm:$0xff]
      %v311 = vld [vmem:[#allocation2 + $0x78] sm:$0xff]
      %v312 = vld [vmem:[#allocation2 + $0x80] sm:$0xff]
      %v313 = vld [vmem:[#allocation2 + $0x88] sm:$0xff]
      %v314 = vld [vmem:[#allocation2 + $0x90] sm:$0xff]
      %v315 = vld [vmem:[#allocation2 + $0x98] sm:$0xff]
      %v316 = vld [vmem:[#allocation2 + $0xa0] sm:$0xff]
      %v317 = vld [vmem:[#allocation2 + $0xa8] sm:$0xff]
      %v318 = vld [vmem:[#allocation2 + $0xb0] sm:$0xff]
      %v319 = vld [vmem:[#allocation2 + $0xb8] sm:$0xff]
      %v320 = vld [vmem:[#allocation2 + $0xc0] sm:$0xff]
      %v321 = vld [vmem:[#allocation2 + $0xc8] sm:$0xff]
      %v322 = vld [vmem:[#allocation2 + $0xd0] sm:$0xff]
      %v323 = vld [vmem:[#allocation2 + $0xd8] sm:$0xff]
      %v324 = vld [vmem:[#allocation2 + $0xe0] sm:$0xff]
      %v325 = vld [vmem:[#allocation2 + $0xe8] sm:$0xff]
      %v326 = vld [vmem:[#allocation2 + $0xf0] sm:$0xff]
      %v327 = vld [vmem:[#allocation2 + $0xf8] sm:$0xff]
      %v328 = vld [vmem:[%s236] sm:$0xf]
      %v329 = vld [vmem:[%s236 + $0x4] sm:$0xf]
      %v330 = vld [vmem:[%s236 + $0x8] sm:$0xf]
      %v331 = vld [vmem:[%s236 + $0xc] sm:$0xf]
      %v332 = vld [vmem:[%s236 + $0x10] sm:$0xf]
      %v333 = vld [vmem:[%s236 + $0x14] sm:$0xf]
      %v334 = vld [vmem:[%s236 + $0x18] sm:$0xf]
      %v335 = vld [vmem:[%s236 + $0x1c] sm:$0xf]
      %v336 = vld [vmem:[%s236 + $0x20] sm:$0xf]
      %v337 = vld [vmem:[%s236 + $0x24] sm:$0xf]
      %v338 = vld [vmem:[%s236 + $0x28] sm:$0xf]
      %v339 = vld [vmem:[%s236 + $0x2c] sm:$0xf]
      %v340 = vld [vmem:[%s236 + $0x30] sm:$0xf]
      %v341 = vld [vmem:[%s236 + $0x34] sm:$0xf]
      %v342 = vld [vmem:[%s236 + $0x38] sm:$0xf]
      %v343 = vld [vmem:[%s236 + $0x3c] sm:$0xf]
      %v344 = vld [vmem:[%s236 + $0x40] sm:$0xf]
      %v345 = vld [vmem:[%s236 + $0x44] sm:$0xf]
      %v346 = vld [vmem:[%s236 + $0x48] sm:$0xf]
      %v347 = vld [vmem:[%s236 + $0x4c] sm:$0xf]
      %v348 = vld [vmem:[%s236 + $0x50] sm:$0xf]
      %v349 = vld [vmem:[%s236 + $0x54] sm:$0xf]
      %v350 = vld [vmem:[%s236 + $0x58] sm:$0xf]
      %v351 = vld [vmem:[%s236 + $0x5c] sm:$0xf]
      %v352 = vld [vmem:[%s236 + $0x60] sm:$0xf]
      %v353 = vld [vmem:[%s236 + $0x64] sm:$0xf]
      %v354 = vld [vmem:[%s236 + $0x68] sm:$0xf]
      %v355 = vld [vmem:[%s236 + $0x6c] sm:$0xf]
      %v356 = vld [vmem:[%s236 + $0x70] sm:$0xf]
      %v357 = vld [vmem:[%s236 + $0x74] sm:$0xf]
      %v358 = vld [vmem:[%s236 + $0x78] sm:$0xf]
      %v359 = vld [vmem:[%s236 + $0x7c] sm:$0xf]
      %v360 = vld [vmem:[%s245] sm:$0xf]
      %v361 = vld [vmem:[%s245 + $0x4] sm:$0xf]
      %v362 = vld [vmem:[%s245 + $0x8] sm:$0xf]
      %v363 = vld [vmem:[%s245 + $0xc] sm:$0xf]
      %v396 = vunpack.c.l.b16 %v328
      %v397 = vunpack.c.l.b16 %v329
      %v398 = vunpack.c.l.b16 %v330
      %v399 = vunpack.c.l.b16 %v331
      %v400 = vunpack.c.l.b16 %v332
      %v401 = vunpack.c.l.b16 %v333
      %v402 = vunpack.c.l.b16 %v334
      %v403 = vunpack.c.l.b16 %v335
      %v404 = vunpack.c.l.b16 %v336
      %v405 = vunpack.c.l.b16 %v337
      %v406 = vunpack.c.l.b16 %v338
      %v407 = vunpack.c.l.b16 %v339
      %v408 = vunpack.c.l.b16 %v340
      %v409 = vunpack.c.l.b16 %v341
      %v410 = vunpack.c.l.b16 %v342
      %v411 = vunpack.c.l.b16 %v343
      %v412 = vunpack.c.l.b16 %v344
      %v413 = vunpack.c.l.b16 %v345
      %v414 = vunpack.c.l.b16 %v346
      %v415 = vunpack.c.l.b16 %v347
      %v416 = vunpack.c.l.b16 %v348
      %v417 = vunpack.c.l.b16 %v349
      %v418 = vunpack.c.l.b16 %v350
      %v419 = vunpack.c.l.b16 %v351
      %v420 = vunpack.c.l.b16 %v352
      %v421 = vunpack.c.l.b16 %v353
      %v422 = vunpack.c.l.b16 %v354
      %v423 = vunpack.c.l.b16 %v355
      %v424 = vunpack.c.l.b16 %v356
      %v425 = vunpack.c.l.b16 %v357
      %v426 = vunpack.c.l.b16 %v358
      %v427 = vunpack.c.l.b16 %v359
      %v428 = vpack.c.b16 %v397, %v396
      %v429 = vpack.c.b16 %v399, %v398
      %v430 = vpack.c.b16 %v401, %v400
      %v431 = vpack.c.b16 %v403, %v402
      %v432 = vpack.c.b16 %v405, %v404
      %v433 = vpack.c.b16 %v407, %v406
      %v434 = vpack.c.b16 %v409, %v408
      %v435 = vpack.c.b16 %v411, %v410
      %v436 = vpack.c.b16 %v413, %v412
      %v437 = vpack.c.b16 %v415, %v414
      %v438 = vpack.c.b16 %v417, %v416
      %v439 = vpack.c.b16 %v419, %v418
      %v440 = vpack.c.b16 %v421, %v420
      %v441 = vpack.c.b16 %v423, %v422
      %v442 = vpack.c.b16 %v425, %v424
      %v443 = vpack.c.b16 %v427, %v426
      %v448 = vunpack.c.l.b16 %v360
      %v449 = vunpack.c.l.b16 %v361
      %v450 = vunpack.c.l.b16 %v362
      %v451 = vunpack.c.l.b16 %v363
      %v452 = vpack.c.b16 %v449, %v448
      %v453 = vpack.c.b16 %v451, %v450
      %vm456 = vcmask 261120
      %v458 = vsel %vm456, %v428, 0
      %v461 = vsel %vm456, %v429, 0
      %v464 = vsel %vm456, %v430, 0
      %v467 = vsel %vm456, %v431, 0
      %v470 = vsel %vm456, %v432, 0
      %v473 = vsel %vm456, %v433, 0
      %v476 = vsel %vm456, %v434, 0
      %v479 = vsel %vm456, %v435, 0
      %v482 = vsel %vm456, %v436, 0
      %v485 = vsel %vm456, %v437, 0
      %v488 = vsel %vm456, %v438, 0
      %v491 = vsel %vm456, %v439, 0
      %v494 = vsel %vm456, %v440, 0
      %v497 = vsel %vm456, %v441, 0
      %v500 = vsel %vm456, %v442, 0
      %v503 = vsel %vm456, %v443, 0
      %505 = vmatprep.subr.bf16.mxu0 0
      %506 = vmatpush1.bf16.msra.mxu0 0
      %507 = vmatprep.subr.bf16.mxu0 0
      %508 = vmatpush1.bf16.msra.mxu0 0
      %509 = vmatprep.subr.bf16.mxu0 0
      %510 = vmatpush1.bf16.msra.mxu0 0
      %511 = vmatprep.subr.bf16.mxu0 0
      %512 = vmatpush1.bf16.msra.mxu0 0
      %513 = vmatprep.subr.bf16.mxu0 0
      %514 = vmatpush1.bf16.msra.mxu0 0
      %515 = vmatprep.subr.bf16.mxu0 0
      %516 = vmatpush1.bf16.msra.mxu0 0
      %517 = vmatprep.subr.bf16.mxu0 0
      %518 = vmatpush1.bf16.msra.mxu0 %v453
      %519 = vmatprep.subr.bf16.mxu0 0
      %520 = vmatpush1.bf16.msra.mxu0 %v452
      %521 = vmatprep.subr.bf16.mxu0 0
      %522 = vmatpush2.bf16.msra.mxu0 0
      %523 = vmatprep.subr.bf16.mxu0 0
      %524 = vmatpush2.bf16.msra.mxu0 0
      %525 = vmatprep.subr.bf16.mxu0 0
      %526 = vmatpush2.bf16.msra.mxu0 0
      %527 = vmatprep.subr.bf16.mxu0 0
      %528 = vmatpush2.bf16.msra.mxu0 0
      %529 = vmatprep.subr.bf16.mxu0 0
      %530 = vmatpush2.bf16.msra.mxu0 0
      %531 = vmatprep.subr.bf16.mxu0 0
      %532 = vmatpush2.bf16.msra.mxu0 0
      %533 = vmatprep.subr.bf16.mxu0 0
      %534 = vmatpush2.bf16.msra.mxu0 0
      %535 = vmatprep.subr.bf16.mxu0 0
      %536 = vmatpush2.bf16.msra.mxu0 0
      %537 = vmatprep.mubr.bf16.mxu0 0
      %538 = vmatmul.mubr.bf16.gmra.mxu0 %v458
      %v539 = vpop.f32.mrf.mxu0
      %v540 = vadd.f32 0.0, %v539
      %v541 = vpop.f32.mrf.mxu0
      %v542 = vpop.f32.mrf.mxu0
      %v543 = vadd.f32 0.0, %v542
      %v544 = vpop.f32.mrf.mxu0
      %545 = vmatprep.mubr.bf16.mxu0 0
      %546 = vmatmul.mubr.bf16.gmra.mxu0 %v461
      %v547 = vpop.f32.mrf.mxu0
      %v548 = vadd.f32 0.0, %v547
      %v549 = vpop.f32.mrf.mxu0
      %v550 = vpop.f32.mrf.mxu0
      %v551 = vadd.f32 0.0, %v550
      %v552 = vpop.f32.mrf.mxu0
      %553 = vmatprep.mubr.bf16.mxu0 0
      %554 = vmatmul.mubr.bf16.gmra.mxu0 %v464
      %v555 = vpop.f32.mrf.mxu0
      %v556 = vadd.f32 0.0, %v555
      %v557 = vpop.f32.mrf.mxu0
      %v558 = vpop.f32.mrf.mxu0
      %v559 = vadd.f32 0.0, %v558
      %v560 = vpop.f32.mrf.mxu0
      %561 = vmatprep.mubr.bf16.mxu0 0
      %562 = vmatmul.mubr.bf16.gmra.mxu0 %v467
      %v563 = vpop.f32.mrf.mxu0
      %v564 = vadd.f32 0.0, %v563
      %v565 = vpop.f32.mrf.mxu0
      %v566 = vpop.f32.mrf.mxu0
      %v567 = vadd.f32 0.0, %v566
      %v568 = vpop.f32.mrf.mxu0
      %569 = vmatprep.mubr.bf16.mxu0 0
      %570 = vmatmul.mubr.bf16.gmra.mxu0 %v470
      %v571 = vpop.f32.mrf.mxu0
      %v572 = vadd.f32 0.0, %v571
      %v573 = vpop.f32.mrf.mxu0
      %v574 = vpop.f32.mrf.mxu0
      %v575 = vadd.f32 0.0, %v574
      %v576 = vpop.f32.mrf.mxu0
      %577 = vmatprep.mubr.bf16.mxu0 0
      %578 = vmatmul.mubr.bf16.gmra.mxu0 %v473
      %v579 = vpop.f32.mrf.mxu0
      %v580 = vadd.f32 0.0, %v579
      %v581 = vpop.f32.mrf.mxu0
      %v582 = vpop.f32.mrf.mxu0
      %v583 = vadd.f32 0.0, %v582
      %v584 = vpop.f32.mrf.mxu0
      %585 = vmatprep.mubr.bf16.mxu0 0
      %586 = vmatmul.mubr.bf16.gmra.mxu0 %v476
      %v587 = vpop.f32.mrf.mxu0
      %v588 = vadd.f32 0.0, %v587
      %v589 = vpop.f32.mrf.mxu0
      %v590 = vpop.f32.mrf.mxu0
      %v591 = vadd.f32 0.0, %v590
      %v592 = vpop.f32.mrf.mxu0
      %593 = vmatprep.mubr.bf16.mxu0 0
      %594 = vmatmul.mubr.bf16.gmra.mxu0 %v479
      %v595 = vpop.f32.mrf.mxu0
      %v596 = vadd.f32 0.0, %v595
      %v597 = vpop.f32.mrf.mxu0
      %v598 = vpop.f32.mrf.mxu0
      %v599 = vadd.f32 0.0, %v598
      %v600 = vpop.f32.mrf.mxu0
      %601 = vmatprep.mubr.bf16.mxu0 0
      %602 = vmatmul.mubr.bf16.gmra.mxu0 %v482
      %v603 = vpop.f32.mrf.mxu0
      %v604 = vadd.f32 0.0, %v603
      %v605 = vpop.f32.mrf.mxu0
      %v606 = vpop.f32.mrf.mxu0
      %v607 = vadd.f32 0.0, %v606
      %v608 = vpop.f32.mrf.mxu0
      %609 = vmatprep.mubr.bf16.mxu0 0
      %610 = vmatmul.mubr.bf16.gmra.mxu0 %v485
      %v611 = vpop.f32.mrf.mxu0
      %v612 = vadd.f32 0.0, %v611
      %v613 = vpop.f32.mrf.mxu0
      %v614 = vpop.f32.mrf.mxu0
      %v615 = vadd.f32 0.0, %v614
      %v616 = vpop.f32.mrf.mxu0
      %617 = vmatprep.mubr.bf16.mxu0 0
      %618 = vmatmul.mubr.bf16.gmra.mxu0 %v488
      %v619 = vpop.f32.mrf.mxu0
      %v620 = vadd.f32 0.0, %v619
      %v621 = vpop.f32.mrf.mxu0
      %v622 = vpop.f32.mrf.mxu0
      %v623 = vadd.f32 0.0, %v622
      %v624 = vpop.f32.mrf.mxu0
      %625 = vmatprep.mubr.bf16.mxu0 0
      %626 = vmatmul.mubr.bf16.gmra.mxu0 %v491
      %v627 = vpop.f32.mrf.mxu0
      %v628 = vadd.f32 0.0, %v627
      %v629 = vpop.f32.mrf.mxu0
      %v630 = vpop.f32.mrf.mxu0
      %v631 = vadd.f32 0.0, %v630
      %v632 = vpop.f32.mrf.mxu0
      %633 = vmatprep.mubr.bf16.mxu0 0
      %634 = vmatmul.mubr.bf16.gmra.mxu0 %v494
      %v635 = vpop.f32.mrf.mxu0
      %v636 = vadd.f32 0.0, %v635
      %v637 = vpop.f32.mrf.mxu0
      %v638 = vpop.f32.mrf.mxu0
      %v639 = vadd.f32 0.0, %v638
      %v640 = vpop.f32.mrf.mxu0
      %641 = vmatprep.mubr.bf16.mxu0 0
      %642 = vmatmul.mubr.bf16.gmra.mxu0 %v497
      %v643 = vpop.f32.mrf.mxu0
      %v644 = vadd.f32 0.0, %v643
      %v645 = vpop.f32.mrf.mxu0
      %v646 = vpop.f32.mrf.mxu0
      %v647 = vadd.f32 0.0, %v646
      %v648 = vpop.f32.mrf.mxu0
      %649 = vmatprep.mubr.bf16.mxu0 0
      %650 = vmatmul.mubr.bf16.gmra.mxu0 %v500
      %v651 = vpop.f32.mrf.mxu0
      %v652 = vadd.f32 0.0, %v651
      %v653 = vpop.f32.mrf.mxu0
      %v654 = vpop.f32.mrf.mxu0
      %v655 = vadd.f32 0.0, %v654
      %v656 = vpop.f32.mrf.mxu0
      %657 = vmatprep.mubr.bf16.mxu0 0
      %658 = vmatmul.mubr.bf16.gmra.mxu0 %v503
      %v659 = vpop.f32.mrf.mxu0
      %v660 = vadd.f32 0.0, %v659
      %v661 = vpop.f32.mrf.mxu0
      %v662 = vpop.f32.mrf.mxu0
      %v663 = vadd.f32 0.0, %v662
      %v664 = vpop.f32.mrf.mxu0
      %665 = vdwg.mxu0
      %v666 = vadd.f32 %v296, %v540
      %v667 = vadd.f32 %v297, %v543
      %v668 = vadd.f32 %v298, %v548
      %v669 = vadd.f32 %v299, %v551
      %v670 = vadd.f32 %v300, %v556
      %v671 = vadd.f32 %v301, %v559
      %v672 = vadd.f32 %v302, %v564
      %v673 = vadd.f32 %v303, %v567
      %v674 = vadd.f32 %v304, %v572
      %v675 = vadd.f32 %v305, %v575
      %v676 = vadd.f32 %v306, %v580
      %v677 = vadd.f32 %v307, %v583
      %v678 = vadd.f32 %v308, %v588
      %v679 = vadd.f32 %v309, %v591
      %v680 = vadd.f32 %v310, %v596
      %v681 = vadd.f32 %v311, %v599
      %v682 = vadd.f32 %v312, %v604
      %v683 = vadd.f32 %v313, %v607
      %v684 = vadd.f32 %v314, %v612
      %v685 = vadd.f32 %v315, %v615
      %v686 = vadd.f32 %v316, %v620
      %v687 = vadd.f32 %v317, %v623
      %v688 = vadd.f32 %v318, %v628
      %v689 = vadd.f32 %v319, %v631
      %v690 = vadd.f32 %v320, %v636
      %v691 = vadd.f32 %v321, %v639
      %v692 = vadd.f32 %v322, %v644
      %v693 = vadd.f32 %v323, %v647
      %v694 = vadd.f32 %v324, %v652
      %v695 = vadd.f32 %v325, %v655
      %v696 = vadd.f32 %v326, %v660
      %v697 = vadd.f32 %v327, %v663
      %698 = vst [vmem:[#allocation2] sm:$0xff] %v666
      %699 = vst [vmem:[#allocation2 + $0x8] sm:$0xff] %v667
      %700 = vst [vmem:[#allocation2 + $0x10] sm:$0xff] %v668
      %701 = vst [vmem:[#allocation2 + $0x18] sm:$0xff] %v669
      %702 = vst [vmem:[#allocation2 + $0x20] sm:$0xff] %v670
      %703 = vst [vmem:[#allocation2 + $0x28] sm:$0xff] %v671
      %704 = vst [vmem:[#allocation2 + $0x30] sm:$0xff] %v672
      %705 = vst [vmem:[#allocation2 + $0x38] sm:$0xff] %v673
      %706 = vst [vmem:[#allocation2 + $0x40] sm:$0xff] %v674
      %707 = vst [vmem:[#allocation2 + $0x48] sm:$0xff] %v675
      %708 = vst [vmem:[#allocation2 + $0x50] sm:$0xff] %v676
      %709 = vst [vmem:[#allocation2 + $0x58] sm:$0xff] %v677
      %710 = vst [vmem:[#allocation2 + $0x60] sm:$0xff] %v678
      %711 = vst [vmem:[#allocation2 + $0x68] sm:$0xff] %v679
      %712 = vst [vmem:[#allocation2 + $0x70] sm:$0xff] %v680
      %713 = vst [vmem:[#allocation2 + $0x78] sm:$0xff] %v681
      %714 = vst [vmem:[#allocation2 + $0x80] sm:$0xff] %v682
      %715 = vst [vmem:[#allocation2 + $0x88] sm:$0xff] %v683
      %716 = vst [vmem:[#allocation2 + $0x90] sm:$0xff] %v684
      %717 = vst [vmem:[#allocation2 + $0x98] sm:$0xff] %v685
      %718 = vst [vmem:[#allocation2 + $0xa0] sm:$0xff] %v686
      %719 = vst [vmem:[#allocation2 + $0xa8] sm:$0xff] %v687
      %720 = vst [vmem:[#allocation2 + $0xb0] sm:$0xff] %v688
      %721 = vst [vmem:[#allocation2 + $0xb8] sm:$0xff] %v689
      %722 = vst [vmem:[#allocation2 + $0xc0] sm:$0xff] %v690
      %723 = vst [vmem:[#allocation2 + $0xc8] sm:$0xff] %v691
      %724 = vst [vmem:[#allocation2 + $0xd0] sm:$0xff] %v692
      %725 = vst [vmem:[#allocation2 + $0xd8] sm:$0xff] %v693
      %726 = vst [vmem:[#allocation2 + $0xe0] sm:$0xff] %v694
      %727 = vst [vmem:[#allocation2 + $0xe8] sm:$0xff] %v695
      %728 = vst [vmem:[#allocation2 + $0xf0] sm:$0xff] %v696
      %729 = vst [vmem:[#allocation2 + $0xf8] sm:$0xff] %v697
      // Predicated region
      $region37: #{deeplab_forward.19} parent=31 // pred_check
        %p730 = pneg %p260
      $region38: #{deeplab_forward.19} parent=31 // pred_check_branch
        %732 = sbr.rel (%p730) target = $region40
      $region39: #{deeplab_forward.19} parent=31 // pred_region
        %v733 = vld [vmem:[#allocation2] sm:$0xff]
        %v734 = vld [vmem:[#allocation2 + $0x8] sm:$0xff]
        %v735 = vld [vmem:[#allocation2 + $0x10] sm:$0xff]
        %v736 = vld [vmem:[#allocation2 + $0x18] sm:$0xff]
        %v737 = vld [vmem:[#allocation2 + $0x20] sm:$0xff]
        %v738 = vld [vmem:[#allocation2 + $0x28] sm:$0xff]
        %v739 = vld [vmem:[#allocation2 + $0x30] sm:$0xff]
        %v740 = vld [vmem:[#allocation2 + $0x38] sm:$0xff]
        %v741 = vld [vmem:[#allocation2 + $0x40] sm:$0xff]
        %v742 = vld [vmem:[#allocation2 + $0x48] sm:$0xff]
        %v743 = vld [vmem:[#allocation2 + $0x50] sm:$0xff]
        %v744 = vld [vmem:[#allocation2 + $0x58] sm:$0xff]
        %v745 = vld [vmem:[#allocation2 + $0x60] sm:$0xff]
        %v746 = vld [vmem:[#allocation2 + $0x68] sm:$0xff]
        %v747 = vld [vmem:[#allocation2 + $0x70] sm:$0xff]
        %v748 = vld [vmem:[#allocation2 + $0x78] sm:$0xff]
        %v749 = vld [vmem:[#allocation2 + $0x80] sm:$0xff]
        %v750 = vld [vmem:[#allocation2 + $0x88] sm:$0xff]
        %v751 = vld [vmem:[#allocation2 + $0x90] sm:$0xff]
        %v752 = vld [vmem:[#allocation2 + $0x98] sm:$0xff]
        %v753 = vld [vmem:[#allocation2 + $0xa0] sm:$0xff]
        %v754 = vld [vmem:[#allocation2 + $0xa8] sm:$0xff]
        %v755 = vld [vmem:[#allocation2 + $0xb0] sm:$0xff]
        %v756 = vld [vmem:[#allocation2 + $0xb8] sm:$0xff]
        %v757 = vld [vmem:[#allocation2 + $0xc0] sm:$0xff]
        %v758 = vld [vmem:[#allocation2 + $0xc8] sm:$0xff]
        %v759 = vld [vmem:[#allocation2 + $0xd0] sm:$0xff]
        %v760 = vld [vmem:[#allocation2 + $0xd8] sm:$0xff]
        %v761 = vld [vmem:[#allocation2 + $0xe0] sm:$0xff]
        %v762 = vld [vmem:[#allocation2 + $0xe8] sm:$0xff]
        %v763 = vld [vmem:[#allocation2 + $0xf0] sm:$0xff]
        %v764 = vld [vmem:[#allocation2 + $0xf8] sm:$0xff]
        %v765 = vld [vmem:[%s249] sm:$0x1]
        %v767 = vlaneseq
        %v768 = vshrl.u32 %v767, 7
        %v769 = vsub.s32 0, %v768
        %v770 = vrot.slane %v765, %v769
        %v772 = vadd.f32 %v733, %v770
        %v773 = vadd.f32 %v734, %v770
        %v774 = vadd.f32 %v735, %v770
        %v775 = vadd.f32 %v736, %v770
        %v776 = vadd.f32 %v737, %v770
        %v777 = vadd.f32 %v738, %v770
        %v778 = vadd.f32 %v739, %v770
        %v779 = vadd.f32 %v740, %v770
        %v780 = vadd.f32 %v741, %v770
        %v781 = vadd.f32 %v742, %v770
        %v782 = vadd.f32 %v743, %v770
        %v783 = vadd.f32 %v744, %v770
        %v784 = vadd.f32 %v745, %v770
        %v785 = vadd.f32 %v746, %v770
        %v786 = vadd.f32 %v747, %v770
        %v787 = vadd.f32 %v748, %v770
        %v788 = vadd.f32 %v749, %v770
        %v789 = vadd.f32 %v750, %v770
        %v790 = vadd.f32 %v751, %v770
        %v791 = vadd.f32 %v752, %v770
        %v792 = vadd.f32 %v753, %v770
        %v793 = vadd.f32 %v754, %v770
        %v794 = vadd.f32 %v755, %v770
        %v795 = vadd.f32 %v756, %v770
        %v796 = vadd.f32 %v757, %v770
        %v797 = vadd.f32 %v758, %v770
        %v798 = vadd.f32 %v759, %v770
        %v799 = vadd.f32 %v760, %v770
        %v800 = vadd.f32 %v761, %v770
        %v801 = vadd.f32 %v762, %v770
        %v802 = vadd.f32 %v763, %v770
        %v803 = vadd.f32 %v764, %v770
        %804 = vst [vmem:[%s257] sm:$0xff] %v772
        %805 = vst [vmem:[%s257 + $0x8] sm:$0xff] %v773
        %806 = vst [vmem:[%s257 + $0x10] sm:$0xff] %v774
        %807 = vst [vmem:[%s257 + $0x18] sm:$0xff] %v775
        %808 = vst [vmem:[%s257 + $0x20] sm:$0xff] %v776
        %809 = vst [vmem:[%s257 + $0x28] sm:$0xff] %v777
        %810 = vst [vmem:[%s257 + $0x30] sm:$0xff] %v778
        %811 = vst [vmem:[%s257 + $0x38] sm:$0xff] %v779
        %812 = vst [vmem:[%s257 + $0x40] sm:$0xff] %v780
        %813 = vst [vmem:[%s257 + $0x48] sm:$0xff] %v781
        %814 = vst [vmem:[%s257 + $0x50] sm:$0xff] %v782
        %815 = vst [vmem:[%s257 + $0x58] sm:$0xff] %v783
        %816 = vst [vmem:[%s257 + $0x60] sm:$0xff] %v784
        %817 = vst [vmem:[%s257 + $0x68] sm:$0xff] %v785
        %818 = vst [vmem:[%s257 + $0x70] sm:$0xff] %v786
        %819 = vst [vmem:[%s257 + $0x78] sm:$0xff] %v787
        %820 = vst [vmem:[%s257 + $0x80] sm:$0xff] %v788
        %821 = vst [vmem:[%s257 + $0x88] sm:$0xff] %v789
        %822 = vst [vmem:[%s257 + $0x90] sm:$0xff] %v790
        %823 = vst [vmem:[%s257 + $0x98] sm:$0xff] %v791
        %824 = vst [vmem:[%s257 + $0xa0] sm:$0xff] %v792
        %825 = vst [vmem:[%s257 + $0xa8] sm:$0xff] %v793
        %826 = vst [vmem:[%s257 + $0xb0] sm:$0xff] %v794
        %827 = vst [vmem:[%s257 + $0xb8] sm:$0xff] %v795
        %828 = vst [vmem:[%s257 + $0xc0] sm:$0xff] %v796
        %829 = vst [vmem:[%s257 + $0xc8] sm:$0xff] %v797
        %830 = vst [vmem:[%s257 + $0xd0] sm:$0xff] %v798
        %831 = vst [vmem:[%s257 + $0xd8] sm:$0xff] %v799
        %832 = vst [vmem:[%s257 + $0xe0] sm:$0xff] %v800
        %833 = vst [vmem:[%s257 + $0xe8] sm:$0xff] %v801
        %834 = vst [vmem:[%s257 + $0xf0] sm:$0xff] %v802
        %835 = vst [vmem:[%s257 + $0xf8] sm:$0xff] %v803
      $region40: #{deeplab_forward.19} parent=31 // pred_fallthru
        _
      %s836 = smul.u32 32, %s19
      %p837 = scmp.lt.s32.totalorder %s836, 63
      %s838 = scalar_select %p837, %s836, 63
      %p839 = scmp.lt.s32.totalorder %s20, 0
      %s840 = scalar_select %p839, %s20, 0
      %s841 = sadd.s32 %s840, %s838
      %s842 = smul.addr %s841, 8
      %s843 = scalar_lea.vmem %s3, %s842
      // Predicated region
      $region41: #{deeplab_forward.19} parent=31 // pred_check
        %p844 = pneg %p135
      $region42: #{deeplab_forward.19} parent=31 // pred_check_branch
        %846 = sbr.rel (%p844) target = $region44
      $region43: #{deeplab_forward.19} parent=31 // pred_region
        %s847 = smul.u32 32, %s19
      $region44: #{deeplab_forward.19} parent=31 // pred_fallthru
        _
    $region32: #{deeplab_forward.19} parent=5 // pred_fallthru
      _
    %p848 = scmp.le.s32.totalorder 2, %s9
    // Predicated region
    $region45: #{deeplab_forward.19} parent=5 // pred_check
      %p849 = pneg %p848
    $region46: #{deeplab_forward.19} parent=5 // pred_check_branch
      %851 = sbr.rel (%p849) target = $region48
    $region47: #{deeplab_forward.19} parent=5 // pred_region
      %s852 = ssub.s32 %s9, 2
      // Predicated region
      $region49: #{deeplab_forward.19} parent=47 // pred_check
        %p853 = pneg %p141
      $region50: #{deeplab_forward.19} parent=47 // pred_check_branch
        %855 = sbr.rel (%p853) target = $region52
      $region51: #{deeplab_forward.19} parent=47 // pred_region
        %s856 = smul.u32 32, %s22
        %p857 = scmp.lt.s32.totalorder %s856, 63
        %s858 = scalar_select %p857, %s856, 63
        %p859 = scmp.lt.s32.totalorder %s23, 0
        %s860 = scalar_select %p859, %s23, 0
        %s861 = sadd.s32 %s860, %s858
        %s862 = smul.addr %s861, 8
        %s863 = scalar_lea.vmem %s3, %s862
      $region52: #{deeplab_forward.19} parent=47 // pred_fallthru
        _
    $region48: #{deeplab_forward.19} parent=5 // pred_fallthru
      _
  $region6: #{deeplab_forward.19} parent=0 // loop_footer
    %s13 = sadd.s32 1, %s9
  $region7: #{deeplab_forward.19} parent=0 // loop_footer_branch
    %8 = sbr.rel target = $region3
  $region8: #{deeplab_forward.19} parent=0 // loop_exit
    _

</llo_original>
